<compile_context>
chip_gen: v5e
topology: v5e:2x2
jax: 0.10.0
libtpu: 0.0.40
codegen_flags: <defaults>
</compile_context>

<pallas_src>
import jax
import jax.numpy as jnp
from jax import lax
from jax.experimental import pallas as pl
from jax.experimental.pallas import tpu as pltpu


def _round_up(x, m):
    return ((x + m - 1) // m) * m


def _make_kernel(B, H, W, C, Cout, Wp, L, P_pad, LM):
    """Builds the fused BasicBlock kernel for fixed static shapes."""

    def kernel(xf_ref, w1_ref, b1_ref, w2_ref, b2_ref, o_ref, col_ref, mid_ref):
        # ---- conv1: im2col (K-stack the 9 taps) + ONE MXU matmul ------------
        # Each tap is a contiguous sublane slice of the flat padded rows.
        for dy in range(3):
            for dx in range(3):
                t = dy * 3 + dx
                col_ref[:, t * C:(t + 1) * C] = xf_ref[pl.ds(dy * Wp + dx, LM), :]
        acc1 = jnp.dot(col_ref[...], w1_ref[...],
                       preferred_element_type=jnp.float32)      # (LM, Cout) f32

        # ---- validity mask, generated in-kernel (no HBM mask stream) --------
        # r -> (image slab index, row-in-slab q, column-in-padded-row c) via
        # exact float floor-division (avoids vector integer div/mod).
        r = lax.broadcasted_iota(jnp.int32, (LM, 1), 0).astype(jnp.float32)
        img = jnp.floor((r + 0.5) / float(P_pad))
        q = r - img * float(P_pad)                     # row within the image slab
        row = jnp.floor((q + 0.5) / float(Wp))
        c = q - row * float(Wp)                        # column within padded row
        valid = jnp.logical_and(c < (W - 0.5), q < (L - 0.5))
        mask = jnp.where(valid, 1.0, 0.0)              # (LM, 1) f32

        # bn1 shift + relu; masked so over-compute columns / inter-image rows
        # become the zero border of the conv2 input.
        y1 = jnp.maximum(acc1 + b1_ref[...], 0.0) * mask

        # ---- stage the zero-bordered conv2 input in VMEM --------------------
        # Only two tiny explicit zero strips are needed (first image top border,
        # last image bottom border); everything else is covered by the masked
        # y1 store.  Rows [P+2, P_pad) of each slab are never read.
        zstrip = jnp.zeros((Wp + 1, Cout), mid_ref.dtype)
        mid_ref[pl.ds(0, Wp + 1), :] = zstrip
        mid_ref[pl.ds((B - 1) * P_pad + (H + 1) * Wp + 1, Wp + 1), :] = zstrip
        mid_ref[pl.ds(Wp + 1, LM), :] = y1.astype(mid_ref.dtype)

        # ---- conv2: im2col + ONE MXU matmul ---------------------------------
        for dy in range(3):
            for dx in range(3):
                t = dy * 3 + dx
                col_ref[:, t * Cout:(t + 1) * Cout] = mid_ref[pl.ds(dy * Wp + dx, LM), :]
        acc2 = jnp.dot(col_ref[...], w2_ref[...],
                       preferred_element_type=jnp.float32)      # (LM, Cout) f32

        # ---- identity shortcut (center tap re-sliced here; short live range)
        center = xf_ref[pl.ds(Wp + 1, LM), :].astype(jnp.float32)
        o_ref[pl.ds(0, LM), :] = jnp.maximum(acc2 + b2_ref[...] + center,
                                             0.0).astype(o_ref.dtype)
        # Hygiene: the trailing never-read rows of the output block.
        o_ref[pl.ds(LM, B * P_pad - LM), :] = jnp.zeros(
            (B * P_pad - LM, Cout), o_ref.dtype)

    return kernel


def basic_block_forward(x_nchw, params, dtype=jnp.bfloat16, images_per_step=None):
    """Fused BasicBlock forward. x_nchw: (N, C, H, W). Returns (N, C, H, W)."""
    w1, s1, b1, w2, s2, b2 = params
    N, C, H, W = x_nchw.shape
    Cout = w1.shape[-1]
    if C != Cout:
        raise NotImplementedError("identity shortcut requires Cin == Cout")

    Wp = W + 2                        # padded row width
    P = (H + 2) * Wp                  # flat rows of one padded image
    L = H * Wp                        # valid virtual output rows per image
    P_pad = _round_up(P + 2, 8)       # per-image slab (taps read up to P+1)
    assert P_pad >= P + 2

    itemsize = jnp.dtype(dtype).itemsize
    if images_per_step is None:       # keep the per-step working set ~<= 8 MB
        per_img = P_pad * (3 * C + 9 * C + Cout + 3 * Cout) * itemsize
        images_per_step = int(max(1, min(N, (8 * 1024 * 1024) // max(per_img, 1))))
    B = max(1, int(images_per_step))
    G = -(-N // B)
    N_pad = G * B
    LM = (B - 1) * P_pad + L          # matmul M rows per grid step

    # ---- parameter prep: fold BN scale into the conv weights (exact) -------
    w1f = (w1 * s1.reshape(1, 1, 1, Cout)).reshape(9 * C, Cout).astype(dtype)
    w2f = (w2 * s2.reshape(1, 1, 1, Cout)).reshape(9 * Cout, Cout).astype(dtype)
    b1v = b1.reshape(1, Cout).astype(jnp.float32)
    b2v = b2.reshape(1, Cout).astype(jnp.float32)

    # ---- input prep: NCHW -> NHWC -> flat padded rows, one slab per image --
    x = jnp.transpose(x_nchw, (0, 2, 3, 1)).astype(dtype)
    if N_pad > N:
        x = jnp.pad(x, ((0, N_pad - N), (0, 0), (0, 0), (0, 0)))
    xp = jnp.pad(x, ((0, 0), (1, 1), (1, 1), (0, 0)))
    xflat = jnp.pad(xp.reshape(N_pad, P, C), ((0, 0), (0, P_pad - P), (0, 0)))
    xflat = xflat.reshape(N_pad * P_pad, C)

    kernel = _make_kernel(B, H, W, C, Cout, Wp, L, P_pad, LM)

    out_flat = pl.pallas_call(
        kernel,
        out_shape=jax.ShapeDtypeStruct((N_pad * P_pad, Cout), dtype),
        grid_spec=pltpu.PrefetchScalarGridSpec(
            num_scalar_prefetch=0,
            grid=(G,),                                      # B images per step
            in_specs=[
                pl.BlockSpec((B * P_pad, C), lambda g: (g, 0)),
                pl.BlockSpec((9 * C, Cout), lambda g: (0, 0)),
                pl.BlockSpec((1, Cout), lambda g: (0, 0)),
                pl.BlockSpec((9 * Cout, Cout), lambda g: (0, 0)),
                pl.BlockSpec((1, Cout), lambda g: (0, 0)),
            ],
            out_specs=pl.BlockSpec((B * P_pad, Cout), lambda g: (g, 0)),
            scratch_shapes=[
                pltpu.VMEM((LM, 9 * C), dtype),             # shared im2col buf
                pltpu.VMEM((B * P_pad, Cout), dtype),       # zero-bordered mid
            ],
        ),
        compiler_params=pltpu.CompilerParams(
            dimension_semantics=("parallel",),              # megacore batch split
            vmem_limit_bytes=64 * 1024 * 1024),
    )(xflat, w1f, b1v, w2f, b2v)

    # Drop padded images, garbage rows and over-compute columns; back to NCHW.
    out = out_flat.reshape(N_pad, P_pad, Cout)[:N, :L, :]
    out = out.reshape(N, H, Wp, Cout)[:, :, :W, :]
    return jnp.transpose(out, (0, 3, 1, 2)).astype(x_nchw.dtype)


def init_params(key, in_planes, out_planes, eps=1e-5):
    """Deterministic synthetic parameters matching BasicBlock's shapes."""
    ks = jax.random.split(key, 10)
    w1 = 0.1 * jax.random.normal(ks[0], (3, 3, in_planes, out_planes), jnp.float32)
    w2 = 0.1 * jax.random.normal(ks[1], (3, 3, out_planes, out_planes), jnp.float32)

    def bn(kg, kb, km, kv):
        gamma = 1.0 + 0.1 * jax.random.normal(kg, (out_planes,), jnp.float32)
        beta = 0.1 * jax.random.normal(kb, (out_planes,), jnp.float32)
        mean = 0.05 * jax.random.normal(km, (out_planes,), jnp.float32)
        var = jnp.abs(jax.random.normal(kv, (out_planes,), jnp.float32)) + 0.5
        scale = gamma / jnp.sqrt(var + eps)
        shift = beta - mean * scale
        return scale.reshape(1, out_planes), shift.reshape(1, out_planes)

    s1, b1 = bn(ks[2], ks[3], ks[4], ks[5])
    s2, b2 = bn(ks[6], ks[7], ks[8], ks[9])
    return (w1, s1, b1, w2, s2, b2)


def ref_forward_nchw(x_nchw, params):
    """Pure-JAX reference (NHWC conv via lax) for correctness checking."""
    w1, s1, b1, w2, s2, b2 = params
    x = jnp.transpose(x_nchw, (0, 2, 3, 1))
    dn = ("NHWC", "HWIO", "NHWC")
    pad = ((1, 1), (1, 1))
    y = lax.conv_general_dilated(x, w1, (1, 1), pad, dimension_numbers=dn)
    y = jnp.maximum(y * s1 + b1, 0.0)
    y = lax.conv_general_dilated(y, w2, (1, 1), pad, dimension_numbers=dn)
    y = jnp.maximum(y * s2 + b2 + x, 0.0)
    return jnp.transpose(y, (0, 3, 1, 2))


if __name__ == "__main__":
    N, C, H, W = 2, 8, 16, 16          # in_planes = out_planes = 8, stride = 1
    key = jax.random.PRNGKey(0)
    kx, kp = jax.random.split(key)
    x = jax.random.normal(kx, (N, C, H, W), jnp.float32)
    params = init_params(kp, C, C)

    ref = jax.block_until_ready(ref_forward_nchw(x, params))

    # f32 storage path (tight check), batched fold: both images in one step.
    out_f32 = jax.block_until_ready(
        basic_block_forward(x, params, dtype=jnp.float32))
    assert out_f32.shape == (N, C, H, W)
    err_f32 = float(jnp.max(jnp.abs(out_f32 - ref)))
    assert err_f32 < 1e-3, f"f32 max abs err {err_f32}"

    # f32 storage path with one image per grid step (exercises grid=(N,)).
    out_f32_b1 = jax.block_until_ready(
        basic_block_forward(x, params, dtype=jnp.float32, images_per_step=1))
    err_b1 = float(jnp.max(jnp.abs(out_f32_b1 - ref)))
    assert err_b1 < 1e-3, f"f32 (B=1) max abs err {err_b1}"

    # Default bf16 storage / f32 MXU accumulation path (loose check vs f32 ref).
    out_bf16 = jax.block_until_ready(basic_block_forward(x, params))
    err_bf16 = float(jnp.max(jnp.abs(out_bf16 - ref)))
    assert err_bf16 < 0.3, f"bf16 max abs err {err_bf16}"

    print("KERNEL_OK")
</pallas_src>

<mosaic_0001>
module attributes {stable_mosaic.version = 11 : i64} {
  func.func @kernel(%arg0: i32, %arg1: memref<656x8xf32, #tpu.memory_space<vmem>>, %arg2: memref<72x8xf32, #tpu.memory_space<vmem>>, %arg3: memref<1x8xf32, #tpu.memory_space<vmem>>, %arg4: memref<72x8xf32, #tpu.memory_space<vmem>>, %arg5: memref<1x8xf32, #tpu.memory_space<vmem>>, %arg6: memref<656x8xf32, #tpu.memory_space<vmem>>, %arg7: memref<616x72xf32, #tpu.memory_space<vmem>>, %arg8: memref<656x8xf32, #tpu.memory_space<vmem>>) attributes {dimension_semantics = [#tpu.dimension_semantics<parallel>], iteration_bounds = array<i64: 1>, scalar_prefetch = 0 : i64, scratch_operands = 2 : i64, tpu.core_type = #tpu.core_type<tc>, window_params = [{transform_indices = @transform_0, window_bounds = array<i64: 656, 8>}, {pipeline_mode = #tpu.pipeline_mode<synchronous>, transform_indices = @transform_1, window_bounds = array<i64: 72, 8>}, {pipeline_mode = #tpu.pipeline_mode<synchronous>, transform_indices = @transform_2, window_bounds = array<i64: 1, 8>}, {pipeline_mode = #tpu.pipeline_mode<synchronous>, transform_indices = @transform_3, window_bounds = array<i64: 72, 8>}, {pipeline_mode = #tpu.pipeline_mode<synchronous>, transform_indices = @transform_4, window_bounds = array<i64: 1, 8>}, {transform_indices = @transform_5, window_bounds = array<i64: 656, 8>}]} {
    %c0 = arith.constant 0 : index
    %c0_0 = arith.constant 0 : index
    %0 = vector.load %arg1[%c0, %c0_0] : memref<656x8xf32, #tpu.memory_space<vmem>>, vector<616x8xf32>
    %c0_1 = arith.constant 0 : index
    %c0_2 = arith.constant 0 : index
    %1 = vector.load %arg7[%c0_1, %c0_2] : memref<616x72xf32, #tpu.memory_space<vmem>>, vector<616x8xf32>
    tpu.vector_store %arg7[%c0_1, %c0_2], %0 {strides = array<i32>} : memref<616x72xf32, #tpu.memory_space<vmem>>, vector<616x8xf32>,
    %c1 = arith.constant 1 : index
    %c0_3 = arith.constant 0 : index
    %2 = vector.load %arg1[%c1, %c0_3] : memref<656x8xf32, #tpu.memory_space<vmem>>, vector<616x8xf32>
    %c0_4 = arith.constant 0 : index
    %c8 = arith.constant 8 : index
    %3 = vector.load %arg7[%c0_4, %c8] : memref<616x72xf32, #tpu.memory_space<vmem>>, vector<616x8xf32>
    tpu.vector_store %arg7[%c0_4, %c8], %2 {strides = array<i32>} : memref<616x72xf32, #tpu.memory_space<vmem>>, vector<616x8xf32>,
    %c2 = arith.constant 2 : index
    %c0_5 = arith.constant 0 : index
    %4 = vector.load %arg1[%c2, %c0_5] : memref<656x8xf32, #tpu.memory_space<vmem>>, vector<616x8xf32>
    %c0_6 = arith.constant 0 : index
    %c16 = arith.constant 16 : index
    %5 = vector.load %arg7[%c0_6, %c16] : memref<616x72xf32, #tpu.memory_space<vmem>>, vector<616x8xf32>
    tpu.vector_store %arg7[%c0_6, %c16], %4 {strides = array<i32>} : memref<616x72xf32, #tpu.memory_space<vmem>>, vector<616x8xf32>,
    %c18 = arith.constant 18 : index
    %c0_7 = arith.constant 0 : index
    %6 = vector.load %arg1[%c18, %c0_7] : memref<656x8xf32, #tpu.memory_space<vmem>>, vector<616x8xf32>
    %c0_8 = arith.constant 0 : index
    %c24 = arith.constant 24 : index
    %7 = vector.load %arg7[%c0_8, %c24] : memref<616x72xf32, #tpu.memory_space<vmem>>, vector<616x8xf32>
    tpu.vector_store %arg7[%c0_8, %c24], %6 {strides = array<i32>} : memref<616x72xf32, #tpu.memory_space<vmem>>, vector<616x8xf32>,
    %c19 = arith.constant 19 : index
    %c0_9 = arith.constant 0 : index
    %8 = vector.load %arg1[%c19, %c0_9] : memref<656x8xf32, #tpu.memory_space<vmem>>, vector<616x8xf32>
    %c0_10 = arith.constant 0 : index
    %c32 = arith.constant 32 : index
    %9 = vector.load %arg7[%c0_10, %c32] : memref<616x72xf32, #tpu.memory_space<vmem>>, vector<616x8xf32>
    tpu.vector_store %arg7[%c0_10, %c32], %8 {strides = array<i32>} : memref<616x72xf32, #tpu.memory_space<vmem>>, vector<616x8xf32>,
    %c20 = arith.constant 20 : index
    %c0_11 = arith.constant 0 : index
    %10 = vector.load %arg1[%c20, %c0_11] : memref<656x8xf32, #tpu.memory_space<vmem>>, vector<616x8xf32>
    %c0_12 = arith.constant 0 : index
    %c40 = arith.constant 40 : index
    %11 = vector.load %arg7[%c0_12, %c40] : memref<616x72xf32, #tpu.memory_space<vmem>>, vector<616x8xf32>
    tpu.vector_store %arg7[%c0_12, %c40], %10 {strides = array<i32>} : memref<616x72xf32, #tpu.memory_space<vmem>>, vector<616x8xf32>,
    %c36 = arith.constant 36 : index
    %c0_13 = arith.constant 0 : index
    %12 = vector.load %arg1[%c36, %c0_13] : memref<656x8xf32, #tpu.memory_space<vmem>>, vector<616x8xf32>
    %c0_14 = arith.constant 0 : index
    %c48 = arith.constant 48 : index
    %13 = vector.load %arg7[%c0_14, %c48] : memref<616x72xf32, #tpu.memory_space<vmem>>, vector<616x8xf32>
    tpu.vector_store %arg7[%c0_14, %c48], %12 {strides = array<i32>} : memref<616x72xf32, #tpu.memory_space<vmem>>, vector<616x8xf32>,
    %c37 = arith.constant 37 : index
    %c0_15 = arith.constant 0 : index
    %14 = vector.load %arg1[%c37, %c0_15] : memref<656x8xf32, #tpu.memory_space<vmem>>, vector<616x8xf32>
    %c0_16 = arith.constant 0 : index
    %c56 = arith.constant 56 : index
    %15 = vector.load %arg7[%c0_16, %c56] : memref<616x72xf32, #tpu.memory_space<vmem>>, vector<616x8xf32>
    tpu.vector_store %arg7[%c0_16, %c56], %14 {strides = array<i32>} : memref<616x72xf32, #tpu.memory_space<vmem>>, vector<616x8xf32>,
    %c38 = arith.constant 38 : index
    %c0_17 = arith.constant 0 : index
    %16 = vector.load %arg1[%c38, %c0_17] : memref<656x8xf32, #tpu.memory_space<vmem>>, vector<616x8xf32>
    %c0_18 = arith.constant 0 : index
    %c64 = arith.constant 64 : index
    %17 = vector.load %arg7[%c0_18, %c64] : memref<616x72xf32, #tpu.memory_space<vmem>>, vector<616x8xf32>
    tpu.vector_store %arg7[%c0_18, %c64], %16 {strides = array<i32>} : memref<616x72xf32, #tpu.memory_space<vmem>>, vector<616x8xf32>,
    %c0_19 = arith.constant 0 : index
    %c0_20 = arith.constant 0 : index
    %18 = vector.load %arg7[%c0_19, %c0_20] : memref<616x72xf32, #tpu.memory_space<vmem>>, vector<616x72xf32>
    %c0_21 = arith.constant 0 : index
    %c0_22 = arith.constant 0 : index
    %19 = vector.load %arg2[%c0_21, %c0_22] : memref<72x8xf32, #tpu.memory_space<vmem>>, vector<72x8xf32>
    %cst = arith.constant dense<0.000000e+00> : vector<616x8xf32>
    %20 = tpu.matmul %18, %19, %cst {dimension_numbers = #tpu.dot_dimension_numbers<[1], [0], [0], [1], [0, 0, 1, 1], [], []>} : vector<616x72xf32>, vector<72x8xf32>, vector<616x8xf32> -> vector<616x8xf32>
    %21 = tpu.iota {dimensions = array<i32: 0>} : vector<616x1xi32>
    %22 = arith.sitofp %21 : vector<616x1xi32> to vector<616x1xf32>
    %cst_23 = arith.constant 5.000000e-01 : f32
    %23 = vector.broadcast %cst_23 : f32 to vector<616x1xf32>
    %24 = arith.addf %22, %23 : vector<616x1xf32>
    %cst_24 = arith.constant 3.280000e+02 : f32
    %25 = vector.broadcast %cst_24 : f32 to vector<616x1xf32>
    %26 = arith.divf %24, %25 : vector<616x1xf32>
    %27 = math.floor %26 : vector<616x1xf32>
    %cst_25 = arith.constant 3.280000e+02 : f32
    %28 = vector.broadcast %cst_25 : f32 to vector<616x1xf32>
    %29 = arith.mulf %27, %28 : vector<616x1xf32>
    %30 = arith.subf %22, %29 : vector<616x1xf32>
    %cst_26 = arith.constant 5.000000e-01 : f32
    %31 = vector.broadcast %cst_26 : f32 to vector<616x1xf32>
    %32 = arith.addf %30, %31 : vector<616x1xf32>
    %cst_27 = arith.constant 1.800000e+01 : f32
    %33 = vector.broadcast %cst_27 : f32 to vector<616x1xf32>
    %34 = arith.divf %32, %33 : vector<616x1xf32>
    %35 = math.floor %34 : vector<616x1xf32>
    %cst_28 = arith.constant 1.800000e+01 : f32
    %36 = vector.broadcast %cst_28 : f32 to vector<616x1xf32>
    %37 = arith.mulf %35, %36 : vector<616x1xf32>
    %38 = arith.subf %30, %37 : vector<616x1xf32>
    %cst_29 = arith.constant 1.550000e+01 : f32
    %39 = vector.broadcast %cst_29 : f32 to vector<616x1xf32>
    %40 = arith.cmpf olt, %38, %39 : vector<616x1xf32>
    %cst_30 = arith.constant 2.875000e+02 : f32
    %41 = vector.broadcast %cst_30 : f32 to vector<616x1xf32>
    %42 = arith.cmpf olt, %30, %41 : vector<616x1xf32>
    %43 = arith.andi %40, %42 : vector<616x1xi1>
    %cst_31 = arith.constant 1.000000e+00 : f32
    %cst_32 = arith.constant 0.000000e+00 : f32
    %44 = vector.broadcast %cst_31 : f32 to vector<616x1xf32>
    %45 = vector.broadcast %cst_32 : f32 to vector<616x1xf32>
    %46 = arith.select %43, %44, %45 : vector<616x1xi1>, vector<616x1xf32>
    %c0_33 = arith.constant 0 : index
    %c0_34 = arith.constant 0 : index
    %47 = vector.load %arg3[%c0_33, %c0_34] : memref<1x8xf32, #tpu.memory_space<vmem>>, vector<1x8xf32>
    %48 = vector.broadcast %47 : vector<1x8xf32> to vector<616x8xf32>
    %49 = arith.addf %20, %48 : vector<616x8xf32>
    %cst_35 = arith.constant 0.000000e+00 : f32
    %50 = vector.broadcast %cst_35 : f32 to vector<616x8xf32>
    %51 = arith.maximumf %49, %50 : vector<616x8xf32>
    %52 = vector.broadcast %46 : vector<616x1xf32> to vector<616x8xf32>
    %53 = arith.mulf %51, %52 : vector<616x8xf32>
    %cst_36 = arith.constant 0.000000e+00 : f32
    %54 = vector.broadcast %cst_36 : f32 to vector<19x8xf32>
    %c0_37 = arith.constant 0 : index
    %c0_38 = arith.constant 0 : index
    %55 = vector.load %arg8[%c0_37, %c0_38] : memref<656x8xf32, #tpu.memory_space<vmem>>, vector<19x8xf32>
    tpu.vector_store %arg8[%c0_37, %c0_38], %54 {strides = array<i32>} : memref<656x8xf32, #tpu.memory_space<vmem>>, vector<19x8xf32>,
    %c635 = arith.constant 635 : index
    %c0_39 = arith.constant 0 : index
    %56 = vector.load %arg8[%c635, %c0_39] : memref<656x8xf32, #tpu.memory_space<vmem>>, vector<19x8xf32>
    tpu.vector_store %arg8[%c635, %c0_39], %54 {strides = array<i32>} : memref<656x8xf32, #tpu.memory_space<vmem>>, vector<19x8xf32>,
    %c19_40 = arith.constant 19 : index
    %c0_41 = arith.constant 0 : index
    %57 = vector.load %arg8[%c19_40, %c0_41] : memref<656x8xf32, #tpu.memory_space<vmem>>, vector<616x8xf32>
    tpu.vector_store %arg8[%c19_40, %c0_41], %53 {strides = array<i32>} : memref<656x8xf32, #tpu.memory_space<vmem>>, vector<616x8xf32>,
    %c0_42 = arith.constant 0 : index
    %c0_43 = arith.constant 0 : index
    %58 = vector.load %arg8[%c0_42, %c0_43] : memref<656x8xf32, #tpu.memory_space<vmem>>, vector<616x8xf32>
    %c0_44 = arith.constant 0 : index
    %c0_45 = arith.constant 0 : index
    %59 = vector.load %arg7[%c0_44, %c0_45] : memref<616x72xf32, #tpu.memory_space<vmem>>, vector<616x8xf32>
    tpu.vector_store %arg7[%c0_44, %c0_45], %58 {strides = array<i32>} : memref<616x72xf32, #tpu.memory_space<vmem>>, vector<616x8xf32>,
    %c1_46 = arith.constant 1 : index
    %c0_47 = arith.constant 0 : index
    %60 = vector.load %arg8[%c1_46, %c0_47] : memref<656x8xf32, #tpu.memory_space<vmem>>, vector<616x8xf32>
    %c0_48 = arith.constant 0 : index
    %c8_49 = arith.constant 8 : index
    %61 = vector.load %arg7[%c0_48, %c8_49] : memref<616x72xf32, #tpu.memory_space<vmem>>, vector<616x8xf32>
    tpu.vector_store %arg7[%c0_48, %c8_49], %60 {strides = array<i32>} : memref<616x72xf32, #tpu.memory_space<vmem>>, vector<616x8xf32>,
    %c2_50 = arith.constant 2 : index
    %c0_51 = arith.constant 0 : index
    %62 = vector.load %arg8[%c2_50, %c0_51] : memref<656x8xf32, #tpu.memory_space<vmem>>, vector<616x8xf32>
    %c0_52 = arith.constant 0 : index
    %c16_53 = arith.constant 16 : index
    %63 = vector.load %arg7[%c0_52, %c16_53] : memref<616x72xf32, #tpu.memory_space<vmem>>, vector<616x8xf32>
    tpu.vector_store %arg7[%c0_52, %c16_53], %62 {strides = array<i32>} : memref<616x72xf32, #tpu.memory_space<vmem>>, vector<616x8xf32>,
    %c18_54 = arith.constant 18 : index
    %c0_55 = arith.constant 0 : index
    %64 = vector.load %arg8[%c18_54, %c0_55] : memref<656x8xf32, #tpu.memory_space<vmem>>, vector<616x8xf32>
    %c0_56 = arith.constant 0 : index
    %c24_57 = arith.constant 24 : index
    %65 = vector.load %arg7[%c0_56, %c24_57] : memref<616x72xf32, #tpu.memory_space<vmem>>, vector<616x8xf32>
    tpu.vector_store %arg7[%c0_56, %c24_57], %64 {strides = array<i32>} : memref<616x72xf32, #tpu.memory_space<vmem>>, vector<616x8xf32>,
    %c19_58 = arith.constant 19 : index
    %c0_59 = arith.constant 0 : index
    %66 = vector.load %arg8[%c19_58, %c0_59] : memref<656x8xf32, #tpu.memory_space<vmem>>, vector<616x8xf32>
    %c0_60 = arith.constant 0 : index
    %c32_61 = arith.constant 32 : index
    %67 = vector.load %arg7[%c0_60, %c32_61] : memref<616x72xf32, #tpu.memory_space<vmem>>, vector<616x8xf32>
    tpu.vector_store %arg7[%c0_60, %c32_61], %66 {strides = array<i32>} : memref<616x72xf32, #tpu.memory_space<vmem>>, vector<616x8xf32>,
    %c20_62 = arith.constant 20 : index
    %c0_63 = arith.constant 0 : index
    %68 = vector.load %arg8[%c20_62, %c0_63] : memref<656x8xf32, #tpu.memory_space<vmem>>, vector<616x8xf32>
    %c0_64 = arith.constant 0 : index
    %c40_65 = arith.constant 40 : index
    %69 = vector.load %arg7[%c0_64, %c40_65] : memref<616x72xf32, #tpu.memory_space<vmem>>, vector<616x8xf32>
    tpu.vector_store %arg7[%c0_64, %c40_65], %68 {strides = array<i32>} : memref<616x72xf32, #tpu.memory_space<vmem>>, vector<616x8xf32>,
    %c36_66 = arith.constant 36 : index
    %c0_67 = arith.constant 0 : index
    %70 = vector.load %arg8[%c36_66, %c0_67] : memref<656x8xf32, #tpu.memory_space<vmem>>, vector<616x8xf32>
    %c0_68 = arith.constant 0 : index
    %c48_69 = arith.constant 48 : index
    %71 = vector.load %arg7[%c0_68, %c48_69] : memref<616x72xf32, #tpu.memory_space<vmem>>, vector<616x8xf32>
    tpu.vector_store %arg7[%c0_68, %c48_69], %70 {strides = array<i32>} : memref<616x72xf32, #tpu.memory_space<vmem>>, vector<616x8xf32>,
    %c37_70 = arith.constant 37 : index
    %c0_71 = arith.constant 0 : index
    %72 = vector.load %arg8[%c37_70, %c0_71] : memref<656x8xf32, #tpu.memory_space<vmem>>, vector<616x8xf32>
    %c0_72 = arith.constant 0 : index
    %c56_73 = arith.constant 56 : index
    %73 = vector.load %arg7[%c0_72, %c56_73] : memref<616x72xf32, #tpu.memory_space<vmem>>, vector<616x8xf32>
    tpu.vector_store %arg7[%c0_72, %c56_73], %72 {strides = array<i32>} : memref<616x72xf32, #tpu.memory_space<vmem>>, vector<616x8xf32>,
    %c38_74 = arith.constant 38 : index
    %c0_75 = arith.constant 0 : index
    %74 = vector.load %arg8[%c38_74, %c0_75] : memref<656x8xf32, #tpu.memory_space<vmem>>, vector<616x8xf32>
    %c0_76 = arith.constant 0 : index
    %c64_77 = arith.constant 64 : index
    %75 = vector.load %arg7[%c0_76, %c64_77] : memref<616x72xf32, #tpu.memory_space<vmem>>, vector<616x8xf32>
    tpu.vector_store %arg7[%c0_76, %c64_77], %74 {strides = array<i32>} : memref<616x72xf32, #tpu.memory_space<vmem>>, vector<616x8xf32>,
    %c0_78 = arith.constant 0 : index
    %c0_79 = arith.constant 0 : index
    %76 = vector.load %arg7[%c0_78, %c0_79] : memref<616x72xf32, #tpu.memory_space<vmem>>, vector<616x72xf32>
    %c0_80 = arith.constant 0 : index
    %c0_81 = arith.constant 0 : index
    %77 = vector.load %arg4[%c0_80, %c0_81] : memref<72x8xf32, #tpu.memory_space<vmem>>, vector<72x8xf32>
    %cst_82 = arith.constant dense<0.000000e+00> : vector<616x8xf32>
    %78 = tpu.matmul %76, %77, %cst_82 {dimension_numbers = #tpu.dot_dimension_numbers<[1], [0], [0], [1], [0, 0, 1, 1], [], []>} : vector<616x72xf32>, vector<72x8xf32>, vector<616x8xf32> -> vector<616x8xf32>
    %c19_83 = arith.constant 19 : index
    %c0_84 = arith.constant 0 : index
    %79 = vector.load %arg1[%c19_83, %c0_84] : memref<656x8xf32, #tpu.memory_space<vmem>>, vector<616x8xf32>
    %c0_85 = arith.constant 0 : index
    %c0_86 = arith.constant 0 : index
    %80 = vector.load %arg5[%c0_85, %c0_86] : memref<1x8xf32, #tpu.memory_space<vmem>>, vector<1x8xf32>
    %81 = vector.broadcast %80 : vector<1x8xf32> to vector<616x8xf32>
    %82 = arith.addf %78, %81 : vector<616x8xf32>
    %83 = arith.addf %82, %79 : vector<616x8xf32>
    %cst_87 = arith.constant 0.000000e+00 : f32
    %84 = vector.broadcast %cst_87 : f32 to vector<616x8xf32>
    %85 = arith.maximumf %83, %84 : vector<616x8xf32>
    %c0_88 = arith.constant 0 : index
    %c0_89 = arith.constant 0 : index
    %86 = vector.load %arg6[%c0_88, %c0_89] : memref<656x8xf32, #tpu.memory_space<vmem>>, vector<616x8xf32>
    tpu.vector_store %arg6[%c0_88, %c0_89], %85 {strides = array<i32>} : memref<656x8xf32, #tpu.memory_space<vmem>>, vector<616x8xf32>,
    %cst_90 = arith.constant 0.000000e+00 : f32
    %87 = vector.broadcast %cst_90 : f32 to vector<40x8xf32>
    %c616 = arith.constant 616 : index
    %c0_91 = arith.constant 0 : index
    %88 = vector.load %arg6[%c616, %c0_91] : memref<656x8xf32, #tpu.memory_space<vmem>>, vector<40x8xf32>
    tpu.vector_store %arg6[%c616, %c0_91], %87 {strides = array<i32>} : memref<656x8xf32, #tpu.memory_space<vmem>>, vector<40x8xf32>,
    return
  }
  func.func @transform_0(%arg0: i32) -> (i32, i32) {
    %c0_i32 = arith.constant 0 : i32
    %c0_i32_0 = arith.constant 0 : i32
    return %arg0, %c0_i32 : i32, i32
  }
  func.func @transform_1(%arg0: i32) -> (i32, i32) {
    %c0_i32 = arith.constant 0 : i32
    %c0_i32_0 = arith.constant 0 : i32
    %c0_i32_1 = arith.constant 0 : i32
    return %c0_i32, %c0_i32_0 : i32, i32
  }
  func.func @transform_2(%arg0: i32) -> (i32, i32) {
    %c0_i32 = arith.constant 0 : i32
    %c0_i32_0 = arith.constant 0 : i32
    %c0_i32_1 = arith.constant 0 : i32
    return %c0_i32, %c0_i32_0 : i32, i32
  }
  func.func @transform_3(%arg0: i32) -> (i32, i32) {
    %c0_i32 = arith.constant 0 : i32
    %c0_i32_0 = arith.constant 0 : i32
    %c0_i32_1 = arith.constant 0 : i32
    return %c0_i32, %c0_i32_0 : i32, i32
  }
  func.func @transform_4(%arg0: i32) -> (i32, i32) {
    %c0_i32 = arith.constant 0 : i32
    %c0_i32_0 = arith.constant 0 : i32
    %c0_i32_1 = arith.constant 0 : i32
    return %c0_i32, %c0_i32_0 : i32, i32
  }
  func.func @transform_5(%arg0: i32) -> (i32, i32) {
    %c0_i32 = arith.constant 0 : i32
    %c0_i32_0 = arith.constant 0 : i32
    return %arg0, %c0_i32 : i32, i32
  }
}

</mosaic_0001>

<llo_original>
// kernel: tpu_custom_call.1
$region0: #{tpu_custom_call.1}
  #allocation0 [shape = 'u32[]', space=smem, size = 0x4, offset = 0x4, fixed_abs, tag = 'smem constant byte address 0x4 - core index']
  #allocation1 [shape = 'u32[72,128]{1,0:T(1,128)}', space=vmem, size = 0x9000, scoped, tag = 'internal scratch']
  #allocation2 [shape = 'f32[616,72]{1,0:T(8,128)}', space=vmem, size = 0x4d000, scoped, tag = 'scratch operand']
  #allocation3 [shape = 'f32[656,8]{1,0:T(8,128)}', space=vmem, size = 0x52000, scoped, tag = 'scratch operand']
  %s0 = inlined_call_operand.vmem [shape: f32[656,8], index: 0, kind: input, shape index: {}]
  %s1 = inlined_call_operand.vmem [shape: f32[72,8], index: 1, kind: input, shape index: {}]
  %s2 = inlined_call_operand.vmem [shape: f32[1,8], index: 2, kind: input, shape index: {}]
  %s3 = inlined_call_operand.vmem [shape: f32[72,8], index: 3, kind: input, shape index: {}]
  %s4 = inlined_call_operand.vmem [shape: f32[1,8], index: 4, kind: input, shape index: {}]
  %s5 = inlined_call_operand.vmem [shape: f32[656,8], index: 5, kind: output, shape index: {}]
  %s6 = sld [smem:[#allocation0]]
  $region30: #{tpu_custom_call.1} parent=0
    _
  %s8 = ssub.s32 1, %s6
  %s9 = scalar_select 0, %s8, %s6
  // Predicated region
  $region2: #{tpu_custom_call.1} parent=0 // pred_check
    _
  $region3: #{tpu_custom_call.1} parent=0 // pred_check_branch
    %11 = sbr.rel (0) target = $region5
  $region4: #{tpu_custom_call.1} parent=0 // pred_region
    _
  $region5: #{tpu_custom_call.1} parent=0 // pred_fallthru
    _
  // Predicated region
  $region6: #{tpu_custom_call.1} parent=0 // pred_check
    _
  $region7: #{tpu_custom_call.1} parent=0 // pred_check_branch
    %13 = sbr.rel (0) target = $region9
  $region8: #{tpu_custom_call.1} parent=0 // pred_region
    _
  $region9: #{tpu_custom_call.1} parent=0 // pred_fallthru
    _
  // Predicated region
  $region10: #{tpu_custom_call.1} parent=0 // pred_check
    _
  $region11: #{tpu_custom_call.1} parent=0 // pred_check_branch
    %15 = sbr.rel (0) target = $region13
  $region12: #{tpu_custom_call.1} parent=0 // pred_region
    _
  $region13: #{tpu_custom_call.1} parent=0 // pred_fallthru
    _
  // Predicated region
  $region14: #{tpu_custom_call.1} parent=0 // pred_check
    _
  $region15: #{tpu_custom_call.1} parent=0 // pred_check_branch
    %17 = sbr.rel (0) target = $region17
  $region16: #{tpu_custom_call.1} parent=0 // pred_region
    _
  $region17: #{tpu_custom_call.1} parent=0 // pred_fallthru
    _
  // Predicated region
  $region18: #{tpu_custom_call.1} parent=0 // pred_check
    _
  $region19: #{tpu_custom_call.1} parent=0 // pred_check_branch
    %19 = sbr.rel (0) target = $region21
  $region20: #{tpu_custom_call.1} parent=0 // pred_region
    _
  $region21: #{tpu_custom_call.1} parent=0 // pred_fallthru
    _
  %v20 = vld [vmem:[%s0] sm:$0xff]
  %v21 = vld [vmem:[%s0 + $0x8] sm:$0xff]
  %v22 = vld [vmem:[%s0 + $0x10] sm:$0xff]
  %v23 = vld [vmem:[%s0 + $0x18] sm:$0xff]
  %v24 = vld [vmem:[%s0 + $0x20] sm:$0xff]
  %v25 = vld [vmem:[%s0 + $0x28] sm:$0xff]
  %v26 = vld [vmem:[%s0 + $0x30] sm:$0xff]
  %v27 = vld [vmem:[%s0 + $0x38] sm:$0xff]
  %v28 = vld [vmem:[%s0 + $0x40] sm:$0xff]
  %v29 = vld [vmem:[%s0 + $0x48] sm:$0xff]
  %v30 = vld [vmem:[%s0 + $0x50] sm:$0xff]
  %v31 = vld [vmem:[%s0 + $0x58] sm:$0xff]
  %v32 = vld [vmem:[%s0 + $0x60] sm:$0xff]
  %v33 = vld [vmem:[%s0 + $0x68] sm:$0xff]
  %v34 = vld [vmem:[%s0 + $0x70] sm:$0xff]
  %v35 = vld [vmem:[%s0 + $0x78] sm:$0xff]
  %v36 = vld [vmem:[%s0 + $0x80] sm:$0xff]
  %v37 = vld [vmem:[%s0 + $0x88] sm:$0xff]
  %v38 = vld [vmem:[%s0 + $0x90] sm:$0xff]
  %v39 = vld [vmem:[%s0 + $0x98] sm:$0xff]
  %v40 = vld [vmem:[%s0 + $0xa0] sm:$0xff]
  %v41 = vld [vmem:[%s0 + $0xa8] sm:$0xff]
  %v42 = vld [vmem:[%s0 + $0xb0] sm:$0xff]
  %v43 = vld [vmem:[%s0 + $0xb8] sm:$0xff]
  %v44 = vld [vmem:[%s0 + $0xc0] sm:$0xff]
  %v45 = vld [vmem:[%s0 + $0xc8] sm:$0xff]
  %v46 = vld [vmem:[%s0 + $0xd0] sm:$0xff]
  %v47 = vld [vmem:[%s0 + $0xd8] sm:$0xff]
  %v48 = vld [vmem:[%s0 + $0xe0] sm:$0xff]
  %v49 = vld [vmem:[%s0 + $0xe8] sm:$0xff]
  %v50 = vld [vmem:[%s0 + $0xf0] sm:$0xff]
  %v51 = vld [vmem:[%s0 + $0xf8] sm:$0xff]
  %v52 = vld [vmem:[%s0 + $0x100] sm:$0xff]
  %v53 = vld [vmem:[%s0 + $0x108] sm:$0xff]
  %v54 = vld [vmem:[%s0 + $0x110] sm:$0xff]
  %v55 = vld [vmem:[%s0 + $0x118] sm:$0xff]
  %v56 = vld [vmem:[%s0 + $0x120] sm:$0xff]
  %v57 = vld [vmem:[%s0 + $0x128] sm:$0xff]
  %v58 = vld [vmem:[%s0 + $0x130] sm:$0xff]
  %v59 = vld [vmem:[%s0 + $0x138] sm:$0xff]
  %v60 = vld [vmem:[%s0 + $0x140] sm:$0xff]
  %v61 = vld [vmem:[%s0 + $0x148] sm:$0xff]
  %v62 = vld [vmem:[%s0 + $0x150] sm:$0xff]
  %v63 = vld [vmem:[%s0 + $0x158] sm:$0xff]
  %v64 = vld [vmem:[%s0 + $0x160] sm:$0xff]
  %v65 = vld [vmem:[%s0 + $0x168] sm:$0xff]
  %v66 = vld [vmem:[%s0 + $0x170] sm:$0xff]
  %v67 = vld [vmem:[%s0 + $0x178] sm:$0xff]
  %v68 = vld [vmem:[%s0 + $0x180] sm:$0xff]
  %v69 = vld [vmem:[%s0 + $0x188] sm:$0xff]
  %v70 = vld [vmem:[%s0 + $0x190] sm:$0xff]
  %v71 = vld [vmem:[%s0 + $0x198] sm:$0xff]
  %v72 = vld [vmem:[%s0 + $0x1a0] sm:$0xff]
  %v73 = vld [vmem:[%s0 + $0x1a8] sm:$0xff]
  %v74 = vld [vmem:[%s0 + $0x1b0] sm:$0xff]
  %v75 = vld [vmem:[%s0 + $0x1b8] sm:$0xff]
  %v76 = vld [vmem:[%s0 + $0x1c0] sm:$0xff]
  %v77 = vld [vmem:[%s0 + $0x1c8] sm:$0xff]
  %v78 = vld [vmem:[%s0 + $0x1d0] sm:$0xff]
  %v79 = vld [vmem:[%s0 + $0x1d8] sm:$0xff]
  %v80 = vld [vmem:[%s0 + $0x1e0] sm:$0xff]
  %v81 = vld [vmem:[%s0 + $0x1e8] sm:$0xff]
  %v82 = vld [vmem:[%s0 + $0x1f0] sm:$0xff]
  %v83 = vld [vmem:[%s0 + $0x1f8] sm:$0xff]
  %v84 = vld [vmem:[%s0 + $0x200] sm:$0xff]
  %v85 = vld [vmem:[%s0 + $0x208] sm:$0xff]
  %v86 = vld [vmem:[%s0 + $0x210] sm:$0xff]
  %v87 = vld [vmem:[%s0 + $0x218] sm:$0xff]
  %v88 = vld [vmem:[%s0 + $0x220] sm:$0xff]
  %v89 = vld [vmem:[%s0 + $0x228] sm:$0xff]
  %v90 = vld [vmem:[%s0 + $0x230] sm:$0xff]
  %v91 = vld [vmem:[%s0 + $0x238] sm:$0xff]
  %v92 = vld [vmem:[%s0 + $0x240] sm:$0xff]
  %v93 = vld [vmem:[%s0 + $0x248] sm:$0xff]
  %v94 = vld [vmem:[%s0 + $0x250] sm:$0xff]
  %v95 = vld [vmem:[%s0 + $0x258] sm:$0xff]
  %v96 = vld [vmem:[%s0 + $0x260] sm:$0xff]
  %vm97 = vcmask 64512
  %98 = vst.msk [vmem:[#allocation2] sm:$0xff] %vm97, %v20
  %99 = vst.msk [vmem:[#allocation2 + $0x8] sm:$0xff] %vm97, %v21
  %100 = vst.msk [vmem:[#allocation2 + $0x10] sm:$0xff] %vm97, %v22
  %101 = vst.msk [vmem:[#allocation2 + $0x18] sm:$0xff] %vm97, %v23
  %102 = vst.msk [vmem:[#allocation2 + $0x20] sm:$0xff] %vm97, %v24
  %103 = vst.msk [vmem:[#allocation2 + $0x28] sm:$0xff] %vm97, %v25
  %104 = vst.msk [vmem:[#allocation2 + $0x30] sm:$0xff] %vm97, %v26
  %105 = vst.msk [vmem:[#allocation2 + $0x38] sm:$0xff] %vm97, %v27
  %106 = vst.msk [vmem:[#allocation2 + $0x40] sm:$0xff] %vm97, %v28
  %107 = vst.msk [vmem:[#allocation2 + $0x48] sm:$0xff] %vm97, %v29
  %108 = vst.msk [vmem:[#allocation2 + $0x50] sm:$0xff] %vm97, %v30
  %109 = vst.msk [vmem:[#allocation2 + $0x58] sm:$0xff] %vm97, %v31
  %110 = vst.msk [vmem:[#allocation2 + $0x60] sm:$0xff] %vm97, %v32
  %111 = vst.msk [vmem:[#allocation2 + $0x68] sm:$0xff] %vm97, %v33
  %112 = vst.msk [vmem:[#allocation2 + $0x70] sm:$0xff] %vm97, %v34
  %113 = vst.msk [vmem:[#allocation2 + $0x78] sm:$0xff] %vm97, %v35
  %114 = vst.msk [vmem:[#allocation2 + $0x80] sm:$0xff] %vm97, %v36
  %115 = vst.msk [vmem:[#allocation2 + $0x88] sm:$0xff] %vm97, %v37
  %116 = vst.msk [vmem:[#allocation2 + $0x90] sm:$0xff] %vm97, %v38
  %117 = vst.msk [vmem:[#allocation2 + $0x98] sm:$0xff] %vm97, %v39
  %118 = vst.msk [vmem:[#allocation2 + $0xa0] sm:$0xff] %vm97, %v40
  %119 = vst.msk [vmem:[#allocation2 + $0xa8] sm:$0xff] %vm97, %v41
  %120 = vst.msk [vmem:[#allocation2 + $0xb0] sm:$0xff] %vm97, %v42
  %121 = vst.msk [vmem:[#allocation2 + $0xb8] sm:$0xff] %vm97, %v43
  %122 = vst.msk [vmem:[#allocation2 + $0xc0] sm:$0xff] %vm97, %v44
  %123 = vst.msk [vmem:[#allocation2 + $0xc8] sm:$0xff] %vm97, %v45
  %124 = vst.msk [vmem:[#allocation2 + $0xd0] sm:$0xff] %vm97, %v46
  %125 = vst.msk [vmem:[#allocation2 + $0xd8] sm:$0xff] %vm97, %v47
  %126 = vst.msk [vmem:[#allocation2 + $0xe0] sm:$0xff] %vm97, %v48
  %127 = vst.msk [vmem:[#allocation2 + $0xe8] sm:$0xff] %vm97, %v49
  %128 = vst.msk [vmem:[#allocation2 + $0xf0] sm:$0xff] %vm97, %v50
  %129 = vst.msk [vmem:[#allocation2 + $0xf8] sm:$0xff] %vm97, %v51
  %130 = vst.msk [vmem:[#allocation2 + $0x100] sm:$0xff] %vm97, %v52
  %131 = vst.msk [vmem:[#allocation2 + $0x108] sm:$0xff] %vm97, %v53
  %132 = vst.msk [vmem:[#allocation2 + $0x110] sm:$0xff] %vm97, %v54
  %133 = vst.msk [vmem:[#allocation2 + $0x118] sm:$0xff] %vm97, %v55
  %134 = vst.msk [vmem:[#allocation2 + $0x120] sm:$0xff] %vm97, %v56
  %135 = vst.msk [vmem:[#allocation2 + $0x128] sm:$0xff] %vm97, %v57
  %136 = vst.msk [vmem:[#allocation2 + $0x130] sm:$0xff] %vm97, %v58
  %137 = vst.msk [vmem:[#allocation2 + $0x138] sm:$0xff] %vm97, %v59
  %138 = vst.msk [vmem:[#allocation2 + $0x140] sm:$0xff] %vm97, %v60
  %139 = vst.msk [vmem:[#allocation2 + $0x148] sm:$0xff] %vm97, %v61
  %140 = vst.msk [vmem:[#allocation2 + $0x150] sm:$0xff] %vm97, %v62
  %141 = vst.msk [vmem:[#allocation2 + $0x158] sm:$0xff] %vm97, %v63
  %142 = vst.msk [vmem:[#allocation2 + $0x160] sm:$0xff] %vm97, %v64
  %143 = vst.msk [vmem:[#allocation2 + $0x168] sm:$0xff] %vm97, %v65
  %144 = vst.msk [vmem:[#allocation2 + $0x170] sm:$0xff] %vm97, %v66
  %145 = vst.msk [vmem:[#allocation2 + $0x178] sm:$0xff] %vm97, %v67
  %146 = vst.msk [vmem:[#allocation2 + $0x180] sm:$0xff] %vm97, %v68
  %147 = vst.msk [vmem:[#allocation2 + $0x188] sm:$0xff] %vm97, %v69
  %148 = vst.msk [vmem:[#allocation2 + $0x190] sm:$0xff] %vm97, %v70
  %149 = vst.msk [vmem:[#allocation2 + $0x198] sm:$0xff] %vm97, %v71
  %150 = vst.msk [vmem:[#allocation2 + $0x1a0] sm:$0xff] %vm97, %v72
  %151 = vst.msk [vmem:[#allocation2 + $0x1a8] sm:$0xff] %vm97, %v73
  %152 = vst.msk [vmem:[#allocation2 + $0x1b0] sm:$0xff] %vm97, %v74
  %153 = vst.msk [vmem:[#allocation2 + $0x1b8] sm:$0xff] %vm97, %v75
  %154 = vst.msk [vmem:[#allocation2 + $0x1c0] sm:$0xff] %vm97, %v76
  %155 = vst.msk [vmem:[#allocation2 + $0x1c8] sm:$0xff] %vm97, %v77
  %156 = vst.msk [vmem:[#allocation2 + $0x1d0] sm:$0xff] %vm97, %v78
  %157 = vst.msk [vmem:[#allocation2 + $0x1d8] sm:$0xff] %vm97, %v79
  %158 = vst.msk [vmem:[#allocation2 + $0x1e0] sm:$0xff] %vm97, %v80
  %159 = vst.msk [vmem:[#allocation2 + $0x1e8] sm:$0xff] %vm97, %v81
  %160 = vst.msk [vmem:[#allocation2 + $0x1f0] sm:$0xff] %vm97, %v82
  %161 = vst.msk [vmem:[#allocation2 + $0x1f8] sm:$0xff] %vm97, %v83
  %162 = vst.msk [vmem:[#allocation2 + $0x200] sm:$0xff] %vm97, %v84
  %163 = vst.msk [vmem:[#allocation2 + $0x208] sm:$0xff] %vm97, %v85
  %164 = vst.msk [vmem:[#allocation2 + $0x210] sm:$0xff] %vm97, %v86
  %165 = vst.msk [vmem:[#allocation2 + $0x218] sm:$0xff] %vm97, %v87
  %166 = vst.msk [vmem:[#allocation2 + $0x220] sm:$0xff] %vm97, %v88
  %167 = vst.msk [vmem:[#allocation2 + $0x228] sm:$0xff] %vm97, %v89
  %168 = vst.msk [vmem:[#allocation2 + $0x230] sm:$0xff] %vm97, %v90
  %169 = vst.msk [vmem:[#allocation2 + $0x238] sm:$0xff] %vm97, %v91
  %170 = vst.msk [vmem:[#allocation2 + $0x240] sm:$0xff] %vm97, %v92
  %171 = vst.msk [vmem:[#allocation2 + $0x248] sm:$0xff] %vm97, %v93
  %172 = vst.msk [vmem:[#allocation2 + $0x250] sm:$0xff] %vm97, %v94
  %173 = vst.msk [vmem:[#allocation2 + $0x258] sm:$0xff] %vm97, %v95
  %174 = vst.msk [vmem:[#allocation2 + $0x260] sm:$0xff] %vm97, %v96
  %v175 = vld [vmem:[%s0 + $0x1] sm:$0xff]
  %v176 = vld [vmem:[%s0 + $0x9] sm:$0xff]
  %v177 = vld [vmem:[%s0 + $0x11] sm:$0xff]
  %v178 = vld [vmem:[%s0 + $0x19] sm:$0xff]
  %v179 = vld [vmem:[%s0 + $0x21] sm:$0xff]
  %v180 = vld [vmem:[%s0 + $0x29] sm:$0xff]
  %v181 = vld [vmem:[%s0 + $0x31] sm:$0xff]
  %v182 = vld [vmem:[%s0 + $0x39] sm:$0xff]
  %v183 = vld [vmem:[%s0 + $0x41] sm:$0xff]
  %v184 = vld [vmem:[%s0 + $0x49] sm:$0xff]
  %v185 = vld [vmem:[%s0 + $0x51] sm:$0xff]
  %v186 = vld [vmem:[%s0 + $0x59] sm:$0xff]
  %v187 = vld [vmem:[%s0 + $0x61] sm:$0xff]
  %v188 = vld [vmem:[%s0 + $0x69] sm:$0xff]
  %v189 = vld [vmem:[%s0 + $0x71] sm:$0xff]
  %v190 = vld [vmem:[%s0 + $0x79] sm:$0xff]
  %v191 = vld [vmem:[%s0 + $0x81] sm:$0xff]
  %v192 = vld [vmem:[%s0 + $0x89] sm:$0xff]
  %v193 = vld [vmem:[%s0 + $0x91] sm:$0xff]
  %v194 = vld [vmem:[%s0 + $0x99] sm:$0xff]
  %v195 = vld [vmem:[%s0 + $0xa1] sm:$0xff]
  %v196 = vld [vmem:[%s0 + $0xa9] sm:$0xff]
  %v197 = vld [vmem:[%s0 + $0xb1] sm:$0xff]
  %v198 = vld [vmem:[%s0 + $0xb9] sm:$0xff]
  %v199 = vld [vmem:[%s0 + $0xc1] sm:$0xff]
  %v200 = vld [vmem:[%s0 + $0xc9] sm:$0xff]
  %v201 = vld [vmem:[%s0 + $0xd1] sm:$0xff]
  %v202 = vld [vmem:[%s0 + $0xd9] sm:$0xff]
  %v203 = vld [vmem:[%s0 + $0xe1] sm:$0xff]
  %v204 = vld [vmem:[%s0 + $0xe9] sm:$0xff]
  %v205 = vld [vmem:[%s0 + $0xf1] sm:$0xff]
  %v206 = vld [vmem:[%s0 + $0xf9] sm:$0xff]
  %v207 = vld [vmem:[%s0 + $0x101] sm:$0xff]
  %v208 = vld [vmem:[%s0 + $0x109] sm:$0xff]
  %v209 = vld [vmem:[%s0 + $0x111] sm:$0xff]
  %v210 = vld [vmem:[%s0 + $0x119] sm:$0xff]
  %v211 = vld [vmem:[%s0 + $0x121] sm:$0xff]
  %v212 = vld [vmem:[%s0 + $0x129] sm:$0xff]
  %v213 = vld [vmem:[%s0 + $0x131] sm:$0xff]
  %v214 = vld [vmem:[%s0 + $0x139] sm:$0xff]
  %v215 = vld [vmem:[%s0 + $0x141] sm:$0xff]
  %v216 = vld [vmem:[%s0 + $0x149] sm:$0xff]
  %v217 = vld [vmem:[%s0 + $0x151] sm:$0xff]
  %v218 = vld [vmem:[%s0 + $0x159] sm:$0xff]
  %v219 = vld [vmem:[%s0 + $0x161] sm:$0xff]
  %v220 = vld [vmem:[%s0 + $0x169] sm:$0xff]
  %v221 = vld [vmem:[%s0 + $0x171] sm:$0xff]
  %v222 = vld [vmem:[%s0 + $0x179] sm:$0xff]
  %v223 = vld [vmem:[%s0 + $0x181] sm:$0xff]
  %v224 = vld [vmem:[%s0 + $0x189] sm:$0xff]
  %v225 = vld [vmem:[%s0 + $0x191] sm:$0xff]
  %v226 = vld [vmem:[%s0 + $0x199] sm:$0xff]
  %v227 = vld [vmem:[%s0 + $0x1a1] sm:$0xff]
  %v228 = vld [vmem:[%s0 + $0x1a9] sm:$0xff]
  %v229 = vld [vmem:[%s0 + $0x1b1] sm:$0xff]
  %v230 = vld [vmem:[%s0 + $0x1b9] sm:$0xff]
  %v231 = vld [vmem:[%s0 + $0x1c1] sm:$0xff]
  %v232 = vld [vmem:[%s0 + $0x1c9] sm:$0xff]
  %v233 = vld [vmem:[%s0 + $0x1d1] sm:$0xff]
  %v234 = vld [vmem:[%s0 + $0x1d9] sm:$0xff]
  %v235 = vld [vmem:[%s0 + $0x1e1] sm:$0xff]
  %v236 = vld [vmem:[%s0 + $0x1e9] sm:$0xff]
  %v237 = vld [vmem:[%s0 + $0x1f1] sm:$0xff]
  %v238 = vld [vmem:[%s0 + $0x1f9] sm:$0xff]
  %v239 = vld [vmem:[%s0 + $0x201] sm:$0xff]
  %v240 = vld [vmem:[%s0 + $0x209] sm:$0xff]
  %v241 = vld [vmem:[%s0 + $0x211] sm:$0xff]
  %v242 = vld [vmem:[%s0 + $0x219] sm:$0xff]
  %v243 = vld [vmem:[%s0 + $0x221] sm:$0xff]
  %v244 = vld [vmem:[%s0 + $0x229] sm:$0xff]
  %v245 = vld [vmem:[%s0 + $0x231] sm:$0xff]
  %v246 = vld [vmem:[%s0 + $0x239] sm:$0xff]
  %v247 = vld [vmem:[%s0 + $0x241] sm:$0xff]
  %v248 = vld [vmem:[%s0 + $0x249] sm:$0xff]
  %v249 = vld [vmem:[%s0 + $0x251] sm:$0xff]
  %v250 = vld [vmem:[%s0 + $0x259] sm:$0xff]
  %v251 = vld [vmem:[%s0 + $0x261] sm:$0xff]
  %329 = vrot.lane.b32.xlu0 %v175, 8
  %v330 = vpop.permute.xlu0 %329
  %331 = vrot.lane.b32.xlu0 %v176, 8
  %v332 = vpop.permute.xlu0 %331
  %333 = vrot.lane.b32.xlu0 %v177, 8
  %v334 = vpop.permute.xlu0 %333
  %335 = vrot.lane.b32.xlu0 %v178, 8
  %v336 = vpop.permute.xlu0 %335
  %337 = vrot.lane.b32.xlu0 %v179, 8
  %v338 = vpop.permute.xlu0 %337
  %339 = vrot.lane.b32.xlu0 %v180, 8
  %v340 = vpop.permute.xlu0 %339
  %341 = vrot.lane.b32.xlu0 %v181, 8
  %v342 = vpop.permute.xlu0 %341
  %343 = vrot.lane.b32.xlu0 %v182, 8
  %v344 = vpop.permute.xlu0 %343
  %345 = vrot.lane.b32.xlu0 %v183, 8
  %v346 = vpop.permute.xlu0 %345
  %347 = vrot.lane.b32.xlu0 %v184, 8
  %v348 = vpop.permute.xlu0 %347
  %349 = vrot.lane.b32.xlu0 %v185, 8
  %v350 = vpop.permute.xlu0 %349
  %351 = vrot.lane.b32.xlu0 %v186, 8
  %v352 = vpop.permute.xlu0 %351
  %353 = vrot.lane.b32.xlu0 %v187, 8
  %v354 = vpop.permute.xlu0 %353
  %355 = vrot.lane.b32.xlu0 %v188, 8
  %v356 = vpop.permute.xlu0 %355
  %357 = vrot.lane.b32.xlu0 %v189, 8
  %v358 = vpop.permute.xlu0 %357
  %359 = vrot.lane.b32.xlu0 %v190, 8
  %v360 = vpop.permute.xlu0 %359
  %361 = vrot.lane.b32.xlu0 %v191, 8
  %v362 = vpop.permute.xlu0 %361
  %363 = vrot.lane.b32.xlu0 %v192, 8
  %v364 = vpop.permute.xlu0 %363
  %365 = vrot.lane.b32.xlu0 %v193, 8
  %v366 = vpop.permute.xlu0 %365
  %367 = vrot.lane.b32.xlu0 %v194, 8
  %v368 = vpop.permute.xlu0 %367
  %369 = vrot.lane.b32.xlu0 %v195, 8
  %v370 = vpop.permute.xlu0 %369
  %371 = vrot.lane.b32.xlu0 %v196, 8
  %v372 = vpop.permute.xlu0 %371
  %373 = vrot.lane.b32.xlu0 %v197, 8
  %v374 = vpop.permute.xlu0 %373
  %375 = vrot.lane.b32.xlu0 %v198, 8
  %v376 = vpop.permute.xlu0 %375
  %377 = vrot.lane.b32.xlu0 %v199, 8
  %v378 = vpop.permute.xlu0 %377
  %379 = vrot.lane.b32.xlu0 %v200, 8
  %v380 = vpop.permute.xlu0 %379
  %381 = vrot.lane.b32.xlu0 %v201, 8
  %v382 = vpop.permute.xlu0 %381
  %383 = vrot.lane.b32.xlu0 %v202, 8
  %v384 = vpop.permute.xlu0 %383
  %385 = vrot.lane.b32.xlu0 %v203, 8
  %v386 = vpop.permute.xlu0 %385
  %387 = vrot.lane.b32.xlu0 %v204, 8
  %v388 = vpop.permute.xlu0 %387
  %389 = vrot.lane.b32.xlu0 %v205, 8
  %v390 = vpop.permute.xlu0 %389
  %391 = vrot.lane.b32.xlu0 %v206, 8
  %v392 = vpop.permute.xlu0 %391
  %393 = vrot.lane.b32.xlu0 %v207, 8
  %v394 = vpop.permute.xlu0 %393
  %395 = vrot.lane.b32.xlu0 %v208, 8
  %v396 = vpop.permute.xlu0 %395
  %397 = vrot.lane.b32.xlu0 %v209, 8
  %v398 = vpop.permute.xlu0 %397
  %399 = vrot.lane.b32.xlu0 %v210, 8
  %v400 = vpop.permute.xlu0 %399
  %401 = vrot.lane.b32.xlu0 %v211, 8
  %v402 = vpop.permute.xlu0 %401
  %403 = vrot.lane.b32.xlu0 %v212, 8
  %v404 = vpop.permute.xlu0 %403
  %405 = vrot.lane.b32.xlu0 %v213, 8
  %v406 = vpop.permute.xlu0 %405
  %407 = vrot.lane.b32.xlu0 %v214, 8
  %v408 = vpop.permute.xlu0 %407
  %409 = vrot.lane.b32.xlu0 %v215, 8
  %v410 = vpop.permute.xlu0 %409
  %411 = vrot.lane.b32.xlu0 %v216, 8
  %v412 = vpop.permute.xlu0 %411
  %413 = vrot.lane.b32.xlu0 %v217, 8
  %v414 = vpop.permute.xlu0 %413
  %415 = vrot.lane.b32.xlu0 %v218, 8
  %v416 = vpop.permute.xlu0 %415
  %417 = vrot.lane.b32.xlu0 %v219, 8
  %v418 = vpop.permute.xlu0 %417
  %419 = vrot.lane.b32.xlu0 %v220, 8
  %v420 = vpop.permute.xlu0 %419
  %421 = vrot.lane.b32.xlu0 %v221, 8
  %v422 = vpop.permute.xlu0 %421
  %423 = vrot.lane.b32.xlu0 %v222, 8
  %v424 = vpop.permute.xlu0 %423
  %425 = vrot.lane.b32.xlu0 %v223, 8
  %v426 = vpop.permute.xlu0 %425
  %427 = vrot.lane.b32.xlu0 %v224, 8
  %v428 = vpop.permute.xlu0 %427
  %429 = vrot.lane.b32.xlu0 %v225, 8
  %v430 = vpop.permute.xlu0 %429
  %431 = vrot.lane.b32.xlu0 %v226, 8
  %v432 = vpop.permute.xlu0 %431
  %433 = vrot.lane.b32.xlu0 %v227, 8
  %v434 = vpop.permute.xlu0 %433
  %435 = vrot.lane.b32.xlu0 %v228, 8
  %v436 = vpop.permute.xlu0 %435
  %437 = vrot.lane.b32.xlu0 %v229, 8
  %v438 = vpop.permute.xlu0 %437
  %439 = vrot.lane.b32.xlu0 %v230, 8
  %v440 = vpop.permute.xlu0 %439
  %441 = vrot.lane.b32.xlu0 %v231, 8
  %v442 = vpop.permute.xlu0 %441
  %443 = vrot.lane.b32.xlu0 %v232, 8
  %v444 = vpop.permute.xlu0 %443
  %445 = vrot.lane.b32.xlu0 %v233, 8
  %v446 = vpop.permute.xlu0 %445
  %447 = vrot.lane.b32.xlu0 %v234, 8
  %v448 = vpop.permute.xlu0 %447
  %449 = vrot.lane.b32.xlu0 %v235, 8
  %v450 = vpop.permute.xlu0 %449
  %451 = vrot.lane.b32.xlu0 %v236, 8
  %v452 = vpop.permute.xlu0 %451
  %453 = vrot.lane.b32.xlu0 %v237, 8
  %v454 = vpop.permute.xlu0 %453
  %455 = vrot.lane.b32.xlu0 %v238, 8
  %v456 = vpop.permute.xlu0 %455
  %457 = vrot.lane.b32.xlu0 %v239, 8
  %v458 = vpop.permute.xlu0 %457
  %459 = vrot.lane.b32.xlu0 %v240, 8
  %v460 = vpop.permute.xlu0 %459
  %461 = vrot.lane.b32.xlu0 %v241, 8
  %v462 = vpop.permute.xlu0 %461
  %463 = vrot.lane.b32.xlu0 %v242, 8
  %v464 = vpop.permute.xlu0 %463
  %465 = vrot.lane.b32.xlu0 %v243, 8
  %v466 = vpop.permute.xlu0 %465
  %467 = vrot.lane.b32.xlu0 %v244, 8
  %v468 = vpop.permute.xlu0 %467
  %469 = vrot.lane.b32.xlu0 %v245, 8
  %v470 = vpop.permute.xlu0 %469
  %471 = vrot.lane.b32.xlu0 %v246, 8
  %v472 = vpop.permute.xlu0 %471
  %473 = vrot.lane.b32.xlu0 %v247, 8
  %v474 = vpop.permute.xlu0 %473
  %475 = vrot.lane.b32.xlu0 %v248, 8
  %v476 = vpop.permute.xlu0 %475
  %477 = vrot.lane.b32.xlu0 %v249, 8
  %v478 = vpop.permute.xlu0 %477
  %479 = vrot.lane.b32.xlu0 %v250, 8
  %v480 = vpop.permute.xlu0 %479
  %481 = vrot.lane.b32.xlu0 %v251, 8
  %v482 = vpop.permute.xlu0 %481
  %vm560 = vcmask 130112
  %561 = vst.msk [vmem:[#allocation2] sm:$0xff] %vm560, %v330
  %562 = vst.msk [vmem:[#allocation2 + $0x8] sm:$0xff] %vm560, %v332
  %563 = vst.msk [vmem:[#allocation2 + $0x10] sm:$0xff] %vm560, %v334
  %564 = vst.msk [vmem:[#allocation2 + $0x18] sm:$0xff] %vm560, %v336
  %565 = vst.msk [vmem:[#allocation2 + $0x20] sm:$0xff] %vm560, %v338
  %566 = vst.msk [vmem:[#allocation2 + $0x28] sm:$0xff] %vm560, %v340
  %567 = vst.msk [vmem:[#allocation2 + $0x30] sm:$0xff] %vm560, %v342
  %568 = vst.msk [vmem:[#allocation2 + $0x38] sm:$0xff] %vm560, %v344
  %569 = vst.msk [vmem:[#allocation2 + $0x40] sm:$0xff] %vm560, %v346
  %570 = vst.msk [vmem:[#allocation2 + $0x48] sm:$0xff] %vm560, %v348
  %571 = vst.msk [vmem:[#allocation2 + $0x50] sm:$0xff] %vm560, %v350
  %572 = vst.msk [vmem:[#allocation2 + $0x58] sm:$0xff] %vm560, %v352
  %573 = vst.msk [vmem:[#allocation2 + $0x60] sm:$0xff] %vm560, %v354
  %574 = vst.msk [vmem:[#allocation2 + $0x68] sm:$0xff] %vm560, %v356
  %575 = vst.msk [vmem:[#allocation2 + $0x70] sm:$0xff] %vm560, %v358
  %576 = vst.msk [vmem:[#allocation2 + $0x78] sm:$0xff] %vm560, %v360
  %577 = vst.msk [vmem:[#allocation2 + $0x80] sm:$0xff] %vm560, %v362
  %578 = vst.msk [vmem:[#allocation2 + $0x88] sm:$0xff] %vm560, %v364
  %579 = vst.msk [vmem:[#allocation2 + $0x90] sm:$0xff] %vm560, %v366
  %580 = vst.msk [vmem:[#allocation2 + $0x98] sm:$0xff] %vm560, %v368
  %581 = vst.msk [vmem:[#allocation2 + $0xa0] sm:$0xff] %vm560, %v370
  %582 = vst.msk [vmem:[#allocation2 + $0xa8] sm:$0xff] %vm560, %v372
  %583 = vst.msk [vmem:[#allocation2 + $0xb0] sm:$0xff] %vm560, %v374
  %584 = vst.msk [vmem:[#allocation2 + $0xb8] sm:$0xff] %vm560, %v376
  %585 = vst.msk [vmem:[#allocation2 + $0xc0] sm:$0xff] %vm560, %v378
  %586 = vst.msk [vmem:[#allocation2 + $0xc8] sm:$0xff] %vm560, %v380
  %587 = vst.msk [vmem:[#allocation2 + $0xd0] sm:$0xff] %vm560, %v382
  %588 = vst.msk [vmem:[#allocation2 + $0xd8] sm:$0xff] %vm560, %v384
  %589 = vst.msk [vmem:[#allocation2 + $0xe0] sm:$0xff] %vm560, %v386
  %590 = vst.msk [vmem:[#allocation2 + $0xe8] sm:$0xff] %vm560, %v388
  %591 = vst.msk [vmem:[#allocation2 + $0xf0] sm:$0xff] %vm560, %v390
  %592 = vst.msk [vmem:[#allocation2 + $0xf8] sm:$0xff] %vm560, %v392
  %593 = vst.msk [vmem:[#allocation2 + $0x100] sm:$0xff] %vm560, %v394
  %594 = vst.msk [vmem:[#allocation2 + $0x108] sm:$0xff] %vm560, %v396
  %595 = vst.msk [vmem:[#allocation2 + $0x110] sm:$0xff] %vm560, %v398
  %596 = vst.msk [vmem:[#allocation2 + $0x118] sm:$0xff] %vm560, %v400
  %597 = vst.msk [vmem:[#allocation2 + $0x120] sm:$0xff] %vm560, %v402
  %598 = vst.msk [vmem:[#allocation2 + $0x128] sm:$0xff] %vm560, %v404
  %599 = vst.msk [vmem:[#allocation2 + $0x130] sm:$0xff] %vm560, %v406
  %600 = vst.msk [vmem:[#allocation2 + $0x138] sm:$0xff] %vm560, %v408
  %601 = vst.msk [vmem:[#allocation2 + $0x140] sm:$0xff] %vm560, %v410
  %602 = vst.msk [vmem:[#allocation2 + $0x148] sm:$0xff] %vm560, %v412
  %603 = vst.msk [vmem:[#allocation2 + $0x150] sm:$0xff] %vm560, %v414
  %604 = vst.msk [vmem:[#allocation2 + $0x158] sm:$0xff] %vm560, %v416
  %605 = vst.msk [vmem:[#allocation2 + $0x160] sm:$0xff] %vm560, %v418
  %606 = vst.msk [vmem:[#allocation2 + $0x168] sm:$0xff] %vm560, %v420
  %607 = vst.msk [vmem:[#allocation2 + $0x170] sm:$0xff] %vm560, %v422
  %608 = vst.msk [vmem:[#allocation2 + $0x178] sm:$0xff] %vm560, %v424
  %609 = vst.msk [vmem:[#allocation2 + $0x180] sm:$0xff] %vm560, %v426
  %610 = vst.msk [vmem:[#allocation2 + $0x188] sm:$0xff] %vm560, %v428
  %611 = vst.msk [vmem:[#allocation2 + $0x190] sm:$0xff] %vm560, %v430
  %612 = vst.msk [vmem:[#allocation2 + $0x198] sm:$0xff] %vm560, %v432
  %613 = vst.msk [vmem:[#allocation2 + $0x1a0] sm:$0xff] %vm560, %v434
  %614 = vst.msk [vmem:[#allocation2 + $0x1a8] sm:$0xff] %vm560, %v436
  %615 = vst.msk [vmem:[#allocation2 + $0x1b0] sm:$0xff] %vm560, %v438
  %616 = vst.msk [vmem:[#allocation2 + $0x1b8] sm:$0xff] %vm560, %v440
  %617 = vst.msk [vmem:[#allocation2 + $0x1c0] sm:$0xff] %vm560, %v442
  %618 = vst.msk [vmem:[#allocation2 + $0x1c8] sm:$0xff] %vm560, %v444
  %619 = vst.msk [vmem:[#allocation2 + $0x1d0] sm:$0xff] %vm560, %v446
  %620 = vst.msk [vmem:[#allocation2 + $0x1d8] sm:$0xff] %vm560, %v448
  %621 = vst.msk [vmem:[#allocation2 + $0x1e0] sm:$0xff] %vm560, %v450
  %622 = vst.msk [vmem:[#allocation2 + $0x1e8] sm:$0xff] %vm560, %v452
  %623 = vst.msk [vmem:[#allocation2 + $0x1f0] sm:$0xff] %vm560, %v454
  %624 = vst.msk [vmem:[#allocation2 + $0x1f8] sm:$0xff] %vm560, %v456
  %625 = vst.msk [vmem:[#allocation2 + $0x200] sm:$0xff] %vm560, %v458
  %626 = vst.msk [vmem:[#allocation2 + $0x208] sm:$0xff] %vm560, %v460
  %627 = vst.msk [vmem:[#allocation2 + $0x210] sm:$0xff] %vm560, %v462
  %628 = vst.msk [vmem:[#allocation2 + $0x218] sm:$0xff] %vm560, %v464
  %629 = vst.msk [vmem:[#allocation2 + $0x220] sm:$0xff] %vm560, %v466
  %630 = vst.msk [vmem:[#allocation2 + $0x228] sm:$0xff] %vm560, %v468
  %631 = vst.msk [vmem:[#allocation2 + $0x230] sm:$0xff] %vm560, %v470
  %632 = vst.msk [vmem:[#allocation2 + $0x238] sm:$0xff] %vm560, %v472
  %633 = vst.msk [vmem:[#allocation2 + $0x240] sm:$0xff] %vm560, %v474
  %634 = vst.msk [vmem:[#allocation2 + $0x248] sm:$0xff] %vm560, %v476
  %635 = vst.msk [vmem:[#allocation2 + $0x250] sm:$0xff] %vm560, %v478
  %636 = vst.msk [vmem:[#allocation2 + $0x258] sm:$0xff] %vm560, %v480
  %637 = vst.msk [vmem:[#allocation2 + $0x260] sm:$0xff] %vm560, %v482
  %v638 = vld [vmem:[%s0 + $0x2] sm:$0xff]
  %v639 = vld [vmem:[%s0 + $0xa] sm:$0xff]
  %v640 = vld [vmem:[%s0 + $0x12] sm:$0xff]
  %v641 = vld [vmem:[%s0 + $0x1a] sm:$0xff]
  %v642 = vld [vmem:[%s0 + $0x22] sm:$0xff]
  %v643 = vld [vmem:[%s0 + $0x2a] sm:$0xff]
  %v644 = vld [vmem:[%s0 + $0x32] sm:$0xff]
  %v645 = vld [vmem:[%s0 + $0x3a] sm:$0xff]
  %v646 = vld [vmem:[%s0 + $0x42] sm:$0xff]
  %v647 = vld [vmem:[%s0 + $0x4a] sm:$0xff]
  %v648 = vld [vmem:[%s0 + $0x52] sm:$0xff]
  %v649 = vld [vmem:[%s0 + $0x5a] sm:$0xff]
  %v650 = vld [vmem:[%s0 + $0x62] sm:$0xff]
  %v651 = vld [vmem:[%s0 + $0x6a] sm:$0xff]
  %v652 = vld [vmem:[%s0 + $0x72] sm:$0xff]
  %v653 = vld [vmem:[%s0 + $0x7a] sm:$0xff]
  %v654 = vld [vmem:[%s0 + $0x82] sm:$0xff]
  %v655 = vld [vmem:[%s0 + $0x8a] sm:$0xff]
  %v656 = vld [vmem:[%s0 + $0x92] sm:$0xff]
  %v657 = vld [vmem:[%s0 + $0x9a] sm:$0xff]
  %v658 = vld [vmem:[%s0 + $0xa2] sm:$0xff]
  %v659 = vld [vmem:[%s0 + $0xaa] sm:$0xff]
  %v660 = vld [vmem:[%s0 + $0xb2] sm:$0xff]
  %v661 = vld [vmem:[%s0 + $0xba] sm:$0xff]
  %v662 = vld [vmem:[%s0 + $0xc2] sm:$0xff]
  %v663 = vld [vmem:[%s0 + $0xca] sm:$0xff]
  %v664 = vld [vmem:[%s0 + $0xd2] sm:$0xff]
  %v665 = vld [vmem:[%s0 + $0xda] sm:$0xff]
  %v666 = vld [vmem:[%s0 + $0xe2] sm:$0xff]
  %v667 = vld [vmem:[%s0 + $0xea] sm:$0xff]
  %v668 = vld [vmem:[%s0 + $0xf2] sm:$0xff]
  %v669 = vld [vmem:[%s0 + $0xfa] sm:$0xff]
  %v670 = vld [vmem:[%s0 + $0x102] sm:$0xff]
  %v671 = vld [vmem:[%s0 + $0x10a] sm:$0xff]
  %v672 = vld [vmem:[%s0 + $0x112] sm:$0xff]
  %v673 = vld [vmem:[%s0 + $0x11a] sm:$0xff]
  %v674 = vld [vmem:[%s0 + $0x122] sm:$0xff]
  %v675 = vld [vmem:[%s0 + $0x12a] sm:$0xff]
  %v676 = vld [vmem:[%s0 + $0x132] sm:$0xff]
  %v677 = vld [vmem:[%s0 + $0x13a] sm:$0xff]
  %v678 = vld [vmem:[%s0 + $0x142] sm:$0xff]
  %v679 = vld [vmem:[%s0 + $0x14a] sm:$0xff]
  %v680 = vld [vmem:[%s0 + $0x152] sm:$0xff]
  %v681 = vld [vmem:[%s0 + $0x15a] sm:$0xff]
  %v682 = vld [vmem:[%s0 + $0x162] sm:$0xff]
  %v683 = vld [vmem:[%s0 + $0x16a] sm:$0xff]
  %v684 = vld [vmem:[%s0 + $0x172] sm:$0xff]
  %v685 = vld [vmem:[%s0 + $0x17a] sm:$0xff]
  %v686 = vld [vmem:[%s0 + $0x182] sm:$0xff]
  %v687 = vld [vmem:[%s0 + $0x18a] sm:$0xff]
  %v688 = vld [vmem:[%s0 + $0x192] sm:$0xff]
  %v689 = vld [vmem:[%s0 + $0x19a] sm:$0xff]
  %v690 = vld [vmem:[%s0 + $0x1a2] sm:$0xff]
  %v691 = vld [vmem:[%s0 + $0x1aa] sm:$0xff]
  %v692 = vld [vmem:[%s0 + $0x1b2] sm:$0xff]
  %v693 = vld [vmem:[%s0 + $0x1ba] sm:$0xff]
  %v694 = vld [vmem:[%s0 + $0x1c2] sm:$0xff]
  %v695 = vld [vmem:[%s0 + $0x1ca] sm:$0xff]
  %v696 = vld [vmem:[%s0 + $0x1d2] sm:$0xff]
  %v697 = vld [vmem:[%s0 + $0x1da] sm:$0xff]
  %v698 = vld [vmem:[%s0 + $0x1e2] sm:$0xff]
  %v699 = vld [vmem:[%s0 + $0x1ea] sm:$0xff]
  %v700 = vld [vmem:[%s0 + $0x1f2] sm:$0xff]
  %v701 = vld [vmem:[%s0 + $0x1fa] sm:$0xff]
  %v702 = vld [vmem:[%s0 + $0x202] sm:$0xff]
  %v703 = vld [vmem:[%s0 + $0x20a] sm:$0xff]
  %v704 = vld [vmem:[%s0 + $0x212] sm:$0xff]
  %v705 = vld [vmem:[%s0 + $0x21a] sm:$0xff]
  %v706 = vld [vmem:[%s0 + $0x222] sm:$0xff]
  %v707 = vld [vmem:[%s0 + $0x22a] sm:$0xff]
  %v708 = vld [vmem:[%s0 + $0x232] sm:$0xff]
  %v709 = vld [vmem:[%s0 + $0x23a] sm:$0xff]
  %v710 = vld [vmem:[%s0 + $0x242] sm:$0xff]
  %v711 = vld [vmem:[%s0 + $0x24a] sm:$0xff]
  %v712 = vld [vmem:[%s0 + $0x252] sm:$0xff]
  %v713 = vld [vmem:[%s0 + $0x25a] sm:$0xff]
  %v714 = vld [vmem:[%s0 + $0x262] sm:$0xff]
  %792 = vrot.lane.b32.xlu0 %v638, 16
  %v793 = vpop.permute.xlu0 %792
  %794 = vrot.lane.b32.xlu0 %v639, 16
  %v795 = vpop.permute.xlu0 %794
  %796 = vrot.lane.b32.xlu0 %v640, 16
  %v797 = vpop.permute.xlu0 %796
  %798 = vrot.lane.b32.xlu0 %v641, 16
  %v799 = vpop.permute.xlu0 %798
  %800 = vrot.lane.b32.xlu0 %v642, 16
  %v801 = vpop.permute.xlu0 %800
  %802 = vrot.lane.b32.xlu0 %v643, 16
  %v803 = vpop.permute.xlu0 %802
  %804 = vrot.lane.b32.xlu0 %v644, 16
  %v805 = vpop.permute.xlu0 %804
  %806 = vrot.lane.b32.xlu0 %v645, 16
  %v807 = vpop.permute.xlu0 %806
  %808 = vrot.lane.b32.xlu0 %v646, 16
  %v809 = vpop.permute.xlu0 %808
  %810 = vrot.lane.b32.xlu0 %v647, 16
  %v811 = vpop.permute.xlu0 %810
  %812 = vrot.lane.b32.xlu0 %v648, 16
  %v813 = vpop.permute.xlu0 %812
  %814 = vrot.lane.b32.xlu0 %v649, 16
  %v815 = vpop.permute.xlu0 %814
  %816 = vrot.lane.b32.xlu0 %v650, 16
  %v817 = vpop.permute.xlu0 %816
  %818 = vrot.lane.b32.xlu0 %v651, 16
  %v819 = vpop.permute.xlu0 %818
  %820 = vrot.lane.b32.xlu0 %v652, 16
  %v821 = vpop.permute.xlu0 %820
  %822 = vrot.lane.b32.xlu0 %v653, 16
  %v823 = vpop.permute.xlu0 %822
  %824 = vrot.lane.b32.xlu0 %v654, 16
  %v825 = vpop.permute.xlu0 %824
  %826 = vrot.lane.b32.xlu0 %v655, 16
  %v827 = vpop.permute.xlu0 %826
  %828 = vrot.lane.b32.xlu0 %v656, 16
  %v829 = vpop.permute.xlu0 %828
  %830 = vrot.lane.b32.xlu0 %v657, 16
  %v831 = vpop.permute.xlu0 %830
  %832 = vrot.lane.b32.xlu0 %v658, 16
  %v833 = vpop.permute.xlu0 %832
  %834 = vrot.lane.b32.xlu0 %v659, 16
  %v835 = vpop.permute.xlu0 %834
  %836 = vrot.lane.b32.xlu0 %v660, 16
  %v837 = vpop.permute.xlu0 %836
  %838 = vrot.lane.b32.xlu0 %v661, 16
  %v839 = vpop.permute.xlu0 %838
  %840 = vrot.lane.b32.xlu0 %v662, 16
  %v841 = vpop.permute.xlu0 %840
  %842 = vrot.lane.b32.xlu0 %v663, 16
  %v843 = vpop.permute.xlu0 %842
  %844 = vrot.lane.b32.xlu0 %v664, 16
  %v845 = vpop.permute.xlu0 %844
  %846 = vrot.lane.b32.xlu0 %v665, 16
  %v847 = vpop.permute.xlu0 %846
  %848 = vrot.lane.b32.xlu0 %v666, 16
  %v849 = vpop.permute.xlu0 %848
  %850 = vrot.lane.b32.xlu0 %v667, 16
  %v851 = vpop.permute.xlu0 %850
  %852 = vrot.lane.b32.xlu0 %v668, 16
  %v853 = vpop.permute.xlu0 %852
  %854 = vrot.lane.b32.xlu0 %v669, 16
  %v855 = vpop.permute.xlu0 %854
  %856 = vrot.lane.b32.xlu0 %v670, 16
  %v857 = vpop.permute.xlu0 %856
  %858 = vrot.lane.b32.xlu0 %v671, 16
  %v859 = vpop.permute.xlu0 %858
  %860 = vrot.lane.b32.xlu0 %v672, 16
  %v861 = vpop.permute.xlu0 %860
  %862 = vrot.lane.b32.xlu0 %v673, 16
  %v863 = vpop.permute.xlu0 %862
  %864 = vrot.lane.b32.xlu0 %v674, 16
  %v865 = vpop.permute.xlu0 %864
  %866 = vrot.lane.b32.xlu0 %v675, 16
  %v867 = vpop.permute.xlu0 %866
  %868 = vrot.lane.b32.xlu0 %v676, 16
  %v869 = vpop.permute.xlu0 %868
  %870 = vrot.lane.b32.xlu0 %v677, 16
  %v871 = vpop.permute.xlu0 %870
  %872 = vrot.lane.b32.xlu0 %v678, 16
  %v873 = vpop.permute.xlu0 %872
  %874 = vrot.lane.b32.xlu0 %v679, 16
  %v875 = vpop.permute.xlu0 %874
  %876 = vrot.lane.b32.xlu0 %v680, 16
  %v877 = vpop.permute.xlu0 %876
  %878 = vrot.lane.b32.xlu0 %v681, 16
  %v879 = vpop.permute.xlu0 %878
  %880 = vrot.lane.b32.xlu0 %v682, 16
  %v881 = vpop.permute.xlu0 %880
  %882 = vrot.lane.b32.xlu0 %v683, 16
  %v883 = vpop.permute.xlu0 %882
  %884 = vrot.lane.b32.xlu0 %v684, 16
  %v885 = vpop.permute.xlu0 %884
  %886 = vrot.lane.b32.xlu0 %v685, 16
  %v887 = vpop.permute.xlu0 %886
  %888 = vrot.lane.b32.xlu0 %v686, 16
  %v889 = vpop.permute.xlu0 %888
  %890 = vrot.lane.b32.xlu0 %v687, 16
  %v891 = vpop.permute.xlu0 %890
  %892 = vrot.lane.b32.xlu0 %v688, 16
  %v893 = vpop.permute.xlu0 %892
  %894 = vrot.lane.b32.xlu0 %v689, 16
  %v895 = vpop.permute.xlu0 %894
  %896 = vrot.lane.b32.xlu0 %v690, 16
  %v897 = vpop.permute.xlu0 %896
  %898 = vrot.lane.b32.xlu0 %v691, 16
  %v899 = vpop.permute.xlu0 %898
  %900 = vrot.lane.b32.xlu0 %v692, 16
  %v901 = vpop.permute.xlu0 %900
  %902 = vrot.lane.b32.xlu0 %v693, 16
  %v903 = vpop.permute.xlu0 %902
  %904 = vrot.lane.b32.xlu0 %v694, 16
  %v905 = vpop.permute.xlu0 %904
  %906 = vrot.lane.b32.xlu0 %v695, 16
  %v907 = vpop.permute.xlu0 %906
  %908 = vrot.lane.b32.xlu0 %v696, 16
  %v909 = vpop.permute.xlu0 %908
  %910 = vrot.lane.b32.xlu0 %v697, 16
  %v911 = vpop.permute.xlu0 %910
  %912 = vrot.lane.b32.xlu0 %v698, 16
  %v913 = vpop.permute.xlu0 %912
  %914 = vrot.lane.b32.xlu0 %v699, 16
  %v915 = vpop.permute.xlu0 %914
  %916 = vrot.lane.b32.xlu0 %v700, 16
  %v917 = vpop.permute.xlu0 %916
  %918 = vrot.lane.b32.xlu0 %v701, 16
  %v919 = vpop.permute.xlu0 %918
  %920 = vrot.lane.b32.xlu0 %v702, 16
  %v921 = vpop.permute.xlu0 %920
  %922 = vrot.lane.b32.xlu0 %v703, 16
  %v923 = vpop.permute.xlu0 %922
  %924 = vrot.lane.b32.xlu0 %v704, 16
  %v925 = vpop.permute.xlu0 %924
  %926 = vrot.lane.b32.xlu0 %v705, 16
  %v927 = vpop.permute.xlu0 %926
  %928 = vrot.lane.b32.xlu0 %v706, 16
  %v929 = vpop.permute.xlu0 %928
  %930 = vrot.lane.b32.xlu0 %v707, 16
  %v931 = vpop.permute.xlu0 %930
  %932 = vrot.lane.b32.xlu0 %v708, 16
  %v933 = vpop.permute.xlu0 %932
  %934 = vrot.lane.b32.xlu0 %v709, 16
  %v935 = vpop.permute.xlu0 %934
  %936 = vrot.lane.b32.xlu0 %v710, 16
  %v937 = vpop.permute.xlu0 %936
  %938 = vrot.lane.b32.xlu0 %v711, 16
  %v939 = vpop.permute.xlu0 %938
  %940 = vrot.lane.b32.xlu0 %v712, 16
  %v941 = vpop.permute.xlu0 %940
  %942 = vrot.lane.b32.xlu0 %v713, 16
  %v943 = vpop.permute.xlu0 %942
  %944 = vrot.lane.b32.xlu0 %v714, 16
  %v945 = vpop.permute.xlu0 %944
  %vm1023 = vcmask 195712
  %1024 = vst.msk [vmem:[#allocation2] sm:$0xff] %vm1023, %v793
  %1025 = vst.msk [vmem:[#allocation2 + $0x8] sm:$0xff] %vm1023, %v795
  %1026 = vst.msk [vmem:[#allocation2 + $0x10] sm:$0xff] %vm1023, %v797
  %1027 = vst.msk [vmem:[#allocation2 + $0x18] sm:$0xff] %vm1023, %v799
  %1028 = vst.msk [vmem:[#allocation2 + $0x20] sm:$0xff] %vm1023, %v801
  %1029 = vst.msk [vmem:[#allocation2 + $0x28] sm:$0xff] %vm1023, %v803
  %1030 = vst.msk [vmem:[#allocation2 + $0x30] sm:$0xff] %vm1023, %v805
  %1031 = vst.msk [vmem:[#allocation2 + $0x38] sm:$0xff] %vm1023, %v807
  %1032 = vst.msk [vmem:[#allocation2 + $0x40] sm:$0xff] %vm1023, %v809
  %1033 = vst.msk [vmem:[#allocation2 + $0x48] sm:$0xff] %vm1023, %v811
  %1034 = vst.msk [vmem:[#allocation2 + $0x50] sm:$0xff] %vm1023, %v813
  %1035 = vst.msk [vmem:[#allocation2 + $0x58] sm:$0xff] %vm1023, %v815
  %1036 = vst.msk [vmem:[#allocation2 + $0x60] sm:$0xff] %vm1023, %v817
  %1037 = vst.msk [vmem:[#allocation2 + $0x68] sm:$0xff] %vm1023, %v819
  %1038 = vst.msk [vmem:[#allocation2 + $0x70] sm:$0xff] %vm1023, %v821
  %1039 = vst.msk [vmem:[#allocation2 + $0x78] sm:$0xff] %vm1023, %v823
  %1040 = vst.msk [vmem:[#allocation2 + $0x80] sm:$0xff] %vm1023, %v825
  %1041 = vst.msk [vmem:[#allocation2 + $0x88] sm:$0xff] %vm1023, %v827
  %1042 = vst.msk [vmem:[#allocation2 + $0x90] sm:$0xff] %vm1023, %v829
  %1043 = vst.msk [vmem:[#allocation2 + $0x98] sm:$0xff] %vm1023, %v831
  %1044 = vst.msk [vmem:[#allocation2 + $0xa0] sm:$0xff] %vm1023, %v833
  %1045 = vst.msk [vmem:[#allocation2 + $0xa8] sm:$0xff] %vm1023, %v835
  %1046 = vst.msk [vmem:[#allocation2 + $0xb0] sm:$0xff] %vm1023, %v837
  %1047 = vst.msk [vmem:[#allocation2 + $0xb8] sm:$0xff] %vm1023, %v839
  %1048 = vst.msk [vmem:[#allocation2 + $0xc0] sm:$0xff] %vm1023, %v841
  %1049 = vst.msk [vmem:[#allocation2 + $0xc8] sm:$0xff] %vm1023, %v843
  %1050 = vst.msk [vmem:[#allocation2 + $0xd0] sm:$0xff] %vm1023, %v845
  %1051 = vst.msk [vmem:[#allocation2 + $0xd8] sm:$0xff] %vm1023, %v847
  %1052 = vst.msk [vmem:[#allocation2 + $0xe0] sm:$0xff] %vm1023, %v849
  %1053 = vst.msk [vmem:[#allocation2 + $0xe8] sm:$0xff] %vm1023, %v851
  %1054 = vst.msk [vmem:[#allocation2 + $0xf0] sm:$0xff] %vm1023, %v853
  %1055 = vst.msk [vmem:[#allocation2 + $0xf8] sm:$0xff] %vm1023, %v855
  %1056 = vst.msk [vmem:[#allocation2 + $0x100] sm:$0xff] %vm1023, %v857
  %1057 = vst.msk [vmem:[#allocation2 + $0x108] sm:$0xff] %vm1023, %v859
  %1058 = vst.msk [vmem:[#allocation2 + $0x110] sm:$0xff] %vm1023, %v861
  %1059 = vst.msk [vmem:[#allocation2 + $0x118] sm:$0xff] %vm1023, %v863
  %1060 = vst.msk [vmem:[#allocation2 + $0x120] sm:$0xff] %vm1023, %v865
  %1061 = vst.msk [vmem:[#allocation2 + $0x128] sm:$0xff] %vm1023, %v867
  %1062 = vst.msk [vmem:[#allocation2 + $0x130] sm:$0xff] %vm1023, %v869
  %1063 = vst.msk [vmem:[#allocation2 + $0x138] sm:$0xff] %vm1023, %v871
  %1064 = vst.msk [vmem:[#allocation2 + $0x140] sm:$0xff] %vm1023, %v873
  %1065 = vst.msk [vmem:[#allocation2 + $0x148] sm:$0xff] %vm1023, %v875
  %1066 = vst.msk [vmem:[#allocation2 + $0x150] sm:$0xff] %vm1023, %v877
  %1067 = vst.msk [vmem:[#allocation2 + $0x158] sm:$0xff] %vm1023, %v879
  %1068 = vst.msk [vmem:[#allocation2 + $0x160] sm:$0xff] %vm1023, %v881
  %1069 = vst.msk [vmem:[#allocation2 + $0x168] sm:$0xff] %vm1023, %v883
  %1070 = vst.msk [vmem:[#allocation2 + $0x170] sm:$0xff] %vm1023, %v885
  %1071 = vst.msk [vmem:[#allocation2 + $0x178] sm:$0xff] %vm1023, %v887
  %1072 = vst.msk [vmem:[#allocation2 + $0x180] sm:$0xff] %vm1023, %v889
  %1073 = vst.msk [vmem:[#allocation2 + $0x188] sm:$0xff] %vm1023, %v891
  %1074 = vst.msk [vmem:[#allocation2 + $0x190] sm:$0xff] %vm1023, %v893
  %1075 = vst.msk [vmem:[#allocation2 + $0x198] sm:$0xff] %vm1023, %v895
  %1076 = vst.msk [vmem:[#allocation2 + $0x1a0] sm:$0xff] %vm1023, %v897
  %1077 = vst.msk [vmem:[#allocation2 + $0x1a8] sm:$0xff] %vm1023, %v899
  %1078 = vst.msk [vmem:[#allocation2 + $0x1b0] sm:$0xff] %vm1023, %v901
  %1079 = vst.msk [vmem:[#allocation2 + $0x1b8] sm:$0xff] %vm1023, %v903
  %1080 = vst.msk [vmem:[#allocation2 + $0x1c0] sm:$0xff] %vm1023, %v905
  %1081 = vst.msk [vmem:[#allocation2 + $0x1c8] sm:$0xff] %vm1023, %v907
  %1082 = vst.msk [vmem:[#allocation2 + $0x1d0] sm:$0xff] %vm1023, %v909
  %1083 = vst.msk [vmem:[#allocation2 + $0x1d8] sm:$0xff] %vm1023, %v911
  %1084 = vst.msk [vmem:[#allocation2 + $0x1e0] sm:$0xff] %vm1023, %v913
  %1085 = vst.msk [vmem:[#allocation2 + $0x1e8] sm:$0xff] %vm1023, %v915
  %1086 = vst.msk [vmem:[#allocation2 + $0x1f0] sm:$0xff] %vm1023, %v917
  %1087 = vst.msk [vmem:[#allocation2 + $0x1f8] sm:$0xff] %vm1023, %v919
  %1088 = vst.msk [vmem:[#allocation2 + $0x200] sm:$0xff] %vm1023, %v921
  %1089 = vst.msk [vmem:[#allocation2 + $0x208] sm:$0xff] %vm1023, %v923
  %1090 = vst.msk [vmem:[#allocation2 + $0x210] sm:$0xff] %vm1023, %v925
  %1091 = vst.msk [vmem:[#allocation2 + $0x218] sm:$0xff] %vm1023, %v927
  %1092 = vst.msk [vmem:[#allocation2 + $0x220] sm:$0xff] %vm1023, %v929
  %1093 = vst.msk [vmem:[#allocation2 + $0x228] sm:$0xff] %vm1023, %v931
  %1094 = vst.msk [vmem:[#allocation2 + $0x230] sm:$0xff] %vm1023, %v933
  %1095 = vst.msk [vmem:[#allocation2 + $0x238] sm:$0xff] %vm1023, %v935
  %1096 = vst.msk [vmem:[#allocation2 + $0x240] sm:$0xff] %vm1023, %v937
  %1097 = vst.msk [vmem:[#allocation2 + $0x248] sm:$0xff] %vm1023, %v939
  %1098 = vst.msk [vmem:[#allocation2 + $0x250] sm:$0xff] %vm1023, %v941
  %1099 = vst.msk [vmem:[#allocation2 + $0x258] sm:$0xff] %vm1023, %v943
  %1100 = vst.msk [vmem:[#allocation2 + $0x260] sm:$0xff] %vm1023, %v945
  %v1101 = vld [vmem:[%s0 + $0x12] sm:$0xff]
  %v1102 = vld [vmem:[%s0 + $0x1a] sm:$0xff]
  %v1103 = vld [vmem:[%s0 + $0x22] sm:$0xff]
  %v1104 = vld [vmem:[%s0 + $0x2a] sm:$0xff]
  %v1105 = vld [vmem:[%s0 + $0x32] sm:$0xff]
  %v1106 = vld [vmem:[%s0 + $0x3a] sm:$0xff]
  %v1107 = vld [vmem:[%s0 + $0x42] sm:$0xff]
  %v1108 = vld [vmem:[%s0 + $0x4a] sm:$0xff]
  %v1109 = vld [vmem:[%s0 + $0x52] sm:$0xff]
  %v1110 = vld [vmem:[%s0 + $0x5a] sm:$0xff]
  %v1111 = vld [vmem:[%s0 + $0x62] sm:$0xff]
  %v1112 = vld [vmem:[%s0 + $0x6a] sm:$0xff]
  %v1113 = vld [vmem:[%s0 + $0x72] sm:$0xff]
  %v1114 = vld [vmem:[%s0 + $0x7a] sm:$0xff]
  %v1115 = vld [vmem:[%s0 + $0x82] sm:$0xff]
  %v1116 = vld [vmem:[%s0 + $0x8a] sm:$0xff]
  %v1117 = vld [vmem:[%s0 + $0x92] sm:$0xff]
  %v1118 = vld [vmem:[%s0 + $0x9a] sm:$0xff]
  %v1119 = vld [vmem:[%s0 + $0xa2] sm:$0xff]
  %v1120 = vld [vmem:[%s0 + $0xaa] sm:$0xff]
  %v1121 = vld [vmem:[%s0 + $0xb2] sm:$0xff]
  %v1122 = vld [vmem:[%s0 + $0xba] sm:$0xff]
  %v1123 = vld [vmem:[%s0 + $0xc2] sm:$0xff]
  %v1124 = vld [vmem:[%s0 + $0xca] sm:$0xff]
  %v1125 = vld [vmem:[%s0 + $0xd2] sm:$0xff]
  %v1126 = vld [vmem:[%s0 + $0xda] sm:$0xff]
  %v1127 = vld [vmem:[%s0 + $0xe2] sm:$0xff]
  %v1128 = vld [vmem:[%s0 + $0xea] sm:$0xff]
  %v1129 = vld [vmem:[%s0 + $0xf2] sm:$0xff]
  %v1130 = vld [vmem:[%s0 + $0xfa] sm:$0xff]
  %v1131 = vld [vmem:[%s0 + $0x102] sm:$0xff]
  %v1132 = vld [vmem:[%s0 + $0x10a] sm:$0xff]
  %v1133 = vld [vmem:[%s0 + $0x112] sm:$0xff]
  %v1134 = vld [vmem:[%s0 + $0x11a] sm:$0xff]
  %v1135 = vld [vmem:[%s0 + $0x122] sm:$0xff]
  %v1136 = vld [vmem:[%s0 + $0x12a] sm:$0xff]
  %v1137 = vld [vmem:[%s0 + $0x132] sm:$0xff]
  %v1138 = vld [vmem:[%s0 + $0x13a] sm:$0xff]
  %v1139 = vld [vmem:[%s0 + $0x142] sm:$0xff]
  %v1140 = vld [vmem:[%s0 + $0x14a] sm:$0xff]
  %v1141 = vld [vmem:[%s0 + $0x152] sm:$0xff]
  %v1142 = vld [vmem:[%s0 + $0x15a] sm:$0xff]
  %v1143 = vld [vmem:[%s0 + $0x162] sm:$0xff]
  %v1144 = vld [vmem:[%s0 + $0x16a] sm:$0xff]
  %v1145 = vld [vmem:[%s0 + $0x172] sm:$0xff]
  %v1146 = vld [vmem:[%s0 + $0x17a] sm:$0xff]
  %v1147 = vld [vmem:[%s0 + $0x182] sm:$0xff]
  %v1148 = vld [vmem:[%s0 + $0x18a] sm:$0xff]
  %v1149 = vld [vmem:[%s0 + $0x192] sm:$0xff]
  %v1150 = vld [vmem:[%s0 + $0x19a] sm:$0xff]
  %v1151 = vld [vmem:[%s0 + $0x1a2] sm:$0xff]
  %v1152 = vld [vmem:[%s0 + $0x1aa] sm:$0xff]
  %v1153 = vld [vmem:[%s0 + $0x1b2] sm:$0xff]
  %v1154 = vld [vmem:[%s0 + $0x1ba] sm:$0xff]
  %v1155 = vld [vmem:[%s0 + $0x1c2] sm:$0xff]
  %v1156 = vld [vmem:[%s0 + $0x1ca] sm:$0xff]
  %v1157 = vld [vmem:[%s0 + $0x1d2] sm:$0xff]
  %v1158 = vld [vmem:[%s0 + $0x1da] sm:$0xff]
  %v1159 = vld [vmem:[%s0 + $0x1e2] sm:$0xff]
  %v1160 = vld [vmem:[%s0 + $0x1ea] sm:$0xff]
  %v1161 = vld [vmem:[%s0 + $0x1f2] sm:$0xff]
  %v1162 = vld [vmem:[%s0 + $0x1fa] sm:$0xff]
  %v1163 = vld [vmem:[%s0 + $0x202] sm:$0xff]
  %v1164 = vld [vmem:[%s0 + $0x20a] sm:$0xff]
  %v1165 = vld [vmem:[%s0 + $0x212] sm:$0xff]
  %v1166 = vld [vmem:[%s0 + $0x21a] sm:$0xff]
  %v1167 = vld [vmem:[%s0 + $0x222] sm:$0xff]
  %v1168 = vld [vmem:[%s0 + $0x22a] sm:$0xff]
  %v1169 = vld [vmem:[%s0 + $0x232] sm:$0xff]
  %v1170 = vld [vmem:[%s0 + $0x23a] sm:$0xff]
  %v1171 = vld [vmem:[%s0 + $0x242] sm:$0xff]
  %v1172 = vld [vmem:[%s0 + $0x24a] sm:$0xff]
  %v1173 = vld [vmem:[%s0 + $0x252] sm:$0xff]
  %v1174 = vld [vmem:[%s0 + $0x25a] sm:$0xff]
  %v1175 = vld [vmem:[%s0 + $0x262] sm:$0xff]
  %v1176 = vld [vmem:[%s0 + $0x26a] sm:$0xff]
  %v1177 = vld [vmem:[%s0 + $0x272] sm:$0xff]
  %1255 = vrot.lane.b32.xlu0 %v1101, 24
  %v1256 = vpop.permute.xlu0 %1255
  %1257 = vrot.lane.b32.xlu0 %v1102, 24
  %v1258 = vpop.permute.xlu0 %1257
  %1259 = vrot.lane.b32.xlu0 %v1103, 24
  %v1260 = vpop.permute.xlu0 %1259
  %1261 = vrot.lane.b32.xlu0 %v1104, 24
  %v1262 = vpop.permute.xlu0 %1261
  %1263 = vrot.lane.b32.xlu0 %v1105, 24
  %v1264 = vpop.permute.xlu0 %1263
  %1265 = vrot.lane.b32.xlu0 %v1106, 24
  %v1266 = vpop.permute.xlu0 %1265
  %1267 = vrot.lane.b32.xlu0 %v1107, 24
  %v1268 = vpop.permute.xlu0 %1267
  %1269 = vrot.lane.b32.xlu0 %v1108, 24
  %v1270 = vpop.permute.xlu0 %1269
  %1271 = vrot.lane.b32.xlu0 %v1109, 24
  %v1272 = vpop.permute.xlu0 %1271
  %1273 = vrot.lane.b32.xlu0 %v1110, 24
  %v1274 = vpop.permute.xlu0 %1273
  %1275 = vrot.lane.b32.xlu0 %v1111, 24
  %v1276 = vpop.permute.xlu0 %1275
  %1277 = vrot.lane.b32.xlu0 %v1112, 24
  %v1278 = vpop.permute.xlu0 %1277
  %1279 = vrot.lane.b32.xlu0 %v1113, 24
  %v1280 = vpop.permute.xlu0 %1279
  %1281 = vrot.lane.b32.xlu0 %v1114, 24
  %v1282 = vpop.permute.xlu0 %1281
  %1283 = vrot.lane.b32.xlu0 %v1115, 24
  %v1284 = vpop.permute.xlu0 %1283
  %1285 = vrot.lane.b32.xlu0 %v1116, 24
  %v1286 = vpop.permute.xlu0 %1285
  %1287 = vrot.lane.b32.xlu0 %v1117, 24
  %v1288 = vpop.permute.xlu0 %1287
  %1289 = vrot.lane.b32.xlu0 %v1118, 24
  %v1290 = vpop.permute.xlu0 %1289
  %1291 = vrot.lane.b32.xlu0 %v1119, 24
  %v1292 = vpop.permute.xlu0 %1291
  %1293 = vrot.lane.b32.xlu0 %v1120, 24
  %v1294 = vpop.permute.xlu0 %1293
  %1295 = vrot.lane.b32.xlu0 %v1121, 24
  %v1296 = vpop.permute.xlu0 %1295
  %1297 = vrot.lane.b32.xlu0 %v1122, 24
  %v1298 = vpop.permute.xlu0 %1297
  %1299 = vrot.lane.b32.xlu0 %v1123, 24
  %v1300 = vpop.permute.xlu0 %1299
  %1301 = vrot.lane.b32.xlu0 %v1124, 24
  %v1302 = vpop.permute.xlu0 %1301
  %1303 = vrot.lane.b32.xlu0 %v1125, 24
  %v1304 = vpop.permute.xlu0 %1303
  %1305 = vrot.lane.b32.xlu0 %v1126, 24
  %v1306 = vpop.permute.xlu0 %1305
  %1307 = vrot.lane.b32.xlu0 %v1127, 24
  %v1308 = vpop.permute.xlu0 %1307
  %1309 = vrot.lane.b32.xlu0 %v1128, 24
  %v1310 = vpop.permute.xlu0 %1309
  %1311 = vrot.lane.b32.xlu0 %v1129, 24
  %v1312 = vpop.permute.xlu0 %1311
  %1313 = vrot.lane.b32.xlu0 %v1130, 24
  %v1314 = vpop.permute.xlu0 %1313
  %1315 = vrot.lane.b32.xlu0 %v1131, 24
  %v1316 = vpop.permute.xlu0 %1315
  %1317 = vrot.lane.b32.xlu0 %v1132, 24
  %v1318 = vpop.permute.xlu0 %1317
  %1319 = vrot.lane.b32.xlu0 %v1133, 24
  %v1320 = vpop.permute.xlu0 %1319
  %1321 = vrot.lane.b32.xlu0 %v1134, 24
  %v1322 = vpop.permute.xlu0 %1321
  %1323 = vrot.lane.b32.xlu0 %v1135, 24
  %v1324 = vpop.permute.xlu0 %1323
  %1325 = vrot.lane.b32.xlu0 %v1136, 24
  %v1326 = vpop.permute.xlu0 %1325
  %1327 = vrot.lane.b32.xlu0 %v1137, 24
  %v1328 = vpop.permute.xlu0 %1327
  %1329 = vrot.lane.b32.xlu0 %v1138, 24
  %v1330 = vpop.permute.xlu0 %1329
  %1331 = vrot.lane.b32.xlu0 %v1139, 24
  %v1332 = vpop.permute.xlu0 %1331
  %1333 = vrot.lane.b32.xlu0 %v1140, 24
  %v1334 = vpop.permute.xlu0 %1333
  %1335 = vrot.lane.b32.xlu0 %v1141, 24
  %v1336 = vpop.permute.xlu0 %1335
  %1337 = vrot.lane.b32.xlu0 %v1142, 24
  %v1338 = vpop.permute.xlu0 %1337
  %1339 = vrot.lane.b32.xlu0 %v1143, 24
  %v1340 = vpop.permute.xlu0 %1339
  %1341 = vrot.lane.b32.xlu0 %v1144, 24
  %v1342 = vpop.permute.xlu0 %1341
  %1343 = vrot.lane.b32.xlu0 %v1145, 24
  %v1344 = vpop.permute.xlu0 %1343
  %1345 = vrot.lane.b32.xlu0 %v1146, 24
  %v1346 = vpop.permute.xlu0 %1345
  %1347 = vrot.lane.b32.xlu0 %v1147, 24
  %v1348 = vpop.permute.xlu0 %1347
  %1349 = vrot.lane.b32.xlu0 %v1148, 24
  %v1350 = vpop.permute.xlu0 %1349
  %1351 = vrot.lane.b32.xlu0 %v1149, 24
  %v1352 = vpop.permute.xlu0 %1351
  %1353 = vrot.lane.b32.xlu0 %v1150, 24
  %v1354 = vpop.permute.xlu0 %1353
  %1355 = vrot.lane.b32.xlu0 %v1151, 24
  %v1356 = vpop.permute.xlu0 %1355
  %1357 = vrot.lane.b32.xlu0 %v1152, 24
  %v1358 = vpop.permute.xlu0 %1357
  %1359 = vrot.lane.b32.xlu0 %v1153, 24
  %v1360 = vpop.permute.xlu0 %1359
  %1361 = vrot.lane.b32.xlu0 %v1154, 24
  %v1362 = vpop.permute.xlu0 %1361
  %1363 = vrot.lane.b32.xlu0 %v1155, 24
  %v1364 = vpop.permute.xlu0 %1363
  %1365 = vrot.lane.b32.xlu0 %v1156, 24
  %v1366 = vpop.permute.xlu0 %1365
  %1367 = vrot.lane.b32.xlu0 %v1157, 24
  %v1368 = vpop.permute.xlu0 %1367
  %1369 = vrot.lane.b32.xlu0 %v1158, 24
  %v1370 = vpop.permute.xlu0 %1369
  %1371 = vrot.lane.b32.xlu0 %v1159, 24
  %v1372 = vpop.permute.xlu0 %1371
  %1373 = vrot.lane.b32.xlu0 %v1160, 24
  %v1374 = vpop.permute.xlu0 %1373
  %1375 = vrot.lane.b32.xlu0 %v1161, 24
  %v1376 = vpop.permute.xlu0 %1375
  %1377 = vrot.lane.b32.xlu0 %v1162, 24
  %v1378 = vpop.permute.xlu0 %1377
  %1379 = vrot.lane.b32.xlu0 %v1163, 24
  %v1380 = vpop.permute.xlu0 %1379
  %1381 = vrot.lane.b32.xlu0 %v1164, 24
  %v1382 = vpop.permute.xlu0 %1381
  %1383 = vrot.lane.b32.xlu0 %v1165, 24
  %v1384 = vpop.permute.xlu0 %1383
  %1385 = vrot.lane.b32.xlu0 %v1166, 24
  %v1386 = vpop.permute.xlu0 %1385
  %1387 = vrot.lane.b32.xlu0 %v1167, 24
  %v1388 = vpop.permute.xlu0 %1387
  %1389 = vrot.lane.b32.xlu0 %v1168, 24
  %v1390 = vpop.permute.xlu0 %1389
  %1391 = vrot.lane.b32.xlu0 %v1169, 24
  %v1392 = vpop.permute.xlu0 %1391
  %1393 = vrot.lane.b32.xlu0 %v1170, 24
  %v1394 = vpop.permute.xlu0 %1393
  %1395 = vrot.lane.b32.xlu0 %v1171, 24
  %v1396 = vpop.permute.xlu0 %1395
  %1397 = vrot.lane.b32.xlu0 %v1172, 24
  %v1398 = vpop.permute.xlu0 %1397
  %1399 = vrot.lane.b32.xlu0 %v1173, 24
  %v1400 = vpop.permute.xlu0 %1399
  %1401 = vrot.lane.b32.xlu0 %v1174, 24
  %v1402 = vpop.permute.xlu0 %1401
  %1403 = vrot.lane.b32.xlu0 %v1175, 24
  %v1404 = vpop.permute.xlu0 %1403
  %1405 = vrot.lane.b32.xlu0 %v1176, 24
  %v1406 = vpop.permute.xlu0 %1405
  %1407 = vrot.lane.b32.xlu0 %v1177, 24
  %v1408 = vpop.permute.xlu0 %1407
  %vm1486 = vcmask 261312
  %1487 = vst.msk [vmem:[#allocation2] sm:$0xff] %vm1486, %v1256
  %1488 = vst.msk [vmem:[#allocation2 + $0x8] sm:$0xff] %vm1486, %v1258
  %1489 = vst.msk [vmem:[#allocation2 + $0x10] sm:$0xff] %vm1486, %v1260
  %1490 = vst.msk [vmem:[#allocation2 + $0x18] sm:$0xff] %vm1486, %v1262
  %1491 = vst.msk [vmem:[#allocation2 + $0x20] sm:$0xff] %vm1486, %v1264
  %1492 = vst.msk [vmem:[#allocation2 + $0x28] sm:$0xff] %vm1486, %v1266
  %1493 = vst.msk [vmem:[#allocation2 + $0x30] sm:$0xff] %vm1486, %v1268
  %1494 = vst.msk [vmem:[#allocation2 + $0x38] sm:$0xff] %vm1486, %v1270
  %1495 = vst.msk [vmem:[#allocation2 + $0x40] sm:$0xff] %vm1486, %v1272
  %1496 = vst.msk [vmem:[#allocation2 + $0x48] sm:$0xff] %vm1486, %v1274
  %1497 = vst.msk [vmem:[#allocation2 + $0x50] sm:$0xff] %vm1486, %v1276
  %1498 = vst.msk [vmem:[#allocation2 + $0x58] sm:$0xff] %vm1486, %v1278
  %1499 = vst.msk [vmem:[#allocation2 + $0x60] sm:$0xff] %vm1486, %v1280
  %1500 = vst.msk [vmem:[#allocation2 + $0x68] sm:$0xff] %vm1486, %v1282
  %1501 = vst.msk [vmem:[#allocation2 + $0x70] sm:$0xff] %vm1486, %v1284
  %1502 = vst.msk [vmem:[#allocation2 + $0x78] sm:$0xff] %vm1486, %v1286
  %1503 = vst.msk [vmem:[#allocation2 + $0x80] sm:$0xff] %vm1486, %v1288
  %1504 = vst.msk [vmem:[#allocation2 + $0x88] sm:$0xff] %vm1486, %v1290
  %1505 = vst.msk [vmem:[#allocation2 + $0x90] sm:$0xff] %vm1486, %v1292
  %1506 = vst.msk [vmem:[#allocation2 + $0x98] sm:$0xff] %vm1486, %v1294
  %1507 = vst.msk [vmem:[#allocation2 + $0xa0] sm:$0xff] %vm1486, %v1296
  %1508 = vst.msk [vmem:[#allocation2 + $0xa8] sm:$0xff] %vm1486, %v1298
  %1509 = vst.msk [vmem:[#allocation2 + $0xb0] sm:$0xff] %vm1486, %v1300
  %1510 = vst.msk [vmem:[#allocation2 + $0xb8] sm:$0xff] %vm1486, %v1302
  %1511 = vst.msk [vmem:[#allocation2 + $0xc0] sm:$0xff] %vm1486, %v1304
  %1512 = vst.msk [vmem:[#allocation2 + $0xc8] sm:$0xff] %vm1486, %v1306
  %1513 = vst.msk [vmem:[#allocation2 + $0xd0] sm:$0xff] %vm1486, %v1308
  %1514 = vst.msk [vmem:[#allocation2 + $0xd8] sm:$0xff] %vm1486, %v1310
  %1515 = vst.msk [vmem:[#allocation2 + $0xe0] sm:$0xff] %vm1486, %v1312
  %1516 = vst.msk [vmem:[#allocation2 + $0xe8] sm:$0xff] %vm1486, %v1314
  %1517 = vst.msk [vmem:[#allocation2 + $0xf0] sm:$0xff] %vm1486, %v1316
  %1518 = vst.msk [vmem:[#allocation2 + $0xf8] sm:$0xff] %vm1486, %v1318
  %1519 = vst.msk [vmem:[#allocation2 + $0x100] sm:$0xff] %vm1486, %v1320
  %1520 = vst.msk [vmem:[#allocation2 + $0x108] sm:$0xff] %vm1486, %v1322
  %1521 = vst.msk [vmem:[#allocation2 + $0x110] sm:$0xff] %vm1486, %v1324
  %1522 = vst.msk [vmem:[#allocation2 + $0x118] sm:$0xff] %vm1486, %v1326
  %1523 = vst.msk [vmem:[#allocation2 + $0x120] sm:$0xff] %vm1486, %v1328
  %1524 = vst.msk [vmem:[#allocation2 + $0x128] sm:$0xff] %vm1486, %v1330
  %1525 = vst.msk [vmem:[#allocation2 + $0x130] sm:$0xff] %vm1486, %v1332
  %1526 = vst.msk [vmem:[#allocation2 + $0x138] sm:$0xff] %vm1486, %v1334
  %1527 = vst.msk [vmem:[#allocation2 + $0x140] sm:$0xff] %vm1486, %v1336
  %1528 = vst.msk [vmem:[#allocation2 + $0x148] sm:$0xff] %vm1486, %v1338
  %1529 = vst.msk [vmem:[#allocation2 + $0x150] sm:$0xff] %vm1486, %v1340
  %1530 = vst.msk [vmem:[#allocation2 + $0x158] sm:$0xff] %vm1486, %v1342
  %1531 = vst.msk [vmem:[#allocation2 + $0x160] sm:$0xff] %vm1486, %v1344
  %1532 = vst.msk [vmem:[#allocation2 + $0x168] sm:$0xff] %vm1486, %v1346
  %1533 = vst.msk [vmem:[#allocation2 + $0x170] sm:$0xff] %vm1486, %v1348
  %1534 = vst.msk [vmem:[#allocation2 + $0x178] sm:$0xff] %vm1486, %v1350
  %1535 = vst.msk [vmem:[#allocation2 + $0x180] sm:$0xff] %vm1486, %v1352
  %1536 = vst.msk [vmem:[#allocation2 + $0x188] sm:$0xff] %vm1486, %v1354
  %1537 = vst.msk [vmem:[#allocation2 + $0x190] sm:$0xff] %vm1486, %v1356
  %1538 = vst.msk [vmem:[#allocation2 + $0x198] sm:$0xff] %vm1486, %v1358
  %1539 = vst.msk [vmem:[#allocation2 + $0x1a0] sm:$0xff] %vm1486, %v1360
  %1540 = vst.msk [vmem:[#allocation2 + $0x1a8] sm:$0xff] %vm1486, %v1362
  %1541 = vst.msk [vmem:[#allocation2 + $0x1b0] sm:$0xff] %vm1486, %v1364
  %1542 = vst.msk [vmem:[#allocation2 + $0x1b8] sm:$0xff] %vm1486, %v1366
  %1543 = vst.msk [vmem:[#allocation2 + $0x1c0] sm:$0xff] %vm1486, %v1368
  %1544 = vst.msk [vmem:[#allocation2 + $0x1c8] sm:$0xff] %vm1486, %v1370
  %1545 = vst.msk [vmem:[#allocation2 + $0x1d0] sm:$0xff] %vm1486, %v1372
  %1546 = vst.msk [vmem:[#allocation2 + $0x1d8] sm:$0xff] %vm1486, %v1374
  %1547 = vst.msk [vmem:[#allocation2 + $0x1e0] sm:$0xff] %vm1486, %v1376
  %1548 = vst.msk [vmem:[#allocation2 + $0x1e8] sm:$0xff] %vm1486, %v1378
  %1549 = vst.msk [vmem:[#allocation2 + $0x1f0] sm:$0xff] %vm1486, %v1380
  %1550 = vst.msk [vmem:[#allocation2 + $0x1f8] sm:$0xff] %vm1486, %v1382
  %1551 = vst.msk [vmem:[#allocation2 + $0x200] sm:$0xff] %vm1486, %v1384
  %1552 = vst.msk [vmem:[#allocation2 + $0x208] sm:$0xff] %vm1486, %v1386
  %1553 = vst.msk [vmem:[#allocation2 + $0x210] sm:$0xff] %vm1486, %v1388
  %1554 = vst.msk [vmem:[#allocation2 + $0x218] sm:$0xff] %vm1486, %v1390
  %1555 = vst.msk [vmem:[#allocation2 + $0x220] sm:$0xff] %vm1486, %v1392
  %1556 = vst.msk [vmem:[#allocation2 + $0x228] sm:$0xff] %vm1486, %v1394
  %1557 = vst.msk [vmem:[#allocation2 + $0x230] sm:$0xff] %vm1486, %v1396
  %1558 = vst.msk [vmem:[#allocation2 + $0x238] sm:$0xff] %vm1486, %v1398
  %1559 = vst.msk [vmem:[#allocation2 + $0x240] sm:$0xff] %vm1486, %v1400
  %1560 = vst.msk [vmem:[#allocation2 + $0x248] sm:$0xff] %vm1486, %v1402
  %1561 = vst.msk [vmem:[#allocation2 + $0x250] sm:$0xff] %vm1486, %v1404
  %1562 = vst.msk [vmem:[#allocation2 + $0x258] sm:$0xff] %vm1486, %v1406
  %1563 = vst.msk [vmem:[#allocation2 + $0x260] sm:$0xff] %vm1486, %v1408
  %v1564 = vld [vmem:[%s0 + $0x13] sm:$0xff]
  %v1565 = vld [vmem:[%s0 + $0x1b] sm:$0xff]
  %v1566 = vld [vmem:[%s0 + $0x23] sm:$0xff]
  %v1567 = vld [vmem:[%s0 + $0x2b] sm:$0xff]
  %v1568 = vld [vmem:[%s0 + $0x33] sm:$0xff]
  %v1569 = vld [vmem:[%s0 + $0x3b] sm:$0xff]
  %v1570 = vld [vmem:[%s0 + $0x43] sm:$0xff]
  %v1571 = vld [vmem:[%s0 + $0x4b] sm:$0xff]
  %v1572 = vld [vmem:[%s0 + $0x53] sm:$0xff]
  %v1573 = vld [vmem:[%s0 + $0x5b] sm:$0xff]
  %v1574 = vld [vmem:[%s0 + $0x63] sm:$0xff]
  %v1575 = vld [vmem:[%s0 + $0x6b] sm:$0xff]
  %v1576 = vld [vmem:[%s0 + $0x73] sm:$0xff]
  %v1577 = vld [vmem:[%s0 + $0x7b] sm:$0xff]
  %v1578 = vld [vmem:[%s0 + $0x83] sm:$0xff]
  %v1579 = vld [vmem:[%s0 + $0x8b] sm:$0xff]
  %v1580 = vld [vmem:[%s0 + $0x93] sm:$0xff]
  %v1581 = vld [vmem:[%s0 + $0x9b] sm:$0xff]
  %v1582 = vld [vmem:[%s0 + $0xa3] sm:$0xff]
  %v1583 = vld [vmem:[%s0 + $0xab] sm:$0xff]
  %v1584 = vld [vmem:[%s0 + $0xb3] sm:$0xff]
  %v1585 = vld [vmem:[%s0 + $0xbb] sm:$0xff]
  %v1586 = vld [vmem:[%s0 + $0xc3] sm:$0xff]
  %v1587 = vld [vmem:[%s0 + $0xcb] sm:$0xff]
  %v1588 = vld [vmem:[%s0 + $0xd3] sm:$0xff]
  %v1589 = vld [vmem:[%s0 + $0xdb] sm:$0xff]
  %v1590 = vld [vmem:[%s0 + $0xe3] sm:$0xff]
  %v1591 = vld [vmem:[%s0 + $0xeb] sm:$0xff]
  %v1592 = vld [vmem:[%s0 + $0xf3] sm:$0xff]
  %v1593 = vld [vmem:[%s0 + $0xfb] sm:$0xff]
  %v1594 = vld [vmem:[%s0 + $0x103] sm:$0xff]
  %v1595 = vld [vmem:[%s0 + $0x10b] sm:$0xff]
  %v1596 = vld [vmem:[%s0 + $0x113] sm:$0xff]
  %v1597 = vld [vmem:[%s0 + $0x11b] sm:$0xff]
  %v1598 = vld [vmem:[%s0 + $0x123] sm:$0xff]
  %v1599 = vld [vmem:[%s0 + $0x12b] sm:$0xff]
  %v1600 = vld [vmem:[%s0 + $0x133] sm:$0xff]
  %v1601 = vld [vmem:[%s0 + $0x13b] sm:$0xff]
  %v1602 = vld [vmem:[%s0 + $0x143] sm:$0xff]
  %v1603 = vld [vmem:[%s0 + $0x14b] sm:$0xff]
  %v1604 = vld [vmem:[%s0 + $0x153] sm:$0xff]
  %v1605 = vld [vmem:[%s0 + $0x15b] sm:$0xff]
  %v1606 = vld [vmem:[%s0 + $0x163] sm:$0xff]
  %v1607 = vld [vmem:[%s0 + $0x16b] sm:$0xff]
  %v1608 = vld [vmem:[%s0 + $0x173] sm:$0xff]
  %v1609 = vld [vmem:[%s0 + $0x17b] sm:$0xff]
  %v1610 = vld [vmem:[%s0 + $0x183] sm:$0xff]
  %v1611 = vld [vmem:[%s0 + $0x18b] sm:$0xff]
  %v1612 = vld [vmem:[%s0 + $0x193] sm:$0xff]
  %v1613 = vld [vmem:[%s0 + $0x19b] sm:$0xff]
  %v1614 = vld [vmem:[%s0 + $0x1a3] sm:$0xff]
  %v1615 = vld [vmem:[%s0 + $0x1ab] sm:$0xff]
  %v1616 = vld [vmem:[%s0 + $0x1b3] sm:$0xff]
  %v1617 = vld [vmem:[%s0 + $0x1bb] sm:$0xff]
  %v1618 = vld [vmem:[%s0 + $0x1c3] sm:$0xff]
  %v1619 = vld [vmem:[%s0 + $0x1cb] sm:$0xff]
  %v1620 = vld [vmem:[%s0 + $0x1d3] sm:$0xff]
  %v1621 = vld [vmem:[%s0 + $0x1db] sm:$0xff]
  %v1622 = vld [vmem:[%s0 + $0x1e3] sm:$0xff]
  %v1623 = vld [vmem:[%s0 + $0x1eb] sm:$0xff]
  %v1624 = vld [vmem:[%s0 + $0x1f3] sm:$0xff]
  %v1625 = vld [vmem:[%s0 + $0x1fb] sm:$0xff]
  %v1626 = vld [vmem:[%s0 + $0x203] sm:$0xff]
  %v1627 = vld [vmem:[%s0 + $0x20b] sm:$0xff]
  %v1628 = vld [vmem:[%s0 + $0x213] sm:$0xff]
  %v1629 = vld [vmem:[%s0 + $0x21b] sm:$0xff]
  %v1630 = vld [vmem:[%s0 + $0x223] sm:$0xff]
  %v1631 = vld [vmem:[%s0 + $0x22b] sm:$0xff]
  %v1632 = vld [vmem:[%s0 + $0x233] sm:$0xff]
  %v1633 = vld [vmem:[%s0 + $0x23b] sm:$0xff]
  %v1634 = vld [vmem:[%s0 + $0x243] sm:$0xff]
  %v1635 = vld [vmem:[%s0 + $0x24b] sm:$0xff]
  %v1636 = vld [vmem:[%s0 + $0x253] sm:$0xff]
  %v1637 = vld [vmem:[%s0 + $0x25b] sm:$0xff]
  %v1638 = vld [vmem:[%s0 + $0x263] sm:$0xff]
  %v1639 = vld [vmem:[%s0 + $0x26b] sm:$0xff]
  %v1640 = vld [vmem:[%s0 + $0x273] sm:$0xff]
  %1718 = vrot.lane.b32.xlu0 %v1564, 32
  %v1719 = vpop.permute.xlu0 %1718
  %1720 = vrot.lane.b32.xlu0 %v1565, 32
  %v1721 = vpop.permute.xlu0 %1720
  %1722 = vrot.lane.b32.xlu0 %v1566, 32
  %v1723 = vpop.permute.xlu0 %1722
  %1724 = vrot.lane.b32.xlu0 %v1567, 32
  %v1725 = vpop.permute.xlu0 %1724
  %1726 = vrot.lane.b32.xlu0 %v1568, 32
  %v1727 = vpop.permute.xlu0 %1726
  %1728 = vrot.lane.b32.xlu0 %v1569, 32
  %v1729 = vpop.permute.xlu0 %1728
  %1730 = vrot.lane.b32.xlu0 %v1570, 32
  %v1731 = vpop.permute.xlu0 %1730
  %1732 = vrot.lane.b32.xlu0 %v1571, 32
  %v1733 = vpop.permute.xlu0 %1732
  %1734 = vrot.lane.b32.xlu0 %v1572, 32
  %v1735 = vpop.permute.xlu0 %1734
  %1736 = vrot.lane.b32.xlu0 %v1573, 32
  %v1737 = vpop.permute.xlu0 %1736
  %1738 = vrot.lane.b32.xlu0 %v1574, 32
  %v1739 = vpop.permute.xlu0 %1738
  %1740 = vrot.lane.b32.xlu0 %v1575, 32
  %v1741 = vpop.permute.xlu0 %1740
  %1742 = vrot.lane.b32.xlu0 %v1576, 32
  %v1743 = vpop.permute.xlu0 %1742
  %1744 = vrot.lane.b32.xlu0 %v1577, 32
  %v1745 = vpop.permute.xlu0 %1744
  %1746 = vrot.lane.b32.xlu0 %v1578, 32
  %v1747 = vpop.permute.xlu0 %1746
  %1748 = vrot.lane.b32.xlu0 %v1579, 32
  %v1749 = vpop.permute.xlu0 %1748
  %1750 = vrot.lane.b32.xlu0 %v1580, 32
  %v1751 = vpop.permute.xlu0 %1750
  %1752 = vrot.lane.b32.xlu0 %v1581, 32
  %v1753 = vpop.permute.xlu0 %1752
  %1754 = vrot.lane.b32.xlu0 %v1582, 32
  %v1755 = vpop.permute.xlu0 %1754
  %1756 = vrot.lane.b32.xlu0 %v1583, 32
  %v1757 = vpop.permute.xlu0 %1756
  %1758 = vrot.lane.b32.xlu0 %v1584, 32
  %v1759 = vpop.permute.xlu0 %1758
  %1760 = vrot.lane.b32.xlu0 %v1585, 32
  %v1761 = vpop.permute.xlu0 %1760
  %1762 = vrot.lane.b32.xlu0 %v1586, 32
  %v1763 = vpop.permute.xlu0 %1762
  %1764 = vrot.lane.b32.xlu0 %v1587, 32
  %v1765 = vpop.permute.xlu0 %1764
  %1766 = vrot.lane.b32.xlu0 %v1588, 32
  %v1767 = vpop.permute.xlu0 %1766
  %1768 = vrot.lane.b32.xlu0 %v1589, 32
  %v1769 = vpop.permute.xlu0 %1768
  %1770 = vrot.lane.b32.xlu0 %v1590, 32
  %v1771 = vpop.permute.xlu0 %1770
  %1772 = vrot.lane.b32.xlu0 %v1591, 32
  %v1773 = vpop.permute.xlu0 %1772
  %1774 = vrot.lane.b32.xlu0 %v1592, 32
  %v1775 = vpop.permute.xlu0 %1774
  %1776 = vrot.lane.b32.xlu0 %v1593, 32
  %v1777 = vpop.permute.xlu0 %1776
  %1778 = vrot.lane.b32.xlu0 %v1594, 32
  %v1779 = vpop.permute.xlu0 %1778
  %1780 = vrot.lane.b32.xlu0 %v1595, 32
  %v1781 = vpop.permute.xlu0 %1780
  %1782 = vrot.lane.b32.xlu0 %v1596, 32
  %v1783 = vpop.permute.xlu0 %1782
  %1784 = vrot.lane.b32.xlu0 %v1597, 32
  %v1785 = vpop.permute.xlu0 %1784
  %1786 = vrot.lane.b32.xlu0 %v1598, 32
  %v1787 = vpop.permute.xlu0 %1786
  %1788 = vrot.lane.b32.xlu0 %v1599, 32
  %v1789 = vpop.permute.xlu0 %1788
  %1790 = vrot.lane.b32.xlu0 %v1600, 32
  %v1791 = vpop.permute.xlu0 %1790
  %1792 = vrot.lane.b32.xlu0 %v1601, 32
  %v1793 = vpop.permute.xlu0 %1792
  %1794 = vrot.lane.b32.xlu0 %v1602, 32
  %v1795 = vpop.permute.xlu0 %1794
  %1796 = vrot.lane.b32.xlu0 %v1603, 32
  %v1797 = vpop.permute.xlu0 %1796
  %1798 = vrot.lane.b32.xlu0 %v1604, 32
  %v1799 = vpop.permute.xlu0 %1798
  %1800 = vrot.lane.b32.xlu0 %v1605, 32
  %v1801 = vpop.permute.xlu0 %1800
  %1802 = vrot.lane.b32.xlu0 %v1606, 32
  %v1803 = vpop.permute.xlu0 %1802
  %1804 = vrot.lane.b32.xlu0 %v1607, 32
  %v1805 = vpop.permute.xlu0 %1804
  %1806 = vrot.lane.b32.xlu0 %v1608, 32
  %v1807 = vpop.permute.xlu0 %1806
  %1808 = vrot.lane.b32.xlu0 %v1609, 32
  %v1809 = vpop.permute.xlu0 %1808
  %1810 = vrot.lane.b32.xlu0 %v1610, 32
  %v1811 = vpop.permute.xlu0 %1810
  %1812 = vrot.lane.b32.xlu0 %v1611, 32
  %v1813 = vpop.permute.xlu0 %1812
  %1814 = vrot.lane.b32.xlu0 %v1612, 32
  %v1815 = vpop.permute.xlu0 %1814
  %1816 = vrot.lane.b32.xlu0 %v1613, 32
  %v1817 = vpop.permute.xlu0 %1816
  %1818 = vrot.lane.b32.xlu0 %v1614, 32
  %v1819 = vpop.permute.xlu0 %1818
  %1820 = vrot.lane.b32.xlu0 %v1615, 32
  %v1821 = vpop.permute.xlu0 %1820
  %1822 = vrot.lane.b32.xlu0 %v1616, 32
  %v1823 = vpop.permute.xlu0 %1822
  %1824 = vrot.lane.b32.xlu0 %v1617, 32
  %v1825 = vpop.permute.xlu0 %1824
  %1826 = vrot.lane.b32.xlu0 %v1618, 32
  %v1827 = vpop.permute.xlu0 %1826
  %1828 = vrot.lane.b32.xlu0 %v1619, 32
  %v1829 = vpop.permute.xlu0 %1828
  %1830 = vrot.lane.b32.xlu0 %v1620, 32
  %v1831 = vpop.permute.xlu0 %1830
  %1832 = vrot.lane.b32.xlu0 %v1621, 32
  %v1833 = vpop.permute.xlu0 %1832
  %1834 = vrot.lane.b32.xlu0 %v1622, 32
  %v1835 = vpop.permute.xlu0 %1834
  %1836 = vrot.lane.b32.xlu0 %v1623, 32
  %v1837 = vpop.permute.xlu0 %1836
  %1838 = vrot.lane.b32.xlu0 %v1624, 32
  %v1839 = vpop.permute.xlu0 %1838
  %1840 = vrot.lane.b32.xlu0 %v1625, 32
  %v1841 = vpop.permute.xlu0 %1840
  %1842 = vrot.lane.b32.xlu0 %v1626, 32
  %v1843 = vpop.permute.xlu0 %1842
  %1844 = vrot.lane.b32.xlu0 %v1627, 32
  %v1845 = vpop.permute.xlu0 %1844
  %1846 = vrot.lane.b32.xlu0 %v1628, 32
  %v1847 = vpop.permute.xlu0 %1846
  %1848 = vrot.lane.b32.xlu0 %v1629, 32
  %v1849 = vpop.permute.xlu0 %1848
  %1850 = vrot.lane.b32.xlu0 %v1630, 32
  %v1851 = vpop.permute.xlu0 %1850
  %1852 = vrot.lane.b32.xlu0 %v1631, 32
  %v1853 = vpop.permute.xlu0 %1852
  %1854 = vrot.lane.b32.xlu0 %v1632, 32
  %v1855 = vpop.permute.xlu0 %1854
  %1856 = vrot.lane.b32.xlu0 %v1633, 32
  %v1857 = vpop.permute.xlu0 %1856
  %1858 = vrot.lane.b32.xlu0 %v1634, 32
  %v1859 = vpop.permute.xlu0 %1858
  %1860 = vrot.lane.b32.xlu0 %v1635, 32
  %v1861 = vpop.permute.xlu0 %1860
  %1862 = vrot.lane.b32.xlu0 %v1636, 32
  %v1863 = vpop.permute.xlu0 %1862
  %1864 = vrot.lane.b32.xlu0 %v1637, 32
  %v1865 = vpop.permute.xlu0 %1864
  %1866 = vrot.lane.b32.xlu0 %v1638, 32
  %v1867 = vpop.permute.xlu0 %1866
  %1868 = vrot.lane.b32.xlu0 %v1639, 32
  %v1869 = vpop.permute.xlu0 %1868
  %1870 = vrot.lane.b32.xlu0 %v1640, 32
  %v1871 = vpop.permute.xlu0 %1870
  %vm1949 = vcmask 326912
  %1950 = vst.msk [vmem:[#allocation2] sm:$0xff] %vm1949, %v1719
  %1951 = vst.msk [vmem:[#allocation2 + $0x8] sm:$0xff] %vm1949, %v1721
  %1952 = vst.msk [vmem:[#allocation2 + $0x10] sm:$0xff] %vm1949, %v1723
  %1953 = vst.msk [vmem:[#allocation2 + $0x18] sm:$0xff] %vm1949, %v1725
  %1954 = vst.msk [vmem:[#allocation2 + $0x20] sm:$0xff] %vm1949, %v1727
  %1955 = vst.msk [vmem:[#allocation2 + $0x28] sm:$0xff] %vm1949, %v1729
  %1956 = vst.msk [vmem:[#allocation2 + $0x30] sm:$0xff] %vm1949, %v1731
  %1957 = vst.msk [vmem:[#allocation2 + $0x38] sm:$0xff] %vm1949, %v1733
  %1958 = vst.msk [vmem:[#allocation2 + $0x40] sm:$0xff] %vm1949, %v1735
  %1959 = vst.msk [vmem:[#allocation2 + $0x48] sm:$0xff] %vm1949, %v1737
  %1960 = vst.msk [vmem:[#allocation2 + $0x50] sm:$0xff] %vm1949, %v1739
  %1961 = vst.msk [vmem:[#allocation2 + $0x58] sm:$0xff] %vm1949, %v1741
  %1962 = vst.msk [vmem:[#allocation2 + $0x60] sm:$0xff] %vm1949, %v1743
  %1963 = vst.msk [vmem:[#allocation2 + $0x68] sm:$0xff] %vm1949, %v1745
  %1964 = vst.msk [vmem:[#allocation2 + $0x70] sm:$0xff] %vm1949, %v1747
  %1965 = vst.msk [vmem:[#allocation2 + $0x78] sm:$0xff] %vm1949, %v1749
  %1966 = vst.msk [vmem:[#allocation2 + $0x80] sm:$0xff] %vm1949, %v1751
  %1967 = vst.msk [vmem:[#allocation2 + $0x88] sm:$0xff] %vm1949, %v1753
  %1968 = vst.msk [vmem:[#allocation2 + $0x90] sm:$0xff] %vm1949, %v1755
  %1969 = vst.msk [vmem:[#allocation2 + $0x98] sm:$0xff] %vm1949, %v1757
  %1970 = vst.msk [vmem:[#allocation2 + $0xa0] sm:$0xff] %vm1949, %v1759
  %1971 = vst.msk [vmem:[#allocation2 + $0xa8] sm:$0xff] %vm1949, %v1761
  %1972 = vst.msk [vmem:[#allocation2 + $0xb0] sm:$0xff] %vm1949, %v1763
  %1973 = vst.msk [vmem:[#allocation2 + $0xb8] sm:$0xff] %vm1949, %v1765
  %1974 = vst.msk [vmem:[#allocation2 + $0xc0] sm:$0xff] %vm1949, %v1767
  %1975 = vst.msk [vmem:[#allocation2 + $0xc8] sm:$0xff] %vm1949, %v1769
  %1976 = vst.msk [vmem:[#allocation2 + $0xd0] sm:$0xff] %vm1949, %v1771
  %1977 = vst.msk [vmem:[#allocation2 + $0xd8] sm:$0xff] %vm1949, %v1773
  %1978 = vst.msk [vmem:[#allocation2 + $0xe0] sm:$0xff] %vm1949, %v1775
  %1979 = vst.msk [vmem:[#allocation2 + $0xe8] sm:$0xff] %vm1949, %v1777
  %1980 = vst.msk [vmem:[#allocation2 + $0xf0] sm:$0xff] %vm1949, %v1779
  %1981 = vst.msk [vmem:[#allocation2 + $0xf8] sm:$0xff] %vm1949, %v1781
  %1982 = vst.msk [vmem:[#allocation2 + $0x100] sm:$0xff] %vm1949, %v1783
  %1983 = vst.msk [vmem:[#allocation2 + $0x108] sm:$0xff] %vm1949, %v1785
  %1984 = vst.msk [vmem:[#allocation2 + $0x110] sm:$0xff] %vm1949, %v1787
  %1985 = vst.msk [vmem:[#allocation2 + $0x118] sm:$0xff] %vm1949, %v1789
  %1986 = vst.msk [vmem:[#allocation2 + $0x120] sm:$0xff] %vm1949, %v1791
  %1987 = vst.msk [vmem:[#allocation2 + $0x128] sm:$0xff] %vm1949, %v1793
  %1988 = vst.msk [vmem:[#allocation2 + $0x130] sm:$0xff] %vm1949, %v1795
  %1989 = vst.msk [vmem:[#allocation2 + $0x138] sm:$0xff] %vm1949, %v1797
  %1990 = vst.msk [vmem:[#allocation2 + $0x140] sm:$0xff] %vm1949, %v1799
  %1991 = vst.msk [vmem:[#allocation2 + $0x148] sm:$0xff] %vm1949, %v1801
  %1992 = vst.msk [vmem:[#allocation2 + $0x150] sm:$0xff] %vm1949, %v1803
  %1993 = vst.msk [vmem:[#allocation2 + $0x158] sm:$0xff] %vm1949, %v1805
  %1994 = vst.msk [vmem:[#allocation2 + $0x160] sm:$0xff] %vm1949, %v1807
  %1995 = vst.msk [vmem:[#allocation2 + $0x168] sm:$0xff] %vm1949, %v1809
  %1996 = vst.msk [vmem:[#allocation2 + $0x170] sm:$0xff] %vm1949, %v1811
  %1997 = vst.msk [vmem:[#allocation2 + $0x178] sm:$0xff] %vm1949, %v1813
  %1998 = vst.msk [vmem:[#allocation2 + $0x180] sm:$0xff] %vm1949, %v1815
  %1999 = vst.msk [vmem:[#allocation2 + $0x188] sm:$0xff] %vm1949, %v1817
  %2000 = vst.msk [vmem:[#allocation2 + $0x190] sm:$0xff] %vm1949, %v1819
  %2001 = vst.msk [vmem:[#allocation2 + $0x198] sm:$0xff] %vm1949, %v1821
  %2002 = vst.msk [vmem:[#allocation2 + $0x1a0] sm:$0xff] %vm1949, %v1823
  %2003 = vst.msk [vmem:[#allocation2 + $0x1a8] sm:$0xff] %vm1949, %v1825
  %2004 = vst.msk [vmem:[#allocation2 + $0x1b0] sm:$0xff] %vm1949, %v1827
  %2005 = vst.msk [vmem:[#allocation2 + $0x1b8] sm:$0xff] %vm1949, %v1829
  %2006 = vst.msk [vmem:[#allocation2 + $0x1c0] sm:$0xff] %vm1949, %v1831
  %2007 = vst.msk [vmem:[#allocation2 + $0x1c8] sm:$0xff] %vm1949, %v1833
  %2008 = vst.msk [vmem:[#allocation2 + $0x1d0] sm:$0xff] %vm1949, %v1835
  %2009 = vst.msk [vmem:[#allocation2 + $0x1d8] sm:$0xff] %vm1949, %v1837
  %2010 = vst.msk [vmem:[#allocation2 + $0x1e0] sm:$0xff] %vm1949, %v1839
  %2011 = vst.msk [vmem:[#allocation2 + $0x1e8] sm:$0xff] %vm1949, %v1841
  %2012 = vst.msk [vmem:[#allocation2 + $0x1f0] sm:$0xff] %vm1949, %v1843
  %2013 = vst.msk [vmem:[#allocation2 + $0x1f8] sm:$0xff] %vm1949, %v1845
  %2014 = vst.msk [vmem:[#allocation2 + $0x200] sm:$0xff] %vm1949, %v1847
  %2015 = vst.msk [vmem:[#allocation2 + $0x208] sm:$0xff] %vm1949, %v1849
  %2016 = vst.msk [vmem:[#allocation2 + $0x210] sm:$0xff] %vm1949, %v1851
  %2017 = vst.msk [vmem:[#allocation2 + $0x218] sm:$0xff] %vm1949, %v1853
  %2018 = vst.msk [vmem:[#allocation2 + $0x220] sm:$0xff] %vm1949, %v1855
  %2019 = vst.msk [vmem:[#allocation2 + $0x228] sm:$0xff] %vm1949, %v1857
  %2020 = vst.msk [vmem:[#allocation2 + $0x230] sm:$0xff] %vm1949, %v1859
  %2021 = vst.msk [vmem:[#allocation2 + $0x238] sm:$0xff] %vm1949, %v1861
  %2022 = vst.msk [vmem:[#allocation2 + $0x240] sm:$0xff] %vm1949, %v1863
  %2023 = vst.msk [vmem:[#allocation2 + $0x248] sm:$0xff] %vm1949, %v1865
  %2024 = vst.msk [vmem:[#allocation2 + $0x250] sm:$0xff] %vm1949, %v1867
  %2025 = vst.msk [vmem:[#allocation2 + $0x258] sm:$0xff] %vm1949, %v1869
  %2026 = vst.msk [vmem:[#allocation2 + $0x260] sm:$0xff] %vm1949, %v1871
  %v2027 = vld [vmem:[%s0 + $0x14] sm:$0xff]
  %v2028 = vld [vmem:[%s0 + $0x1c] sm:$0xff]
  %v2029 = vld [vmem:[%s0 + $0x24] sm:$0xff]
  %v2030 = vld [vmem:[%s0 + $0x2c] sm:$0xff]
  %v2031 = vld [vmem:[%s0 + $0x34] sm:$0xff]
  %v2032 = vld [vmem:[%s0 + $0x3c] sm:$0xff]
  %v2033 = vld [vmem:[%s0 + $0x44] sm:$0xff]
  %v2034 = vld [vmem:[%s0 + $0x4c] sm:$0xff]
  %v2035 = vld [vmem:[%s0 + $0x54] sm:$0xff]
  %v2036 = vld [vmem:[%s0 + $0x5c] sm:$0xff]
  %v2037 = vld [vmem:[%s0 + $0x64] sm:$0xff]
  %v2038 = vld [vmem:[%s0 + $0x6c] sm:$0xff]
  %v2039 = vld [vmem:[%s0 + $0x74] sm:$0xff]
  %v2040 = vld [vmem:[%s0 + $0x7c] sm:$0xff]
  %v2041 = vld [vmem:[%s0 + $0x84] sm:$0xff]
  %v2042 = vld [vmem:[%s0 + $0x8c] sm:$0xff]
  %v2043 = vld [vmem:[%s0 + $0x94] sm:$0xff]
  %v2044 = vld [vmem:[%s0 + $0x9c] sm:$0xff]
  %v2045 = vld [vmem:[%s0 + $0xa4] sm:$0xff]
  %v2046 = vld [vmem:[%s0 + $0xac] sm:$0xff]
  %v2047 = vld [vmem:[%s0 + $0xb4] sm:$0xff]
  %v2048 = vld [vmem:[%s0 + $0xbc] sm:$0xff]
  %v2049 = vld [vmem:[%s0 + $0xc4] sm:$0xff]
  %v2050 = vld [vmem:[%s0 + $0xcc] sm:$0xff]
  %v2051 = vld [vmem:[%s0 + $0xd4] sm:$0xff]
  %v2052 = vld [vmem:[%s0 + $0xdc] sm:$0xff]
  %v2053 = vld [vmem:[%s0 + $0xe4] sm:$0xff]
  %v2054 = vld [vmem:[%s0 + $0xec] sm:$0xff]
  %v2055 = vld [vmem:[%s0 + $0xf4] sm:$0xff]
  %v2056 = vld [vmem:[%s0 + $0xfc] sm:$0xff]
  %v2057 = vld [vmem:[%s0 + $0x104] sm:$0xff]
  %v2058 = vld [vmem:[%s0 + $0x10c] sm:$0xff]
  %v2059 = vld [vmem:[%s0 + $0x114] sm:$0xff]
  %v2060 = vld [vmem:[%s0 + $0x11c] sm:$0xff]
  %v2061 = vld [vmem:[%s0 + $0x124] sm:$0xff]
  %v2062 = vld [vmem:[%s0 + $0x12c] sm:$0xff]
  %v2063 = vld [vmem:[%s0 + $0x134] sm:$0xff]
  %v2064 = vld [vmem:[%s0 + $0x13c] sm:$0xff]
  %v2065 = vld [vmem:[%s0 + $0x144] sm:$0xff]
  %v2066 = vld [vmem:[%s0 + $0x14c] sm:$0xff]
  %v2067 = vld [vmem:[%s0 + $0x154] sm:$0xff]
  %v2068 = vld [vmem:[%s0 + $0x15c] sm:$0xff]
  %v2069 = vld [vmem:[%s0 + $0x164] sm:$0xff]
  %v2070 = vld [vmem:[%s0 + $0x16c] sm:$0xff]
  %v2071 = vld [vmem:[%s0 + $0x174] sm:$0xff]
  %v2072 = vld [vmem:[%s0 + $0x17c] sm:$0xff]
  %v2073 = vld [vmem:[%s0 + $0x184] sm:$0xff]
  %v2074 = vld [vmem:[%s0 + $0x18c] sm:$0xff]
  %v2075 = vld [vmem:[%s0 + $0x194] sm:$0xff]
  %v2076 = vld [vmem:[%s0 + $0x19c] sm:$0xff]
  %v2077 = vld [vmem:[%s0 + $0x1a4] sm:$0xff]
  %v2078 = vld [vmem:[%s0 + $0x1ac] sm:$0xff]
  %v2079 = vld [vmem:[%s0 + $0x1b4] sm:$0xff]
  %v2080 = vld [vmem:[%s0 + $0x1bc] sm:$0xff]
  %v2081 = vld [vmem:[%s0 + $0x1c4] sm:$0xff]
  %v2082 = vld [vmem:[%s0 + $0x1cc] sm:$0xff]
  %v2083 = vld [vmem:[%s0 + $0x1d4] sm:$0xff]
  %v2084 = vld [vmem:[%s0 + $0x1dc] sm:$0xff]
  %v2085 = vld [vmem:[%s0 + $0x1e4] sm:$0xff]
  %v2086 = vld [vmem:[%s0 + $0x1ec] sm:$0xff]
  %v2087 = vld [vmem:[%s0 + $0x1f4] sm:$0xff]
  %v2088 = vld [vmem:[%s0 + $0x1fc] sm:$0xff]
  %v2089 = vld [vmem:[%s0 + $0x204] sm:$0xff]
  %v2090 = vld [vmem:[%s0 + $0x20c] sm:$0xff]
  %v2091 = vld [vmem:[%s0 + $0x214] sm:$0xff]
  %v2092 = vld [vmem:[%s0 + $0x21c] sm:$0xff]
  %v2093 = vld [vmem:[%s0 + $0x224] sm:$0xff]
  %v2094 = vld [vmem:[%s0 + $0x22c] sm:$0xff]
  %v2095 = vld [vmem:[%s0 + $0x234] sm:$0xff]
  %v2096 = vld [vmem:[%s0 + $0x23c] sm:$0xff]
  %v2097 = vld [vmem:[%s0 + $0x244] sm:$0xff]
  %v2098 = vld [vmem:[%s0 + $0x24c] sm:$0xff]
  %v2099 = vld [vmem:[%s0 + $0x254] sm:$0xff]
  %v2100 = vld [vmem:[%s0 + $0x25c] sm:$0xff]
  %v2101 = vld [vmem:[%s0 + $0x264] sm:$0xff]
  %v2102 = vld [vmem:[%s0 + $0x26c] sm:$0xff]
  %v2103 = vld [vmem:[%s0 + $0x274] sm:$0xff]
  %2181 = vrot.lane.b32.xlu0 %v2027, 40
  %v2182 = vpop.permute.xlu0 %2181
  %2183 = vrot.lane.b32.xlu0 %v2028, 40
  %v2184 = vpop.permute.xlu0 %2183
  %2185 = vrot.lane.b32.xlu0 %v2029, 40
  %v2186 = vpop.permute.xlu0 %2185
  %2187 = vrot.lane.b32.xlu0 %v2030, 40
  %v2188 = vpop.permute.xlu0 %2187
  %2189 = vrot.lane.b32.xlu0 %v2031, 40
  %v2190 = vpop.permute.xlu0 %2189
  %2191 = vrot.lane.b32.xlu0 %v2032, 40
  %v2192 = vpop.permute.xlu0 %2191
  %2193 = vrot.lane.b32.xlu0 %v2033, 40
  %v2194 = vpop.permute.xlu0 %2193
  %2195 = vrot.lane.b32.xlu0 %v2034, 40
  %v2196 = vpop.permute.xlu0 %2195
  %2197 = vrot.lane.b32.xlu0 %v2035, 40
  %v2198 = vpop.permute.xlu0 %2197
  %2199 = vrot.lane.b32.xlu0 %v2036, 40
  %v2200 = vpop.permute.xlu0 %2199
  %2201 = vrot.lane.b32.xlu0 %v2037, 40
  %v2202 = vpop.permute.xlu0 %2201
  %2203 = vrot.lane.b32.xlu0 %v2038, 40
  %v2204 = vpop.permute.xlu0 %2203
  %2205 = vrot.lane.b32.xlu0 %v2039, 40
  %v2206 = vpop.permute.xlu0 %2205
  %2207 = vrot.lane.b32.xlu0 %v2040, 40
  %v2208 = vpop.permute.xlu0 %2207
  %2209 = vrot.lane.b32.xlu0 %v2041, 40
  %v2210 = vpop.permute.xlu0 %2209
  %2211 = vrot.lane.b32.xlu0 %v2042, 40
  %v2212 = vpop.permute.xlu0 %2211
  %2213 = vrot.lane.b32.xlu0 %v2043, 40
  %v2214 = vpop.permute.xlu0 %2213
  %2215 = vrot.lane.b32.xlu0 %v2044, 40
  %v2216 = vpop.permute.xlu0 %2215
  %2217 = vrot.lane.b32.xlu0 %v2045, 40
  %v2218 = vpop.permute.xlu0 %2217
  %2219 = vrot.lane.b32.xlu0 %v2046, 40
  %v2220 = vpop.permute.xlu0 %2219
  %2221 = vrot.lane.b32.xlu0 %v2047, 40
  %v2222 = vpop.permute.xlu0 %2221
  %2223 = vrot.lane.b32.xlu0 %v2048, 40
  %v2224 = vpop.permute.xlu0 %2223
  %2225 = vrot.lane.b32.xlu0 %v2049, 40
  %v2226 = vpop.permute.xlu0 %2225
  %2227 = vrot.lane.b32.xlu0 %v2050, 40
  %v2228 = vpop.permute.xlu0 %2227
  %2229 = vrot.lane.b32.xlu0 %v2051, 40
  %v2230 = vpop.permute.xlu0 %2229
  %2231 = vrot.lane.b32.xlu0 %v2052, 40
  %v2232 = vpop.permute.xlu0 %2231
  %2233 = vrot.lane.b32.xlu0 %v2053, 40
  %v2234 = vpop.permute.xlu0 %2233
  %2235 = vrot.lane.b32.xlu0 %v2054, 40
  %v2236 = vpop.permute.xlu0 %2235
  %2237 = vrot.lane.b32.xlu0 %v2055, 40
  %v2238 = vpop.permute.xlu0 %2237
  %2239 = vrot.lane.b32.xlu0 %v2056, 40
  %v2240 = vpop.permute.xlu0 %2239
  %2241 = vrot.lane.b32.xlu0 %v2057, 40
  %v2242 = vpop.permute.xlu0 %2241
  %2243 = vrot.lane.b32.xlu0 %v2058, 40
  %v2244 = vpop.permute.xlu0 %2243
  %2245 = vrot.lane.b32.xlu0 %v2059, 40
  %v2246 = vpop.permute.xlu0 %2245
  %2247 = vrot.lane.b32.xlu0 %v2060, 40
  %v2248 = vpop.permute.xlu0 %2247
  %2249 = vrot.lane.b32.xlu0 %v2061, 40
  %v2250 = vpop.permute.xlu0 %2249
  %2251 = vrot.lane.b32.xlu0 %v2062, 40
  %v2252 = vpop.permute.xlu0 %2251
  %2253 = vrot.lane.b32.xlu0 %v2063, 40
  %v2254 = vpop.permute.xlu0 %2253
  %2255 = vrot.lane.b32.xlu0 %v2064, 40
  %v2256 = vpop.permute.xlu0 %2255
  %2257 = vrot.lane.b32.xlu0 %v2065, 40
  %v2258 = vpop.permute.xlu0 %2257
  %2259 = vrot.lane.b32.xlu0 %v2066, 40
  %v2260 = vpop.permute.xlu0 %2259
  %2261 = vrot.lane.b32.xlu0 %v2067, 40
  %v2262 = vpop.permute.xlu0 %2261
  %2263 = vrot.lane.b32.xlu0 %v2068, 40
  %v2264 = vpop.permute.xlu0 %2263
  %2265 = vrot.lane.b32.xlu0 %v2069, 40
  %v2266 = vpop.permute.xlu0 %2265
  %2267 = vrot.lane.b32.xlu0 %v2070, 40
  %v2268 = vpop.permute.xlu0 %2267
  %2269 = vrot.lane.b32.xlu0 %v2071, 40
  %v2270 = vpop.permute.xlu0 %2269
  %2271 = vrot.lane.b32.xlu0 %v2072, 40
  %v2272 = vpop.permute.xlu0 %2271
  %2273 = vrot.lane.b32.xlu0 %v2073, 40
  %v2274 = vpop.permute.xlu0 %2273
  %2275 = vrot.lane.b32.xlu0 %v2074, 40
  %v2276 = vpop.permute.xlu0 %2275
  %2277 = vrot.lane.b32.xlu0 %v2075, 40
  %v2278 = vpop.permute.xlu0 %2277
  %2279 = vrot.lane.b32.xlu0 %v2076, 40
  %v2280 = vpop.permute.xlu0 %2279
  %2281 = vrot.lane.b32.xlu0 %v2077, 40
  %v2282 = vpop.permute.xlu0 %2281
  %2283 = vrot.lane.b32.xlu0 %v2078, 40
  %v2284 = vpop.permute.xlu0 %2283
  %2285 = vrot.lane.b32.xlu0 %v2079, 40
  %v2286 = vpop.permute.xlu0 %2285
  %2287 = vrot.lane.b32.xlu0 %v2080, 40
  %v2288 = vpop.permute.xlu0 %2287
  %2289 = vrot.lane.b32.xlu0 %v2081, 40
  %v2290 = vpop.permute.xlu0 %2289
  %2291 = vrot.lane.b32.xlu0 %v2082, 40
  %v2292 = vpop.permute.xlu0 %2291
  %2293 = vrot.lane.b32.xlu0 %v2083, 40
  %v2294 = vpop.permute.xlu0 %2293
  %2295 = vrot.lane.b32.xlu0 %v2084, 40
  %v2296 = vpop.permute.xlu0 %2295
  %2297 = vrot.lane.b32.xlu0 %v2085, 40
  %v2298 = vpop.permute.xlu0 %2297
  %2299 = vrot.lane.b32.xlu0 %v2086, 40
  %v2300 = vpop.permute.xlu0 %2299
  %2301 = vrot.lane.b32.xlu0 %v2087, 40
  %v2302 = vpop.permute.xlu0 %2301
  %2303 = vrot.lane.b32.xlu0 %v2088, 40
  %v2304 = vpop.permute.xlu0 %2303
  %2305 = vrot.lane.b32.xlu0 %v2089, 40
  %v2306 = vpop.permute.xlu0 %2305
  %2307 = vrot.lane.b32.xlu0 %v2090, 40
  %v2308 = vpop.permute.xlu0 %2307
  %2309 = vrot.lane.b32.xlu0 %v2091, 40
  %v2310 = vpop.permute.xlu0 %2309
  %2311 = vrot.lane.b32.xlu0 %v2092, 40
  %v2312 = vpop.permute.xlu0 %2311
  %2313 = vrot.lane.b32.xlu0 %v2093, 40
  %v2314 = vpop.permute.xlu0 %2313
  %2315 = vrot.lane.b32.xlu0 %v2094, 40
  %v2316 = vpop.permute.xlu0 %2315
  %2317 = vrot.lane.b32.xlu0 %v2095, 40
  %v2318 = vpop.permute.xlu0 %2317
  %2319 = vrot.lane.b32.xlu0 %v2096, 40
  %v2320 = vpop.permute.xlu0 %2319
  %2321 = vrot.lane.b32.xlu0 %v2097, 40
  %v2322 = vpop.permute.xlu0 %2321
  %2323 = vrot.lane.b32.xlu0 %v2098, 40
  %v2324 = vpop.permute.xlu0 %2323
  %2325 = vrot.lane.b32.xlu0 %v2099, 40
  %v2326 = vpop.permute.xlu0 %2325
  %2327 = vrot.lane.b32.xlu0 %v2100, 40
  %v2328 = vpop.permute.xlu0 %2327
  %2329 = vrot.lane.b32.xlu0 %v2101, 40
  %v2330 = vpop.permute.xlu0 %2329
  %2331 = vrot.lane.b32.xlu0 %v2102, 40
  %v2332 = vpop.permute.xlu0 %2331
  %2333 = vrot.lane.b32.xlu0 %v2103, 40
  %v2334 = vpop.permute.xlu0 %2333
  %vm2412 = vcmask 392512
  %2413 = vst.msk [vmem:[#allocation2] sm:$0xff] %vm2412, %v2182
  %2414 = vst.msk [vmem:[#allocation2 + $0x8] sm:$0xff] %vm2412, %v2184
  %2415 = vst.msk [vmem:[#allocation2 + $0x10] sm:$0xff] %vm2412, %v2186
  %2416 = vst.msk [vmem:[#allocation2 + $0x18] sm:$0xff] %vm2412, %v2188
  %2417 = vst.msk [vmem:[#allocation2 + $0x20] sm:$0xff] %vm2412, %v2190
  %2418 = vst.msk [vmem:[#allocation2 + $0x28] sm:$0xff] %vm2412, %v2192
  %2419 = vst.msk [vmem:[#allocation2 + $0x30] sm:$0xff] %vm2412, %v2194
  %2420 = vst.msk [vmem:[#allocation2 + $0x38] sm:$0xff] %vm2412, %v2196
  %2421 = vst.msk [vmem:[#allocation2 + $0x40] sm:$0xff] %vm2412, %v2198
  %2422 = vst.msk [vmem:[#allocation2 + $0x48] sm:$0xff] %vm2412, %v2200
  %2423 = vst.msk [vmem:[#allocation2 + $0x50] sm:$0xff] %vm2412, %v2202
  %2424 = vst.msk [vmem:[#allocation2 + $0x58] sm:$0xff] %vm2412, %v2204
  %2425 = vst.msk [vmem:[#allocation2 + $0x60] sm:$0xff] %vm2412, %v2206
  %2426 = vst.msk [vmem:[#allocation2 + $0x68] sm:$0xff] %vm2412, %v2208
  %2427 = vst.msk [vmem:[#allocation2 + $0x70] sm:$0xff] %vm2412, %v2210
  %2428 = vst.msk [vmem:[#allocation2 + $0x78] sm:$0xff] %vm2412, %v2212
  %2429 = vst.msk [vmem:[#allocation2 + $0x80] sm:$0xff] %vm2412, %v2214
  %2430 = vst.msk [vmem:[#allocation2 + $0x88] sm:$0xff] %vm2412, %v2216
  %2431 = vst.msk [vmem:[#allocation2 + $0x90] sm:$0xff] %vm2412, %v2218
  %2432 = vst.msk [vmem:[#allocation2 + $0x98] sm:$0xff] %vm2412, %v2220
  %2433 = vst.msk [vmem:[#allocation2 + $0xa0] sm:$0xff] %vm2412, %v2222
  %2434 = vst.msk [vmem:[#allocation2 + $0xa8] sm:$0xff] %vm2412, %v2224
  %2435 = vst.msk [vmem:[#allocation2 + $0xb0] sm:$0xff] %vm2412, %v2226
  %2436 = vst.msk [vmem:[#allocation2 + $0xb8] sm:$0xff] %vm2412, %v2228
  %2437 = vst.msk [vmem:[#allocation2 + $0xc0] sm:$0xff] %vm2412, %v2230
  %2438 = vst.msk [vmem:[#allocation2 + $0xc8] sm:$0xff] %vm2412, %v2232
  %2439 = vst.msk [vmem:[#allocation2 + $0xd0] sm:$0xff] %vm2412, %v2234
  %2440 = vst.msk [vmem:[#allocation2 + $0xd8] sm:$0xff] %vm2412, %v2236
  %2441 = vst.msk [vmem:[#allocation2 + $0xe0] sm:$0xff] %vm2412, %v2238
  %2442 = vst.msk [vmem:[#allocation2 + $0xe8] sm:$0xff] %vm2412, %v2240
  %2443 = vst.msk [vmem:[#allocation2 + $0xf0] sm:$0xff] %vm2412, %v2242
  %2444 = vst.msk [vmem:[#allocation2 + $0xf8] sm:$0xff] %vm2412, %v2244
  %2445 = vst.msk [vmem:[#allocation2 + $0x100] sm:$0xff] %vm2412, %v2246
  %2446 = vst.msk [vmem:[#allocation2 + $0x108] sm:$0xff] %vm2412, %v2248
  %2447 = vst.msk [vmem:[#allocation2 + $0x110] sm:$0xff] %vm2412, %v2250
  %2448 = vst.msk [vmem:[#allocation2 + $0x118] sm:$0xff] %vm2412, %v2252
  %2449 = vst.msk [vmem:[#allocation2 + $0x120] sm:$0xff] %vm2412, %v2254
  %2450 = vst.msk [vmem:[#allocation2 + $0x128] sm:$0xff] %vm2412, %v2256
  %2451 = vst.msk [vmem:[#allocation2 + $0x130] sm:$0xff] %vm2412, %v2258
  %2452 = vst.msk [vmem:[#allocation2 + $0x138] sm:$0xff] %vm2412, %v2260
  %2453 = vst.msk [vmem:[#allocation2 + $0x140] sm:$0xff] %vm2412, %v2262
  %2454 = vst.msk [vmem:[#allocation2 + $0x148] sm:$0xff] %vm2412, %v2264
  %2455 = vst.msk [vmem:[#allocation2 + $0x150] sm:$0xff] %vm2412, %v2266
  %2456 = vst.msk [vmem:[#allocation2 + $0x158] sm:$0xff] %vm2412, %v2268
  %2457 = vst.msk [vmem:[#allocation2 + $0x160] sm:$0xff] %vm2412, %v2270
  %2458 = vst.msk [vmem:[#allocation2 + $0x168] sm:$0xff] %vm2412, %v2272
  %2459 = vst.msk [vmem:[#allocation2 + $0x170] sm:$0xff] %vm2412, %v2274
  %2460 = vst.msk [vmem:[#allocation2 + $0x178] sm:$0xff] %vm2412, %v2276
  %2461 = vst.msk [vmem:[#allocation2 + $0x180] sm:$0xff] %vm2412, %v2278
  %2462 = vst.msk [vmem:[#allocation2 + $0x188] sm:$0xff] %vm2412, %v2280
  %2463 = vst.msk [vmem:[#allocation2 + $0x190] sm:$0xff] %vm2412, %v2282
  %2464 = vst.msk [vmem:[#allocation2 + $0x198] sm:$0xff] %vm2412, %v2284
  %2465 = vst.msk [vmem:[#allocation2 + $0x1a0] sm:$0xff] %vm2412, %v2286
  %2466 = vst.msk [vmem:[#allocation2 + $0x1a8] sm:$0xff] %vm2412, %v2288
  %2467 = vst.msk [vmem:[#allocation2 + $0x1b0] sm:$0xff] %vm2412, %v2290
  %2468 = vst.msk [vmem:[#allocation2 + $0x1b8] sm:$0xff] %vm2412, %v2292
  %2469 = vst.msk [vmem:[#allocation2 + $0x1c0] sm:$0xff] %vm2412, %v2294
  %2470 = vst.msk [vmem:[#allocation2 + $0x1c8] sm:$0xff] %vm2412, %v2296
  %2471 = vst.msk [vmem:[#allocation2 + $0x1d0] sm:$0xff] %vm2412, %v2298
  %2472 = vst.msk [vmem:[#allocation2 + $0x1d8] sm:$0xff] %vm2412, %v2300
  %2473 = vst.msk [vmem:[#allocation2 + $0x1e0] sm:$0xff] %vm2412, %v2302
  %2474 = vst.msk [vmem:[#allocation2 + $0x1e8] sm:$0xff] %vm2412, %v2304
  %2475 = vst.msk [vmem:[#allocation2 + $0x1f0] sm:$0xff] %vm2412, %v2306
  %2476 = vst.msk [vmem:[#allocation2 + $0x1f8] sm:$0xff] %vm2412, %v2308
  %2477 = vst.msk [vmem:[#allocation2 + $0x200] sm:$0xff] %vm2412, %v2310
  %2478 = vst.msk [vmem:[#allocation2 + $0x208] sm:$0xff] %vm2412, %v2312
  %2479 = vst.msk [vmem:[#allocation2 + $0x210] sm:$0xff] %vm2412, %v2314
  %2480 = vst.msk [vmem:[#allocation2 + $0x218] sm:$0xff] %vm2412, %v2316
  %2481 = vst.msk [vmem:[#allocation2 + $0x220] sm:$0xff] %vm2412, %v2318
  %2482 = vst.msk [vmem:[#allocation2 + $0x228] sm:$0xff] %vm2412, %v2320
  %2483 = vst.msk [vmem:[#allocation2 + $0x230] sm:$0xff] %vm2412, %v2322
  %2484 = vst.msk [vmem:[#allocation2 + $0x238] sm:$0xff] %vm2412, %v2324
  %2485 = vst.msk [vmem:[#allocation2 + $0x240] sm:$0xff] %vm2412, %v2326
  %2486 = vst.msk [vmem:[#allocation2 + $0x248] sm:$0xff] %vm2412, %v2328
  %2487 = vst.msk [vmem:[#allocation2 + $0x250] sm:$0xff] %vm2412, %v2330
  %2488 = vst.msk [vmem:[#allocation2 + $0x258] sm:$0xff] %vm2412, %v2332
  %2489 = vst.msk [vmem:[#allocation2 + $0x260] sm:$0xff] %vm2412, %v2334
  %v2490 = vld [vmem:[%s0 + $0x24] sm:$0xff]
  %v2491 = vld [vmem:[%s0 + $0x2c] sm:$0xff]
  %v2492 = vld [vmem:[%s0 + $0x34] sm:$0xff]
  %v2493 = vld [vmem:[%s0 + $0x3c] sm:$0xff]
  %v2494 = vld [vmem:[%s0 + $0x44] sm:$0xff]
  %v2495 = vld [vmem:[%s0 + $0x4c] sm:$0xff]
  %v2496 = vld [vmem:[%s0 + $0x54] sm:$0xff]
  %v2497 = vld [vmem:[%s0 + $0x5c] sm:$0xff]
  %v2498 = vld [vmem:[%s0 + $0x64] sm:$0xff]
  %v2499 = vld [vmem:[%s0 + $0x6c] sm:$0xff]
  %v2500 = vld [vmem:[%s0 + $0x74] sm:$0xff]
  %v2501 = vld [vmem:[%s0 + $0x7c] sm:$0xff]
  %v2502 = vld [vmem:[%s0 + $0x84] sm:$0xff]
  %v2503 = vld [vmem:[%s0 + $0x8c] sm:$0xff]
  %v2504 = vld [vmem:[%s0 + $0x94] sm:$0xff]
  %v2505 = vld [vmem:[%s0 + $0x9c] sm:$0xff]
  %v2506 = vld [vmem:[%s0 + $0xa4] sm:$0xff]
  %v2507 = vld [vmem:[%s0 + $0xac] sm:$0xff]
  %v2508 = vld [vmem:[%s0 + $0xb4] sm:$0xff]
  %v2509 = vld [vmem:[%s0 + $0xbc] sm:$0xff]
  %v2510 = vld [vmem:[%s0 + $0xc4] sm:$0xff]
  %v2511 = vld [vmem:[%s0 + $0xcc] sm:$0xff]
  %v2512 = vld [vmem:[%s0 + $0xd4] sm:$0xff]
  %v2513 = vld [vmem:[%s0 + $0xdc] sm:$0xff]
  %v2514 = vld [vmem:[%s0 + $0xe4] sm:$0xff]
  %v2515 = vld [vmem:[%s0 + $0xec] sm:$0xff]
  %v2516 = vld [vmem:[%s0 + $0xf4] sm:$0xff]
  %v2517 = vld [vmem:[%s0 + $0xfc] sm:$0xff]
  %v2518 = vld [vmem:[%s0 + $0x104] sm:$0xff]
  %v2519 = vld [vmem:[%s0 + $0x10c] sm:$0xff]
  %v2520 = vld [vmem:[%s0 + $0x114] sm:$0xff]
  %v2521 = vld [vmem:[%s0 + $0x11c] sm:$0xff]
  %v2522 = vld [vmem:[%s0 + $0x124] sm:$0xff]
  %v2523 = vld [vmem:[%s0 + $0x12c] sm:$0xff]
  %v2524 = vld [vmem:[%s0 + $0x134] sm:$0xff]
  %v2525 = vld [vmem:[%s0 + $0x13c] sm:$0xff]
  %v2526 = vld [vmem:[%s0 + $0x144] sm:$0xff]
  %v2527 = vld [vmem:[%s0 + $0x14c] sm:$0xff]
  %v2528 = vld [vmem:[%s0 + $0x154] sm:$0xff]
  %v2529 = vld [vmem:[%s0 + $0x15c] sm:$0xff]
  %v2530 = vld [vmem:[%s0 + $0x164] sm:$0xff]
  %v2531 = vld [vmem:[%s0 + $0x16c] sm:$0xff]
  %v2532 = vld [vmem:[%s0 + $0x174] sm:$0xff]
  %v2533 = vld [vmem:[%s0 + $0x17c] sm:$0xff]
  %v2534 = vld [vmem:[%s0 + $0x184] sm:$0xff]
  %v2535 = vld [vmem:[%s0 + $0x18c] sm:$0xff]
  %v2536 = vld [vmem:[%s0 + $0x194] sm:$0xff]
  %v2537 = vld [vmem:[%s0 + $0x19c] sm:$0xff]
  %v2538 = vld [vmem:[%s0 + $0x1a4] sm:$0xff]
  %v2539 = vld [vmem:[%s0 + $0x1ac] sm:$0xff]
  %v2540 = vld [vmem:[%s0 + $0x1b4] sm:$0xff]
  %v2541 = vld [vmem:[%s0 + $0x1bc] sm:$0xff]
  %v2542 = vld [vmem:[%s0 + $0x1c4] sm:$0xff]
  %v2543 = vld [vmem:[%s0 + $0x1cc] sm:$0xff]
  %v2544 = vld [vmem:[%s0 + $0x1d4] sm:$0xff]
  %v2545 = vld [vmem:[%s0 + $0x1dc] sm:$0xff]
  %v2546 = vld [vmem:[%s0 + $0x1e4] sm:$0xff]
  %v2547 = vld [vmem:[%s0 + $0x1ec] sm:$0xff]
  %v2548 = vld [vmem:[%s0 + $0x1f4] sm:$0xff]
  %v2549 = vld [vmem:[%s0 + $0x1fc] sm:$0xff]
  %v2550 = vld [vmem:[%s0 + $0x204] sm:$0xff]
  %v2551 = vld [vmem:[%s0 + $0x20c] sm:$0xff]
  %v2552 = vld [vmem:[%s0 + $0x214] sm:$0xff]
  %v2553 = vld [vmem:[%s0 + $0x21c] sm:$0xff]
  %v2554 = vld [vmem:[%s0 + $0x224] sm:$0xff]
  %v2555 = vld [vmem:[%s0 + $0x22c] sm:$0xff]
  %v2556 = vld [vmem:[%s0 + $0x234] sm:$0xff]
  %v2557 = vld [vmem:[%s0 + $0x23c] sm:$0xff]
  %v2558 = vld [vmem:[%s0 + $0x244] sm:$0xff]
  %v2559 = vld [vmem:[%s0 + $0x24c] sm:$0xff]
  %v2560 = vld [vmem:[%s0 + $0x254] sm:$0xff]
  %v2561 = vld [vmem:[%s0 + $0x25c] sm:$0xff]
  %v2562 = vld [vmem:[%s0 + $0x264] sm:$0xff]
  %v2563 = vld [vmem:[%s0 + $0x26c] sm:$0xff]
  %v2564 = vld [vmem:[%s0 + $0x274] sm:$0xff]
  %v2565 = vld [vmem:[%s0 + $0x27c] sm:$0xff]
  %v2566 = vld [vmem:[%s0 + $0x284] sm:$0xff]
  %2644 = vrot.lane.b32.xlu0 %v2490, 48
  %v2645 = vpop.permute.xlu0 %2644
  %2646 = vrot.lane.b32.xlu0 %v2491, 48
  %v2647 = vpop.permute.xlu0 %2646
  %2648 = vrot.lane.b32.xlu0 %v2492, 48
  %v2649 = vpop.permute.xlu0 %2648
  %2650 = vrot.lane.b32.xlu0 %v2493, 48
  %v2651 = vpop.permute.xlu0 %2650
  %2652 = vrot.lane.b32.xlu0 %v2494, 48
  %v2653 = vpop.permute.xlu0 %2652
  %2654 = vrot.lane.b32.xlu0 %v2495, 48
  %v2655 = vpop.permute.xlu0 %2654
  %2656 = vrot.lane.b32.xlu0 %v2496, 48
  %v2657 = vpop.permute.xlu0 %2656
  %2658 = vrot.lane.b32.xlu0 %v2497, 48
  %v2659 = vpop.permute.xlu0 %2658
  %2660 = vrot.lane.b32.xlu0 %v2498, 48
  %v2661 = vpop.permute.xlu0 %2660
  %2662 = vrot.lane.b32.xlu0 %v2499, 48
  %v2663 = vpop.permute.xlu0 %2662
  %2664 = vrot.lane.b32.xlu0 %v2500, 48
  %v2665 = vpop.permute.xlu0 %2664
  %2666 = vrot.lane.b32.xlu0 %v2501, 48
  %v2667 = vpop.permute.xlu0 %2666
  %2668 = vrot.lane.b32.xlu0 %v2502, 48
  %v2669 = vpop.permute.xlu0 %2668
  %2670 = vrot.lane.b32.xlu0 %v2503, 48
  %v2671 = vpop.permute.xlu0 %2670
  %2672 = vrot.lane.b32.xlu0 %v2504, 48
  %v2673 = vpop.permute.xlu0 %2672
  %2674 = vrot.lane.b32.xlu0 %v2505, 48
  %v2675 = vpop.permute.xlu0 %2674
  %2676 = vrot.lane.b32.xlu0 %v2506, 48
  %v2677 = vpop.permute.xlu0 %2676
  %2678 = vrot.lane.b32.xlu0 %v2507, 48
  %v2679 = vpop.permute.xlu0 %2678
  %2680 = vrot.lane.b32.xlu0 %v2508, 48
  %v2681 = vpop.permute.xlu0 %2680
  %2682 = vrot.lane.b32.xlu0 %v2509, 48
  %v2683 = vpop.permute.xlu0 %2682
  %2684 = vrot.lane.b32.xlu0 %v2510, 48
  %v2685 = vpop.permute.xlu0 %2684
  %2686 = vrot.lane.b32.xlu0 %v2511, 48
  %v2687 = vpop.permute.xlu0 %2686
  %2688 = vrot.lane.b32.xlu0 %v2512, 48
  %v2689 = vpop.permute.xlu0 %2688
  %2690 = vrot.lane.b32.xlu0 %v2513, 48
  %v2691 = vpop.permute.xlu0 %2690
  %2692 = vrot.lane.b32.xlu0 %v2514, 48
  %v2693 = vpop.permute.xlu0 %2692
  %2694 = vrot.lane.b32.xlu0 %v2515, 48
  %v2695 = vpop.permute.xlu0 %2694
  %2696 = vrot.lane.b32.xlu0 %v2516, 48
  %v2697 = vpop.permute.xlu0 %2696
  %2698 = vrot.lane.b32.xlu0 %v2517, 48
  %v2699 = vpop.permute.xlu0 %2698
  %2700 = vrot.lane.b32.xlu0 %v2518, 48
  %v2701 = vpop.permute.xlu0 %2700
  %2702 = vrot.lane.b32.xlu0 %v2519, 48
  %v2703 = vpop.permute.xlu0 %2702
  %2704 = vrot.lane.b32.xlu0 %v2520, 48
  %v2705 = vpop.permute.xlu0 %2704
  %2706 = vrot.lane.b32.xlu0 %v2521, 48
  %v2707 = vpop.permute.xlu0 %2706
  %2708 = vrot.lane.b32.xlu0 %v2522, 48
  %v2709 = vpop.permute.xlu0 %2708
  %2710 = vrot.lane.b32.xlu0 %v2523, 48
  %v2711 = vpop.permute.xlu0 %2710
  %2712 = vrot.lane.b32.xlu0 %v2524, 48
  %v2713 = vpop.permute.xlu0 %2712
  %2714 = vrot.lane.b32.xlu0 %v2525, 48
  %v2715 = vpop.permute.xlu0 %2714
  %2716 = vrot.lane.b32.xlu0 %v2526, 48
  %v2717 = vpop.permute.xlu0 %2716
  %2718 = vrot.lane.b32.xlu0 %v2527, 48
  %v2719 = vpop.permute.xlu0 %2718
  %2720 = vrot.lane.b32.xlu0 %v2528, 48
  %v2721 = vpop.permute.xlu0 %2720
  %2722 = vrot.lane.b32.xlu0 %v2529, 48
  %v2723 = vpop.permute.xlu0 %2722
  %2724 = vrot.lane.b32.xlu0 %v2530, 48
  %v2725 = vpop.permute.xlu0 %2724
  %2726 = vrot.lane.b32.xlu0 %v2531, 48
  %v2727 = vpop.permute.xlu0 %2726
  %2728 = vrot.lane.b32.xlu0 %v2532, 48
  %v2729 = vpop.permute.xlu0 %2728
  %2730 = vrot.lane.b32.xlu0 %v2533, 48
  %v2731 = vpop.permute.xlu0 %2730
  %2732 = vrot.lane.b32.xlu0 %v2534, 48
  %v2733 = vpop.permute.xlu0 %2732
  %2734 = vrot.lane.b32.xlu0 %v2535, 48
  %v2735 = vpop.permute.xlu0 %2734
  %2736 = vrot.lane.b32.xlu0 %v2536, 48
  %v2737 = vpop.permute.xlu0 %2736
  %2738 = vrot.lane.b32.xlu0 %v2537, 48
  %v2739 = vpop.permute.xlu0 %2738
  %2740 = vrot.lane.b32.xlu0 %v2538, 48
  %v2741 = vpop.permute.xlu0 %2740
  %2742 = vrot.lane.b32.xlu0 %v2539, 48
  %v2743 = vpop.permute.xlu0 %2742
  %2744 = vrot.lane.b32.xlu0 %v2540, 48
  %v2745 = vpop.permute.xlu0 %2744
  %2746 = vrot.lane.b32.xlu0 %v2541, 48
  %v2747 = vpop.permute.xlu0 %2746
  %2748 = vrot.lane.b32.xlu0 %v2542, 48
  %v2749 = vpop.permute.xlu0 %2748
  %2750 = vrot.lane.b32.xlu0 %v2543, 48
  %v2751 = vpop.permute.xlu0 %2750
  %2752 = vrot.lane.b32.xlu0 %v2544, 48
  %v2753 = vpop.permute.xlu0 %2752
  %2754 = vrot.lane.b32.xlu0 %v2545, 48
  %v2755 = vpop.permute.xlu0 %2754
  %2756 = vrot.lane.b32.xlu0 %v2546, 48
  %v2757 = vpop.permute.xlu0 %2756
  %2758 = vrot.lane.b32.xlu0 %v2547, 48
  %v2759 = vpop.permute.xlu0 %2758
  %2760 = vrot.lane.b32.xlu0 %v2548, 48
  %v2761 = vpop.permute.xlu0 %2760
  %2762 = vrot.lane.b32.xlu0 %v2549, 48
  %v2763 = vpop.permute.xlu0 %2762
  %2764 = vrot.lane.b32.xlu0 %v2550, 48
  %v2765 = vpop.permute.xlu0 %2764
  %2766 = vrot.lane.b32.xlu0 %v2551, 48
  %v2767 = vpop.permute.xlu0 %2766
  %2768 = vrot.lane.b32.xlu0 %v2552, 48
  %v2769 = vpop.permute.xlu0 %2768
  %2770 = vrot.lane.b32.xlu0 %v2553, 48
  %v2771 = vpop.permute.xlu0 %2770
  %2772 = vrot.lane.b32.xlu0 %v2554, 48
  %v2773 = vpop.permute.xlu0 %2772
  %2774 = vrot.lane.b32.xlu0 %v2555, 48
  %v2775 = vpop.permute.xlu0 %2774
  %2776 = vrot.lane.b32.xlu0 %v2556, 48
  %v2777 = vpop.permute.xlu0 %2776
  %2778 = vrot.lane.b32.xlu0 %v2557, 48
  %v2779 = vpop.permute.xlu0 %2778
  %2780 = vrot.lane.b32.xlu0 %v2558, 48
  %v2781 = vpop.permute.xlu0 %2780
  %2782 = vrot.lane.b32.xlu0 %v2559, 48
  %v2783 = vpop.permute.xlu0 %2782
  %2784 = vrot.lane.b32.xlu0 %v2560, 48
  %v2785 = vpop.permute.xlu0 %2784
  %2786 = vrot.lane.b32.xlu0 %v2561, 48
  %v2787 = vpop.permute.xlu0 %2786
  %2788 = vrot.lane.b32.xlu0 %v2562, 48
  %v2789 = vpop.permute.xlu0 %2788
  %2790 = vrot.lane.b32.xlu0 %v2563, 48
  %v2791 = vpop.permute.xlu0 %2790
  %2792 = vrot.lane.b32.xlu0 %v2564, 48
  %v2793 = vpop.permute.xlu0 %2792
  %2794 = vrot.lane.b32.xlu0 %v2565, 48
  %v2795 = vpop.permute.xlu0 %2794
  %2796 = vrot.lane.b32.xlu0 %v2566, 48
  %v2797 = vpop.permute.xlu0 %2796
  %vm2875 = vcmask 458112
  %2876 = vst.msk [vmem:[#allocation2] sm:$0xff] %vm2875, %v2645
  %2877 = vst.msk [vmem:[#allocation2 + $0x8] sm:$0xff] %vm2875, %v2647
  %2878 = vst.msk [vmem:[#allocation2 + $0x10] sm:$0xff] %vm2875, %v2649
  %2879 = vst.msk [vmem:[#allocation2 + $0x18] sm:$0xff] %vm2875, %v2651
  %2880 = vst.msk [vmem:[#allocation2 + $0x20] sm:$0xff] %vm2875, %v2653
  %2881 = vst.msk [vmem:[#allocation2 + $0x28] sm:$0xff] %vm2875, %v2655
  %2882 = vst.msk [vmem:[#allocation2 + $0x30] sm:$0xff] %vm2875, %v2657
  %2883 = vst.msk [vmem:[#allocation2 + $0x38] sm:$0xff] %vm2875, %v2659
  %2884 = vst.msk [vmem:[#allocation2 + $0x40] sm:$0xff] %vm2875, %v2661
  %2885 = vst.msk [vmem:[#allocation2 + $0x48] sm:$0xff] %vm2875, %v2663
  %2886 = vst.msk [vmem:[#allocation2 + $0x50] sm:$0xff] %vm2875, %v2665
  %2887 = vst.msk [vmem:[#allocation2 + $0x58] sm:$0xff] %vm2875, %v2667
  %2888 = vst.msk [vmem:[#allocation2 + $0x60] sm:$0xff] %vm2875, %v2669
  %2889 = vst.msk [vmem:[#allocation2 + $0x68] sm:$0xff] %vm2875, %v2671
  %2890 = vst.msk [vmem:[#allocation2 + $0x70] sm:$0xff] %vm2875, %v2673
  %2891 = vst.msk [vmem:[#allocation2 + $0x78] sm:$0xff] %vm2875, %v2675
  %2892 = vst.msk [vmem:[#allocation2 + $0x80] sm:$0xff] %vm2875, %v2677
  %2893 = vst.msk [vmem:[#allocation2 + $0x88] sm:$0xff] %vm2875, %v2679
  %2894 = vst.msk [vmem:[#allocation2 + $0x90] sm:$0xff] %vm2875, %v2681
  %2895 = vst.msk [vmem:[#allocation2 + $0x98] sm:$0xff] %vm2875, %v2683
  %2896 = vst.msk [vmem:[#allocation2 + $0xa0] sm:$0xff] %vm2875, %v2685
  %2897 = vst.msk [vmem:[#allocation2 + $0xa8] sm:$0xff] %vm2875, %v2687
  %2898 = vst.msk [vmem:[#allocation2 + $0xb0] sm:$0xff] %vm2875, %v2689
  %2899 = vst.msk [vmem:[#allocation2 + $0xb8] sm:$0xff] %vm2875, %v2691
  %2900 = vst.msk [vmem:[#allocation2 + $0xc0] sm:$0xff] %vm2875, %v2693
  %2901 = vst.msk [vmem:[#allocation2 + $0xc8] sm:$0xff] %vm2875, %v2695
  %2902 = vst.msk [vmem:[#allocation2 + $0xd0] sm:$0xff] %vm2875, %v2697
  %2903 = vst.msk [vmem:[#allocation2 + $0xd8] sm:$0xff] %vm2875, %v2699
  %2904 = vst.msk [vmem:[#allocation2 + $0xe0] sm:$0xff] %vm2875, %v2701
  %2905 = vst.msk [vmem:[#allocation2 + $0xe8] sm:$0xff] %vm2875, %v2703
  %2906 = vst.msk [vmem:[#allocation2 + $0xf0] sm:$0xff] %vm2875, %v2705
  %2907 = vst.msk [vmem:[#allocation2 + $0xf8] sm:$0xff] %vm2875, %v2707
  %2908 = vst.msk [vmem:[#allocation2 + $0x100] sm:$0xff] %vm2875, %v2709
  %2909 = vst.msk [vmem:[#allocation2 + $0x108] sm:$0xff] %vm2875, %v2711
  %2910 = vst.msk [vmem:[#allocation2 + $0x110] sm:$0xff] %vm2875, %v2713
  %2911 = vst.msk [vmem:[#allocation2 + $0x118] sm:$0xff] %vm2875, %v2715
  %2912 = vst.msk [vmem:[#allocation2 + $0x120] sm:$0xff] %vm2875, %v2717
  %2913 = vst.msk [vmem:[#allocation2 + $0x128] sm:$0xff] %vm2875, %v2719
  %2914 = vst.msk [vmem:[#allocation2 + $0x130] sm:$0xff] %vm2875, %v2721
  %2915 = vst.msk [vmem:[#allocation2 + $0x138] sm:$0xff] %vm2875, %v2723
  %2916 = vst.msk [vmem:[#allocation2 + $0x140] sm:$0xff] %vm2875, %v2725
  %2917 = vst.msk [vmem:[#allocation2 + $0x148] sm:$0xff] %vm2875, %v2727
  %2918 = vst.msk [vmem:[#allocation2 + $0x150] sm:$0xff] %vm2875, %v2729
  %2919 = vst.msk [vmem:[#allocation2 + $0x158] sm:$0xff] %vm2875, %v2731
  %2920 = vst.msk [vmem:[#allocation2 + $0x160] sm:$0xff] %vm2875, %v2733
  %2921 = vst.msk [vmem:[#allocation2 + $0x168] sm:$0xff] %vm2875, %v2735
  %2922 = vst.msk [vmem:[#allocation2 + $0x170] sm:$0xff] %vm2875, %v2737
  %2923 = vst.msk [vmem:[#allocation2 + $0x178] sm:$0xff] %vm2875, %v2739
  %2924 = vst.msk [vmem:[#allocation2 + $0x180] sm:$0xff] %vm2875, %v2741
  %2925 = vst.msk [vmem:[#allocation2 + $0x188] sm:$0xff] %vm2875, %v2743
  %2926 = vst.msk [vmem:[#allocation2 + $0x190] sm:$0xff] %vm2875, %v2745
  %2927 = vst.msk [vmem:[#allocation2 + $0x198] sm:$0xff] %vm2875, %v2747
  %2928 = vst.msk [vmem:[#allocation2 + $0x1a0] sm:$0xff] %vm2875, %v2749
  %2929 = vst.msk [vmem:[#allocation2 + $0x1a8] sm:$0xff] %vm2875, %v2751
  %2930 = vst.msk [vmem:[#allocation2 + $0x1b0] sm:$0xff] %vm2875, %v2753
  %2931 = vst.msk [vmem:[#allocation2 + $0x1b8] sm:$0xff] %vm2875, %v2755
  %2932 = vst.msk [vmem:[#allocation2 + $0x1c0] sm:$0xff] %vm2875, %v2757
  %2933 = vst.msk [vmem:[#allocation2 + $0x1c8] sm:$0xff] %vm2875, %v2759
  %2934 = vst.msk [vmem:[#allocation2 + $0x1d0] sm:$0xff] %vm2875, %v2761
  %2935 = vst.msk [vmem:[#allocation2 + $0x1d8] sm:$0xff] %vm2875, %v2763
  %2936 = vst.msk [vmem:[#allocation2 + $0x1e0] sm:$0xff] %vm2875, %v2765
  %2937 = vst.msk [vmem:[#allocation2 + $0x1e8] sm:$0xff] %vm2875, %v2767
  %2938 = vst.msk [vmem:[#allocation2 + $0x1f0] sm:$0xff] %vm2875, %v2769
  %2939 = vst.msk [vmem:[#allocation2 + $0x1f8] sm:$0xff] %vm2875, %v2771
  %2940 = vst.msk [vmem:[#allocation2 + $0x200] sm:$0xff] %vm2875, %v2773
  %2941 = vst.msk [vmem:[#allocation2 + $0x208] sm:$0xff] %vm2875, %v2775
  %2942 = vst.msk [vmem:[#allocation2 + $0x210] sm:$0xff] %vm2875, %v2777
  %2943 = vst.msk [vmem:[#allocation2 + $0x218] sm:$0xff] %vm2875, %v2779
  %2944 = vst.msk [vmem:[#allocation2 + $0x220] sm:$0xff] %vm2875, %v2781
  %2945 = vst.msk [vmem:[#allocation2 + $0x228] sm:$0xff] %vm2875, %v2783
  %2946 = vst.msk [vmem:[#allocation2 + $0x230] sm:$0xff] %vm2875, %v2785
  %2947 = vst.msk [vmem:[#allocation2 + $0x238] sm:$0xff] %vm2875, %v2787
  %2948 = vst.msk [vmem:[#allocation2 + $0x240] sm:$0xff] %vm2875, %v2789
  %2949 = vst.msk [vmem:[#allocation2 + $0x248] sm:$0xff] %vm2875, %v2791
  %2950 = vst.msk [vmem:[#allocation2 + $0x250] sm:$0xff] %vm2875, %v2793
  %2951 = vst.msk [vmem:[#allocation2 + $0x258] sm:$0xff] %vm2875, %v2795
  %2952 = vst.msk [vmem:[#allocation2 + $0x260] sm:$0xff] %vm2875, %v2797
  %v2953 = vld [vmem:[%s0 + $0x25] sm:$0xff]
  %v2954 = vld [vmem:[%s0 + $0x2d] sm:$0xff]
  %v2955 = vld [vmem:[%s0 + $0x35] sm:$0xff]
  %v2956 = vld [vmem:[%s0 + $0x3d] sm:$0xff]
  %v2957 = vld [vmem:[%s0 + $0x45] sm:$0xff]
  %v2958 = vld [vmem:[%s0 + $0x4d] sm:$0xff]
  %v2959 = vld [vmem:[%s0 + $0x55] sm:$0xff]
  %v2960 = vld [vmem:[%s0 + $0x5d] sm:$0xff]
  %v2961 = vld [vmem:[%s0 + $0x65] sm:$0xff]
  %v2962 = vld [vmem:[%s0 + $0x6d] sm:$0xff]
  %v2963 = vld [vmem:[%s0 + $0x75] sm:$0xff]
  %v2964 = vld [vmem:[%s0 + $0x7d] sm:$0xff]
  %v2965 = vld [vmem:[%s0 + $0x85] sm:$0xff]
  %v2966 = vld [vmem:[%s0 + $0x8d] sm:$0xff]
  %v2967 = vld [vmem:[%s0 + $0x95] sm:$0xff]
  %v2968 = vld [vmem:[%s0 + $0x9d] sm:$0xff]
  %v2969 = vld [vmem:[%s0 + $0xa5] sm:$0xff]
  %v2970 = vld [vmem:[%s0 + $0xad] sm:$0xff]
  %v2971 = vld [vmem:[%s0 + $0xb5] sm:$0xff]
  %v2972 = vld [vmem:[%s0 + $0xbd] sm:$0xff]
  %v2973 = vld [vmem:[%s0 + $0xc5] sm:$0xff]
  %v2974 = vld [vmem:[%s0 + $0xcd] sm:$0xff]
  %v2975 = vld [vmem:[%s0 + $0xd5] sm:$0xff]
  %v2976 = vld [vmem:[%s0 + $0xdd] sm:$0xff]
  %v2977 = vld [vmem:[%s0 + $0xe5] sm:$0xff]
  %v2978 = vld [vmem:[%s0 + $0xed] sm:$0xff]
  %v2979 = vld [vmem:[%s0 + $0xf5] sm:$0xff]
  %v2980 = vld [vmem:[%s0 + $0xfd] sm:$0xff]
  %v2981 = vld [vmem:[%s0 + $0x105] sm:$0xff]
  %v2982 = vld [vmem:[%s0 + $0x10d] sm:$0xff]
  %v2983 = vld [vmem:[%s0 + $0x115] sm:$0xff]
  %v2984 = vld [vmem:[%s0 + $0x11d] sm:$0xff]
  %v2985 = vld [vmem:[%s0 + $0x125] sm:$0xff]
  %v2986 = vld [vmem:[%s0 + $0x12d] sm:$0xff]
  %v2987 = vld [vmem:[%s0 + $0x135] sm:$0xff]
  %v2988 = vld [vmem:[%s0 + $0x13d] sm:$0xff]
  %v2989 = vld [vmem:[%s0 + $0x145] sm:$0xff]
  %v2990 = vld [vmem:[%s0 + $0x14d] sm:$0xff]
  %v2991 = vld [vmem:[%s0 + $0x155] sm:$0xff]
  %v2992 = vld [vmem:[%s0 + $0x15d] sm:$0xff]
  %v2993 = vld [vmem:[%s0 + $0x165] sm:$0xff]
  %v2994 = vld [vmem:[%s0 + $0x16d] sm:$0xff]
  %v2995 = vld [vmem:[%s0 + $0x175] sm:$0xff]
  %v2996 = vld [vmem:[%s0 + $0x17d] sm:$0xff]
  %v2997 = vld [vmem:[%s0 + $0x185] sm:$0xff]
  %v2998 = vld [vmem:[%s0 + $0x18d] sm:$0xff]
  %v2999 = vld [vmem:[%s0 + $0x195] sm:$0xff]
  %v3000 = vld [vmem:[%s0 + $0x19d] sm:$0xff]
  %v3001 = vld [vmem:[%s0 + $0x1a5] sm:$0xff]
  %v3002 = vld [vmem:[%s0 + $0x1ad] sm:$0xff]
  %v3003 = vld [vmem:[%s0 + $0x1b5] sm:$0xff]
  %v3004 = vld [vmem:[%s0 + $0x1bd] sm:$0xff]
  %v3005 = vld [vmem:[%s0 + $0x1c5] sm:$0xff]
  %v3006 = vld [vmem:[%s0 + $0x1cd] sm:$0xff]
  %v3007 = vld [vmem:[%s0 + $0x1d5] sm:$0xff]
  %v3008 = vld [vmem:[%s0 + $0x1dd] sm:$0xff]
  %v3009 = vld [vmem:[%s0 + $0x1e5] sm:$0xff]
  %v3010 = vld [vmem:[%s0 + $0x1ed] sm:$0xff]
  %v3011 = vld [vmem:[%s0 + $0x1f5] sm:$0xff]
  %v3012 = vld [vmem:[%s0 + $0x1fd] sm:$0xff]
  %v3013 = vld [vmem:[%s0 + $0x205] sm:$0xff]
  %v3014 = vld [vmem:[%s0 + $0x20d] sm:$0xff]
  %v3015 = vld [vmem:[%s0 + $0x215] sm:$0xff]
  %v3016 = vld [vmem:[%s0 + $0x21d] sm:$0xff]
  %v3017 = vld [vmem:[%s0 + $0x225] sm:$0xff]
  %v3018 = vld [vmem:[%s0 + $0x22d] sm:$0xff]
  %v3019 = vld [vmem:[%s0 + $0x235] sm:$0xff]
  %v3020 = vld [vmem:[%s0 + $0x23d] sm:$0xff]
  %v3021 = vld [vmem:[%s0 + $0x245] sm:$0xff]
  %v3022 = vld [vmem:[%s0 + $0x24d] sm:$0xff]
  %v3023 = vld [vmem:[%s0 + $0x255] sm:$0xff]
  %v3024 = vld [vmem:[%s0 + $0x25d] sm:$0xff]
  %v3025 = vld [vmem:[%s0 + $0x265] sm:$0xff]
  %v3026 = vld [vmem:[%s0 + $0x26d] sm:$0xff]
  %v3027 = vld [vmem:[%s0 + $0x275] sm:$0xff]
  %v3028 = vld [vmem:[%s0 + $0x27d] sm:$0xff]
  %v3029 = vld [vmem:[%s0 + $0x285] sm:$0xff]
  %3107 = vrot.lane.b32.xlu0 %v2953, 56
  %v3108 = vpop.permute.xlu0 %3107
  %3109 = vrot.lane.b32.xlu0 %v2954, 56
  %v3110 = vpop.permute.xlu0 %3109
  %3111 = vrot.lane.b32.xlu0 %v2955, 56
  %v3112 = vpop.permute.xlu0 %3111
  %3113 = vrot.lane.b32.xlu0 %v2956, 56
  %v3114 = vpop.permute.xlu0 %3113
  %3115 = vrot.lane.b32.xlu0 %v2957, 56
  %v3116 = vpop.permute.xlu0 %3115
  %3117 = vrot.lane.b32.xlu0 %v2958, 56
  %v3118 = vpop.permute.xlu0 %3117
  %3119 = vrot.lane.b32.xlu0 %v2959, 56
  %v3120 = vpop.permute.xlu0 %3119
  %3121 = vrot.lane.b32.xlu0 %v2960, 56
  %v3122 = vpop.permute.xlu0 %3121
  %3123 = vrot.lane.b32.xlu0 %v2961, 56
  %v3124 = vpop.permute.xlu0 %3123
  %3125 = vrot.lane.b32.xlu0 %v2962, 56
  %v3126 = vpop.permute.xlu0 %3125
  %3127 = vrot.lane.b32.xlu0 %v2963, 56
  %v3128 = vpop.permute.xlu0 %3127
  %3129 = vrot.lane.b32.xlu0 %v2964, 56
  %v3130 = vpop.permute.xlu0 %3129
  %3131 = vrot.lane.b32.xlu0 %v2965, 56
  %v3132 = vpop.permute.xlu0 %3131
  %3133 = vrot.lane.b32.xlu0 %v2966, 56
  %v3134 = vpop.permute.xlu0 %3133
  %3135 = vrot.lane.b32.xlu0 %v2967, 56
  %v3136 = vpop.permute.xlu0 %3135
  %3137 = vrot.lane.b32.xlu0 %v2968, 56
  %v3138 = vpop.permute.xlu0 %3137
  %3139 = vrot.lane.b32.xlu0 %v2969, 56
  %v3140 = vpop.permute.xlu0 %3139
  %3141 = vrot.lane.b32.xlu0 %v2970, 56
  %v3142 = vpop.permute.xlu0 %3141
  %3143 = vrot.lane.b32.xlu0 %v2971, 56
  %v3144 = vpop.permute.xlu0 %3143
  %3145 = vrot.lane.b32.xlu0 %v2972, 56
  %v3146 = vpop.permute.xlu0 %3145
  %3147 = vrot.lane.b32.xlu0 %v2973, 56
  %v3148 = vpop.permute.xlu0 %3147
  %3149 = vrot.lane.b32.xlu0 %v2974, 56
  %v3150 = vpop.permute.xlu0 %3149
  %3151 = vrot.lane.b32.xlu0 %v2975, 56
  %v3152 = vpop.permute.xlu0 %3151
  %3153 = vrot.lane.b32.xlu0 %v2976, 56
  %v3154 = vpop.permute.xlu0 %3153
  %3155 = vrot.lane.b32.xlu0 %v2977, 56
  %v3156 = vpop.permute.xlu0 %3155
  %3157 = vrot.lane.b32.xlu0 %v2978, 56
  %v3158 = vpop.permute.xlu0 %3157
  %3159 = vrot.lane.b32.xlu0 %v2979, 56
  %v3160 = vpop.permute.xlu0 %3159
  %3161 = vrot.lane.b32.xlu0 %v2980, 56
  %v3162 = vpop.permute.xlu0 %3161
  %3163 = vrot.lane.b32.xlu0 %v2981, 56
  %v3164 = vpop.permute.xlu0 %3163
  %3165 = vrot.lane.b32.xlu0 %v2982, 56
  %v3166 = vpop.permute.xlu0 %3165
  %3167 = vrot.lane.b32.xlu0 %v2983, 56
  %v3168 = vpop.permute.xlu0 %3167
  %3169 = vrot.lane.b32.xlu0 %v2984, 56
  %v3170 = vpop.permute.xlu0 %3169
  %3171 = vrot.lane.b32.xlu0 %v2985, 56
  %v3172 = vpop.permute.xlu0 %3171
  %3173 = vrot.lane.b32.xlu0 %v2986, 56
  %v3174 = vpop.permute.xlu0 %3173
  %3175 = vrot.lane.b32.xlu0 %v2987, 56
  %v3176 = vpop.permute.xlu0 %3175
  %3177 = vrot.lane.b32.xlu0 %v2988, 56
  %v3178 = vpop.permute.xlu0 %3177
  %3179 = vrot.lane.b32.xlu0 %v2989, 56
  %v3180 = vpop.permute.xlu0 %3179
  %3181 = vrot.lane.b32.xlu0 %v2990, 56
  %v3182 = vpop.permute.xlu0 %3181
  %3183 = vrot.lane.b32.xlu0 %v2991, 56
  %v3184 = vpop.permute.xlu0 %3183
  %3185 = vrot.lane.b32.xlu0 %v2992, 56
  %v3186 = vpop.permute.xlu0 %3185
  %3187 = vrot.lane.b32.xlu0 %v2993, 56
  %v3188 = vpop.permute.xlu0 %3187
  %3189 = vrot.lane.b32.xlu0 %v2994, 56
  %v3190 = vpop.permute.xlu0 %3189
  %3191 = vrot.lane.b32.xlu0 %v2995, 56
  %v3192 = vpop.permute.xlu0 %3191
  %3193 = vrot.lane.b32.xlu0 %v2996, 56
  %v3194 = vpop.permute.xlu0 %3193
  %3195 = vrot.lane.b32.xlu0 %v2997, 56
  %v3196 = vpop.permute.xlu0 %3195
  %3197 = vrot.lane.b32.xlu0 %v2998, 56
  %v3198 = vpop.permute.xlu0 %3197
  %3199 = vrot.lane.b32.xlu0 %v2999, 56
  %v3200 = vpop.permute.xlu0 %3199
  %3201 = vrot.lane.b32.xlu0 %v3000, 56
  %v3202 = vpop.permute.xlu0 %3201
  %3203 = vrot.lane.b32.xlu0 %v3001, 56
  %v3204 = vpop.permute.xlu0 %3203
  %3205 = vrot.lane.b32.xlu0 %v3002, 56
  %v3206 = vpop.permute.xlu0 %3205
  %3207 = vrot.lane.b32.xlu0 %v3003, 56
  %v3208 = vpop.permute.xlu0 %3207
  %3209 = vrot.lane.b32.xlu0 %v3004, 56
  %v3210 = vpop.permute.xlu0 %3209
  %3211 = vrot.lane.b32.xlu0 %v3005, 56
  %v3212 = vpop.permute.xlu0 %3211
  %3213 = vrot.lane.b32.xlu0 %v3006, 56
  %v3214 = vpop.permute.xlu0 %3213
  %3215 = vrot.lane.b32.xlu0 %v3007, 56
  %v3216 = vpop.permute.xlu0 %3215
  %3217 = vrot.lane.b32.xlu0 %v3008, 56
  %v3218 = vpop.permute.xlu0 %3217
  %3219 = vrot.lane.b32.xlu0 %v3009, 56
  %v3220 = vpop.permute.xlu0 %3219
  %3221 = vrot.lane.b32.xlu0 %v3010, 56
  %v3222 = vpop.permute.xlu0 %3221
  %3223 = vrot.lane.b32.xlu0 %v3011, 56
  %v3224 = vpop.permute.xlu0 %3223
  %3225 = vrot.lane.b32.xlu0 %v3012, 56
  %v3226 = vpop.permute.xlu0 %3225
  %3227 = vrot.lane.b32.xlu0 %v3013, 56
  %v3228 = vpop.permute.xlu0 %3227
  %3229 = vrot.lane.b32.xlu0 %v3014, 56
  %v3230 = vpop.permute.xlu0 %3229
  %3231 = vrot.lane.b32.xlu0 %v3015, 56
  %v3232 = vpop.permute.xlu0 %3231
  %3233 = vrot.lane.b32.xlu0 %v3016, 56
  %v3234 = vpop.permute.xlu0 %3233
  %3235 = vrot.lane.b32.xlu0 %v3017, 56
  %v3236 = vpop.permute.xlu0 %3235
  %3237 = vrot.lane.b32.xlu0 %v3018, 56
  %v3238 = vpop.permute.xlu0 %3237
  %3239 = vrot.lane.b32.xlu0 %v3019, 56
  %v3240 = vpop.permute.xlu0 %3239
  %3241 = vrot.lane.b32.xlu0 %v3020, 56
  %v3242 = vpop.permute.xlu0 %3241
  %3243 = vrot.lane.b32.xlu0 %v3021, 56
  %v3244 = vpop.permute.xlu0 %3243
  %3245 = vrot.lane.b32.xlu0 %v3022, 56
  %v3246 = vpop.permute.xlu0 %3245
  %3247 = vrot.lane.b32.xlu0 %v3023, 56
  %v3248 = vpop.permute.xlu0 %3247
  %3249 = vrot.lane.b32.xlu0 %v3024, 56
  %v3250 = vpop.permute.xlu0 %3249
  %3251 = vrot.lane.b32.xlu0 %v3025, 56
  %v3252 = vpop.permute.xlu0 %3251
  %3253 = vrot.lane.b32.xlu0 %v3026, 56
  %v3254 = vpop.permute.xlu0 %3253
  %3255 = vrot.lane.b32.xlu0 %v3027, 56
  %v3256 = vpop.permute.xlu0 %3255
  %3257 = vrot.lane.b32.xlu0 %v3028, 56
  %v3258 = vpop.permute.xlu0 %3257
  %3259 = vrot.lane.b32.xlu0 %v3029, 56
  %v3260 = vpop.permute.xlu0 %3259
  %vm3338 = vcmask 523712
  %3339 = vst.msk [vmem:[#allocation2] sm:$0xff] %vm3338, %v3108
  %3340 = vst.msk [vmem:[#allocation2 + $0x8] sm:$0xff] %vm3338, %v3110
  %3341 = vst.msk [vmem:[#allocation2 + $0x10] sm:$0xff] %vm3338, %v3112
  %3342 = vst.msk [vmem:[#allocation2 + $0x18] sm:$0xff] %vm3338, %v3114
  %3343 = vst.msk [vmem:[#allocation2 + $0x20] sm:$0xff] %vm3338, %v3116
  %3344 = vst.msk [vmem:[#allocation2 + $0x28] sm:$0xff] %vm3338, %v3118
  %3345 = vst.msk [vmem:[#allocation2 + $0x30] sm:$0xff] %vm3338, %v3120
  %3346 = vst.msk [vmem:[#allocation2 + $0x38] sm:$0xff] %vm3338, %v3122
  %3347 = vst.msk [vmem:[#allocation2 + $0x40] sm:$0xff] %vm3338, %v3124
  %3348 = vst.msk [vmem:[#allocation2 + $0x48] sm:$0xff] %vm3338, %v3126
  %3349 = vst.msk [vmem:[#allocation2 + $0x50] sm:$0xff] %vm3338, %v3128
  %3350 = vst.msk [vmem:[#allocation2 + $0x58] sm:$0xff] %vm3338, %v3130
  %3351 = vst.msk [vmem:[#allocation2 + $0x60] sm:$0xff] %vm3338, %v3132
  %3352 = vst.msk [vmem:[#allocation2 + $0x68] sm:$0xff] %vm3338, %v3134
  %3353 = vst.msk [vmem:[#allocation2 + $0x70] sm:$0xff] %vm3338, %v3136
  %3354 = vst.msk [vmem:[#allocation2 + $0x78] sm:$0xff] %vm3338, %v3138
  %3355 = vst.msk [vmem:[#allocation2 + $0x80] sm:$0xff] %vm3338, %v3140
  %3356 = vst.msk [vmem:[#allocation2 + $0x88] sm:$0xff] %vm3338, %v3142
  %3357 = vst.msk [vmem:[#allocation2 + $0x90] sm:$0xff] %vm3338, %v3144
  %3358 = vst.msk [vmem:[#allocation2 + $0x98] sm:$0xff] %vm3338, %v3146
  %3359 = vst.msk [vmem:[#allocation2 + $0xa0] sm:$0xff] %vm3338, %v3148
  %3360 = vst.msk [vmem:[#allocation2 + $0xa8] sm:$0xff] %vm3338, %v3150
  %3361 = vst.msk [vmem:[#allocation2 + $0xb0] sm:$0xff] %vm3338, %v3152
  %3362 = vst.msk [vmem:[#allocation2 + $0xb8] sm:$0xff] %vm3338, %v3154
  %3363 = vst.msk [vmem:[#allocation2 + $0xc0] sm:$0xff] %vm3338, %v3156
  %3364 = vst.msk [vmem:[#allocation2 + $0xc8] sm:$0xff] %vm3338, %v3158
  %3365 = vst.msk [vmem:[#allocation2 + $0xd0] sm:$0xff] %vm3338, %v3160
  %3366 = vst.msk [vmem:[#allocation2 + $0xd8] sm:$0xff] %vm3338, %v3162
  %3367 = vst.msk [vmem:[#allocation2 + $0xe0] sm:$0xff] %vm3338, %v3164
  %3368 = vst.msk [vmem:[#allocation2 + $0xe8] sm:$0xff] %vm3338, %v3166
  %3369 = vst.msk [vmem:[#allocation2 + $0xf0] sm:$0xff] %vm3338, %v3168
  %3370 = vst.msk [vmem:[#allocation2 + $0xf8] sm:$0xff] %vm3338, %v3170
  %3371 = vst.msk [vmem:[#allocation2 + $0x100] sm:$0xff] %vm3338, %v3172
  %3372 = vst.msk [vmem:[#allocation2 + $0x108] sm:$0xff] %vm3338, %v3174
  %3373 = vst.msk [vmem:[#allocation2 + $0x110] sm:$0xff] %vm3338, %v3176
  %3374 = vst.msk [vmem:[#allocation2 + $0x118] sm:$0xff] %vm3338, %v3178
  %3375 = vst.msk [vmem:[#allocation2 + $0x120] sm:$0xff] %vm3338, %v3180
  %3376 = vst.msk [vmem:[#allocation2 + $0x128] sm:$0xff] %vm3338, %v3182
  %3377 = vst.msk [vmem:[#allocation2 + $0x130] sm:$0xff] %vm3338, %v3184
  %3378 = vst.msk [vmem:[#allocation2 + $0x138] sm:$0xff] %vm3338, %v3186
  %3379 = vst.msk [vmem:[#allocation2 + $0x140] sm:$0xff] %vm3338, %v3188
  %3380 = vst.msk [vmem:[#allocation2 + $0x148] sm:$0xff] %vm3338, %v3190
  %3381 = vst.msk [vmem:[#allocation2 + $0x150] sm:$0xff] %vm3338, %v3192
  %3382 = vst.msk [vmem:[#allocation2 + $0x158] sm:$0xff] %vm3338, %v3194
  %3383 = vst.msk [vmem:[#allocation2 + $0x160] sm:$0xff] %vm3338, %v3196
  %3384 = vst.msk [vmem:[#allocation2 + $0x168] sm:$0xff] %vm3338, %v3198
  %3385 = vst.msk [vmem:[#allocation2 + $0x170] sm:$0xff] %vm3338, %v3200
  %3386 = vst.msk [vmem:[#allocation2 + $0x178] sm:$0xff] %vm3338, %v3202
  %3387 = vst.msk [vmem:[#allocation2 + $0x180] sm:$0xff] %vm3338, %v3204
  %3388 = vst.msk [vmem:[#allocation2 + $0x188] sm:$0xff] %vm3338, %v3206
  %3389 = vst.msk [vmem:[#allocation2 + $0x190] sm:$0xff] %vm3338, %v3208
  %3390 = vst.msk [vmem:[#allocation2 + $0x198] sm:$0xff] %vm3338, %v3210
  %3391 = vst.msk [vmem:[#allocation2 + $0x1a0] sm:$0xff] %vm3338, %v3212
  %3392 = vst.msk [vmem:[#allocation2 + $0x1a8] sm:$0xff] %vm3338, %v3214
  %3393 = vst.msk [vmem:[#allocation2 + $0x1b0] sm:$0xff] %vm3338, %v3216
  %3394 = vst.msk [vmem:[#allocation2 + $0x1b8] sm:$0xff] %vm3338, %v3218
  %3395 = vst.msk [vmem:[#allocation2 + $0x1c0] sm:$0xff] %vm3338, %v3220
  %3396 = vst.msk [vmem:[#allocation2 + $0x1c8] sm:$0xff] %vm3338, %v3222
  %3397 = vst.msk [vmem:[#allocation2 + $0x1d0] sm:$0xff] %vm3338, %v3224
  %3398 = vst.msk [vmem:[#allocation2 + $0x1d8] sm:$0xff] %vm3338, %v3226
  %3399 = vst.msk [vmem:[#allocation2 + $0x1e0] sm:$0xff] %vm3338, %v3228
  %3400 = vst.msk [vmem:[#allocation2 + $0x1e8] sm:$0xff] %vm3338, %v3230
  %3401 = vst.msk [vmem:[#allocation2 + $0x1f0] sm:$0xff] %vm3338, %v3232
  %3402 = vst.msk [vmem:[#allocation2 + $0x1f8] sm:$0xff] %vm3338, %v3234
  %3403 = vst.msk [vmem:[#allocation2 + $0x200] sm:$0xff] %vm3338, %v3236
  %3404 = vst.msk [vmem:[#allocation2 + $0x208] sm:$0xff] %vm3338, %v3238
  %3405 = vst.msk [vmem:[#allocation2 + $0x210] sm:$0xff] %vm3338, %v3240
  %3406 = vst.msk [vmem:[#allocation2 + $0x218] sm:$0xff] %vm3338, %v3242
  %3407 = vst.msk [vmem:[#allocation2 + $0x220] sm:$0xff] %vm3338, %v3244
  %3408 = vst.msk [vmem:[#allocation2 + $0x228] sm:$0xff] %vm3338, %v3246
  %3409 = vst.msk [vmem:[#allocation2 + $0x230] sm:$0xff] %vm3338, %v3248
  %3410 = vst.msk [vmem:[#allocation2 + $0x238] sm:$0xff] %vm3338, %v3250
  %3411 = vst.msk [vmem:[#allocation2 + $0x240] sm:$0xff] %vm3338, %v3252
  %3412 = vst.msk [vmem:[#allocation2 + $0x248] sm:$0xff] %vm3338, %v3254
  %3413 = vst.msk [vmem:[#allocation2 + $0x250] sm:$0xff] %vm3338, %v3256
  %3414 = vst.msk [vmem:[#allocation2 + $0x258] sm:$0xff] %vm3338, %v3258
  %3415 = vst.msk [vmem:[#allocation2 + $0x260] sm:$0xff] %vm3338, %v3260
  %v3416 = vld [vmem:[%s0 + $0x26] sm:$0xff]
  %v3417 = vld [vmem:[%s0 + $0x2e] sm:$0xff]
  %v3418 = vld [vmem:[%s0 + $0x36] sm:$0xff]
  %v3419 = vld [vmem:[%s0 + $0x3e] sm:$0xff]
  %v3420 = vld [vmem:[%s0 + $0x46] sm:$0xff]
  %v3421 = vld [vmem:[%s0 + $0x4e] sm:$0xff]
  %v3422 = vld [vmem:[%s0 + $0x56] sm:$0xff]
  %v3423 = vld [vmem:[%s0 + $0x5e] sm:$0xff]
  %v3424 = vld [vmem:[%s0 + $0x66] sm:$0xff]
  %v3425 = vld [vmem:[%s0 + $0x6e] sm:$0xff]
  %v3426 = vld [vmem:[%s0 + $0x76] sm:$0xff]
  %v3427 = vld [vmem:[%s0 + $0x7e] sm:$0xff]
  %v3428 = vld [vmem:[%s0 + $0x86] sm:$0xff]
  %v3429 = vld [vmem:[%s0 + $0x8e] sm:$0xff]
  %v3430 = vld [vmem:[%s0 + $0x96] sm:$0xff]
  %v3431 = vld [vmem:[%s0 + $0x9e] sm:$0xff]
  %v3432 = vld [vmem:[%s0 + $0xa6] sm:$0xff]
  %v3433 = vld [vmem:[%s0 + $0xae] sm:$0xff]
  %v3434 = vld [vmem:[%s0 + $0xb6] sm:$0xff]
  %v3435 = vld [vmem:[%s0 + $0xbe] sm:$0xff]
  %v3436 = vld [vmem:[%s0 + $0xc6] sm:$0xff]
  %v3437 = vld [vmem:[%s0 + $0xce] sm:$0xff]
  %v3438 = vld [vmem:[%s0 + $0xd6] sm:$0xff]
  %v3439 = vld [vmem:[%s0 + $0xde] sm:$0xff]
  %v3440 = vld [vmem:[%s0 + $0xe6] sm:$0xff]
  %v3441 = vld [vmem:[%s0 + $0xee] sm:$0xff]
  %v3442 = vld [vmem:[%s0 + $0xf6] sm:$0xff]
  %v3443 = vld [vmem:[%s0 + $0xfe] sm:$0xff]
  %v3444 = vld [vmem:[%s0 + $0x106] sm:$0xff]
  %v3445 = vld [vmem:[%s0 + $0x10e] sm:$0xff]
  %v3446 = vld [vmem:[%s0 + $0x116] sm:$0xff]
  %v3447 = vld [vmem:[%s0 + $0x11e] sm:$0xff]
  %v3448 = vld [vmem:[%s0 + $0x126] sm:$0xff]
  %v3449 = vld [vmem:[%s0 + $0x12e] sm:$0xff]
  %v3450 = vld [vmem:[%s0 + $0x136] sm:$0xff]
  %v3451 = vld [vmem:[%s0 + $0x13e] sm:$0xff]
  %v3452 = vld [vmem:[%s0 + $0x146] sm:$0xff]
  %v3453 = vld [vmem:[%s0 + $0x14e] sm:$0xff]
  %v3454 = vld [vmem:[%s0 + $0x156] sm:$0xff]
  %v3455 = vld [vmem:[%s0 + $0x15e] sm:$0xff]
  %v3456 = vld [vmem:[%s0 + $0x166] sm:$0xff]
  %v3457 = vld [vmem:[%s0 + $0x16e] sm:$0xff]
  %v3458 = vld [vmem:[%s0 + $0x176] sm:$0xff]
  %v3459 = vld [vmem:[%s0 + $0x17e] sm:$0xff]
  %v3460 = vld [vmem:[%s0 + $0x186] sm:$0xff]
  %v3461 = vld [vmem:[%s0 + $0x18e] sm:$0xff]
  %v3462 = vld [vmem:[%s0 + $0x196] sm:$0xff]
  %v3463 = vld [vmem:[%s0 + $0x19e] sm:$0xff]
  %v3464 = vld [vmem:[%s0 + $0x1a6] sm:$0xff]
  %v3465 = vld [vmem:[%s0 + $0x1ae] sm:$0xff]
  %v3466 = vld [vmem:[%s0 + $0x1b6] sm:$0xff]
  %v3467 = vld [vmem:[%s0 + $0x1be] sm:$0xff]
  %v3468 = vld [vmem:[%s0 + $0x1c6] sm:$0xff]
  %v3469 = vld [vmem:[%s0 + $0x1ce] sm:$0xff]
  %v3470 = vld [vmem:[%s0 + $0x1d6] sm:$0xff]
  %v3471 = vld [vmem:[%s0 + $0x1de] sm:$0xff]
  %v3472 = vld [vmem:[%s0 + $0x1e6] sm:$0xff]
  %v3473 = vld [vmem:[%s0 + $0x1ee] sm:$0xff]
  %v3474 = vld [vmem:[%s0 + $0x1f6] sm:$0xff]
  %v3475 = vld [vmem:[%s0 + $0x1fe] sm:$0xff]
  %v3476 = vld [vmem:[%s0 + $0x206] sm:$0xff]
  %v3477 = vld [vmem:[%s0 + $0x20e] sm:$0xff]
  %v3478 = vld [vmem:[%s0 + $0x216] sm:$0xff]
  %v3479 = vld [vmem:[%s0 + $0x21e] sm:$0xff]
  %v3480 = vld [vmem:[%s0 + $0x226] sm:$0xff]
  %v3481 = vld [vmem:[%s0 + $0x22e] sm:$0xff]
  %v3482 = vld [vmem:[%s0 + $0x236] sm:$0xff]
  %v3483 = vld [vmem:[%s0 + $0x23e] sm:$0xff]
  %v3484 = vld [vmem:[%s0 + $0x246] sm:$0xff]
  %v3485 = vld [vmem:[%s0 + $0x24e] sm:$0xff]
  %v3486 = vld [vmem:[%s0 + $0x256] sm:$0xff]
  %v3487 = vld [vmem:[%s0 + $0x25e] sm:$0xff]
  %v3488 = vld [vmem:[%s0 + $0x266] sm:$0xff]
  %v3489 = vld [vmem:[%s0 + $0x26e] sm:$0xff]
  %v3490 = vld [vmem:[%s0 + $0x276] sm:$0xff]
  %v3491 = vld [vmem:[%s0 + $0x27e] sm:$0xff]
  %v3492 = vld [vmem:[%s0 + $0x286] sm:$0xff]
  %3570 = vrot.lane.b32.xlu0 %v3416, 64
  %v3571 = vpop.permute.xlu0 %3570
  %3572 = vrot.lane.b32.xlu0 %v3417, 64
  %v3573 = vpop.permute.xlu0 %3572
  %3574 = vrot.lane.b32.xlu0 %v3418, 64
  %v3575 = vpop.permute.xlu0 %3574
  %3576 = vrot.lane.b32.xlu0 %v3419, 64
  %v3577 = vpop.permute.xlu0 %3576
  %3578 = vrot.lane.b32.xlu0 %v3420, 64
  %v3579 = vpop.permute.xlu0 %3578
  %3580 = vrot.lane.b32.xlu0 %v3421, 64
  %v3581 = vpop.permute.xlu0 %3580
  %3582 = vrot.lane.b32.xlu0 %v3422, 64
  %v3583 = vpop.permute.xlu0 %3582
  %3584 = vrot.lane.b32.xlu0 %v3423, 64
  %v3585 = vpop.permute.xlu0 %3584
  %3586 = vrot.lane.b32.xlu0 %v3424, 64
  %v3587 = vpop.permute.xlu0 %3586
  %3588 = vrot.lane.b32.xlu0 %v3425, 64
  %v3589 = vpop.permute.xlu0 %3588
  %3590 = vrot.lane.b32.xlu0 %v3426, 64
  %v3591 = vpop.permute.xlu0 %3590
  %3592 = vrot.lane.b32.xlu0 %v3427, 64
  %v3593 = vpop.permute.xlu0 %3592
  %3594 = vrot.lane.b32.xlu0 %v3428, 64
  %v3595 = vpop.permute.xlu0 %3594
  %3596 = vrot.lane.b32.xlu0 %v3429, 64
  %v3597 = vpop.permute.xlu0 %3596
  %3598 = vrot.lane.b32.xlu0 %v3430, 64
  %v3599 = vpop.permute.xlu0 %3598
  %3600 = vrot.lane.b32.xlu0 %v3431, 64
  %v3601 = vpop.permute.xlu0 %3600
  %3602 = vrot.lane.b32.xlu0 %v3432, 64
  %v3603 = vpop.permute.xlu0 %3602
  %3604 = vrot.lane.b32.xlu0 %v3433, 64
  %v3605 = vpop.permute.xlu0 %3604
  %3606 = vrot.lane.b32.xlu0 %v3434, 64
  %v3607 = vpop.permute.xlu0 %3606
  %3608 = vrot.lane.b32.xlu0 %v3435, 64
  %v3609 = vpop.permute.xlu0 %3608
  %3610 = vrot.lane.b32.xlu0 %v3436, 64
  %v3611 = vpop.permute.xlu0 %3610
  %3612 = vrot.lane.b32.xlu0 %v3437, 64
  %v3613 = vpop.permute.xlu0 %3612
  %3614 = vrot.lane.b32.xlu0 %v3438, 64
  %v3615 = vpop.permute.xlu0 %3614
  %3616 = vrot.lane.b32.xlu0 %v3439, 64
  %v3617 = vpop.permute.xlu0 %3616
  %3618 = vrot.lane.b32.xlu0 %v3440, 64
  %v3619 = vpop.permute.xlu0 %3618
  %3620 = vrot.lane.b32.xlu0 %v3441, 64
  %v3621 = vpop.permute.xlu0 %3620
  %3622 = vrot.lane.b32.xlu0 %v3442, 64
  %v3623 = vpop.permute.xlu0 %3622
  %3624 = vrot.lane.b32.xlu0 %v3443, 64
  %v3625 = vpop.permute.xlu0 %3624
  %3626 = vrot.lane.b32.xlu0 %v3444, 64
  %v3627 = vpop.permute.xlu0 %3626
  %3628 = vrot.lane.b32.xlu0 %v3445, 64
  %v3629 = vpop.permute.xlu0 %3628
  %3630 = vrot.lane.b32.xlu0 %v3446, 64
  %v3631 = vpop.permute.xlu0 %3630
  %3632 = vrot.lane.b32.xlu0 %v3447, 64
  %v3633 = vpop.permute.xlu0 %3632
  %3634 = vrot.lane.b32.xlu0 %v3448, 64
  %v3635 = vpop.permute.xlu0 %3634
  %3636 = vrot.lane.b32.xlu0 %v3449, 64
  %v3637 = vpop.permute.xlu0 %3636
  %3638 = vrot.lane.b32.xlu0 %v3450, 64
  %v3639 = vpop.permute.xlu0 %3638
  %3640 = vrot.lane.b32.xlu0 %v3451, 64
  %v3641 = vpop.permute.xlu0 %3640
  %3642 = vrot.lane.b32.xlu0 %v3452, 64
  %v3643 = vpop.permute.xlu0 %3642
  %3644 = vrot.lane.b32.xlu0 %v3453, 64
  %v3645 = vpop.permute.xlu0 %3644
  %3646 = vrot.lane.b32.xlu0 %v3454, 64
  %v3647 = vpop.permute.xlu0 %3646
  %3648 = vrot.lane.b32.xlu0 %v3455, 64
  %v3649 = vpop.permute.xlu0 %3648
  %3650 = vrot.lane.b32.xlu0 %v3456, 64
  %v3651 = vpop.permute.xlu0 %3650
  %3652 = vrot.lane.b32.xlu0 %v3457, 64
  %v3653 = vpop.permute.xlu0 %3652
  %3654 = vrot.lane.b32.xlu0 %v3458, 64
  %v3655 = vpop.permute.xlu0 %3654
  %3656 = vrot.lane.b32.xlu0 %v3459, 64
  %v3657 = vpop.permute.xlu0 %3656
  %3658 = vrot.lane.b32.xlu0 %v3460, 64
  %v3659 = vpop.permute.xlu0 %3658
  %3660 = vrot.lane.b32.xlu0 %v3461, 64
  %v3661 = vpop.permute.xlu0 %3660
  %3662 = vrot.lane.b32.xlu0 %v3462, 64
  %v3663 = vpop.permute.xlu0 %3662
  %3664 = vrot.lane.b32.xlu0 %v3463, 64
  %v3665 = vpop.permute.xlu0 %3664
  %3666 = vrot.lane.b32.xlu0 %v3464, 64
  %v3667 = vpop.permute.xlu0 %3666
  %3668 = vrot.lane.b32.xlu0 %v3465, 64
  %v3669 = vpop.permute.xlu0 %3668
  %3670 = vrot.lane.b32.xlu0 %v3466, 64
  %v3671 = vpop.permute.xlu0 %3670
  %3672 = vrot.lane.b32.xlu0 %v3467, 64
  %v3673 = vpop.permute.xlu0 %3672
  %3674 = vrot.lane.b32.xlu0 %v3468, 64
  %v3675 = vpop.permute.xlu0 %3674
  %3676 = vrot.lane.b32.xlu0 %v3469, 64
  %v3677 = vpop.permute.xlu0 %3676
  %3678 = vrot.lane.b32.xlu0 %v3470, 64
  %v3679 = vpop.permute.xlu0 %3678
  %3680 = vrot.lane.b32.xlu0 %v3471, 64
  %v3681 = vpop.permute.xlu0 %3680
  %3682 = vrot.lane.b32.xlu0 %v3472, 64
  %v3683 = vpop.permute.xlu0 %3682
  %3684 = vrot.lane.b32.xlu0 %v3473, 64
  %v3685 = vpop.permute.xlu0 %3684
  %3686 = vrot.lane.b32.xlu0 %v3474, 64
  %v3687 = vpop.permute.xlu0 %3686
  %3688 = vrot.lane.b32.xlu0 %v3475, 64
  %v3689 = vpop.permute.xlu0 %3688
  %3690 = vrot.lane.b32.xlu0 %v3476, 64
  %v3691 = vpop.permute.xlu0 %3690
  %3692 = vrot.lane.b32.xlu0 %v3477, 64
  %v3693 = vpop.permute.xlu0 %3692
  %3694 = vrot.lane.b32.xlu0 %v3478, 64
  %v3695 = vpop.permute.xlu0 %3694
  %3696 = vrot.lane.b32.xlu0 %v3479, 64
  %v3697 = vpop.permute.xlu0 %3696
  %3698 = vrot.lane.b32.xlu0 %v3480, 64
  %v3699 = vpop.permute.xlu0 %3698
  %3700 = vrot.lane.b32.xlu0 %v3481, 64
  %v3701 = vpop.permute.xlu0 %3700
  %3702 = vrot.lane.b32.xlu0 %v3482, 64
  %v3703 = vpop.permute.xlu0 %3702
  %3704 = vrot.lane.b32.xlu0 %v3483, 64
  %v3705 = vpop.permute.xlu0 %3704
  %3706 = vrot.lane.b32.xlu0 %v3484, 64
  %v3707 = vpop.permute.xlu0 %3706
  %3708 = vrot.lane.b32.xlu0 %v3485, 64
  %v3709 = vpop.permute.xlu0 %3708
  %3710 = vrot.lane.b32.xlu0 %v3486, 64
  %v3711 = vpop.permute.xlu0 %3710
  %3712 = vrot.lane.b32.xlu0 %v3487, 64
  %v3713 = vpop.permute.xlu0 %3712
  %3714 = vrot.lane.b32.xlu0 %v3488, 64
  %v3715 = vpop.permute.xlu0 %3714
  %3716 = vrot.lane.b32.xlu0 %v3489, 64
  %v3717 = vpop.permute.xlu0 %3716
  %3718 = vrot.lane.b32.xlu0 %v3490, 64
  %v3719 = vpop.permute.xlu0 %3718
  %3720 = vrot.lane.b32.xlu0 %v3491, 64
  %v3721 = vpop.permute.xlu0 %3720
  %3722 = vrot.lane.b32.xlu0 %v3492, 64
  %v3723 = vpop.permute.xlu0 %3722
  %vm3801 = vcmask 589312
  %3802 = vst.msk [vmem:[#allocation2] sm:$0xff] %vm3801, %v3571
  %3803 = vst.msk [vmem:[#allocation2 + $0x8] sm:$0xff] %vm3801, %v3573
  %3804 = vst.msk [vmem:[#allocation2 + $0x10] sm:$0xff] %vm3801, %v3575
  %3805 = vst.msk [vmem:[#allocation2 + $0x18] sm:$0xff] %vm3801, %v3577
  %3806 = vst.msk [vmem:[#allocation2 + $0x20] sm:$0xff] %vm3801, %v3579
  %3807 = vst.msk [vmem:[#allocation2 + $0x28] sm:$0xff] %vm3801, %v3581
  %3808 = vst.msk [vmem:[#allocation2 + $0x30] sm:$0xff] %vm3801, %v3583
  %3809 = vst.msk [vmem:[#allocation2 + $0x38] sm:$0xff] %vm3801, %v3585
  %3810 = vst.msk [vmem:[#allocation2 + $0x40] sm:$0xff] %vm3801, %v3587
  %3811 = vst.msk [vmem:[#allocation2 + $0x48] sm:$0xff] %vm3801, %v3589
  %3812 = vst.msk [vmem:[#allocation2 + $0x50] sm:$0xff] %vm3801, %v3591
  %3813 = vst.msk [vmem:[#allocation2 + $0x58] sm:$0xff] %vm3801, %v3593
  %3814 = vst.msk [vmem:[#allocation2 + $0x60] sm:$0xff] %vm3801, %v3595
  %3815 = vst.msk [vmem:[#allocation2 + $0x68] sm:$0xff] %vm3801, %v3597
  %3816 = vst.msk [vmem:[#allocation2 + $0x70] sm:$0xff] %vm3801, %v3599
  %3817 = vst.msk [vmem:[#allocation2 + $0x78] sm:$0xff] %vm3801, %v3601
  %3818 = vst.msk [vmem:[#allocation2 + $0x80] sm:$0xff] %vm3801, %v3603
  %3819 = vst.msk [vmem:[#allocation2 + $0x88] sm:$0xff] %vm3801, %v3605
  %3820 = vst.msk [vmem:[#allocation2 + $0x90] sm:$0xff] %vm3801, %v3607
  %3821 = vst.msk [vmem:[#allocation2 + $0x98] sm:$0xff] %vm3801, %v3609
  %3822 = vst.msk [vmem:[#allocation2 + $0xa0] sm:$0xff] %vm3801, %v3611
  %3823 = vst.msk [vmem:[#allocation2 + $0xa8] sm:$0xff] %vm3801, %v3613
  %3824 = vst.msk [vmem:[#allocation2 + $0xb0] sm:$0xff] %vm3801, %v3615
  %3825 = vst.msk [vmem:[#allocation2 + $0xb8] sm:$0xff] %vm3801, %v3617
  %3826 = vst.msk [vmem:[#allocation2 + $0xc0] sm:$0xff] %vm3801, %v3619
  %3827 = vst.msk [vmem:[#allocation2 + $0xc8] sm:$0xff] %vm3801, %v3621
  %3828 = vst.msk [vmem:[#allocation2 + $0xd0] sm:$0xff] %vm3801, %v3623
  %3829 = vst.msk [vmem:[#allocation2 + $0xd8] sm:$0xff] %vm3801, %v3625
  %3830 = vst.msk [vmem:[#allocation2 + $0xe0] sm:$0xff] %vm3801, %v3627
  %3831 = vst.msk [vmem:[#allocation2 + $0xe8] sm:$0xff] %vm3801, %v3629
  %3832 = vst.msk [vmem:[#allocation2 + $0xf0] sm:$0xff] %vm3801, %v3631
  %3833 = vst.msk [vmem:[#allocation2 + $0xf8] sm:$0xff] %vm3801, %v3633
  %3834 = vst.msk [vmem:[#allocation2 + $0x100] sm:$0xff] %vm3801, %v3635
  %3835 = vst.msk [vmem:[#allocation2 + $0x108] sm:$0xff] %vm3801, %v3637
  %3836 = vst.msk [vmem:[#allocation2 + $0x110] sm:$0xff] %vm3801, %v3639
  %3837 = vst.msk [vmem:[#allocation2 + $0x118] sm:$0xff] %vm3801, %v3641
  %3838 = vst.msk [vmem:[#allocation2 + $0x120] sm:$0xff] %vm3801, %v3643
  %3839 = vst.msk [vmem:[#allocation2 + $0x128] sm:$0xff] %vm3801, %v3645
  %3840 = vst.msk [vmem:[#allocation2 + $0x130] sm:$0xff] %vm3801, %v3647
  %3841 = vst.msk [vmem:[#allocation2 + $0x138] sm:$0xff] %vm3801, %v3649
  %3842 = vst.msk [vmem:[#allocation2 + $0x140] sm:$0xff] %vm3801, %v3651
  %3843 = vst.msk [vmem:[#allocation2 + $0x148] sm:$0xff] %vm3801, %v3653
  %3844 = vst.msk [vmem:[#allocation2 + $0x150] sm:$0xff] %vm3801, %v3655
  %3845 = vst.msk [vmem:[#allocation2 + $0x158] sm:$0xff] %vm3801, %v3657
  %3846 = vst.msk [vmem:[#allocation2 + $0x160] sm:$0xff] %vm3801, %v3659
  %3847 = vst.msk [vmem:[#allocation2 + $0x168] sm:$0xff] %vm3801, %v3661
  %3848 = vst.msk [vmem:[#allocation2 + $0x170] sm:$0xff] %vm3801, %v3663
  %3849 = vst.msk [vmem:[#allocation2 + $0x178] sm:$0xff] %vm3801, %v3665
  %3850 = vst.msk [vmem:[#allocation2 + $0x180] sm:$0xff] %vm3801, %v3667
  %3851 = vst.msk [vmem:[#allocation2 + $0x188] sm:$0xff] %vm3801, %v3669
  %3852 = vst.msk [vmem:[#allocation2 + $0x190] sm:$0xff] %vm3801, %v3671
  %3853 = vst.msk [vmem:[#allocation2 + $0x198] sm:$0xff] %vm3801, %v3673
  %3854 = vst.msk [vmem:[#allocation2 + $0x1a0] sm:$0xff] %vm3801, %v3675
  %3855 = vst.msk [vmem:[#allocation2 + $0x1a8] sm:$0xff] %vm3801, %v3677
  %3856 = vst.msk [vmem:[#allocation2 + $0x1b0] sm:$0xff] %vm3801, %v3679
  %3857 = vst.msk [vmem:[#allocation2 + $0x1b8] sm:$0xff] %vm3801, %v3681
  %3858 = vst.msk [vmem:[#allocation2 + $0x1c0] sm:$0xff] %vm3801, %v3683
  %3859 = vst.msk [vmem:[#allocation2 + $0x1c8] sm:$0xff] %vm3801, %v3685
  %3860 = vst.msk [vmem:[#allocation2 + $0x1d0] sm:$0xff] %vm3801, %v3687
  %3861 = vst.msk [vmem:[#allocation2 + $0x1d8] sm:$0xff] %vm3801, %v3689
  %3862 = vst.msk [vmem:[#allocation2 + $0x1e0] sm:$0xff] %vm3801, %v3691
  %3863 = vst.msk [vmem:[#allocation2 + $0x1e8] sm:$0xff] %vm3801, %v3693
  %3864 = vst.msk [vmem:[#allocation2 + $0x1f0] sm:$0xff] %vm3801, %v3695
  %3865 = vst.msk [vmem:[#allocation2 + $0x1f8] sm:$0xff] %vm3801, %v3697
  %3866 = vst.msk [vmem:[#allocation2 + $0x200] sm:$0xff] %vm3801, %v3699
  %3867 = vst.msk [vmem:[#allocation2 + $0x208] sm:$0xff] %vm3801, %v3701
  %3868 = vst.msk [vmem:[#allocation2 + $0x210] sm:$0xff] %vm3801, %v3703
  %3869 = vst.msk [vmem:[#allocation2 + $0x218] sm:$0xff] %vm3801, %v3705
  %3870 = vst.msk [vmem:[#allocation2 + $0x220] sm:$0xff] %vm3801, %v3707
  %3871 = vst.msk [vmem:[#allocation2 + $0x228] sm:$0xff] %vm3801, %v3709
  %3872 = vst.msk [vmem:[#allocation2 + $0x230] sm:$0xff] %vm3801, %v3711
  %3873 = vst.msk [vmem:[#allocation2 + $0x238] sm:$0xff] %vm3801, %v3713
  %3874 = vst.msk [vmem:[#allocation2 + $0x240] sm:$0xff] %vm3801, %v3715
  %3875 = vst.msk [vmem:[#allocation2 + $0x248] sm:$0xff] %vm3801, %v3717
  %3876 = vst.msk [vmem:[#allocation2 + $0x250] sm:$0xff] %vm3801, %v3719
  %3877 = vst.msk [vmem:[#allocation2 + $0x258] sm:$0xff] %vm3801, %v3721
  %3878 = vst.msk [vmem:[#allocation2 + $0x260] sm:$0xff] %vm3801, %v3723
  %v3879 = vld [vmem:[#allocation2] sm:$0xff]
  %v3880 = vld [vmem:[#allocation2 + $0x8] sm:$0xff]
  %v3881 = vld [vmem:[#allocation2 + $0x10] sm:$0xff]
  %v3882 = vld [vmem:[#allocation2 + $0x18] sm:$0xff]
  %v3883 = vld [vmem:[#allocation2 + $0x20] sm:$0xff]
  %v3884 = vld [vmem:[#allocation2 + $0x28] sm:$0xff]
  %v3885 = vld [vmem:[#allocation2 + $0x30] sm:$0xff]
  %v3886 = vld [vmem:[#allocation2 + $0x38] sm:$0xff]
  %v3887 = vld [vmem:[#allocation2 + $0x40] sm:$0xff]
  %v3888 = vld [vmem:[#allocation2 + $0x48] sm:$0xff]
  %v3889 = vld [vmem:[#allocation2 + $0x50] sm:$0xff]
  %v3890 = vld [vmem:[#allocation2 + $0x58] sm:$0xff]
  %v3891 = vld [vmem:[#allocation2 + $0x60] sm:$0xff]
  %v3892 = vld [vmem:[#allocation2 + $0x68] sm:$0xff]
  %v3893 = vld [vmem:[#allocation2 + $0x70] sm:$0xff]
  %v3894 = vld [vmem:[#allocation2 + $0x78] sm:$0xff]
  %v3895 = vld [vmem:[#allocation2 + $0x80] sm:$0xff]
  %v3896 = vld [vmem:[#allocation2 + $0x88] sm:$0xff]
  %v3897 = vld [vmem:[#allocation2 + $0x90] sm:$0xff]
  %v3898 = vld [vmem:[#allocation2 + $0x98] sm:$0xff]
  %v3899 = vld [vmem:[#allocation2 + $0xa0] sm:$0xff]
  %v3900 = vld [vmem:[#allocation2 + $0xa8] sm:$0xff]
  %v3901 = vld [vmem:[#allocation2 + $0xb0] sm:$0xff]
  %v3902 = vld [vmem:[#allocation2 + $0xb8] sm:$0xff]
  %v3903 = vld [vmem:[#allocation2 + $0xc0] sm:$0xff]
  %v3904 = vld [vmem:[#allocation2 + $0xc8] sm:$0xff]
  %v3905 = vld [vmem:[#allocation2 + $0xd0] sm:$0xff]
  %v3906 = vld [vmem:[#allocation2 + $0xd8] sm:$0xff]
  %v3907 = vld [vmem:[#allocation2 + $0xe0] sm:$0xff]
  %v3908 = vld [vmem:[#allocation2 + $0xe8] sm:$0xff]
  %v3909 = vld [vmem:[#allocation2 + $0xf0] sm:$0xff]
  %v3910 = vld [vmem:[#allocation2 + $0xf8] sm:$0xff]
  %v3911 = vld [vmem:[#allocation2 + $0x100] sm:$0xff]
  %v3912 = vld [vmem:[#allocation2 + $0x108] sm:$0xff]
  %v3913 = vld [vmem:[#allocation2 + $0x110] sm:$0xff]
  %v3914 = vld [vmem:[#allocation2 + $0x118] sm:$0xff]
  %v3915 = vld [vmem:[#allocation2 + $0x120] sm:$0xff]
  %v3916 = vld [vmem:[#allocation2 + $0x128] sm:$0xff]
  %v3917 = vld [vmem:[#allocation2 + $0x130] sm:$0xff]
  %v3918 = vld [vmem:[#allocation2 + $0x138] sm:$0xff]
  %v3919 = vld [vmem:[#allocation2 + $0x140] sm:$0xff]
  %v3920 = vld [vmem:[#allocation2 + $0x148] sm:$0xff]
  %v3921 = vld [vmem:[#allocation2 + $0x150] sm:$0xff]
  %v3922 = vld [vmem:[#allocation2 + $0x158] sm:$0xff]
  %v3923 = vld [vmem:[#allocation2 + $0x160] sm:$0xff]
  %v3924 = vld [vmem:[#allocation2 + $0x168] sm:$0xff]
  %v3925 = vld [vmem:[#allocation2 + $0x170] sm:$0xff]
  %v3926 = vld [vmem:[#allocation2 + $0x178] sm:$0xff]
  %v3927 = vld [vmem:[#allocation2 + $0x180] sm:$0xff]
  %v3928 = vld [vmem:[#allocation2 + $0x188] sm:$0xff]
  %v3929 = vld [vmem:[#allocation2 + $0x190] sm:$0xff]
  %v3930 = vld [vmem:[#allocation2 + $0x198] sm:$0xff]
  %v3931 = vld [vmem:[#allocation2 + $0x1a0] sm:$0xff]
  %v3932 = vld [vmem:[#allocation2 + $0x1a8] sm:$0xff]
  %v3933 = vld [vmem:[#allocation2 + $0x1b0] sm:$0xff]
  %v3934 = vld [vmem:[#allocation2 + $0x1b8] sm:$0xff]
  %v3935 = vld [vmem:[#allocation2 + $0x1c0] sm:$0xff]
  %v3936 = vld [vmem:[#allocation2 + $0x1c8] sm:$0xff]
  %v3937 = vld [vmem:[#allocation2 + $0x1d0] sm:$0xff]
  %v3938 = vld [vmem:[#allocation2 + $0x1d8] sm:$0xff]
  %v3939 = vld [vmem:[#allocation2 + $0x1e0] sm:$0xff]
  %v3940 = vld [vmem:[#allocation2 + $0x1e8] sm:$0xff]
  %v3941 = vld [vmem:[#allocation2 + $0x1f0] sm:$0xff]
  %v3942 = vld [vmem:[#allocation2 + $0x1f8] sm:$0xff]
  %v3943 = vld [vmem:[#allocation2 + $0x200] sm:$0xff]
  %v3944 = vld [vmem:[#allocation2 + $0x208] sm:$0xff]
  %v3945 = vld [vmem:[#allocation2 + $0x210] sm:$0xff]
  %v3946 = vld [vmem:[#allocation2 + $0x218] sm:$0xff]
  %v3947 = vld [vmem:[#allocation2 + $0x220] sm:$0xff]
  %v3948 = vld [vmem:[#allocation2 + $0x228] sm:$0xff]
  %v3949 = vld [vmem:[#allocation2 + $0x230] sm:$0xff]
  %v3950 = vld [vmem:[#allocation2 + $0x238] sm:$0xff]
  %v3951 = vld [vmem:[#allocation2 + $0x240] sm:$0xff]
  %v3952 = vld [vmem:[#allocation2 + $0x248] sm:$0xff]
  %v3953 = vld [vmem:[#allocation2 + $0x250] sm:$0xff]
  %v3954 = vld [vmem:[#allocation2 + $0x258] sm:$0xff]
  %v3955 = vld [vmem:[#allocation2 + $0x260] sm:$0xff]
  %v3956 = vld [vmem:[%s1] sm:$0xff]
  %v3957 = vld [vmem:[%s1 + $0x8] sm:$0xff]
  %v3958 = vld [vmem:[%s1 + $0x10] sm:$0xff]
  %v3959 = vld [vmem:[%s1 + $0x18] sm:$0xff]
  %v3960 = vld [vmem:[%s1 + $0x20] sm:$0xff]
  %v3961 = vld [vmem:[%s1 + $0x28] sm:$0xff]
  %v3962 = vld [vmem:[%s1 + $0x30] sm:$0xff]
  %v3963 = vld [vmem:[%s1 + $0x38] sm:$0xff]
  %v3964 = vld [vmem:[%s1 + $0x40] sm:$0xff]
  %v3965 = vlaneseq
  %v3966 = vshrl.u32 %v3965, 7
  %v3967 = vadd.s32 %v3966, 8
  %v3968 = vadd.s32 %v3966, 16
  %v3969 = vadd.s32 %v3966, 24
  %v3970 = vadd.s32 %v3966, 32
  %v3971 = vadd.s32 %v3966, 40
  %v3972 = vadd.s32 %v3966, 48
  %v3973 = vadd.s32 %v3966, 56
  %v3974 = vadd.s32 %v3966, 64
  %v3975 = vadd.s32 %v3966, 72
  %v3976 = vadd.s32 %v3966, 80
  %v3977 = vadd.s32 %v3966, 88
  %v3978 = vadd.s32 %v3966, 96
  %v3979 = vadd.s32 %v3966, 104
  %v3980 = vadd.s32 %v3966, 112
  %v3981 = vadd.s32 %v3966, 120
  %v3982 = vadd.s32 %v3966, 128
  %v3983 = vadd.s32 %v3966, 136
  %v3984 = vadd.s32 %v3966, 144
  %v3985 = vadd.s32 %v3966, 152
  %v3986 = vadd.s32 %v3966, 160
  %v3987 = vadd.s32 %v3966, 168
  %v3988 = vadd.s32 %v3966, 176
  %v3989 = vadd.s32 %v3966, 184
  %v3990 = vadd.s32 %v3966, 192
  %v3991 = vadd.s32 %v3966, 200
  %v3992 = vadd.s32 %v3966, 208
  %v3993 = vadd.s32 %v3966, 216
  %v3994 = vadd.s32 %v3966, 224
  %v3995 = vadd.s32 %v3966, 232
  %v3996 = vadd.s32 %v3966, 240
  %v3997 = vadd.s32 %v3966, 248
  %v3998 = vadd.s32 %v3966, 256
  %v3999 = vadd.s32 %v3966, 264
  %v4000 = vadd.s32 %v3966, 272
  %v4001 = vadd.s32 %v3966, 280
  %v4002 = vadd.s32 %v3966, 288
  %v4003 = vadd.s32 %v3966, 296
  %v4004 = vadd.s32 %v3966, 304
  %v4005 = vadd.s32 %v3966, 312
  %v4006 = vadd.s32 %v3966, 320
  %v4007 = vadd.s32 %v3966, 328
  %v4008 = vadd.s32 %v3966, 336
  %v4009 = vadd.s32 %v3966, 344
  %v4010 = vadd.s32 %v3966, 352
  %v4011 = vadd.s32 %v3966, 360
  %v4012 = vadd.s32 %v3966, 368
  %v4013 = vadd.s32 %v3966, 376
  %v4014 = vadd.s32 %v3966, 384
  %v4015 = vadd.s32 %v3966, 392
  %v4016 = vadd.s32 %v3966, 400
  %v4017 = vadd.s32 %v3966, 408
  %v4018 = vadd.s32 %v3966, 416
  %v4019 = vadd.s32 %v3966, 424
  %v4020 = vadd.s32 %v3966, 432
  %v4021 = vadd.s32 %v3966, 440
  %v4022 = vadd.s32 %v3966, 448
  %v4023 = vadd.s32 %v3966, 456
  %v4024 = vadd.s32 %v3966, 464
  %v4025 = vadd.s32 %v3966, 472
  %v4026 = vadd.s32 %v3966, 480
  %v4027 = vadd.s32 %v3966, 488
  %v4028 = vadd.s32 %v3966, 496
  %v4029 = vadd.s32 %v3966, 504
  %v4030 = vadd.s32 %v3966, 512
  %v4031 = vadd.s32 %v3966, 520
  %v4032 = vadd.s32 %v3966, 528
  %v4033 = vadd.s32 %v3966, 536
  %v4034 = vadd.s32 %v3966, 544
  %v4035 = vadd.s32 %v3966, 552
  %v4036 = vadd.s32 %v3966, 560
  %v4037 = vadd.s32 %v3966, 568
  %v4038 = vadd.s32 %v3966, 576
  %v4039 = vadd.s32 %v3966, 584
  %v4040 = vadd.s32 %v3966, 592
  %v4041 = vadd.s32 %v3966, 600
  %v4042 = vadd.s32 %v3966, 608
  %v4043 = vcvt.s32.f32 %v3966
  %v4044 = vcvt.s32.f32 %v3967
  %v4045 = vcvt.s32.f32 %v3968
  %v4046 = vcvt.s32.f32 %v3969
  %v4047 = vcvt.s32.f32 %v3970
  %v4048 = vcvt.s32.f32 %v3971
  %v4049 = vcvt.s32.f32 %v3972
  %v4050 = vcvt.s32.f32 %v3973
  %v4051 = vcvt.s32.f32 %v3974
  %v4052 = vcvt.s32.f32 %v3975
  %v4053 = vcvt.s32.f32 %v3976
  %v4054 = vcvt.s32.f32 %v3977
  %v4055 = vcvt.s32.f32 %v3978
  %v4056 = vcvt.s32.f32 %v3979
  %v4057 = vcvt.s32.f32 %v3980
  %v4058 = vcvt.s32.f32 %v3981
  %v4059 = vcvt.s32.f32 %v3982
  %v4060 = vcvt.s32.f32 %v3983
  %v4061 = vcvt.s32.f32 %v3984
  %v4062 = vcvt.s32.f32 %v3985
  %v4063 = vcvt.s32.f32 %v3986
  %v4064 = vcvt.s32.f32 %v3987
  %v4065 = vcvt.s32.f32 %v3988
  %v4066 = vcvt.s32.f32 %v3989
  %v4067 = vcvt.s32.f32 %v3990
  %v4068 = vcvt.s32.f32 %v3991
  %v4069 = vcvt.s32.f32 %v3992
  %v4070 = vcvt.s32.f32 %v3993
  %v4071 = vcvt.s32.f32 %v3994
  %v4072 = vcvt.s32.f32 %v3995
  %v4073 = vcvt.s32.f32 %v3996
  %v4074 = vcvt.s32.f32 %v3997
  %v4075 = vcvt.s32.f32 %v3998
  %v4076 = vcvt.s32.f32 %v3999
  %v4077 = vcvt.s32.f32 %v4000
  %v4078 = vcvt.s32.f32 %v4001
  %v4079 = vcvt.s32.f32 %v4002
  %v4080 = vcvt.s32.f32 %v4003
  %v4081 = vcvt.s32.f32 %v4004
  %v4082 = vcvt.s32.f32 %v4005
  %v4083 = vcvt.s32.f32 %v4006
  %v4084 = vcvt.s32.f32 %v4007
  %v4085 = vcvt.s32.f32 %v4008
  %v4086 = vcvt.s32.f32 %v4009
  %v4087 = vcvt.s32.f32 %v4010
  %v4088 = vcvt.s32.f32 %v4011
  %v4089 = vcvt.s32.f32 %v4012
  %v4090 = vcvt.s32.f32 %v4013
  %v4091 = vcvt.s32.f32 %v4014
  %v4092 = vcvt.s32.f32 %v4015
  %v4093 = vcvt.s32.f32 %v4016
  %v4094 = vcvt.s32.f32 %v4017
  %v4095 = vcvt.s32.f32 %v4018
  %v4096 = vcvt.s32.f32 %v4019
  %v4097 = vcvt.s32.f32 %v4020
  %v4098 = vcvt.s32.f32 %v4021
  %v4099 = vcvt.s32.f32 %v4022
  %v4100 = vcvt.s32.f32 %v4023
  %v4101 = vcvt.s32.f32 %v4024
  %v4102 = vcvt.s32.f32 %v4025
  %v4103 = vcvt.s32.f32 %v4026
  %v4104 = vcvt.s32.f32 %v4027
  %v4105 = vcvt.s32.f32 %v4028
  %v4106 = vcvt.s32.f32 %v4029
  %v4107 = vcvt.s32.f32 %v4030
  %v4108 = vcvt.s32.f32 %v4031
  %v4109 = vcvt.s32.f32 %v4032
  %v4110 = vcvt.s32.f32 %v4033
  %v4111 = vcvt.s32.f32 %v4034
  %v4112 = vcvt.s32.f32 %v4035
  %v4113 = vcvt.s32.f32 %v4036
  %v4114 = vcvt.s32.f32 %v4037
  %v4115 = vcvt.s32.f32 %v4038
  %v4116 = vcvt.s32.f32 %v4039
  %v4117 = vcvt.s32.f32 %v4040
  %v4118 = vcvt.s32.f32 %v4041
  %v4119 = vcvt.s32.f32 %v4042
  %v4120 = vadd.f32 %v4043, 0.5
  %v4121 = vadd.f32 %v4044, 0.5
  %v4122 = vadd.f32 %v4045, 0.5
  %v4123 = vadd.f32 %v4046, 0.5
  %v4124 = vadd.f32 %v4047, 0.5
  %v4125 = vadd.f32 %v4048, 0.5
  %v4126 = vadd.f32 %v4049, 0.5
  %v4127 = vadd.f32 %v4050, 0.5
  %v4128 = vadd.f32 %v4051, 0.5
  %v4129 = vadd.f32 %v4052, 0.5
  %v4130 = vadd.f32 %v4053, 0.5
  %v4131 = vadd.f32 %v4054, 0.5
  %v4132 = vadd.f32 %v4055, 0.5
  %v4133 = vadd.f32 %v4056, 0.5
  %v4134 = vadd.f32 %v4057, 0.5
  %v4135 = vadd.f32 %v4058, 0.5
  %v4136 = vadd.f32 %v4059, 0.5
  %v4137 = vadd.f32 %v4060, 0.5
  %v4138 = vadd.f32 %v4061, 0.5
  %v4139 = vadd.f32 %v4062, 0.5
  %v4140 = vadd.f32 %v4063, 0.5
  %v4141 = vadd.f32 %v4064, 0.5
  %v4142 = vadd.f32 %v4065, 0.5
  %v4143 = vadd.f32 %v4066, 0.5
  %v4144 = vadd.f32 %v4067, 0.5
  %v4145 = vadd.f32 %v4068, 0.5
  %v4146 = vadd.f32 %v4069, 0.5
  %v4147 = vadd.f32 %v4070, 0.5
  %v4148 = vadd.f32 %v4071, 0.5
  %v4149 = vadd.f32 %v4072, 0.5
  %v4150 = vadd.f32 %v4073, 0.5
  %v4151 = vadd.f32 %v4074, 0.5
  %v4152 = vadd.f32 %v4075, 0.5
  %v4153 = vadd.f32 %v4076, 0.5
  %v4154 = vadd.f32 %v4077, 0.5
  %v4155 = vadd.f32 %v4078, 0.5
  %v4156 = vadd.f32 %v4079, 0.5
  %v4157 = vadd.f32 %v4080, 0.5
  %v4158 = vadd.f32 %v4081, 0.5
  %v4159 = vadd.f32 %v4082, 0.5
  %v4160 = vadd.f32 %v4083, 0.5
  %v4161 = vadd.f32 %v4084, 0.5
  %v4162 = vadd.f32 %v4085, 0.5
  %v4163 = vadd.f32 %v4086, 0.5
  %v4164 = vadd.f32 %v4087, 0.5
  %v4165 = vadd.f32 %v4088, 0.5
  %v4166 = vadd.f32 %v4089, 0.5
  %v4167 = vadd.f32 %v4090, 0.5
  %v4168 = vadd.f32 %v4091, 0.5
  %v4169 = vadd.f32 %v4092, 0.5
  %v4170 = vadd.f32 %v4093, 0.5
  %v4171 = vadd.f32 %v4094, 0.5
  %v4172 = vadd.f32 %v4095, 0.5
  %v4173 = vadd.f32 %v4096, 0.5
  %v4174 = vadd.f32 %v4097, 0.5
  %v4175 = vadd.f32 %v4098, 0.5
  %v4176 = vadd.f32 %v4099, 0.5
  %v4177 = vadd.f32 %v4100, 0.5
  %v4178 = vadd.f32 %v4101, 0.5
  %v4179 = vadd.f32 %v4102, 0.5
  %v4180 = vadd.f32 %v4103, 0.5
  %v4181 = vadd.f32 %v4104, 0.5
  %v4182 = vadd.f32 %v4105, 0.5
  %v4183 = vadd.f32 %v4106, 0.5
  %v4184 = vadd.f32 %v4107, 0.5
  %v4185 = vadd.f32 %v4108, 0.5
  %v4186 = vadd.f32 %v4109, 0.5
  %v4187 = vadd.f32 %v4110, 0.5
  %v4188 = vadd.f32 %v4111, 0.5
  %v4189 = vadd.f32 %v4112, 0.5
  %v4190 = vadd.f32 %v4113, 0.5
  %v4191 = vadd.f32 %v4114, 0.5
  %v4192 = vadd.f32 %v4115, 0.5
  %v4193 = vadd.f32 %v4116, 0.5
  %v4194 = vadd.f32 %v4117, 0.5
  %v4195 = vadd.f32 %v4118, 0.5
  %v4196 = vadd.f32 %v4119, 0.5
  %v4197 = vrcp.pop 328.0
  %v4198 = vmul.f32 328.0, %v4197
  %v4199 = vsub.f32 1.0, %v4198
  %v4200 = vmul.f32 %v4197, %v4199
  %v4201 = vadd.f32 %v4197, %v4200
  %vm4202 = vweird.f32 %v4197
  %v4203 = vsel %vm4202, %v4197, %v4201
  %v4204 = vmul.f32 %v4120, %v4203
  %v4205 = vmul.f32 %v4121, %v4203
  %v4206 = vmul.f32 %v4122, %v4203
  %v4207 = vmul.f32 %v4123, %v4203
  %v4208 = vmul.f32 %v4124, %v4203
  %v4209 = vmul.f32 %v4125, %v4203
  %v4210 = vmul.f32 %v4126, %v4203
  %v4211 = vmul.f32 %v4127, %v4203
  %v4212 = vmul.f32 %v4128, %v4203
  %v4213 = vmul.f32 %v4129, %v4203
  %v4214 = vmul.f32 %v4130, %v4203
  %v4215 = vmul.f32 %v4131, %v4203
  %v4216 = vmul.f32 %v4132, %v4203
  %v4217 = vmul.f32 %v4133, %v4203
  %v4218 = vmul.f32 %v4134, %v4203
  %v4219 = vmul.f32 %v4135, %v4203
  %v4220 = vmul.f32 %v4136, %v4203
  %v4221 = vmul.f32 %v4137, %v4203
  %v4222 = vmul.f32 %v4138, %v4203
  %v4223 = vmul.f32 %v4139, %v4203
  %v4224 = vmul.f32 %v4140, %v4203
  %v4225 = vmul.f32 %v4141, %v4203
  %v4226 = vmul.f32 %v4142, %v4203
  %v4227 = vmul.f32 %v4143, %v4203
  %v4228 = vmul.f32 %v4144, %v4203
  %v4229 = vmul.f32 %v4145, %v4203
  %v4230 = vmul.f32 %v4146, %v4203
  %v4231 = vmul.f32 %v4147, %v4203
  %v4232 = vmul.f32 %v4148, %v4203
  %v4233 = vmul.f32 %v4149, %v4203
  %v4234 = vmul.f32 %v4150, %v4203
  %v4235 = vmul.f32 %v4151, %v4203
  %v4236 = vmul.f32 %v4152, %v4203
  %v4237 = vmul.f32 %v4153, %v4203
  %v4238 = vmul.f32 %v4154, %v4203
  %v4239 = vmul.f32 %v4155, %v4203
  %v4240 = vmul.f32 %v4156, %v4203
  %v4241 = vmul.f32 %v4157, %v4203
  %v4242 = vmul.f32 %v4158, %v4203
  %v4243 = vmul.f32 %v4159, %v4203
  %v4244 = vmul.f32 %v4160, %v4203
  %v4245 = vmul.f32 %v4161, %v4203
  %v4246 = vmul.f32 %v4162, %v4203
  %v4247 = vmul.f32 %v4163, %v4203
  %v4248 = vmul.f32 %v4164, %v4203
  %v4249 = vmul.f32 %v4165, %v4203
  %v4250 = vmul.f32 %v4166, %v4203
  %v4251 = vmul.f32 %v4167, %v4203
  %v4252 = vmul.f32 %v4168, %v4203
  %v4253 = vmul.f32 %v4169, %v4203
  %v4254 = vmul.f32 %v4170, %v4203
  %v4255 = vmul.f32 %v4171, %v4203
  %v4256 = vmul.f32 %v4172, %v4203
  %v4257 = vmul.f32 %v4173, %v4203
  %v4258 = vmul.f32 %v4174, %v4203
  %v4259 = vmul.f32 %v4175, %v4203
  %v4260 = vmul.f32 %v4176, %v4203
  %v4261 = vmul.f32 %v4177, %v4203
  %v4262 = vmul.f32 %v4178, %v4203
  %v4263 = vmul.f32 %v4179, %v4203
  %v4264 = vmul.f32 %v4180, %v4203
  %v4265 = vmul.f32 %v4181, %v4203
  %v4266 = vmul.f32 %v4182, %v4203
  %v4267 = vmul.f32 %v4183, %v4203
  %v4268 = vmul.f32 %v4184, %v4203
  %v4269 = vmul.f32 %v4185, %v4203
  %v4270 = vmul.f32 %v4186, %v4203
  %v4271 = vmul.f32 %v4187, %v4203
  %v4272 = vmul.f32 %v4188, %v4203
  %v4273 = vmul.f32 %v4189, %v4203
  %v4274 = vmul.f32 %v4190, %v4203
  %v4275 = vmul.f32 %v4191, %v4203
  %v4276 = vmul.f32 %v4192, %v4203
  %v4277 = vmul.f32 %v4193, %v4203
  %v4278 = vmul.f32 %v4194, %v4203
  %v4279 = vmul.f32 %v4195, %v4203
  %v4280 = vmul.f32 %v4196, %v4203
  %v4281 = vfloor.f32 %v4204
  %v4282 = vfloor.f32 %v4205
  %v4283 = vfloor.f32 %v4206
  %v4284 = vfloor.f32 %v4207
  %v4285 = vfloor.f32 %v4208
  %v4286 = vfloor.f32 %v4209
  %v4287 = vfloor.f32 %v4210
  %v4288 = vfloor.f32 %v4211
  %v4289 = vfloor.f32 %v4212
  %v4290 = vfloor.f32 %v4213
  %v4291 = vfloor.f32 %v4214
  %v4292 = vfloor.f32 %v4215
  %v4293 = vfloor.f32 %v4216
  %v4294 = vfloor.f32 %v4217
  %v4295 = vfloor.f32 %v4218
  %v4296 = vfloor.f32 %v4219
  %v4297 = vfloor.f32 %v4220
  %v4298 = vfloor.f32 %v4221
  %v4299 = vfloor.f32 %v4222
  %v4300 = vfloor.f32 %v4223
  %v4301 = vfloor.f32 %v4224
  %v4302 = vfloor.f32 %v4225
  %v4303 = vfloor.f32 %v4226
  %v4304 = vfloor.f32 %v4227
  %v4305 = vfloor.f32 %v4228
  %v4306 = vfloor.f32 %v4229
  %v4307 = vfloor.f32 %v4230
  %v4308 = vfloor.f32 %v4231
  %v4309 = vfloor.f32 %v4232
  %v4310 = vfloor.f32 %v4233
  %v4311 = vfloor.f32 %v4234
  %v4312 = vfloor.f32 %v4235
  %v4313 = vfloor.f32 %v4236
  %v4314 = vfloor.f32 %v4237
  %v4315 = vfloor.f32 %v4238
  %v4316 = vfloor.f32 %v4239
  %v4317 = vfloor.f32 %v4240
  %v4318 = vfloor.f32 %v4241
  %v4319 = vfloor.f32 %v4242
  %v4320 = vfloor.f32 %v4243
  %v4321 = vfloor.f32 %v4244
  %v4322 = vfloor.f32 %v4245
  %v4323 = vfloor.f32 %v4246
  %v4324 = vfloor.f32 %v4247
  %v4325 = vfloor.f32 %v4248
  %v4326 = vfloor.f32 %v4249
  %v4327 = vfloor.f32 %v4250
  %v4328 = vfloor.f32 %v4251
  %v4329 = vfloor.f32 %v4252
  %v4330 = vfloor.f32 %v4253
  %v4331 = vfloor.f32 %v4254
  %v4332 = vfloor.f32 %v4255
  %v4333 = vfloor.f32 %v4256
  %v4334 = vfloor.f32 %v4257
  %v4335 = vfloor.f32 %v4258
  %v4336 = vfloor.f32 %v4259
  %v4337 = vfloor.f32 %v4260
  %v4338 = vfloor.f32 %v4261
  %v4339 = vfloor.f32 %v4262
  %v4340 = vfloor.f32 %v4263
  %v4341 = vfloor.f32 %v4264
  %v4342 = vfloor.f32 %v4265
  %v4343 = vfloor.f32 %v4266
  %v4344 = vfloor.f32 %v4267
  %v4345 = vfloor.f32 %v4268
  %v4346 = vfloor.f32 %v4269
  %v4347 = vfloor.f32 %v4270
  %v4348 = vfloor.f32 %v4271
  %v4349 = vfloor.f32 %v4272
  %v4350 = vfloor.f32 %v4273
  %v4351 = vfloor.f32 %v4274
  %v4352 = vfloor.f32 %v4275
  %v4353 = vfloor.f32 %v4276
  %v4354 = vfloor.f32 %v4277
  %v4355 = vfloor.f32 %v4278
  %v4356 = vfloor.f32 %v4279
  %v4357 = vfloor.f32 %v4280
  %v4358 = vmul.f32 %v4281, 328.0
  %v4359 = vmul.f32 %v4282, 328.0
  %v4360 = vmul.f32 %v4283, 328.0
  %v4361 = vmul.f32 %v4284, 328.0
  %v4362 = vmul.f32 %v4285, 328.0
  %v4363 = vmul.f32 %v4286, 328.0
  %v4364 = vmul.f32 %v4287, 328.0
  %v4365 = vmul.f32 %v4288, 328.0
  %v4366 = vmul.f32 %v4289, 328.0
  %v4367 = vmul.f32 %v4290, 328.0
  %v4368 = vmul.f32 %v4291, 328.0
  %v4369 = vmul.f32 %v4292, 328.0
  %v4370 = vmul.f32 %v4293, 328.0
  %v4371 = vmul.f32 %v4294, 328.0
  %v4372 = vmul.f32 %v4295, 328.0
  %v4373 = vmul.f32 %v4296, 328.0
  %v4374 = vmul.f32 %v4297, 328.0
  %v4375 = vmul.f32 %v4298, 328.0
  %v4376 = vmul.f32 %v4299, 328.0
  %v4377 = vmul.f32 %v4300, 328.0
  %v4378 = vmul.f32 %v4301, 328.0
  %v4379 = vmul.f32 %v4302, 328.0
  %v4380 = vmul.f32 %v4303, 328.0
  %v4381 = vmul.f32 %v4304, 328.0
  %v4382 = vmul.f32 %v4305, 328.0
  %v4383 = vmul.f32 %v4306, 328.0
  %v4384 = vmul.f32 %v4307, 328.0
  %v4385 = vmul.f32 %v4308, 328.0
  %v4386 = vmul.f32 %v4309, 328.0
  %v4387 = vmul.f32 %v4310, 328.0
  %v4388 = vmul.f32 %v4311, 328.0
  %v4389 = vmul.f32 %v4312, 328.0
  %v4390 = vmul.f32 %v4313, 328.0
  %v4391 = vmul.f32 %v4314, 328.0
  %v4392 = vmul.f32 %v4315, 328.0
  %v4393 = vmul.f32 %v4316, 328.0
  %v4394 = vmul.f32 %v4317, 328.0
  %v4395 = vmul.f32 %v4318, 328.0
  %v4396 = vmul.f32 %v4319, 328.0
  %v4397 = vmul.f32 %v4320, 328.0
  %v4398 = vmul.f32 %v4321, 328.0
  %v4399 = vmul.f32 %v4322, 328.0
  %v4400 = vmul.f32 %v4323, 328.0
  %v4401 = vmul.f32 %v4324, 328.0
  %v4402 = vmul.f32 %v4325, 328.0
  %v4403 = vmul.f32 %v4326, 328.0
  %v4404 = vmul.f32 %v4327, 328.0
  %v4405 = vmul.f32 %v4328, 328.0
  %v4406 = vmul.f32 %v4329, 328.0
  %v4407 = vmul.f32 %v4330, 328.0
  %v4408 = vmul.f32 %v4331, 328.0
  %v4409 = vmul.f32 %v4332, 328.0
  %v4410 = vmul.f32 %v4333, 328.0
  %v4411 = vmul.f32 %v4334, 328.0
  %v4412 = vmul.f32 %v4335, 328.0
  %v4413 = vmul.f32 %v4336, 328.0
  %v4414 = vmul.f32 %v4337, 328.0
  %v4415 = vmul.f32 %v4338, 328.0
  %v4416 = vmul.f32 %v4339, 328.0
  %v4417 = vmul.f32 %v4340, 328.0
  %v4418 = vmul.f32 %v4341, 328.0
  %v4419 = vmul.f32 %v4342, 328.0
  %v4420 = vmul.f32 %v4343, 328.0
  %v4421 = vmul.f32 %v4344, 328.0
  %v4422 = vmul.f32 %v4345, 328.0
  %v4423 = vmul.f32 %v4346, 328.0
  %v4424 = vmul.f32 %v4347, 328.0
  %v4425 = vmul.f32 %v4348, 328.0
  %v4426 = vmul.f32 %v4349, 328.0
  %v4427 = vmul.f32 %v4350, 328.0
  %v4428 = vmul.f32 %v4351, 328.0
  %v4429 = vmul.f32 %v4352, 328.0
  %v4430 = vmul.f32 %v4353, 328.0
  %v4431 = vmul.f32 %v4354, 328.0
  %v4432 = vmul.f32 %v4355, 328.0
  %v4433 = vmul.f32 %v4356, 328.0
  %v4434 = vmul.f32 %v4357, 328.0
  %v4435 = vsub.f32 %v4043, %v4358
  %v4436 = vsub.f32 %v4044, %v4359
  %v4437 = vsub.f32 %v4045, %v4360
  %v4438 = vsub.f32 %v4046, %v4361
  %v4439 = vsub.f32 %v4047, %v4362
  %v4440 = vsub.f32 %v4048, %v4363
  %v4441 = vsub.f32 %v4049, %v4364
  %v4442 = vsub.f32 %v4050, %v4365
  %v4443 = vsub.f32 %v4051, %v4366
  %v4444 = vsub.f32 %v4052, %v4367
  %v4445 = vsub.f32 %v4053, %v4368
  %v4446 = vsub.f32 %v4054, %v4369
  %v4447 = vsub.f32 %v4055, %v4370
  %v4448 = vsub.f32 %v4056, %v4371
  %v4449 = vsub.f32 %v4057, %v4372
  %v4450 = vsub.f32 %v4058, %v4373
  %v4451 = vsub.f32 %v4059, %v4374
  %v4452 = vsub.f32 %v4060, %v4375
  %v4453 = vsub.f32 %v4061, %v4376
  %v4454 = vsub.f32 %v4062, %v4377
  %v4455 = vsub.f32 %v4063, %v4378
  %v4456 = vsub.f32 %v4064, %v4379
  %v4457 = vsub.f32 %v4065, %v4380
  %v4458 = vsub.f32 %v4066, %v4381
  %v4459 = vsub.f32 %v4067, %v4382
  %v4460 = vsub.f32 %v4068, %v4383
  %v4461 = vsub.f32 %v4069, %v4384
  %v4462 = vsub.f32 %v4070, %v4385
  %v4463 = vsub.f32 %v4071, %v4386
  %v4464 = vsub.f32 %v4072, %v4387
  %v4465 = vsub.f32 %v4073, %v4388
  %v4466 = vsub.f32 %v4074, %v4389
  %v4467 = vsub.f32 %v4075, %v4390
  %v4468 = vsub.f32 %v4076, %v4391
  %v4469 = vsub.f32 %v4077, %v4392
  %v4470 = vsub.f32 %v4078, %v4393
  %v4471 = vsub.f32 %v4079, %v4394
  %v4472 = vsub.f32 %v4080, %v4395
  %v4473 = vsub.f32 %v4081, %v4396
  %v4474 = vsub.f32 %v4082, %v4397
  %v4475 = vsub.f32 %v4083, %v4398
  %v4476 = vsub.f32 %v4084, %v4399
  %v4477 = vsub.f32 %v4085, %v4400
  %v4478 = vsub.f32 %v4086, %v4401
  %v4479 = vsub.f32 %v4087, %v4402
  %v4480 = vsub.f32 %v4088, %v4403
  %v4481 = vsub.f32 %v4089, %v4404
  %v4482 = vsub.f32 %v4090, %v4405
  %v4483 = vsub.f32 %v4091, %v4406
  %v4484 = vsub.f32 %v4092, %v4407
  %v4485 = vsub.f32 %v4093, %v4408
  %v4486 = vsub.f32 %v4094, %v4409
  %v4487 = vsub.f32 %v4095, %v4410
  %v4488 = vsub.f32 %v4096, %v4411
  %v4489 = vsub.f32 %v4097, %v4412
  %v4490 = vsub.f32 %v4098, %v4413
  %v4491 = vsub.f32 %v4099, %v4414
  %v4492 = vsub.f32 %v4100, %v4415
  %v4493 = vsub.f32 %v4101, %v4416
  %v4494 = vsub.f32 %v4102, %v4417
  %v4495 = vsub.f32 %v4103, %v4418
  %v4496 = vsub.f32 %v4104, %v4419
  %v4497 = vsub.f32 %v4105, %v4420
  %v4498 = vsub.f32 %v4106, %v4421
  %v4499 = vsub.f32 %v4107, %v4422
  %v4500 = vsub.f32 %v4108, %v4423
  %v4501 = vsub.f32 %v4109, %v4424
  %v4502 = vsub.f32 %v4110, %v4425
  %v4503 = vsub.f32 %v4111, %v4426
  %v4504 = vsub.f32 %v4112, %v4427
  %v4505 = vsub.f32 %v4113, %v4428
  %v4506 = vsub.f32 %v4114, %v4429
  %v4507 = vsub.f32 %v4115, %v4430
  %v4508 = vsub.f32 %v4116, %v4431
  %v4509 = vsub.f32 %v4117, %v4432
  %v4510 = vsub.f32 %v4118, %v4433
  %v4511 = vsub.f32 %v4119, %v4434
  %v4512 = vadd.f32 %v4435, 0.5
  %v4513 = vadd.f32 %v4436, 0.5
  %v4514 = vadd.f32 %v4437, 0.5
  %v4515 = vadd.f32 %v4438, 0.5
  %v4516 = vadd.f32 %v4439, 0.5
  %v4517 = vadd.f32 %v4440, 0.5
  %v4518 = vadd.f32 %v4441, 0.5
  %v4519 = vadd.f32 %v4442, 0.5
  %v4520 = vadd.f32 %v4443, 0.5
  %v4521 = vadd.f32 %v4444, 0.5
  %v4522 = vadd.f32 %v4445, 0.5
  %v4523 = vadd.f32 %v4446, 0.5
  %v4524 = vadd.f32 %v4447, 0.5
  %v4525 = vadd.f32 %v4448, 0.5
  %v4526 = vadd.f32 %v4449, 0.5
  %v4527 = vadd.f32 %v4450, 0.5
  %v4528 = vadd.f32 %v4451, 0.5
  %v4529 = vadd.f32 %v4452, 0.5
  %v4530 = vadd.f32 %v4453, 0.5
  %v4531 = vadd.f32 %v4454, 0.5
  %v4532 = vadd.f32 %v4455, 0.5
  %v4533 = vadd.f32 %v4456, 0.5
  %v4534 = vadd.f32 %v4457, 0.5
  %v4535 = vadd.f32 %v4458, 0.5
  %v4536 = vadd.f32 %v4459, 0.5
  %v4537 = vadd.f32 %v4460, 0.5
  %v4538 = vadd.f32 %v4461, 0.5
  %v4539 = vadd.f32 %v4462, 0.5
  %v4540 = vadd.f32 %v4463, 0.5
  %v4541 = vadd.f32 %v4464, 0.5
  %v4542 = vadd.f32 %v4465, 0.5
  %v4543 = vadd.f32 %v4466, 0.5
  %v4544 = vadd.f32 %v4467, 0.5
  %v4545 = vadd.f32 %v4468, 0.5
  %v4546 = vadd.f32 %v4469, 0.5
  %v4547 = vadd.f32 %v4470, 0.5
  %v4548 = vadd.f32 %v4471, 0.5
  %v4549 = vadd.f32 %v4472, 0.5
  %v4550 = vadd.f32 %v4473, 0.5
  %v4551 = vadd.f32 %v4474, 0.5
  %v4552 = vadd.f32 %v4475, 0.5
  %v4553 = vadd.f32 %v4476, 0.5
  %v4554 = vadd.f32 %v4477, 0.5
  %v4555 = vadd.f32 %v4478, 0.5
  %v4556 = vadd.f32 %v4479, 0.5
  %v4557 = vadd.f32 %v4480, 0.5
  %v4558 = vadd.f32 %v4481, 0.5
  %v4559 = vadd.f32 %v4482, 0.5
  %v4560 = vadd.f32 %v4483, 0.5
  %v4561 = vadd.f32 %v4484, 0.5
  %v4562 = vadd.f32 %v4485, 0.5
  %v4563 = vadd.f32 %v4486, 0.5
  %v4564 = vadd.f32 %v4487, 0.5
  %v4565 = vadd.f32 %v4488, 0.5
  %v4566 = vadd.f32 %v4489, 0.5
  %v4567 = vadd.f32 %v4490, 0.5
  %v4568 = vadd.f32 %v4491, 0.5
  %v4569 = vadd.f32 %v4492, 0.5
  %v4570 = vadd.f32 %v4493, 0.5
  %v4571 = vadd.f32 %v4494, 0.5
  %v4572 = vadd.f32 %v4495, 0.5
  %v4573 = vadd.f32 %v4496, 0.5
  %v4574 = vadd.f32 %v4497, 0.5
  %v4575 = vadd.f32 %v4498, 0.5
  %v4576 = vadd.f32 %v4499, 0.5
  %v4577 = vadd.f32 %v4500, 0.5
  %v4578 = vadd.f32 %v4501, 0.5
  %v4579 = vadd.f32 %v4502, 0.5
  %v4580 = vadd.f32 %v4503, 0.5
  %v4581 = vadd.f32 %v4504, 0.5
  %v4582 = vadd.f32 %v4505, 0.5
  %v4583 = vadd.f32 %v4506, 0.5
  %v4584 = vadd.f32 %v4507, 0.5
  %v4585 = vadd.f32 %v4508, 0.5
  %v4586 = vadd.f32 %v4509, 0.5
  %v4587 = vadd.f32 %v4510, 0.5
  %v4588 = vadd.f32 %v4511, 0.5
  %v4589 = vrcp.pop 18.0
  %v4590 = vmul.f32 18.0, %v4589
  %v4591 = vsub.f32 1.0, %v4590
  %v4592 = vmul.f32 %v4589, %v4591
  %v4593 = vadd.f32 %v4589, %v4592
  %vm4594 = vweird.f32 %v4589
  %v4595 = vsel %vm4594, %v4589, %v4593
  %v4596 = vmul.f32 %v4512, %v4595
  %v4597 = vmul.f32 %v4513, %v4595
  %v4598 = vmul.f32 %v4514, %v4595
  %v4599 = vmul.f32 %v4515, %v4595
  %v4600 = vmul.f32 %v4516, %v4595
  %v4601 = vmul.f32 %v4517, %v4595
  %v4602 = vmul.f32 %v4518, %v4595
  %v4603 = vmul.f32 %v4519, %v4595
  %v4604 = vmul.f32 %v4520, %v4595
  %v4605 = vmul.f32 %v4521, %v4595
  %v4606 = vmul.f32 %v4522, %v4595
  %v4607 = vmul.f32 %v4523, %v4595
  %v4608 = vmul.f32 %v4524, %v4595
  %v4609 = vmul.f32 %v4525, %v4595
  %v4610 = vmul.f32 %v4526, %v4595
  %v4611 = vmul.f32 %v4527, %v4595
  %v4612 = vmul.f32 %v4528, %v4595
  %v4613 = vmul.f32 %v4529, %v4595
  %v4614 = vmul.f32 %v4530, %v4595
  %v4615 = vmul.f32 %v4531, %v4595
  %v4616 = vmul.f32 %v4532, %v4595
  %v4617 = vmul.f32 %v4533, %v4595
  %v4618 = vmul.f32 %v4534, %v4595
  %v4619 = vmul.f32 %v4535, %v4595
  %v4620 = vmul.f32 %v4536, %v4595
  %v4621 = vmul.f32 %v4537, %v4595
  %v4622 = vmul.f32 %v4538, %v4595
  %v4623 = vmul.f32 %v4539, %v4595
  %v4624 = vmul.f32 %v4540, %v4595
  %v4625 = vmul.f32 %v4541, %v4595
  %v4626 = vmul.f32 %v4542, %v4595
  %v4627 = vmul.f32 %v4543, %v4595
  %v4628 = vmul.f32 %v4544, %v4595
  %v4629 = vmul.f32 %v4545, %v4595
  %v4630 = vmul.f32 %v4546, %v4595
  %v4631 = vmul.f32 %v4547, %v4595
  %v4632 = vmul.f32 %v4548, %v4595
  %v4633 = vmul.f32 %v4549, %v4595
  %v4634 = vmul.f32 %v4550, %v4595
  %v4635 = vmul.f32 %v4551, %v4595
  %v4636 = vmul.f32 %v4552, %v4595
  %v4637 = vmul.f32 %v4553, %v4595
  %v4638 = vmul.f32 %v4554, %v4595
  %v4639 = vmul.f32 %v4555, %v4595
  %v4640 = vmul.f32 %v4556, %v4595
  %v4641 = vmul.f32 %v4557, %v4595
  %v4642 = vmul.f32 %v4558, %v4595
  %v4643 = vmul.f32 %v4559, %v4595
  %v4644 = vmul.f32 %v4560, %v4595
  %v4645 = vmul.f32 %v4561, %v4595
  %v4646 = vmul.f32 %v4562, %v4595
  %v4647 = vmul.f32 %v4563, %v4595
  %v4648 = vmul.f32 %v4564, %v4595
  %v4649 = vmul.f32 %v4565, %v4595
  %v4650 = vmul.f32 %v4566, %v4595
  %v4651 = vmul.f32 %v4567, %v4595
  %v4652 = vmul.f32 %v4568, %v4595
  %v4653 = vmul.f32 %v4569, %v4595
  %v4654 = vmul.f32 %v4570, %v4595
  %v4655 = vmul.f32 %v4571, %v4595
  %v4656 = vmul.f32 %v4572, %v4595
  %v4657 = vmul.f32 %v4573, %v4595
  %v4658 = vmul.f32 %v4574, %v4595
  %v4659 = vmul.f32 %v4575, %v4595
  %v4660 = vmul.f32 %v4576, %v4595
  %v4661 = vmul.f32 %v4577, %v4595
  %v4662 = vmul.f32 %v4578, %v4595
  %v4663 = vmul.f32 %v4579, %v4595
  %v4664 = vmul.f32 %v4580, %v4595
  %v4665 = vmul.f32 %v4581, %v4595
  %v4666 = vmul.f32 %v4582, %v4595
  %v4667 = vmul.f32 %v4583, %v4595
  %v4668 = vmul.f32 %v4584, %v4595
  %v4669 = vmul.f32 %v4585, %v4595
  %v4670 = vmul.f32 %v4586, %v4595
  %v4671 = vmul.f32 %v4587, %v4595
  %v4672 = vmul.f32 %v4588, %v4595
  %v4673 = vfloor.f32 %v4596
  %v4674 = vfloor.f32 %v4597
  %v4675 = vfloor.f32 %v4598
  %v4676 = vfloor.f32 %v4599
  %v4677 = vfloor.f32 %v4600
  %v4678 = vfloor.f32 %v4601
  %v4679 = vfloor.f32 %v4602
  %v4680 = vfloor.f32 %v4603
  %v4681 = vfloor.f32 %v4604
  %v4682 = vfloor.f32 %v4605
  %v4683 = vfloor.f32 %v4606
  %v4684 = vfloor.f32 %v4607
  %v4685 = vfloor.f32 %v4608
  %v4686 = vfloor.f32 %v4609
  %v4687 = vfloor.f32 %v4610
  %v4688 = vfloor.f32 %v4611
  %v4689 = vfloor.f32 %v4612
  %v4690 = vfloor.f32 %v4613
  %v4691 = vfloor.f32 %v4614
  %v4692 = vfloor.f32 %v4615
  %v4693 = vfloor.f32 %v4616
  %v4694 = vfloor.f32 %v4617
  %v4695 = vfloor.f32 %v4618
  %v4696 = vfloor.f32 %v4619
  %v4697 = vfloor.f32 %v4620
  %v4698 = vfloor.f32 %v4621
  %v4699 = vfloor.f32 %v4622
  %v4700 = vfloor.f32 %v4623
  %v4701 = vfloor.f32 %v4624
  %v4702 = vfloor.f32 %v4625
  %v4703 = vfloor.f32 %v4626
  %v4704 = vfloor.f32 %v4627
  %v4705 = vfloor.f32 %v4628
  %v4706 = vfloor.f32 %v4629
  %v4707 = vfloor.f32 %v4630
  %v4708 = vfloor.f32 %v4631
  %v4709 = vfloor.f32 %v4632
  %v4710 = vfloor.f32 %v4633
  %v4711 = vfloor.f32 %v4634
  %v4712 = vfloor.f32 %v4635
  %v4713 = vfloor.f32 %v4636
  %v4714 = vfloor.f32 %v4637
  %v4715 = vfloor.f32 %v4638
  %v4716 = vfloor.f32 %v4639
  %v4717 = vfloor.f32 %v4640
  %v4718 = vfloor.f32 %v4641
  %v4719 = vfloor.f32 %v4642
  %v4720 = vfloor.f32 %v4643
  %v4721 = vfloor.f32 %v4644
  %v4722 = vfloor.f32 %v4645
  %v4723 = vfloor.f32 %v4646
  %v4724 = vfloor.f32 %v4647
  %v4725 = vfloor.f32 %v4648
  %v4726 = vfloor.f32 %v4649
  %v4727 = vfloor.f32 %v4650
  %v4728 = vfloor.f32 %v4651
  %v4729 = vfloor.f32 %v4652
  %v4730 = vfloor.f32 %v4653
  %v4731 = vfloor.f32 %v4654
  %v4732 = vfloor.f32 %v4655
  %v4733 = vfloor.f32 %v4656
  %v4734 = vfloor.f32 %v4657
  %v4735 = vfloor.f32 %v4658
  %v4736 = vfloor.f32 %v4659
  %v4737 = vfloor.f32 %v4660
  %v4738 = vfloor.f32 %v4661
  %v4739 = vfloor.f32 %v4662
  %v4740 = vfloor.f32 %v4663
  %v4741 = vfloor.f32 %v4664
  %v4742 = vfloor.f32 %v4665
  %v4743 = vfloor.f32 %v4666
  %v4744 = vfloor.f32 %v4667
  %v4745 = vfloor.f32 %v4668
  %v4746 = vfloor.f32 %v4669
  %v4747 = vfloor.f32 %v4670
  %v4748 = vfloor.f32 %v4671
  %v4749 = vfloor.f32 %v4672
  %v4750 = vmul.f32 %v4673, 18.0
  %v4751 = vmul.f32 %v4674, 18.0
  %v4752 = vmul.f32 %v4675, 18.0
  %v4753 = vmul.f32 %v4676, 18.0
  %v4754 = vmul.f32 %v4677, 18.0
  %v4755 = vmul.f32 %v4678, 18.0
  %v4756 = vmul.f32 %v4679, 18.0
  %v4757 = vmul.f32 %v4680, 18.0
  %v4758 = vmul.f32 %v4681, 18.0
  %v4759 = vmul.f32 %v4682, 18.0
  %v4760 = vmul.f32 %v4683, 18.0
  %v4761 = vmul.f32 %v4684, 18.0
  %v4762 = vmul.f32 %v4685, 18.0
  %v4763 = vmul.f32 %v4686, 18.0
  %v4764 = vmul.f32 %v4687, 18.0
  %v4765 = vmul.f32 %v4688, 18.0
  %v4766 = vmul.f32 %v4689, 18.0
  %v4767 = vmul.f32 %v4690, 18.0
  %v4768 = vmul.f32 %v4691, 18.0
  %v4769 = vmul.f32 %v4692, 18.0
  %v4770 = vmul.f32 %v4693, 18.0
  %v4771 = vmul.f32 %v4694, 18.0
  %v4772 = vmul.f32 %v4695, 18.0
  %v4773 = vmul.f32 %v4696, 18.0
  %v4774 = vmul.f32 %v4697, 18.0
  %v4775 = vmul.f32 %v4698, 18.0
  %v4776 = vmul.f32 %v4699, 18.0
  %v4777 = vmul.f32 %v4700, 18.0
  %v4778 = vmul.f32 %v4701, 18.0
  %v4779 = vmul.f32 %v4702, 18.0
  %v4780 = vmul.f32 %v4703, 18.0
  %v4781 = vmul.f32 %v4704, 18.0
  %v4782 = vmul.f32 %v4705, 18.0
  %v4783 = vmul.f32 %v4706, 18.0
  %v4784 = vmul.f32 %v4707, 18.0
  %v4785 = vmul.f32 %v4708, 18.0
  %v4786 = vmul.f32 %v4709, 18.0
  %v4787 = vmul.f32 %v4710, 18.0
  %v4788 = vmul.f32 %v4711, 18.0
  %v4789 = vmul.f32 %v4712, 18.0
  %v4790 = vmul.f32 %v4713, 18.0
  %v4791 = vmul.f32 %v4714, 18.0
  %v4792 = vmul.f32 %v4715, 18.0
  %v4793 = vmul.f32 %v4716, 18.0
  %v4794 = vmul.f32 %v4717, 18.0
  %v4795 = vmul.f32 %v4718, 18.0
  %v4796 = vmul.f32 %v4719, 18.0
  %v4797 = vmul.f32 %v4720, 18.0
  %v4798 = vmul.f32 %v4721, 18.0
  %v4799 = vmul.f32 %v4722, 18.0
  %v4800 = vmul.f32 %v4723, 18.0
  %v4801 = vmul.f32 %v4724, 18.0
  %v4802 = vmul.f32 %v4725, 18.0
  %v4803 = vmul.f32 %v4726, 18.0
  %v4804 = vmul.f32 %v4727, 18.0
  %v4805 = vmul.f32 %v4728, 18.0
  %v4806 = vmul.f32 %v4729, 18.0
  %v4807 = vmul.f32 %v4730, 18.0
  %v4808 = vmul.f32 %v4731, 18.0
  %v4809 = vmul.f32 %v4732, 18.0
  %v4810 = vmul.f32 %v4733, 18.0
  %v4811 = vmul.f32 %v4734, 18.0
  %v4812 = vmul.f32 %v4735, 18.0
  %v4813 = vmul.f32 %v4736, 18.0
  %v4814 = vmul.f32 %v4737, 18.0
  %v4815 = vmul.f32 %v4738, 18.0
  %v4816 = vmul.f32 %v4739, 18.0
  %v4817 = vmul.f32 %v4740, 18.0
  %v4818 = vmul.f32 %v4741, 18.0
  %v4819 = vmul.f32 %v4742, 18.0
  %v4820 = vmul.f32 %v4743, 18.0
  %v4821 = vmul.f32 %v4744, 18.0
  %v4822 = vmul.f32 %v4745, 18.0
  %v4823 = vmul.f32 %v4746, 18.0
  %v4824 = vmul.f32 %v4747, 18.0
  %v4825 = vmul.f32 %v4748, 18.0
  %v4826 = vmul.f32 %v4749, 18.0
  %v4827 = vsub.f32 %v4435, %v4750
  %v4828 = vsub.f32 %v4436, %v4751
  %v4829 = vsub.f32 %v4437, %v4752
  %v4830 = vsub.f32 %v4438, %v4753
  %v4831 = vsub.f32 %v4439, %v4754
  %v4832 = vsub.f32 %v4440, %v4755
  %v4833 = vsub.f32 %v4441, %v4756
  %v4834 = vsub.f32 %v4442, %v4757
  %v4835 = vsub.f32 %v4443, %v4758
  %v4836 = vsub.f32 %v4444, %v4759
  %v4837 = vsub.f32 %v4445, %v4760
  %v4838 = vsub.f32 %v4446, %v4761
  %v4839 = vsub.f32 %v4447, %v4762
  %v4840 = vsub.f32 %v4448, %v4763
  %v4841 = vsub.f32 %v4449, %v4764
  %v4842 = vsub.f32 %v4450, %v4765
  %v4843 = vsub.f32 %v4451, %v4766
  %v4844 = vsub.f32 %v4452, %v4767
  %v4845 = vsub.f32 %v4453, %v4768
  %v4846 = vsub.f32 %v4454, %v4769
  %v4847 = vsub.f32 %v4455, %v4770
  %v4848 = vsub.f32 %v4456, %v4771
  %v4849 = vsub.f32 %v4457, %v4772
  %v4850 = vsub.f32 %v4458, %v4773
  %v4851 = vsub.f32 %v4459, %v4774
  %v4852 = vsub.f32 %v4460, %v4775
  %v4853 = vsub.f32 %v4461, %v4776
  %v4854 = vsub.f32 %v4462, %v4777
  %v4855 = vsub.f32 %v4463, %v4778
  %v4856 = vsub.f32 %v4464, %v4779
  %v4857 = vsub.f32 %v4465, %v4780
  %v4858 = vsub.f32 %v4466, %v4781
  %v4859 = vsub.f32 %v4467, %v4782
  %v4860 = vsub.f32 %v4468, %v4783
  %v4861 = vsub.f32 %v4469, %v4784
  %v4862 = vsub.f32 %v4470, %v4785
  %v4863 = vsub.f32 %v4471, %v4786
  %v4864 = vsub.f32 %v4472, %v4787
  %v4865 = vsub.f32 %v4473, %v4788
  %v4866 = vsub.f32 %v4474, %v4789
  %v4867 = vsub.f32 %v4475, %v4790
  %v4868 = vsub.f32 %v4476, %v4791
  %v4869 = vsub.f32 %v4477, %v4792
  %v4870 = vsub.f32 %v4478, %v4793
  %v4871 = vsub.f32 %v4479, %v4794
  %v4872 = vsub.f32 %v4480, %v4795
  %v4873 = vsub.f32 %v4481, %v4796
  %v4874 = vsub.f32 %v4482, %v4797
  %v4875 = vsub.f32 %v4483, %v4798
  %v4876 = vsub.f32 %v4484, %v4799
  %v4877 = vsub.f32 %v4485, %v4800
  %v4878 = vsub.f32 %v4486, %v4801
  %v4879 = vsub.f32 %v4487, %v4802
  %v4880 = vsub.f32 %v4488, %v4803
  %v4881 = vsub.f32 %v4489, %v4804
  %v4882 = vsub.f32 %v4490, %v4805
  %v4883 = vsub.f32 %v4491, %v4806
  %v4884 = vsub.f32 %v4492, %v4807
  %v4885 = vsub.f32 %v4493, %v4808
  %v4886 = vsub.f32 %v4494, %v4809
  %v4887 = vsub.f32 %v4495, %v4810
  %v4888 = vsub.f32 %v4496, %v4811
  %v4889 = vsub.f32 %v4497, %v4812
  %v4890 = vsub.f32 %v4498, %v4813
  %v4891 = vsub.f32 %v4499, %v4814
  %v4892 = vsub.f32 %v4500, %v4815
  %v4893 = vsub.f32 %v4501, %v4816
  %v4894 = vsub.f32 %v4502, %v4817
  %v4895 = vsub.f32 %v4503, %v4818
  %v4896 = vsub.f32 %v4504, %v4819
  %v4897 = vsub.f32 %v4505, %v4820
  %v4898 = vsub.f32 %v4506, %v4821
  %v4899 = vsub.f32 %v4507, %v4822
  %v4900 = vsub.f32 %v4508, %v4823
  %v4901 = vsub.f32 %v4509, %v4824
  %v4902 = vsub.f32 %v4510, %v4825
  %v4903 = vsub.f32 %v4511, %v4826
  %vm4904 = vcmp.lt.f32.partialorder %v4827, 15.5
  %vm4905 = vcmp.lt.f32.partialorder %v4828, 15.5
  %vm4906 = vcmp.lt.f32.partialorder %v4829, 15.5
  %vm4907 = vcmp.lt.f32.partialorder %v4830, 15.5
  %vm4908 = vcmp.lt.f32.partialorder %v4831, 15.5
  %vm4909 = vcmp.lt.f32.partialorder %v4832, 15.5
  %vm4910 = vcmp.lt.f32.partialorder %v4833, 15.5
  %vm4911 = vcmp.lt.f32.partialorder %v4834, 15.5
  %vm4912 = vcmp.lt.f32.partialorder %v4835, 15.5
  %vm4913 = vcmp.lt.f32.partialorder %v4836, 15.5
  %vm4914 = vcmp.lt.f32.partialorder %v4837, 15.5
  %vm4915 = vcmp.lt.f32.partialorder %v4838, 15.5
  %vm4916 = vcmp.lt.f32.partialorder %v4839, 15.5
  %vm4917 = vcmp.lt.f32.partialorder %v4840, 15.5
  %vm4918 = vcmp.lt.f32.partialorder %v4841, 15.5
  %vm4919 = vcmp.lt.f32.partialorder %v4842, 15.5
  %vm4920 = vcmp.lt.f32.partialorder %v4843, 15.5
  %vm4921 = vcmp.lt.f32.partialorder %v4844, 15.5
  %vm4922 = vcmp.lt.f32.partialorder %v4845, 15.5
  %vm4923 = vcmp.lt.f32.partialorder %v4846, 15.5
  %vm4924 = vcmp.lt.f32.partialorder %v4847, 15.5
  %vm4925 = vcmp.lt.f32.partialorder %v4848, 15.5
  %vm4926 = vcmp.lt.f32.partialorder %v4849, 15.5
  %vm4927 = vcmp.lt.f32.partialorder %v4850, 15.5
  %vm4928 = vcmp.lt.f32.partialorder %v4851, 15.5
  %vm4929 = vcmp.lt.f32.partialorder %v4852, 15.5
  %vm4930 = vcmp.lt.f32.partialorder %v4853, 15.5
  %vm4931 = vcmp.lt.f32.partialorder %v4854, 15.5
  %vm4932 = vcmp.lt.f32.partialorder %v4855, 15.5
  %vm4933 = vcmp.lt.f32.partialorder %v4856, 15.5
  %vm4934 = vcmp.lt.f32.partialorder %v4857, 15.5
  %vm4935 = vcmp.lt.f32.partialorder %v4858, 15.5
  %vm4936 = vcmp.lt.f32.partialorder %v4859, 15.5
  %vm4937 = vcmp.lt.f32.partialorder %v4860, 15.5
  %vm4938 = vcmp.lt.f32.partialorder %v4861, 15.5
  %vm4939 = vcmp.lt.f32.partialorder %v4862, 15.5
  %vm4940 = vcmp.lt.f32.partialorder %v4863, 15.5
  %vm4941 = vcmp.lt.f32.partialorder %v4864, 15.5
  %vm4942 = vcmp.lt.f32.partialorder %v4865, 15.5
  %vm4943 = vcmp.lt.f32.partialorder %v4866, 15.5
  %vm4944 = vcmp.lt.f32.partialorder %v4867, 15.5
  %vm4945 = vcmp.lt.f32.partialorder %v4868, 15.5
  %vm4946 = vcmp.lt.f32.partialorder %v4869, 15.5
  %vm4947 = vcmp.lt.f32.partialorder %v4870, 15.5
  %vm4948 = vcmp.lt.f32.partialorder %v4871, 15.5
  %vm4949 = vcmp.lt.f32.partialorder %v4872, 15.5
  %vm4950 = vcmp.lt.f32.partialorder %v4873, 15.5
  %vm4951 = vcmp.lt.f32.partialorder %v4874, 15.5
  %vm4952 = vcmp.lt.f32.partialorder %v4875, 15.5
  %vm4953 = vcmp.lt.f32.partialorder %v4876, 15.5
  %vm4954 = vcmp.lt.f32.partialorder %v4877, 15.5
  %vm4955 = vcmp.lt.f32.partialorder %v4878, 15.5
  %vm4956 = vcmp.lt.f32.partialorder %v4879, 15.5
  %vm4957 = vcmp.lt.f32.partialorder %v4880, 15.5
  %vm4958 = vcmp.lt.f32.partialorder %v4881, 15.5
  %vm4959 = vcmp.lt.f32.partialorder %v4882, 15.5
  %vm4960 = vcmp.lt.f32.partialorder %v4883, 15.5
  %vm4961 = vcmp.lt.f32.partialorder %v4884, 15.5
  %vm4962 = vcmp.lt.f32.partialorder %v4885, 15.5
  %vm4963 = vcmp.lt.f32.partialorder %v4886, 15.5
  %vm4964 = vcmp.lt.f32.partialorder %v4887, 15.5
  %vm4965 = vcmp.lt.f32.partialorder %v4888, 15.5
  %vm4966 = vcmp.lt.f32.partialorder %v4889, 15.5
  %vm4967 = vcmp.lt.f32.partialorder %v4890, 15.5
  %vm4968 = vcmp.lt.f32.partialorder %v4891, 15.5
  %vm4969 = vcmp.lt.f32.partialorder %v4892, 15.5
  %vm4970 = vcmp.lt.f32.partialorder %v4893, 15.5
  %vm4971 = vcmp.lt.f32.partialorder %v4894, 15.5
  %vm4972 = vcmp.lt.f32.partialorder %v4895, 15.5
  %vm4973 = vcmp.lt.f32.partialorder %v4896, 15.5
  %vm4974 = vcmp.lt.f32.partialorder %v4897, 15.5
  %vm4975 = vcmp.lt.f32.partialorder %v4898, 15.5
  %vm4976 = vcmp.lt.f32.partialorder %v4899, 15.5
  %vm4977 = vcmp.lt.f32.partialorder %v4900, 15.5
  %vm4978 = vcmp.lt.f32.partialorder %v4901, 15.5
  %vm4979 = vcmp.lt.f32.partialorder %v4902, 15.5
  %vm4980 = vcmp.lt.f32.partialorder %v4903, 15.5
  %vm4981 = vcmp.lt.f32.partialorder %v4435, 287.5
  %vm4982 = vcmp.lt.f32.partialorder %v4436, 287.5
  %vm4983 = vcmp.lt.f32.partialorder %v4437, 287.5
  %vm4984 = vcmp.lt.f32.partialorder %v4438, 287.5
  %vm4985 = vcmp.lt.f32.partialorder %v4439, 287.5
  %vm4986 = vcmp.lt.f32.partialorder %v4440, 287.5
  %vm4987 = vcmp.lt.f32.partialorder %v4441, 287.5
  %vm4988 = vcmp.lt.f32.partialorder %v4442, 287.5
  %vm4989 = vcmp.lt.f32.partialorder %v4443, 287.5
  %vm4990 = vcmp.lt.f32.partialorder %v4444, 287.5
  %vm4991 = vcmp.lt.f32.partialorder %v4445, 287.5
  %vm4992 = vcmp.lt.f32.partialorder %v4446, 287.5
  %vm4993 = vcmp.lt.f32.partialorder %v4447, 287.5
  %vm4994 = vcmp.lt.f32.partialorder %v4448, 287.5
  %vm4995 = vcmp.lt.f32.partialorder %v4449, 287.5
  %vm4996 = vcmp.lt.f32.partialorder %v4450, 287.5
  %vm4997 = vcmp.lt.f32.partialorder %v4451, 287.5
  %vm4998 = vcmp.lt.f32.partialorder %v4452, 287.5
  %vm4999 = vcmp.lt.f32.partialorder %v4453, 287.5
  %vm5000 = vcmp.lt.f32.partialorder %v4454, 287.5
  %vm5001 = vcmp.lt.f32.partialorder %v4455, 287.5
  %vm5002 = vcmp.lt.f32.partialorder %v4456, 287.5
  %vm5003 = vcmp.lt.f32.partialorder %v4457, 287.5
  %vm5004 = vcmp.lt.f32.partialorder %v4458, 287.5
  %vm5005 = vcmp.lt.f32.partialorder %v4459, 287.5
  %vm5006 = vcmp.lt.f32.partialorder %v4460, 287.5
  %vm5007 = vcmp.lt.f32.partialorder %v4461, 287.5
  %vm5008 = vcmp.lt.f32.partialorder %v4462, 287.5
  %vm5009 = vcmp.lt.f32.partialorder %v4463, 287.5
  %vm5010 = vcmp.lt.f32.partialorder %v4464, 287.5
  %vm5011 = vcmp.lt.f32.partialorder %v4465, 287.5
  %vm5012 = vcmp.lt.f32.partialorder %v4466, 287.5
  %vm5013 = vcmp.lt.f32.partialorder %v4467, 287.5
  %vm5014 = vcmp.lt.f32.partialorder %v4468, 287.5
  %vm5015 = vcmp.lt.f32.partialorder %v4469, 287.5
  %vm5016 = vcmp.lt.f32.partialorder %v4470, 287.5
  %vm5017 = vcmp.lt.f32.partialorder %v4471, 287.5
  %vm5018 = vcmp.lt.f32.partialorder %v4472, 287.5
  %vm5019 = vcmp.lt.f32.partialorder %v4473, 287.5
  %vm5020 = vcmp.lt.f32.partialorder %v4474, 287.5
  %vm5021 = vcmp.lt.f32.partialorder %v4475, 287.5
  %vm5022 = vcmp.lt.f32.partialorder %v4476, 287.5
  %vm5023 = vcmp.lt.f32.partialorder %v4477, 287.5
  %vm5024 = vcmp.lt.f32.partialorder %v4478, 287.5
  %vm5025 = vcmp.lt.f32.partialorder %v4479, 287.5
  %vm5026 = vcmp.lt.f32.partialorder %v4480, 287.5
  %vm5027 = vcmp.lt.f32.partialorder %v4481, 287.5
  %vm5028 = vcmp.lt.f32.partialorder %v4482, 287.5
  %vm5029 = vcmp.lt.f32.partialorder %v4483, 287.5
  %vm5030 = vcmp.lt.f32.partialorder %v4484, 287.5
  %vm5031 = vcmp.lt.f32.partialorder %v4485, 287.5
  %vm5032 = vcmp.lt.f32.partialorder %v4486, 287.5
  %vm5033 = vcmp.lt.f32.partialorder %v4487, 287.5
  %vm5034 = vcmp.lt.f32.partialorder %v4488, 287.5
  %vm5035 = vcmp.lt.f32.partialorder %v4489, 287.5
  %vm5036 = vcmp.lt.f32.partialorder %v4490, 287.5
  %vm5037 = vcmp.lt.f32.partialorder %v4491, 287.5
  %vm5038 = vcmp.lt.f32.partialorder %v4492, 287.5
  %vm5039 = vcmp.lt.f32.partialorder %v4493, 287.5
  %vm5040 = vcmp.lt.f32.partialorder %v4494, 287.5
  %vm5041 = vcmp.lt.f32.partialorder %v4495, 287.5
  %vm5042 = vcmp.lt.f32.partialorder %v4496, 287.5
  %vm5043 = vcmp.lt.f32.partialorder %v4497, 287.5
  %vm5044 = vcmp.lt.f32.partialorder %v4498, 287.5
  %vm5045 = vcmp.lt.f32.partialorder %v4499, 287.5
  %vm5046 = vcmp.lt.f32.partialorder %v4500, 287.5
  %vm5047 = vcmp.lt.f32.partialorder %v4501, 287.5
  %vm5048 = vcmp.lt.f32.partialorder %v4502, 287.5
  %vm5049 = vcmp.lt.f32.partialorder %v4503, 287.5
  %vm5050 = vcmp.lt.f32.partialorder %v4504, 287.5
  %vm5051 = vcmp.lt.f32.partialorder %v4505, 287.5
  %vm5052 = vcmp.lt.f32.partialorder %v4506, 287.5
  %vm5053 = vcmp.lt.f32.partialorder %v4507, 287.5
  %vm5054 = vcmp.lt.f32.partialorder %v4508, 287.5
  %vm5055 = vcmp.lt.f32.partialorder %v4509, 287.5
  %vm5056 = vcmp.lt.f32.partialorder %v4510, 287.5
  %vm5057 = vcmp.lt.f32.partialorder %v4511, 287.5
  %vm5058 = vmand %vm4904, %vm4981
  %vm5059 = vmand %vm4905, %vm4982
  %vm5060 = vmand %vm4906, %vm4983
  %vm5061 = vmand %vm4907, %vm4984
  %vm5062 = vmand %vm4908, %vm4985
  %vm5063 = vmand %vm4909, %vm4986
  %vm5064 = vmand %vm4910, %vm4987
  %vm5065 = vmand %vm4911, %vm4988
  %vm5066 = vmand %vm4912, %vm4989
  %vm5067 = vmand %vm4913, %vm4990
  %vm5068 = vmand %vm4914, %vm4991
  %vm5069 = vmand %vm4915, %vm4992
  %vm5070 = vmand %vm4916, %vm4993
  %vm5071 = vmand %vm4917, %vm4994
  %vm5072 = vmand %vm4918, %vm4995
  %vm5073 = vmand %vm4919, %vm4996
  %vm5074 = vmand %vm4920, %vm4997
  %vm5075 = vmand %vm4921, %vm4998
  %vm5076 = vmand %vm4922, %vm4999
  %vm5077 = vmand %vm4923, %vm5000
  %vm5078 = vmand %vm4924, %vm5001
  %vm5079 = vmand %vm4925, %vm5002
  %vm5080 = vmand %vm4926, %vm5003
  %vm5081 = vmand %vm4927, %vm5004
  %vm5082 = vmand %vm4928, %vm5005
  %vm5083 = vmand %vm4929, %vm5006
  %vm5084 = vmand %vm4930, %vm5007
  %vm5085 = vmand %vm4931, %vm5008
  %vm5086 = vmand %vm4932, %vm5009
  %vm5087 = vmand %vm4933, %vm5010
  %vm5088 = vmand %vm4934, %vm5011
  %vm5089 = vmand %vm4935, %vm5012
  %vm5090 = vmand %vm4936, %vm5013
  %vm5091 = vmand %vm4937, %vm5014
  %vm5092 = vmand %vm4938, %vm5015
  %vm5093 = vmand %vm4939, %vm5016
  %vm5094 = vmand %vm4940, %vm5017
  %vm5095 = vmand %vm4941, %vm5018
  %vm5096 = vmand %vm4942, %vm5019
  %vm5097 = vmand %vm4943, %vm5020
  %vm5098 = vmand %vm4944, %vm5021
  %vm5099 = vmand %vm4945, %vm5022
  %vm5100 = vmand %vm4946, %vm5023
  %vm5101 = vmand %vm4947, %vm5024
  %vm5102 = vmand %vm4948, %vm5025
  %vm5103 = vmand %vm4949, %vm5026
  %vm5104 = vmand %vm4950, %vm5027
  %vm5105 = vmand %vm4951, %vm5028
  %vm5106 = vmand %vm4952, %vm5029
  %vm5107 = vmand %vm4953, %vm5030
  %vm5108 = vmand %vm4954, %vm5031
  %vm5109 = vmand %vm4955, %vm5032
  %vm5110 = vmand %vm4956, %vm5033
  %vm5111 = vmand %vm4957, %vm5034
  %vm5112 = vmand %vm4958, %vm5035
  %vm5113 = vmand %vm4959, %vm5036
  %vm5114 = vmand %vm4960, %vm5037
  %vm5115 = vmand %vm4961, %vm5038
  %vm5116 = vmand %vm4962, %vm5039
  %vm5117 = vmand %vm4963, %vm5040
  %vm5118 = vmand %vm4964, %vm5041
  %vm5119 = vmand %vm4965, %vm5042
  %vm5120 = vmand %vm4966, %vm5043
  %vm5121 = vmand %vm4967, %vm5044
  %vm5122 = vmand %vm4968, %vm5045
  %vm5123 = vmand %vm4969, %vm5046
  %vm5124 = vmand %vm4970, %vm5047
  %vm5125 = vmand %vm4971, %vm5048
  %vm5126 = vmand %vm4972, %vm5049
  %vm5127 = vmand %vm4973, %vm5050
  %vm5128 = vmand %vm4974, %vm5051
  %vm5129 = vmand %vm4975, %vm5052
  %vm5130 = vmand %vm4976, %vm5053
  %vm5131 = vmand %vm4977, %vm5054
  %vm5132 = vmand %vm4978, %vm5055
  %vm5133 = vmand %vm4979, %vm5056
  %vm5134 = vmand %vm4980, %vm5057
  %v5135 = vsel %vm5058, 1.0, 0.0
  %v5136 = vsel %vm5059, 1.0, 0.0
  %v5137 = vsel %vm5060, 1.0, 0.0
  %v5138 = vsel %vm5061, 1.0, 0.0
  %v5139 = vsel %vm5062, 1.0, 0.0
  %v5140 = vsel %vm5063, 1.0, 0.0
  %v5141 = vsel %vm5064, 1.0, 0.0
  %v5142 = vsel %vm5065, 1.0, 0.0
  %v5143 = vsel %vm5066, 1.0, 0.0
  %v5144 = vsel %vm5067, 1.0, 0.0
  %v5145 = vsel %vm5068, 1.0, 0.0
  %v5146 = vsel %vm5069, 1.0, 0.0
  %v5147 = vsel %vm5070, 1.0, 0.0
  %v5148 = vsel %vm5071, 1.0, 0.0
  %v5149 = vsel %vm5072, 1.0, 0.0
  %v5150 = vsel %vm5073, 1.0, 0.0
  %v5151 = vsel %vm5074, 1.0, 0.0
  %v5152 = vsel %vm5075, 1.0, 0.0
  %v5153 = vsel %vm5076, 1.0, 0.0
  %v5154 = vsel %vm5077, 1.0, 0.0
  %v5155 = vsel %vm5078, 1.0, 0.0
  %v5156 = vsel %vm5079, 1.0, 0.0
  %v5157 = vsel %vm5080, 1.0, 0.0
  %v5158 = vsel %vm5081, 1.0, 0.0
  %v5159 = vsel %vm5082, 1.0, 0.0
  %v5160 = vsel %vm5083, 1.0, 0.0
  %v5161 = vsel %vm5084, 1.0, 0.0
  %v5162 = vsel %vm5085, 1.0, 0.0
  %v5163 = vsel %vm5086, 1.0, 0.0
  %v5164 = vsel %vm5087, 1.0, 0.0
  %v5165 = vsel %vm5088, 1.0, 0.0
  %v5166 = vsel %vm5089, 1.0, 0.0
  %v5167 = vsel %vm5090, 1.0, 0.0
  %v5168 = vsel %vm5091, 1.0, 0.0
  %v5169 = vsel %vm5092, 1.0, 0.0
  %v5170 = vsel %vm5093, 1.0, 0.0
  %v5171 = vsel %vm5094, 1.0, 0.0
  %v5172 = vsel %vm5095, 1.0, 0.0
  %v5173 = vsel %vm5096, 1.0, 0.0
  %v5174 = vsel %vm5097, 1.0, 0.0
  %v5175 = vsel %vm5098, 1.0, 0.0
  %v5176 = vsel %vm5099, 1.0, 0.0
  %v5177 = vsel %vm5100, 1.0, 0.0
  %v5178 = vsel %vm5101, 1.0, 0.0
  %v5179 = vsel %vm5102, 1.0, 0.0
  %v5180 = vsel %vm5103, 1.0, 0.0
  %v5181 = vsel %vm5104, 1.0, 0.0
  %v5182 = vsel %vm5105, 1.0, 0.0
  %v5183 = vsel %vm5106, 1.0, 0.0
  %v5184 = vsel %vm5107, 1.0, 0.0
  %v5185 = vsel %vm5108, 1.0, 0.0
  %v5186 = vsel %vm5109, 1.0, 0.0
  %v5187 = vsel %vm5110, 1.0, 0.0
  %v5188 = vsel %vm5111, 1.0, 0.0
  %v5189 = vsel %vm5112, 1.0, 0.0
  %v5190 = vsel %vm5113, 1.0, 0.0
  %v5191 = vsel %vm5114, 1.0, 0.0
  %v5192 = vsel %vm5115, 1.0, 0.0
  %v5193 = vsel %vm5116, 1.0, 0.0
  %v5194 = vsel %vm5117, 1.0, 0.0
  %v5195 = vsel %vm5118, 1.0, 0.0
  %v5196 = vsel %vm5119, 1.0, 0.0
  %v5197 = vsel %vm5120, 1.0, 0.0
  %v5198 = vsel %vm5121, 1.0, 0.0
  %v5199 = vsel %vm5122, 1.0, 0.0
  %v5200 = vsel %vm5123, 1.0, 0.0
  %v5201 = vsel %vm5124, 1.0, 0.0
  %v5202 = vsel %vm5125, 1.0, 0.0
  %v5203 = vsel %vm5126, 1.0, 0.0
  %v5204 = vsel %vm5127, 1.0, 0.0
  %v5205 = vsel %vm5128, 1.0, 0.0
  %v5206 = vsel %vm5129, 1.0, 0.0
  %v5207 = vsel %vm5130, 1.0, 0.0
  %v5208 = vsel %vm5131, 1.0, 0.0
  %v5209 = vsel %vm5132, 1.0, 0.0
  %v5210 = vsel %vm5133, 1.0, 0.0
  %v5211 = vsel %vm5134, 1.0, 0.0
  %v5212 = vld [vmem:[%s2] sm:$0x1]
  %v5214 = vperm.slane %v5212, 0
  %vm5216 = vcmask 588800
  %v5218 = vsel %vm5216, %v3879, 0
  %v5221 = vsel %vm5216, %v3880, 0
  %v5224 = vsel %vm5216, %v3881, 0
  %v5227 = vsel %vm5216, %v3882, 0
  %v5230 = vsel %vm5216, %v3883, 0
  %v5233 = vsel %vm5216, %v3884, 0
  %v5236 = vsel %vm5216, %v3885, 0
  %v5239 = vsel %vm5216, %v3886, 0
  %v5242 = vsel %vm5216, %v3887, 0
  %v5245 = vsel %vm5216, %v3888, 0
  %v5248 = vsel %vm5216, %v3889, 0
  %v5251 = vsel %vm5216, %v3890, 0
  %v5254 = vsel %vm5216, %v3891, 0
  %v5257 = vsel %vm5216, %v3892, 0
  %v5260 = vsel %vm5216, %v3893, 0
  %v5263 = vsel %vm5216, %v3894, 0
  %v5266 = vsel %vm5216, %v3895, 0
  %v5269 = vsel %vm5216, %v3896, 0
  %v5272 = vsel %vm5216, %v3897, 0
  %v5275 = vsel %vm5216, %v3898, 0
  %v5278 = vsel %vm5216, %v3899, 0
  %v5281 = vsel %vm5216, %v3900, 0
  %v5284 = vsel %vm5216, %v3901, 0
  %v5287 = vsel %vm5216, %v3902, 0
  %v5290 = vsel %vm5216, %v3903, 0
  %v5293 = vsel %vm5216, %v3904, 0
  %v5296 = vsel %vm5216, %v3905, 0
  %v5299 = vsel %vm5216, %v3906, 0
  %v5302 = vsel %vm5216, %v3907, 0
  %v5305 = vsel %vm5216, %v3908, 0
  %v5308 = vsel %vm5216, %v3909, 0
  %v5311 = vsel %vm5216, %v3910, 0
  %v5314 = vsel %vm5216, %v3911, 0
  %v5317 = vsel %vm5216, %v3912, 0
  %v5320 = vsel %vm5216, %v3913, 0
  %v5323 = vsel %vm5216, %v3914, 0
  %v5326 = vsel %vm5216, %v3915, 0
  %v5329 = vsel %vm5216, %v3916, 0
  %v5332 = vsel %vm5216, %v3917, 0
  %v5335 = vsel %vm5216, %v3918, 0
  %v5338 = vsel %vm5216, %v3919, 0
  %v5341 = vsel %vm5216, %v3920, 0
  %v5344 = vsel %vm5216, %v3921, 0
  %v5347 = vsel %vm5216, %v3922, 0
  %v5350 = vsel %vm5216, %v3923, 0
  %v5353 = vsel %vm5216, %v3924, 0
  %v5356 = vsel %vm5216, %v3925, 0
  %v5359 = vsel %vm5216, %v3926, 0
  %v5362 = vsel %vm5216, %v3927, 0
  %v5365 = vsel %vm5216, %v3928, 0
  %v5368 = vsel %vm5216, %v3929, 0
  %v5371 = vsel %vm5216, %v3930, 0
  %v5374 = vsel %vm5216, %v3931, 0
  %v5377 = vsel %vm5216, %v3932, 0
  %v5380 = vsel %vm5216, %v3933, 0
  %v5383 = vsel %vm5216, %v3934, 0
  %v5386 = vsel %vm5216, %v3935, 0
  %v5389 = vsel %vm5216, %v3936, 0
  %v5392 = vsel %vm5216, %v3937, 0
  %v5395 = vsel %vm5216, %v3938, 0
  %v5398 = vsel %vm5216, %v3939, 0
  %v5401 = vsel %vm5216, %v3940, 0
  %v5404 = vsel %vm5216, %v3941, 0
  %v5407 = vsel %vm5216, %v3942, 0
  %v5410 = vsel %vm5216, %v3943, 0
  %v5413 = vsel %vm5216, %v3944, 0
  %v5416 = vsel %vm5216, %v3945, 0
  %v5419 = vsel %vm5216, %v3946, 0
  %v5422 = vsel %vm5216, %v3947, 0
  %v5425 = vsel %vm5216, %v3948, 0
  %v5428 = vsel %vm5216, %v3949, 0
  %v5431 = vsel %vm5216, %v3950, 0
  %v5434 = vsel %vm5216, %v3951, 0
  %v5437 = vsel %vm5216, %v3952, 0
  %v5440 = vsel %vm5216, %v3953, 0
  %v5443 = vsel %vm5216, %v3954, 0
  %v5446 = vsel %vm5216, %v3955, 0
  %5448 = vmatpush.msra.mxu0 0.0
  %5449 = vmatpush.msra.mxu0 0.0
  %5450 = vmatpush.msra.mxu0 0.0
  %5451 = vmatpush.msra.mxu0 0.0
  %5452 = vmatpush.msra.mxu0 0.0
  %5453 = vmatpush.msra.mxu0 0.0
  %5454 = vmatpush.msra.mxu0 0.0
  %5455 = vmatpush.msra.mxu0 %v3964
  %5456 = vmatpush.msra.mxu0 %v3963
  %5457 = vmatpush.msra.mxu0 %v3962
  %5458 = vmatpush.msra.mxu0 %v3961
  %5459 = vmatpush.msra.mxu0 %v3960
  %5460 = vmatpush.msra.mxu0 %v3959
  %5461 = vmatpush.msra.mxu0 %v3958
  %5462 = vmatpush.msra.mxu0 %v3957
  %5463 = vmatpush.msra.mxu0 %v3956
  %5464 = vmatmul.f32.gmra.mxu0 %v5218
  %v5465 = vpop.f32.mrf.mxu0
  %v5466 = vadd.f32 %v5214, %v5465
  %5467 = vmatmul.f32.gmra.mxu0 %v5221
  %v5468 = vpop.f32.mrf.mxu0
  %v5469 = vadd.f32 %v5214, %v5468
  %5470 = vmatmul.f32.gmra.mxu0 %v5224
  %v5471 = vpop.f32.mrf.mxu0
  %v5472 = vadd.f32 %v5214, %v5471
  %5473 = vmatmul.f32.gmra.mxu0 %v5227
  %v5474 = vpop.f32.mrf.mxu0
  %v5475 = vadd.f32 %v5214, %v5474
  %5476 = vmatmul.f32.gmra.mxu0 %v5230
  %v5477 = vpop.f32.mrf.mxu0
  %v5478 = vadd.f32 %v5214, %v5477
  %5479 = vmatmul.f32.gmra.mxu0 %v5233
  %v5480 = vpop.f32.mrf.mxu0
  %v5481 = vadd.f32 %v5214, %v5480
  %5482 = vmatmul.f32.gmra.mxu0 %v5236
  %v5483 = vpop.f32.mrf.mxu0
  %v5484 = vadd.f32 %v5214, %v5483
  %5485 = vmatmul.f32.gmra.mxu0 %v5239
  %v5486 = vpop.f32.mrf.mxu0
  %v5487 = vadd.f32 %v5214, %v5486
  %5488 = vmatmul.f32.gmra.mxu0 %v5242
  %v5489 = vpop.f32.mrf.mxu0
  %v5490 = vadd.f32 %v5214, %v5489
  %5491 = vmatmul.f32.gmra.mxu0 %v5245
  %v5492 = vpop.f32.mrf.mxu0
  %v5493 = vadd.f32 %v5214, %v5492
  %5494 = vmatmul.f32.gmra.mxu0 %v5248
  %v5495 = vpop.f32.mrf.mxu0
  %v5496 = vadd.f32 %v5214, %v5495
  %5497 = vmatmul.f32.gmra.mxu0 %v5251
  %v5498 = vpop.f32.mrf.mxu0
  %v5499 = vadd.f32 %v5214, %v5498
  %5500 = vmatmul.f32.gmra.mxu0 %v5254
  %v5501 = vpop.f32.mrf.mxu0
  %v5502 = vadd.f32 %v5214, %v5501
  %5503 = vmatmul.f32.gmra.mxu0 %v5257
  %v5504 = vpop.f32.mrf.mxu0
  %v5505 = vadd.f32 %v5214, %v5504
  %5506 = vmatmul.f32.gmra.mxu0 %v5260
  %v5507 = vpop.f32.mrf.mxu0
  %v5508 = vadd.f32 %v5214, %v5507
  %5509 = vmatmul.f32.gmra.mxu0 %v5263
  %v5510 = vpop.f32.mrf.mxu0
  %v5511 = vadd.f32 %v5214, %v5510
  %5512 = vmatmul.f32.gmra.mxu0 %v5266
  %v5513 = vpop.f32.mrf.mxu0
  %v5514 = vadd.f32 %v5214, %v5513
  %5515 = vmatmul.f32.gmra.mxu0 %v5269
  %v5516 = vpop.f32.mrf.mxu0
  %v5517 = vadd.f32 %v5214, %v5516
  %5518 = vmatmul.f32.gmra.mxu0 %v5272
  %v5519 = vpop.f32.mrf.mxu0
  %v5520 = vadd.f32 %v5214, %v5519
  %5521 = vmatmul.f32.gmra.mxu0 %v5275
  %v5522 = vpop.f32.mrf.mxu0
  %v5523 = vadd.f32 %v5214, %v5522
  %5524 = vmatmul.f32.gmra.mxu0 %v5278
  %v5525 = vpop.f32.mrf.mxu0
  %v5526 = vadd.f32 %v5214, %v5525
  %5527 = vmatmul.f32.gmra.mxu0 %v5281
  %v5528 = vpop.f32.mrf.mxu0
  %v5529 = vadd.f32 %v5214, %v5528
  %5530 = vmatmul.f32.gmra.mxu0 %v5284
  %v5531 = vpop.f32.mrf.mxu0
  %v5532 = vadd.f32 %v5214, %v5531
  %5533 = vmatmul.f32.gmra.mxu0 %v5287
  %v5534 = vpop.f32.mrf.mxu0
  %v5535 = vadd.f32 %v5214, %v5534
  %5536 = vmatmul.f32.gmra.mxu0 %v5290
  %v5537 = vpop.f32.mrf.mxu0
  %v5538 = vadd.f32 %v5214, %v5537
  %5539 = vmatmul.f32.gmra.mxu0 %v5293
  %v5540 = vpop.f32.mrf.mxu0
  %v5541 = vadd.f32 %v5214, %v5540
  %5542 = vmatmul.f32.gmra.mxu0 %v5296
  %v5543 = vpop.f32.mrf.mxu0
  %v5544 = vadd.f32 %v5214, %v5543
  %5545 = vmatmul.f32.gmra.mxu0 %v5299
  %v5546 = vpop.f32.mrf.mxu0
  %v5547 = vadd.f32 %v5214, %v5546
  %5548 = vmatmul.f32.gmra.mxu0 %v5302
  %v5549 = vpop.f32.mrf.mxu0
  %v5550 = vadd.f32 %v5214, %v5549
  %5551 = vmatmul.f32.gmra.mxu0 %v5305
  %v5552 = vpop.f32.mrf.mxu0
  %v5553 = vadd.f32 %v5214, %v5552
  %5554 = vmatmul.f32.gmra.mxu0 %v5308
  %v5555 = vpop.f32.mrf.mxu0
  %v5556 = vadd.f32 %v5214, %v5555
  %5557 = vmatmul.f32.gmra.mxu0 %v5311
  %v5558 = vpop.f32.mrf.mxu0
  %v5559 = vadd.f32 %v5214, %v5558
  %5560 = vmatmul.f32.gmra.mxu0 %v5314
  %v5561 = vpop.f32.mrf.mxu0
  %v5562 = vadd.f32 %v5214, %v5561
  %5563 = vmatmul.f32.gmra.mxu0 %v5317
  %v5564 = vpop.f32.mrf.mxu0
  %v5565 = vadd.f32 %v5214, %v5564
  %5566 = vmatmul.f32.gmra.mxu0 %v5320
  %v5567 = vpop.f32.mrf.mxu0
  %v5568 = vadd.f32 %v5214, %v5567
  %5569 = vmatmul.f32.gmra.mxu0 %v5323
  %v5570 = vpop.f32.mrf.mxu0
  %v5571 = vadd.f32 %v5214, %v5570
  %5572 = vmatmul.f32.gmra.mxu0 %v5326
  %v5573 = vpop.f32.mrf.mxu0
  %v5574 = vadd.f32 %v5214, %v5573
  %5575 = vmatmul.f32.gmra.mxu0 %v5329
  %v5576 = vpop.f32.mrf.mxu0
  %v5577 = vadd.f32 %v5214, %v5576
  %5578 = vmatmul.f32.gmra.mxu0 %v5332
  %v5579 = vpop.f32.mrf.mxu0
  %v5580 = vadd.f32 %v5214, %v5579
  %5581 = vmatmul.f32.gmra.mxu0 %v5335
  %v5582 = vpop.f32.mrf.mxu0
  %v5583 = vadd.f32 %v5214, %v5582
  %5584 = vmatmul.f32.gmra.mxu0 %v5338
  %v5585 = vpop.f32.mrf.mxu0
  %v5586 = vadd.f32 %v5214, %v5585
  %5587 = vmatmul.f32.gmra.mxu0 %v5341
  %v5588 = vpop.f32.mrf.mxu0
  %v5589 = vadd.f32 %v5214, %v5588
  %5590 = vmatmul.f32.gmra.mxu0 %v5344
  %v5591 = vpop.f32.mrf.mxu0
  %v5592 = vadd.f32 %v5214, %v5591
  %5593 = vmatmul.f32.gmra.mxu0 %v5347
  %v5594 = vpop.f32.mrf.mxu0
  %v5595 = vadd.f32 %v5214, %v5594
  %5596 = vmatmul.f32.gmra.mxu0 %v5350
  %v5597 = vpop.f32.mrf.mxu0
  %v5598 = vadd.f32 %v5214, %v5597
  %5599 = vmatmul.f32.gmra.mxu0 %v5353
  %v5600 = vpop.f32.mrf.mxu0
  %v5601 = vadd.f32 %v5214, %v5600
  %5602 = vmatmul.f32.gmra.mxu0 %v5356
  %v5603 = vpop.f32.mrf.mxu0
  %v5604 = vadd.f32 %v5214, %v5603
  %5605 = vmatmul.f32.gmra.mxu0 %v5359
  %v5606 = vpop.f32.mrf.mxu0
  %v5607 = vadd.f32 %v5214, %v5606
  %5608 = vmatmul.f32.gmra.mxu0 %v5362
  %v5609 = vpop.f32.mrf.mxu0
  %v5610 = vadd.f32 %v5214, %v5609
  %5611 = vmatmul.f32.gmra.mxu0 %v5365
  %v5612 = vpop.f32.mrf.mxu0
  %v5613 = vadd.f32 %v5214, %v5612
  %5614 = vmatmul.f32.gmra.mxu0 %v5368
  %v5615 = vpop.f32.mrf.mxu0
  %v5616 = vadd.f32 %v5214, %v5615
  %5617 = vmatmul.f32.gmra.mxu0 %v5371
  %v5618 = vpop.f32.mrf.mxu0
  %v5619 = vadd.f32 %v5214, %v5618
  %5620 = vmatmul.f32.gmra.mxu0 %v5374
  %v5621 = vpop.f32.mrf.mxu0
  %v5622 = vadd.f32 %v5214, %v5621
  %5623 = vmatmul.f32.gmra.mxu0 %v5377
  %v5624 = vpop.f32.mrf.mxu0
  %v5625 = vadd.f32 %v5214, %v5624
  %5626 = vmatmul.f32.gmra.mxu0 %v5380
  %v5627 = vpop.f32.mrf.mxu0
  %v5628 = vadd.f32 %v5214, %v5627
  %5629 = vmatmul.f32.gmra.mxu0 %v5383
  %v5630 = vpop.f32.mrf.mxu0
  %v5631 = vadd.f32 %v5214, %v5630
  %5632 = vmatmul.f32.gmra.mxu0 %v5386
  %v5633 = vpop.f32.mrf.mxu0
  %v5634 = vadd.f32 %v5214, %v5633
  %5635 = vmatmul.f32.gmra.mxu0 %v5389
  %v5636 = vpop.f32.mrf.mxu0
  %v5637 = vadd.f32 %v5214, %v5636
  %5638 = vmatmul.f32.gmra.mxu0 %v5392
  %v5639 = vpop.f32.mrf.mxu0
  %v5640 = vadd.f32 %v5214, %v5639
  %5641 = vmatmul.f32.gmra.mxu0 %v5395
  %v5642 = vpop.f32.mrf.mxu0
  %v5643 = vadd.f32 %v5214, %v5642
  %5644 = vmatmul.f32.gmra.mxu0 %v5398
  %v5645 = vpop.f32.mrf.mxu0
  %v5646 = vadd.f32 %v5214, %v5645
  %5647 = vmatmul.f32.gmra.mxu0 %v5401
  %v5648 = vpop.f32.mrf.mxu0
  %v5649 = vadd.f32 %v5214, %v5648
  %5650 = vmatmul.f32.gmra.mxu0 %v5404
  %v5651 = vpop.f32.mrf.mxu0
  %v5652 = vadd.f32 %v5214, %v5651
  %5653 = vmatmul.f32.gmra.mxu0 %v5407
  %v5654 = vpop.f32.mrf.mxu0
  %v5655 = vadd.f32 %v5214, %v5654
  %5656 = vmatmul.f32.gmra.mxu0 %v5410
  %v5657 = vpop.f32.mrf.mxu0
  %v5658 = vadd.f32 %v5214, %v5657
  %5659 = vmatmul.f32.gmra.mxu0 %v5413
  %v5660 = vpop.f32.mrf.mxu0
  %v5661 = vadd.f32 %v5214, %v5660
  %5662 = vmatmul.f32.gmra.mxu0 %v5416
  %v5663 = vpop.f32.mrf.mxu0
  %v5664 = vadd.f32 %v5214, %v5663
  %5665 = vmatmul.f32.gmra.mxu0 %v5419
  %v5666 = vpop.f32.mrf.mxu0
  %v5667 = vadd.f32 %v5214, %v5666
  %5668 = vmatmul.f32.gmra.mxu0 %v5422
  %v5669 = vpop.f32.mrf.mxu0
  %v5670 = vadd.f32 %v5214, %v5669
  %5671 = vmatmul.f32.gmra.mxu0 %v5425
  %v5672 = vpop.f32.mrf.mxu0
  %v5673 = vadd.f32 %v5214, %v5672
  %5674 = vmatmul.f32.gmra.mxu0 %v5428
  %v5675 = vpop.f32.mrf.mxu0
  %v5676 = vadd.f32 %v5214, %v5675
  %5677 = vmatmul.f32.gmra.mxu0 %v5431
  %v5678 = vpop.f32.mrf.mxu0
  %v5679 = vadd.f32 %v5214, %v5678
  %5680 = vmatmul.f32.gmra.mxu0 %v5434
  %v5681 = vpop.f32.mrf.mxu0
  %v5682 = vadd.f32 %v5214, %v5681
  %5683 = vmatmul.f32.gmra.mxu0 %v5437
  %v5684 = vpop.f32.mrf.mxu0
  %v5685 = vadd.f32 %v5214, %v5684
  %5686 = vmatmul.f32.gmra.mxu0 %v5440
  %v5687 = vpop.f32.mrf.mxu0
  %v5688 = vadd.f32 %v5214, %v5687
  %5689 = vmatmul.f32.gmra.mxu0 %v5443
  %v5690 = vpop.f32.mrf.mxu0
  %v5691 = vadd.f32 %v5214, %v5690
  %5692 = vmatmul.f32.gmra.mxu0 %v5446
  %v5693 = vpop.f32.mrf.mxu0
  %v5694 = vadd.f32 %v5214, %v5693
  %5695 = vdwg.mxu0
  %v5696 = vmax.f32 %v5466, 0.0
  %v5697 = vmax.f32 %v5469, 0.0
  %v5698 = vmax.f32 %v5472, 0.0
  %v5699 = vmax.f32 %v5475, 0.0
  %v5700 = vmax.f32 %v5478, 0.0
  %v5701 = vmax.f32 %v5481, 0.0
  %v5702 = vmax.f32 %v5484, 0.0
  %v5703 = vmax.f32 %v5487, 0.0
  %v5704 = vmax.f32 %v5490, 0.0
  %v5705 = vmax.f32 %v5493, 0.0
  %v5706 = vmax.f32 %v5496, 0.0
  %v5707 = vmax.f32 %v5499, 0.0
  %v5708 = vmax.f32 %v5502, 0.0
  %v5709 = vmax.f32 %v5505, 0.0
  %v5710 = vmax.f32 %v5508, 0.0
  %v5711 = vmax.f32 %v5511, 0.0
  %v5712 = vmax.f32 %v5514, 0.0
  %v5713 = vmax.f32 %v5517, 0.0
  %v5714 = vmax.f32 %v5520, 0.0
  %v5715 = vmax.f32 %v5523, 0.0
  %v5716 = vmax.f32 %v5526, 0.0
  %v5717 = vmax.f32 %v5529, 0.0
  %v5718 = vmax.f32 %v5532, 0.0
  %v5719 = vmax.f32 %v5535, 0.0
  %v5720 = vmax.f32 %v5538, 0.0
  %v5721 = vmax.f32 %v5541, 0.0
  %v5722 = vmax.f32 %v5544, 0.0
  %v5723 = vmax.f32 %v5547, 0.0
  %v5724 = vmax.f32 %v5550, 0.0
  %v5725 = vmax.f32 %v5553, 0.0
  %v5726 = vmax.f32 %v5556, 0.0
  %v5727 = vmax.f32 %v5559, 0.0
  %v5728 = vmax.f32 %v5562, 0.0
  %v5729 = vmax.f32 %v5565, 0.0
  %v5730 = vmax.f32 %v5568, 0.0
  %v5731 = vmax.f32 %v5571, 0.0
  %v5732 = vmax.f32 %v5574, 0.0
  %v5733 = vmax.f32 %v5577, 0.0
  %v5734 = vmax.f32 %v5580, 0.0
  %v5735 = vmax.f32 %v5583, 0.0
  %v5736 = vmax.f32 %v5586, 0.0
  %v5737 = vmax.f32 %v5589, 0.0
  %v5738 = vmax.f32 %v5592, 0.0
  %v5739 = vmax.f32 %v5595, 0.0
  %v5740 = vmax.f32 %v5598, 0.0
  %v5741 = vmax.f32 %v5601, 0.0
  %v5742 = vmax.f32 %v5604, 0.0
  %v5743 = vmax.f32 %v5607, 0.0
  %v5744 = vmax.f32 %v5610, 0.0
  %v5745 = vmax.f32 %v5613, 0.0
  %v5746 = vmax.f32 %v5616, 0.0
  %v5747 = vmax.f32 %v5619, 0.0
  %v5748 = vmax.f32 %v5622, 0.0
  %v5749 = vmax.f32 %v5625, 0.0
  %v5750 = vmax.f32 %v5628, 0.0
  %v5751 = vmax.f32 %v5631, 0.0
  %v5752 = vmax.f32 %v5634, 0.0
  %v5753 = vmax.f32 %v5637, 0.0
  %v5754 = vmax.f32 %v5640, 0.0
  %v5755 = vmax.f32 %v5643, 0.0
  %v5756 = vmax.f32 %v5646, 0.0
  %v5757 = vmax.f32 %v5649, 0.0
  %v5758 = vmax.f32 %v5652, 0.0
  %v5759 = vmax.f32 %v5655, 0.0
  %v5760 = vmax.f32 %v5658, 0.0
  %v5761 = vmax.f32 %v5661, 0.0
  %v5762 = vmax.f32 %v5664, 0.0
  %v5763 = vmax.f32 %v5667, 0.0
  %v5764 = vmax.f32 %v5670, 0.0
  %v5765 = vmax.f32 %v5673, 0.0
  %v5766 = vmax.f32 %v5676, 0.0
  %v5767 = vmax.f32 %v5679, 0.0
  %v5768 = vmax.f32 %v5682, 0.0
  %v5769 = vmax.f32 %v5685, 0.0
  %v5770 = vmax.f32 %v5688, 0.0
  %v5771 = vmax.f32 %v5691, 0.0
  %v5772 = vmax.f32 %v5694, 0.0
  %v5773 = vmul.f32 %v5696, %v5135
  %v5774 = vmul.f32 %v5697, %v5136
  %v5775 = vmul.f32 %v5698, %v5137
  %v5776 = vmul.f32 %v5699, %v5138
  %v5777 = vmul.f32 %v5700, %v5139
  %v5778 = vmul.f32 %v5701, %v5140
  %v5779 = vmul.f32 %v5702, %v5141
  %v5780 = vmul.f32 %v5703, %v5142
  %v5781 = vmul.f32 %v5704, %v5143
  %v5782 = vmul.f32 %v5705, %v5144
  %v5783 = vmul.f32 %v5706, %v5145
  %v5784 = vmul.f32 %v5707, %v5146
  %v5785 = vmul.f32 %v5708, %v5147
  %v5786 = vmul.f32 %v5709, %v5148
  %v5787 = vmul.f32 %v5710, %v5149
  %v5788 = vmul.f32 %v5711, %v5150
  %v5789 = vmul.f32 %v5712, %v5151
  %v5790 = vmul.f32 %v5713, %v5152
  %v5791 = vmul.f32 %v5714, %v5153
  %v5792 = vmul.f32 %v5715, %v5154
  %v5793 = vmul.f32 %v5716, %v5155
  %v5794 = vmul.f32 %v5717, %v5156
  %v5795 = vmul.f32 %v5718, %v5157
  %v5796 = vmul.f32 %v5719, %v5158
  %v5797 = vmul.f32 %v5720, %v5159
  %v5798 = vmul.f32 %v5721, %v5160
  %v5799 = vmul.f32 %v5722, %v5161
  %v5800 = vmul.f32 %v5723, %v5162
  %v5801 = vmul.f32 %v5724, %v5163
  %v5802 = vmul.f32 %v5725, %v5164
  %v5803 = vmul.f32 %v5726, %v5165
  %v5804 = vmul.f32 %v5727, %v5166
  %v5805 = vmul.f32 %v5728, %v5167
  %v5806 = vmul.f32 %v5729, %v5168
  %v5807 = vmul.f32 %v5730, %v5169
  %v5808 = vmul.f32 %v5731, %v5170
  %v5809 = vmul.f32 %v5732, %v5171
  %v5810 = vmul.f32 %v5733, %v5172
  %v5811 = vmul.f32 %v5734, %v5173
  %v5812 = vmul.f32 %v5735, %v5174
  %v5813 = vmul.f32 %v5736, %v5175
  %v5814 = vmul.f32 %v5737, %v5176
  %v5815 = vmul.f32 %v5738, %v5177
  %v5816 = vmul.f32 %v5739, %v5178
  %v5817 = vmul.f32 %v5740, %v5179
  %v5818 = vmul.f32 %v5741, %v5180
  %v5819 = vmul.f32 %v5742, %v5181
  %v5820 = vmul.f32 %v5743, %v5182
  %v5821 = vmul.f32 %v5744, %v5183
  %v5822 = vmul.f32 %v5745, %v5184
  %v5823 = vmul.f32 %v5746, %v5185
  %v5824 = vmul.f32 %v5747, %v5186
  %v5825 = vmul.f32 %v5748, %v5187
  %v5826 = vmul.f32 %v5749, %v5188
  %v5827 = vmul.f32 %v5750, %v5189
  %v5828 = vmul.f32 %v5751, %v5190
  %v5829 = vmul.f32 %v5752, %v5191
  %v5830 = vmul.f32 %v5753, %v5192
  %v5831 = vmul.f32 %v5754, %v5193
  %v5832 = vmul.f32 %v5755, %v5194
  %v5833 = vmul.f32 %v5756, %v5195
  %v5834 = vmul.f32 %v5757, %v5196
  %v5835 = vmul.f32 %v5758, %v5197
  %v5836 = vmul.f32 %v5759, %v5198
  %v5837 = vmul.f32 %v5760, %v5199
  %v5838 = vmul.f32 %v5761, %v5200
  %v5839 = vmul.f32 %v5762, %v5201
  %v5840 = vmul.f32 %v5763, %v5202
  %v5841 = vmul.f32 %v5764, %v5203
  %v5842 = vmul.f32 %v5765, %v5204
  %v5843 = vmul.f32 %v5766, %v5205
  %v5844 = vmul.f32 %v5767, %v5206
  %v5845 = vmul.f32 %v5768, %v5207
  %v5846 = vmul.f32 %v5769, %v5208
  %v5847 = vmul.f32 %v5770, %v5209
  %v5848 = vmul.f32 %v5771, %v5210
  %v5849 = vmul.f32 %v5772, %v5211
  %5850 = vst.msk [vmem:[#allocation3] sm:$0xff] %vm97, 0.0
  %5851 = vst.msk [vmem:[#allocation3 + $0x8] sm:$0xff] %vm97, 0.0
  %vm5852 = vcmask 59392
  %5853 = vst.msk [vmem:[#allocation3 + $0x10] sm:$0x7] %vm5852, 0.0
  %5854 = vst.msk [vmem:[#allocation3 + $0x27b] sm:$0xff] %vm97, 0.0
  %5855 = vst.msk [vmem:[#allocation3 + $0x283] sm:$0xff] %vm97, 0.0
  %5856 = vst.msk [vmem:[#allocation3 + $0x28b] sm:$0x7] %vm5852, 0.0
  %5857 = vst.msk [vmem:[#allocation3 + $0x13] sm:$0xff] %vm97, %v5773
  %5858 = vst.msk [vmem:[#allocation3 + $0x1b] sm:$0xff] %vm97, %v5774
  %5859 = vst.msk [vmem:[#allocation3 + $0x23] sm:$0xff] %vm97, %v5775
  %5860 = vst.msk [vmem:[#allocation3 + $0x2b] sm:$0xff] %vm97, %v5776
  %5861 = vst.msk [vmem:[#allocation3 + $0x33] sm:$0xff] %vm97, %v5777
  %5862 = vst.msk [vmem:[#allocation3 + $0x3b] sm:$0xff] %vm97, %v5778
  %5863 = vst.msk [vmem:[#allocation3 + $0x43] sm:$0xff] %vm97, %v5779
  %5864 = vst.msk [vmem:[#allocation3 + $0x4b] sm:$0xff] %vm97, %v5780
  %5865 = vst.msk [vmem:[#allocation3 + $0x53] sm:$0xff] %vm97, %v5781
  %5866 = vst.msk [vmem:[#allocation3 + $0x5b] sm:$0xff] %vm97, %v5782
  %5867 = vst.msk [vmem:[#allocation3 + $0x63] sm:$0xff] %vm97, %v5783
  %5868 = vst.msk [vmem:[#allocation3 + $0x6b] sm:$0xff] %vm97, %v5784
  %5869 = vst.msk [vmem:[#allocation3 + $0x73] sm:$0xff] %vm97, %v5785
  %5870 = vst.msk [vmem:[#allocation3 + $0x7b] sm:$0xff] %vm97, %v5786
  %5871 = vst.msk [vmem:[#allocation3 + $0x83] sm:$0xff] %vm97, %v5787
  %5872 = vst.msk [vmem:[#allocation3 + $0x8b] sm:$0xff] %vm97, %v5788
  %5873 = vst.msk [vmem:[#allocation3 + $0x93] sm:$0xff] %vm97, %v5789
  %5874 = vst.msk [vmem:[#allocation3 + $0x9b] sm:$0xff] %vm97, %v5790
  %5875 = vst.msk [vmem:[#allocation3 + $0xa3] sm:$0xff] %vm97, %v5791
  %5876 = vst.msk [vmem:[#allocation3 + $0xab] sm:$0xff] %vm97, %v5792
  %5877 = vst.msk [vmem:[#allocation3 + $0xb3] sm:$0xff] %vm97, %v5793
  %5878 = vst.msk [vmem:[#allocation3 + $0xbb] sm:$0xff] %vm97, %v5794
  %5879 = vst.msk [vmem:[#allocation3 + $0xc3] sm:$0xff] %vm97, %v5795
  %5880 = vst.msk [vmem:[#allocation3 + $0xcb] sm:$0xff] %vm97, %v5796
  %5881 = vst.msk [vmem:[#allocation3 + $0xd3] sm:$0xff] %vm97, %v5797
  %5882 = vst.msk [vmem:[#allocation3 + $0xdb] sm:$0xff] %vm97, %v5798
  %5883 = vst.msk [vmem:[#allocation3 + $0xe3] sm:$0xff] %vm97, %v5799
  %5884 = vst.msk [vmem:[#allocation3 + $0xeb] sm:$0xff] %vm97, %v5800
  %5885 = vst.msk [vmem:[#allocation3 + $0xf3] sm:$0xff] %vm97, %v5801
  %5886 = vst.msk [vmem:[#allocation3 + $0xfb] sm:$0xff] %vm97, %v5802
  %5887 = vst.msk [vmem:[#allocation3 + $0x103] sm:$0xff] %vm97, %v5803
  %5888 = vst.msk [vmem:[#allocation3 + $0x10b] sm:$0xff] %vm97, %v5804
  %5889 = vst.msk [vmem:[#allocation3 + $0x113] sm:$0xff] %vm97, %v5805
  %5890 = vst.msk [vmem:[#allocation3 + $0x11b] sm:$0xff] %vm97, %v5806
  %5891 = vst.msk [vmem:[#allocation3 + $0x123] sm:$0xff] %vm97, %v5807
  %5892 = vst.msk [vmem:[#allocation3 + $0x12b] sm:$0xff] %vm97, %v5808
  %5893 = vst.msk [vmem:[#allocation3 + $0x133] sm:$0xff] %vm97, %v5809
  %5894 = vst.msk [vmem:[#allocation3 + $0x13b] sm:$0xff] %vm97, %v5810
  %5895 = vst.msk [vmem:[#allocation3 + $0x143] sm:$0xff] %vm97, %v5811
  %5896 = vst.msk [vmem:[#allocation3 + $0x14b] sm:$0xff] %vm97, %v5812
  %5897 = vst.msk [vmem:[#allocation3 + $0x153] sm:$0xff] %vm97, %v5813
  %5898 = vst.msk [vmem:[#allocation3 + $0x15b] sm:$0xff] %vm97, %v5814
  %5899 = vst.msk [vmem:[#allocation3 + $0x163] sm:$0xff] %vm97, %v5815
  %5900 = vst.msk [vmem:[#allocation3 + $0x16b] sm:$0xff] %vm97, %v5816
  %5901 = vst.msk [vmem:[#allocation3 + $0x173] sm:$0xff] %vm97, %v5817
  %5902 = vst.msk [vmem:[#allocation3 + $0x17b] sm:$0xff] %vm97, %v5818
  %5903 = vst.msk [vmem:[#allocation3 + $0x183] sm:$0xff] %vm97, %v5819
  %5904 = vst.msk [vmem:[#allocation3 + $0x18b] sm:$0xff] %vm97, %v5820
  %5905 = vst.msk [vmem:[#allocation3 + $0x193] sm:$0xff] %vm97, %v5821
  %5906 = vst.msk [vmem:[#allocation3 + $0x19b] sm:$0xff] %vm97, %v5822
  %5907 = vst.msk [vmem:[#allocation3 + $0x1a3] sm:$0xff] %vm97, %v5823
  %5908 = vst.msk [vmem:[#allocation3 + $0x1ab] sm:$0xff] %vm97, %v5824
  %5909 = vst.msk [vmem:[#allocation3 + $0x1b3] sm:$0xff] %vm97, %v5825
  %5910 = vst.msk [vmem:[#allocation3 + $0x1bb] sm:$0xff] %vm97, %v5826
  %5911 = vst.msk [vmem:[#allocation3 + $0x1c3] sm:$0xff] %vm97, %v5827
  %5912 = vst.msk [vmem:[#allocation3 + $0x1cb] sm:$0xff] %vm97, %v5828
  %5913 = vst.msk [vmem:[#allocation3 + $0x1d3] sm:$0xff] %vm97, %v5829
  %5914 = vst.msk [vmem:[#allocation3 + $0x1db] sm:$0xff] %vm97, %v5830
  %5915 = vst.msk [vmem:[#allocation3 + $0x1e3] sm:$0xff] %vm97, %v5831
  %5916 = vst.msk [vmem:[#allocation3 + $0x1eb] sm:$0xff] %vm97, %v5832
  %5917 = vst.msk [vmem:[#allocation3 + $0x1f3] sm:$0xff] %vm97, %v5833
  %5918 = vst.msk [vmem:[#allocation3 + $0x1fb] sm:$0xff] %vm97, %v5834
  %5919 = vst.msk [vmem:[#allocation3 + $0x203] sm:$0xff] %vm97, %v5835
  %5920 = vst.msk [vmem:[#allocation3 + $0x20b] sm:$0xff] %vm97, %v5836
  %5921 = vst.msk [vmem:[#allocation3 + $0x213] sm:$0xff] %vm97, %v5837
  %5922 = vst.msk [vmem:[#allocation3 + $0x21b] sm:$0xff] %vm97, %v5838
  %5923 = vst.msk [vmem:[#allocation3 + $0x223] sm:$0xff] %vm97, %v5839
  %5924 = vst.msk [vmem:[#allocation3 + $0x22b] sm:$0xff] %vm97, %v5840
  %5925 = vst.msk [vmem:[#allocation3 + $0x233] sm:$0xff] %vm97, %v5841
  %5926 = vst.msk [vmem:[#allocation3 + $0x23b] sm:$0xff] %vm97, %v5842
  %5927 = vst.msk [vmem:[#allocation3 + $0x243] sm:$0xff] %vm97, %v5843
  %5928 = vst.msk [vmem:[#allocation3 + $0x24b] sm:$0xff] %vm97, %v5844
  %5929 = vst.msk [vmem:[#allocation3 + $0x253] sm:$0xff] %vm97, %v5845
  %5930 = vst.msk [vmem:[#allocation3 + $0x25b] sm:$0xff] %vm97, %v5846
  %5931 = vst.msk [vmem:[#allocation3 + $0x263] sm:$0xff] %vm97, %v5847
  %5932 = vst.msk [vmem:[#allocation3 + $0x26b] sm:$0xff] %vm97, %v5848
  %5933 = vst.msk [vmem:[#allocation3 + $0x273] sm:$0xff] %vm97, %v5849
  %v5934 = vld [vmem:[#allocation3] sm:$0xff]
  %v5935 = vld [vmem:[#allocation3 + $0x8] sm:$0xff]
  %v5936 = vld [vmem:[#allocation3 + $0x10] sm:$0xff]
  %v5937 = vld [vmem:[#allocation3 + $0x18] sm:$0xff]
  %v5938 = vld [vmem:[#allocation3 + $0x20] sm:$0xff]
  %v5939 = vld [vmem:[#allocation3 + $0x28] sm:$0xff]
  %v5940 = vld [vmem:[#allocation3 + $0x30] sm:$0xff]
  %v5941 = vld [vmem:[#allocation3 + $0x38] sm:$0xff]
  %v5942 = vld [vmem:[#allocation3 + $0x40] sm:$0xff]
  %v5943 = vld [vmem:[#allocation3 + $0x48] sm:$0xff]
  %v5944 = vld [vmem:[#allocation3 + $0x50] sm:$0xff]
  %v5945 = vld [vmem:[#allocation3 + $0x58] sm:$0xff]
  %v5946 = vld [vmem:[#allocation3 + $0x60] sm:$0xff]
  %v5947 = vld [vmem:[#allocation3 + $0x68] sm:$0xff]
  %v5948 = vld [vmem:[#allocation3 + $0x70] sm:$0xff]
  %v5949 = vld [vmem:[#allocation3 + $0x78] sm:$0xff]
  %v5950 = vld [vmem:[#allocation3 + $0x80] sm:$0xff]
  %v5951 = vld [vmem:[#allocation3 + $0x88] sm:$0xff]
  %v5952 = vld [vmem:[#allocation3 + $0x90] sm:$0xff]
  %v5953 = vld [vmem:[#allocation3 + $0x98] sm:$0xff]
  %v5954 = vld [vmem:[#allocation3 + $0xa0] sm:$0xff]
  %v5955 = vld [vmem:[#allocation3 + $0xa8] sm:$0xff]
  %v5956 = vld [vmem:[#allocation3 + $0xb0] sm:$0xff]
  %v5957 = vld [vmem:[#allocation3 + $0xb8] sm:$0xff]
  %v5958 = vld [vmem:[#allocation3 + $0xc0] sm:$0xff]
  %v5959 = vld [vmem:[#allocation3 + $0xc8] sm:$0xff]
  %v5960 = vld [vmem:[#allocation3 + $0xd0] sm:$0xff]
  %v5961 = vld [vmem:[#allocation3 + $0xd8] sm:$0xff]
  %v5962 = vld [vmem:[#allocation3 + $0xe0] sm:$0xff]
  %v5963 = vld [vmem:[#allocation3 + $0xe8] sm:$0xff]
  %v5964 = vld [vmem:[#allocation3 + $0xf0] sm:$0xff]
  %v5965 = vld [vmem:[#allocation3 + $0xf8] sm:$0xff]
  %v5966 = vld [vmem:[#allocation3 + $0x100] sm:$0xff]
  %v5967 = vld [vmem:[#allocation3 + $0x108] sm:$0xff]
  %v5968 = vld [vmem:[#allocation3 + $0x110] sm:$0xff]
  %v5969 = vld [vmem:[#allocation3 + $0x118] sm:$0xff]
  %v5970 = vld [vmem:[#allocation3 + $0x120] sm:$0xff]
  %v5971 = vld [vmem:[#allocation3 + $0x128] sm:$0xff]
  %v5972 = vld [vmem:[#allocation3 + $0x130] sm:$0xff]
  %v5973 = vld [vmem:[#allocation3 + $0x138] sm:$0xff]
  %v5974 = vld [vmem:[#allocation3 + $0x140] sm:$0xff]
  %v5975 = vld [vmem:[#allocation3 + $0x148] sm:$0xff]
  %v5976 = vld [vmem:[#allocation3 + $0x150] sm:$0xff]
  %v5977 = vld [vmem:[#allocation3 + $0x158] sm:$0xff]
  %v5978 = vld [vmem:[#allocation3 + $0x160] sm:$0xff]
  %v5979 = vld [vmem:[#allocation3 + $0x168] sm:$0xff]
  %v5980 = vld [vmem:[#allocation3 + $0x170] sm:$0xff]
  %v5981 = vld [vmem:[#allocation3 + $0x178] sm:$0xff]
  %v5982 = vld [vmem:[#allocation3 + $0x180] sm:$0xff]
  %v5983 = vld [vmem:[#allocation3 + $0x188] sm:$0xff]
  %v5984 = vld [vmem:[#allocation3 + $0x190] sm:$0xff]
  %v5985 = vld [vmem:[#allocation3 + $0x198] sm:$0xff]
  %v5986 = vld [vmem:[#allocation3 + $0x1a0] sm:$0xff]
  %v5987 = vld [vmem:[#allocation3 + $0x1a8] sm:$0xff]
  %v5988 = vld [vmem:[#allocation3 + $0x1b0] sm:$0xff]
  %v5989 = vld [vmem:[#allocation3 + $0x1b8] sm:$0xff]
  %v5990 = vld [vmem:[#allocation3 + $0x1c0] sm:$0xff]
  %v5991 = vld [vmem:[#allocation3 + $0x1c8] sm:$0xff]
  %v5992 = vld [vmem:[#allocation3 + $0x1d0] sm:$0xff]
  %v5993 = vld [vmem:[#allocation3 + $0x1d8] sm:$0xff]
  %v5994 = vld [vmem:[#allocation3 + $0x1e0] sm:$0xff]
  %v5995 = vld [vmem:[#allocation3 + $0x1e8] sm:$0xff]
  %v5996 = vld [vmem:[#allocation3 + $0x1f0] sm:$0xff]
  %v5997 = vld [vmem:[#allocation3 + $0x1f8] sm:$0xff]
  %v5998 = vld [vmem:[#allocation3 + $0x200] sm:$0xff]
  %v5999 = vld [vmem:[#allocation3 + $0x208] sm:$0xff]
  %v6000 = vld [vmem:[#allocation3 + $0x210] sm:$0xff]
  %v6001 = vld [vmem:[#allocation3 + $0x218] sm:$0xff]
  %v6002 = vld [vmem:[#allocation3 + $0x220] sm:$0xff]
  %v6003 = vld [vmem:[#allocation3 + $0x228] sm:$0xff]
  %v6004 = vld [vmem:[#allocation3 + $0x230] sm:$0xff]
  %v6005 = vld [vmem:[#allocation3 + $0x238] sm:$0xff]
  %v6006 = vld [vmem:[#allocation3 + $0x240] sm:$0xff]
  %v6007 = vld [vmem:[#allocation3 + $0x248] sm:$0xff]
  %v6008 = vld [vmem:[#allocation3 + $0x250] sm:$0xff]
  %v6009 = vld [vmem:[#allocation3 + $0x258] sm:$0xff]
  %v6010 = vld [vmem:[#allocation3 + $0x260] sm:$0xff]
  %6011 = vst.msk [vmem:[#allocation2] sm:$0xff] %vm97, %v5934
  %6012 = vst.msk [vmem:[#allocation2 + $0x8] sm:$0xff] %vm97, %v5935
  %6013 = vst.msk [vmem:[#allocation2 + $0x10] sm:$0xff] %vm97, %v5936
  %6014 = vst.msk [vmem:[#allocation2 + $0x18] sm:$0xff] %vm97, %v5937
  %6015 = vst.msk [vmem:[#allocation2 + $0x20] sm:$0xff] %vm97, %v5938
  %6016 = vst.msk [vmem:[#allocation2 + $0x28] sm:$0xff] %vm97, %v5939
  %6017 = vst.msk [vmem:[#allocation2 + $0x30] sm:$0xff] %vm97, %v5940
  %6018 = vst.msk [vmem:[#allocation2 + $0x38] sm:$0xff] %vm97, %v5941
  %6019 = vst.msk [vmem:[#allocation2 + $0x40] sm:$0xff] %vm97, %v5942
  %6020 = vst.msk [vmem:[#allocation2 + $0x48] sm:$0xff] %vm97, %v5943
  %6021 = vst.msk [vmem:[#allocation2 + $0x50] sm:$0xff] %vm97, %v5944
  %6022 = vst.msk [vmem:[#allocation2 + $0x58] sm:$0xff] %vm97, %v5945
  %6023 = vst.msk [vmem:[#allocation2 + $0x60] sm:$0xff] %vm97, %v5946
  %6024 = vst.msk [vmem:[#allocation2 + $0x68] sm:$0xff] %vm97, %v5947
  %6025 = vst.msk [vmem:[#allocation2 + $0x70] sm:$0xff] %vm97, %v5948
  %6026 = vst.msk [vmem:[#allocation2 + $0x78] sm:$0xff] %vm97, %v5949
  %6027 = vst.msk [vmem:[#allocation2 + $0x80] sm:$0xff] %vm97, %v5950
  %6028 = vst.msk [vmem:[#allocation2 + $0x88] sm:$0xff] %vm97, %v5951
  %6029 = vst.msk [vmem:[#allocation2 + $0x90] sm:$0xff] %vm97, %v5952
  %6030 = vst.msk [vmem:[#allocation2 + $0x98] sm:$0xff] %vm97, %v5953
  %6031 = vst.msk [vmem:[#allocation2 + $0xa0] sm:$0xff] %vm97, %v5954
  %6032 = vst.msk [vmem:[#allocation2 + $0xa8] sm:$0xff] %vm97, %v5955
  %6033 = vst.msk [vmem:[#allocation2 + $0xb0] sm:$0xff] %vm97, %v5956
  %6034 = vst.msk [vmem:[#allocation2 + $0xb8] sm:$0xff] %vm97, %v5957
  %6035 = vst.msk [vmem:[#allocation2 + $0xc0] sm:$0xff] %vm97, %v5958
  %6036 = vst.msk [vmem:[#allocation2 + $0xc8] sm:$0xff] %vm97, %v5959
  %6037 = vst.msk [vmem:[#allocation2 + $0xd0] sm:$0xff] %vm97, %v5960
  %6038 = vst.msk [vmem:[#allocation2 + $0xd8] sm:$0xff] %vm97, %v5961
  %6039 = vst.msk [vmem:[#allocation2 + $0xe0] sm:$0xff] %vm97, %v5962
  %6040 = vst.msk [vmem:[#allocation2 + $0xe8] sm:$0xff] %vm97, %v5963
  %6041 = vst.msk [vmem:[#allocation2 + $0xf0] sm:$0xff] %vm97, %v5964
  %6042 = vst.msk [vmem:[#allocation2 + $0xf8] sm:$0xff] %vm97, %v5965
  %6043 = vst.msk [vmem:[#allocation2 + $0x100] sm:$0xff] %vm97, %v5966
  %6044 = vst.msk [vmem:[#allocation2 + $0x108] sm:$0xff] %vm97, %v5967
  %6045 = vst.msk [vmem:[#allocation2 + $0x110] sm:$0xff] %vm97, %v5968
  %6046 = vst.msk [vmem:[#allocation2 + $0x118] sm:$0xff] %vm97, %v5969
  %6047 = vst.msk [vmem:[#allocation2 + $0x120] sm:$0xff] %vm97, %v5970
  %6048 = vst.msk [vmem:[#allocation2 + $0x128] sm:$0xff] %vm97, %v5971
  %6049 = vst.msk [vmem:[#allocation2 + $0x130] sm:$0xff] %vm97, %v5972
  %6050 = vst.msk [vmem:[#allocation2 + $0x138] sm:$0xff] %vm97, %v5973
  %6051 = vst.msk [vmem:[#allocation2 + $0x140] sm:$0xff] %vm97, %v5974
  %6052 = vst.msk [vmem:[#allocation2 + $0x148] sm:$0xff] %vm97, %v5975
  %6053 = vst.msk [vmem:[#allocation2 + $0x150] sm:$0xff] %vm97, %v5976
  %6054 = vst.msk [vmem:[#allocation2 + $0x158] sm:$0xff] %vm97, %v5977
  %6055 = vst.msk [vmem:[#allocation2 + $0x160] sm:$0xff] %vm97, %v5978
  %6056 = vst.msk [vmem:[#allocation2 + $0x168] sm:$0xff] %vm97, %v5979
  %6057 = vst.msk [vmem:[#allocation2 + $0x170] sm:$0xff] %vm97, %v5980
  %6058 = vst.msk [vmem:[#allocation2 + $0x178] sm:$0xff] %vm97, %v5981
  %6059 = vst.msk [vmem:[#allocation2 + $0x180] sm:$0xff] %vm97, %v5982
  %6060 = vst.msk [vmem:[#allocation2 + $0x188] sm:$0xff] %vm97, %v5983
  %6061 = vst.msk [vmem:[#allocation2 + $0x190] sm:$0xff] %vm97, %v5984
  %6062 = vst.msk [vmem:[#allocation2 + $0x198] sm:$0xff] %vm97, %v5985
  %6063 = vst.msk [vmem:[#allocation2 + $0x1a0] sm:$0xff] %vm97, %v5986
  %6064 = vst.msk [vmem:[#allocation2 + $0x1a8] sm:$0xff] %vm97, %v5987
  %6065 = vst.msk [vmem:[#allocation2 + $0x1b0] sm:$0xff] %vm97, %v5988
  %6066 = vst.msk [vmem:[#allocation2 + $0x1b8] sm:$0xff] %vm97, %v5989
  %6067 = vst.msk [vmem:[#allocation2 + $0x1c0] sm:$0xff] %vm97, %v5990
  %6068 = vst.msk [vmem:[#allocation2 + $0x1c8] sm:$0xff] %vm97, %v5991
  %6069 = vst.msk [vmem:[#allocation2 + $0x1d0] sm:$0xff] %vm97, %v5992
  %6070 = vst.msk [vmem:[#allocation2 + $0x1d8] sm:$0xff] %vm97, %v5993
  %6071 = vst.msk [vmem:[#allocation2 + $0x1e0] sm:$0xff] %vm97, %v5994
  %6072 = vst.msk [vmem:[#allocation2 + $0x1e8] sm:$0xff] %vm97, %v5995
  %6073 = vst.msk [vmem:[#allocation2 + $0x1f0] sm:$0xff] %vm97, %v5996
  %6074 = vst.msk [vmem:[#allocation2 + $0x1f8] sm:$0xff] %vm97, %v5997
  %6075 = vst.msk [vmem:[#allocation2 + $0x200] sm:$0xff] %vm97, %v5998
  %6076 = vst.msk [vmem:[#allocation2 + $0x208] sm:$0xff] %vm97, %v5999
  %6077 = vst.msk [vmem:[#allocation2 + $0x210] sm:$0xff] %vm97, %v6000
  %6078 = vst.msk [vmem:[#allocation2 + $0x218] sm:$0xff] %vm97, %v6001
  %6079 = vst.msk [vmem:[#allocation2 + $0x220] sm:$0xff] %vm97, %v6002
  %6080 = vst.msk [vmem:[#allocation2 + $0x228] sm:$0xff] %vm97, %v6003
  %6081 = vst.msk [vmem:[#allocation2 + $0x230] sm:$0xff] %vm97, %v6004
  %6082 = vst.msk [vmem:[#allocation2 + $0x238] sm:$0xff] %vm97, %v6005
  %6083 = vst.msk [vmem:[#allocation2 + $0x240] sm:$0xff] %vm97, %v6006
  %6084 = vst.msk [vmem:[#allocation2 + $0x248] sm:$0xff] %vm97, %v6007
  %6085 = vst.msk [vmem:[#allocation2 + $0x250] sm:$0xff] %vm97, %v6008
  %6086 = vst.msk [vmem:[#allocation2 + $0x258] sm:$0xff] %vm97, %v6009
  %6087 = vst.msk [vmem:[#allocation2 + $0x260] sm:$0xff] %vm97, %v6010
  %v6088 = vld [vmem:[#allocation3 + $0x1] sm:$0xff]
  %v6089 = vld [vmem:[#allocation3 + $0x9] sm:$0xff]
  %v6090 = vld [vmem:[#allocation3 + $0x11] sm:$0xff]
  %v6091 = vld [vmem:[#allocation3 + $0x19] sm:$0xff]
  %v6092 = vld [vmem:[#allocation3 + $0x21] sm:$0xff]
  %v6093 = vld [vmem:[#allocation3 + $0x29] sm:$0xff]
  %v6094 = vld [vmem:[#allocation3 + $0x31] sm:$0xff]
  %v6095 = vld [vmem:[#allocation3 + $0x39] sm:$0xff]
  %v6096 = vld [vmem:[#allocation3 + $0x41] sm:$0xff]
  %v6097 = vld [vmem:[#allocation3 + $0x49] sm:$0xff]
  %v6098 = vld [vmem:[#allocation3 + $0x51] sm:$0xff]
  %v6099 = vld [vmem:[#allocation3 + $0x59] sm:$0xff]
  %v6100 = vld [vmem:[#allocation3 + $0x61] sm:$0xff]
  %v6101 = vld [vmem:[#allocation3 + $0x69] sm:$0xff]
  %v6102 = vld [vmem:[#allocation3 + $0x71] sm:$0xff]
  %v6103 = vld [vmem:[#allocation3 + $0x79] sm:$0xff]
  %v6104 = vld [vmem:[#allocation3 + $0x81] sm:$0xff]
  %v6105 = vld [vmem:[#allocation3 + $0x89] sm:$0xff]
  %v6106 = vld [vmem:[#allocation3 + $0x91] sm:$0xff]
  %v6107 = vld [vmem:[#allocation3 + $0x99] sm:$0xff]
  %v6108 = vld [vmem:[#allocation3 + $0xa1] sm:$0xff]
  %v6109 = vld [vmem:[#allocation3 + $0xa9] sm:$0xff]
  %v6110 = vld [vmem:[#allocation3 + $0xb1] sm:$0xff]
  %v6111 = vld [vmem:[#allocation3 + $0xb9] sm:$0xff]
  %v6112 = vld [vmem:[#allocation3 + $0xc1] sm:$0xff]
  %v6113 = vld [vmem:[#allocation3 + $0xc9] sm:$0xff]
  %v6114 = vld [vmem:[#allocation3 + $0xd1] sm:$0xff]
  %v6115 = vld [vmem:[#allocation3 + $0xd9] sm:$0xff]
  %v6116 = vld [vmem:[#allocation3 + $0xe1] sm:$0xff]
  %v6117 = vld [vmem:[#allocation3 + $0xe9] sm:$0xff]
  %v6118 = vld [vmem:[#allocation3 + $0xf1] sm:$0xff]
  %v6119 = vld [vmem:[#allocation3 + $0xf9] sm:$0xff]
  %v6120 = vld [vmem:[#allocation3 + $0x101] sm:$0xff]
  %v6121 = vld [vmem:[#allocation3 + $0x109] sm:$0xff]
  %v6122 = vld [vmem:[#allocation3 + $0x111] sm:$0xff]
  %v6123 = vld [vmem:[#allocation3 + $0x119] sm:$0xff]
  %v6124 = vld [vmem:[#allocation3 + $0x121] sm:$0xff]
  %v6125 = vld [vmem:[#allocation3 + $0x129] sm:$0xff]
  %v6126 = vld [vmem:[#allocation3 + $0x131] sm:$0xff]
  %v6127 = vld [vmem:[#allocation3 + $0x139] sm:$0xff]
  %v6128 = vld [vmem:[#allocation3 + $0x141] sm:$0xff]
  %v6129 = vld [vmem:[#allocation3 + $0x149] sm:$0xff]
  %v6130 = vld [vmem:[#allocation3 + $0x151] sm:$0xff]
  %v6131 = vld [vmem:[#allocation3 + $0x159] sm:$0xff]
  %v6132 = vld [vmem:[#allocation3 + $0x161] sm:$0xff]
  %v6133 = vld [vmem:[#allocation3 + $0x169] sm:$0xff]
  %v6134 = vld [vmem:[#allocation3 + $0x171] sm:$0xff]
  %v6135 = vld [vmem:[#allocation3 + $0x179] sm:$0xff]
  %v6136 = vld [vmem:[#allocation3 + $0x181] sm:$0xff]
  %v6137 = vld [vmem:[#allocation3 + $0x189] sm:$0xff]
  %v6138 = vld [vmem:[#allocation3 + $0x191] sm:$0xff]
  %v6139 = vld [vmem:[#allocation3 + $0x199] sm:$0xff]
  %v6140 = vld [vmem:[#allocation3 + $0x1a1] sm:$0xff]
  %v6141 = vld [vmem:[#allocation3 + $0x1a9] sm:$0xff]
  %v6142 = vld [vmem:[#allocation3 + $0x1b1] sm:$0xff]
  %v6143 = vld [vmem:[#allocation3 + $0x1b9] sm:$0xff]
  %v6144 = vld [vmem:[#allocation3 + $0x1c1] sm:$0xff]
  %v6145 = vld [vmem:[#allocation3 + $0x1c9] sm:$0xff]
  %v6146 = vld [vmem:[#allocation3 + $0x1d1] sm:$0xff]
  %v6147 = vld [vmem:[#allocation3 + $0x1d9] sm:$0xff]
  %v6148 = vld [vmem:[#allocation3 + $0x1e1] sm:$0xff]
  %v6149 = vld [vmem:[#allocation3 + $0x1e9] sm:$0xff]
  %v6150 = vld [vmem:[#allocation3 + $0x1f1] sm:$0xff]
  %v6151 = vld [vmem:[#allocation3 + $0x1f9] sm:$0xff]
  %v6152 = vld [vmem:[#allocation3 + $0x201] sm:$0xff]
  %v6153 = vld [vmem:[#allocation3 + $0x209] sm:$0xff]
  %v6154 = vld [vmem:[#allocation3 + $0x211] sm:$0xff]
  %v6155 = vld [vmem:[#allocation3 + $0x219] sm:$0xff]
  %v6156 = vld [vmem:[#allocation3 + $0x221] sm:$0xff]
  %v6157 = vld [vmem:[#allocation3 + $0x229] sm:$0xff]
  %v6158 = vld [vmem:[#allocation3 + $0x231] sm:$0xff]
  %v6159 = vld [vmem:[#allocation3 + $0x239] sm:$0xff]
  %v6160 = vld [vmem:[#allocation3 + $0x241] sm:$0xff]
  %v6161 = vld [vmem:[#allocation3 + $0x249] sm:$0xff]
  %v6162 = vld [vmem:[#allocation3 + $0x251] sm:$0xff]
  %v6163 = vld [vmem:[#allocation3 + $0x259] sm:$0xff]
  %v6164 = vld [vmem:[#allocation3 + $0x261] sm:$0xff]
  %6242 = vrot.lane.b32.xlu0 %v6088, 8
  %v6243 = vpop.permute.xlu0 %6242
  %6244 = vrot.lane.b32.xlu0 %v6089, 8
  %v6245 = vpop.permute.xlu0 %6244
  %6246 = vrot.lane.b32.xlu0 %v6090, 8
  %v6247 = vpop.permute.xlu0 %6246
  %6248 = vrot.lane.b32.xlu0 %v6091, 8
  %v6249 = vpop.permute.xlu0 %6248
  %6250 = vrot.lane.b32.xlu0 %v6092, 8
  %v6251 = vpop.permute.xlu0 %6250
  %6252 = vrot.lane.b32.xlu0 %v6093, 8
  %v6253 = vpop.permute.xlu0 %6252
  %6254 = vrot.lane.b32.xlu0 %v6094, 8
  %v6255 = vpop.permute.xlu0 %6254
  %6256 = vrot.lane.b32.xlu0 %v6095, 8
  %v6257 = vpop.permute.xlu0 %6256
  %6258 = vrot.lane.b32.xlu0 %v6096, 8
  %v6259 = vpop.permute.xlu0 %6258
  %6260 = vrot.lane.b32.xlu0 %v6097, 8
  %v6261 = vpop.permute.xlu0 %6260
  %6262 = vrot.lane.b32.xlu0 %v6098, 8
  %v6263 = vpop.permute.xlu0 %6262
  %6264 = vrot.lane.b32.xlu0 %v6099, 8
  %v6265 = vpop.permute.xlu0 %6264
  %6266 = vrot.lane.b32.xlu0 %v6100, 8
  %v6267 = vpop.permute.xlu0 %6266
  %6268 = vrot.lane.b32.xlu0 %v6101, 8
  %v6269 = vpop.permute.xlu0 %6268
  %6270 = vrot.lane.b32.xlu0 %v6102, 8
  %v6271 = vpop.permute.xlu0 %6270
  %6272 = vrot.lane.b32.xlu0 %v6103, 8
  %v6273 = vpop.permute.xlu0 %6272
  %6274 = vrot.lane.b32.xlu0 %v6104, 8
  %v6275 = vpop.permute.xlu0 %6274
  %6276 = vrot.lane.b32.xlu0 %v6105, 8
  %v6277 = vpop.permute.xlu0 %6276
  %6278 = vrot.lane.b32.xlu0 %v6106, 8
  %v6279 = vpop.permute.xlu0 %6278
  %6280 = vrot.lane.b32.xlu0 %v6107, 8
  %v6281 = vpop.permute.xlu0 %6280
  %6282 = vrot.lane.b32.xlu0 %v6108, 8
  %v6283 = vpop.permute.xlu0 %6282
  %6284 = vrot.lane.b32.xlu0 %v6109, 8
  %v6285 = vpop.permute.xlu0 %6284
  %6286 = vrot.lane.b32.xlu0 %v6110, 8
  %v6287 = vpop.permute.xlu0 %6286
  %6288 = vrot.lane.b32.xlu0 %v6111, 8
  %v6289 = vpop.permute.xlu0 %6288
  %6290 = vrot.lane.b32.xlu0 %v6112, 8
  %v6291 = vpop.permute.xlu0 %6290
  %6292 = vrot.lane.b32.xlu0 %v6113, 8
  %v6293 = vpop.permute.xlu0 %6292
  %6294 = vrot.lane.b32.xlu0 %v6114, 8
  %v6295 = vpop.permute.xlu0 %6294
  %6296 = vrot.lane.b32.xlu0 %v6115, 8
  %v6297 = vpop.permute.xlu0 %6296
  %6298 = vrot.lane.b32.xlu0 %v6116, 8
  %v6299 = vpop.permute.xlu0 %6298
  %6300 = vrot.lane.b32.xlu0 %v6117, 8
  %v6301 = vpop.permute.xlu0 %6300
  %6302 = vrot.lane.b32.xlu0 %v6118, 8
  %v6303 = vpop.permute.xlu0 %6302
  %6304 = vrot.lane.b32.xlu0 %v6119, 8
  %v6305 = vpop.permute.xlu0 %6304
  %6306 = vrot.lane.b32.xlu0 %v6120, 8
  %v6307 = vpop.permute.xlu0 %6306
  %6308 = vrot.lane.b32.xlu0 %v6121, 8
  %v6309 = vpop.permute.xlu0 %6308
  %6310 = vrot.lane.b32.xlu0 %v6122, 8
  %v6311 = vpop.permute.xlu0 %6310
  %6312 = vrot.lane.b32.xlu0 %v6123, 8
  %v6313 = vpop.permute.xlu0 %6312
  %6314 = vrot.lane.b32.xlu0 %v6124, 8
  %v6315 = vpop.permute.xlu0 %6314
  %6316 = vrot.lane.b32.xlu0 %v6125, 8
  %v6317 = vpop.permute.xlu0 %6316
  %6318 = vrot.lane.b32.xlu0 %v6126, 8
  %v6319 = vpop.permute.xlu0 %6318
  %6320 = vrot.lane.b32.xlu0 %v6127, 8
  %v6321 = vpop.permute.xlu0 %6320
  %6322 = vrot.lane.b32.xlu0 %v6128, 8
  %v6323 = vpop.permute.xlu0 %6322
  %6324 = vrot.lane.b32.xlu0 %v6129, 8
  %v6325 = vpop.permute.xlu0 %6324
  %6326 = vrot.lane.b32.xlu0 %v6130, 8
  %v6327 = vpop.permute.xlu0 %6326
  %6328 = vrot.lane.b32.xlu0 %v6131, 8
  %v6329 = vpop.permute.xlu0 %6328
  %6330 = vrot.lane.b32.xlu0 %v6132, 8
  %v6331 = vpop.permute.xlu0 %6330
  %6332 = vrot.lane.b32.xlu0 %v6133, 8
  %v6333 = vpop.permute.xlu0 %6332
  %6334 = vrot.lane.b32.xlu0 %v6134, 8
  %v6335 = vpop.permute.xlu0 %6334
  %6336 = vrot.lane.b32.xlu0 %v6135, 8
  %v6337 = vpop.permute.xlu0 %6336
  %6338 = vrot.lane.b32.xlu0 %v6136, 8
  %v6339 = vpop.permute.xlu0 %6338
  %6340 = vrot.lane.b32.xlu0 %v6137, 8
  %v6341 = vpop.permute.xlu0 %6340
  %6342 = vrot.lane.b32.xlu0 %v6138, 8
  %v6343 = vpop.permute.xlu0 %6342
  %6344 = vrot.lane.b32.xlu0 %v6139, 8
  %v6345 = vpop.permute.xlu0 %6344
  %6346 = vrot.lane.b32.xlu0 %v6140, 8
  %v6347 = vpop.permute.xlu0 %6346
  %6348 = vrot.lane.b32.xlu0 %v6141, 8
  %v6349 = vpop.permute.xlu0 %6348
  %6350 = vrot.lane.b32.xlu0 %v6142, 8
  %v6351 = vpop.permute.xlu0 %6350
  %6352 = vrot.lane.b32.xlu0 %v6143, 8
  %v6353 = vpop.permute.xlu0 %6352
  %6354 = vrot.lane.b32.xlu0 %v6144, 8
  %v6355 = vpop.permute.xlu0 %6354
  %6356 = vrot.lane.b32.xlu0 %v6145, 8
  %v6357 = vpop.permute.xlu0 %6356
  %6358 = vrot.lane.b32.xlu0 %v6146, 8
  %v6359 = vpop.permute.xlu0 %6358
  %6360 = vrot.lane.b32.xlu0 %v6147, 8
  %v6361 = vpop.permute.xlu0 %6360
  %6362 = vrot.lane.b32.xlu0 %v6148, 8
  %v6363 = vpop.permute.xlu0 %6362
  %6364 = vrot.lane.b32.xlu0 %v6149, 8
  %v6365 = vpop.permute.xlu0 %6364
  %6366 = vrot.lane.b32.xlu0 %v6150, 8
  %v6367 = vpop.permute.xlu0 %6366
  %6368 = vrot.lane.b32.xlu0 %v6151, 8
  %v6369 = vpop.permute.xlu0 %6368
  %6370 = vrot.lane.b32.xlu0 %v6152, 8
  %v6371 = vpop.permute.xlu0 %6370
  %6372 = vrot.lane.b32.xlu0 %v6153, 8
  %v6373 = vpop.permute.xlu0 %6372
  %6374 = vrot.lane.b32.xlu0 %v6154, 8
  %v6375 = vpop.permute.xlu0 %6374
  %6376 = vrot.lane.b32.xlu0 %v6155, 8
  %v6377 = vpop.permute.xlu0 %6376
  %6378 = vrot.lane.b32.xlu0 %v6156, 8
  %v6379 = vpop.permute.xlu0 %6378
  %6380 = vrot.lane.b32.xlu0 %v6157, 8
  %v6381 = vpop.permute.xlu0 %6380
  %6382 = vrot.lane.b32.xlu0 %v6158, 8
  %v6383 = vpop.permute.xlu0 %6382
  %6384 = vrot.lane.b32.xlu0 %v6159, 8
  %v6385 = vpop.permute.xlu0 %6384
  %6386 = vrot.lane.b32.xlu0 %v6160, 8
  %v6387 = vpop.permute.xlu0 %6386
  %6388 = vrot.lane.b32.xlu0 %v6161, 8
  %v6389 = vpop.permute.xlu0 %6388
  %6390 = vrot.lane.b32.xlu0 %v6162, 8
  %v6391 = vpop.permute.xlu0 %6390
  %6392 = vrot.lane.b32.xlu0 %v6163, 8
  %v6393 = vpop.permute.xlu0 %6392
  %6394 = vrot.lane.b32.xlu0 %v6164, 8
  %v6395 = vpop.permute.xlu0 %6394
  %6473 = vst.msk [vmem:[#allocation2] sm:$0xff] %vm560, %v6243
  %6474 = vst.msk [vmem:[#allocation2 + $0x8] sm:$0xff] %vm560, %v6245
  %6475 = vst.msk [vmem:[#allocation2 + $0x10] sm:$0xff] %vm560, %v6247
  %6476 = vst.msk [vmem:[#allocation2 + $0x18] sm:$0xff] %vm560, %v6249
  %6477 = vst.msk [vmem:[#allocation2 + $0x20] sm:$0xff] %vm560, %v6251
  %6478 = vst.msk [vmem:[#allocation2 + $0x28] sm:$0xff] %vm560, %v6253
  %6479 = vst.msk [vmem:[#allocation2 + $0x30] sm:$0xff] %vm560, %v6255
  %6480 = vst.msk [vmem:[#allocation2 + $0x38] sm:$0xff] %vm560, %v6257
  %6481 = vst.msk [vmem:[#allocation2 + $0x40] sm:$0xff] %vm560, %v6259
  %6482 = vst.msk [vmem:[#allocation2 + $0x48] sm:$0xff] %vm560, %v6261
  %6483 = vst.msk [vmem:[#allocation2 + $0x50] sm:$0xff] %vm560, %v6263
  %6484 = vst.msk [vmem:[#allocation2 + $0x58] sm:$0xff] %vm560, %v6265
  %6485 = vst.msk [vmem:[#allocation2 + $0x60] sm:$0xff] %vm560, %v6267
  %6486 = vst.msk [vmem:[#allocation2 + $0x68] sm:$0xff] %vm560, %v6269
  %6487 = vst.msk [vmem:[#allocation2 + $0x70] sm:$0xff] %vm560, %v6271
  %6488 = vst.msk [vmem:[#allocation2 + $0x78] sm:$0xff] %vm560, %v6273
  %6489 = vst.msk [vmem:[#allocation2 + $0x80] sm:$0xff] %vm560, %v6275
  %6490 = vst.msk [vmem:[#allocation2 + $0x88] sm:$0xff] %vm560, %v6277
  %6491 = vst.msk [vmem:[#allocation2 + $0x90] sm:$0xff] %vm560, %v6279
  %6492 = vst.msk [vmem:[#allocation2 + $0x98] sm:$0xff] %vm560, %v6281
  %6493 = vst.msk [vmem:[#allocation2 + $0xa0] sm:$0xff] %vm560, %v6283
  %6494 = vst.msk [vmem:[#allocation2 + $0xa8] sm:$0xff] %vm560, %v6285
  %6495 = vst.msk [vmem:[#allocation2 + $0xb0] sm:$0xff] %vm560, %v6287
  %6496 = vst.msk [vmem:[#allocation2 + $0xb8] sm:$0xff] %vm560, %v6289
  %6497 = vst.msk [vmem:[#allocation2 + $0xc0] sm:$0xff] %vm560, %v6291
  %6498 = vst.msk [vmem:[#allocation2 + $0xc8] sm:$0xff] %vm560, %v6293
  %6499 = vst.msk [vmem:[#allocation2 + $0xd0] sm:$0xff] %vm560, %v6295
  %6500 = vst.msk [vmem:[#allocation2 + $0xd8] sm:$0xff] %vm560, %v6297
  %6501 = vst.msk [vmem:[#allocation2 + $0xe0] sm:$0xff] %vm560, %v6299
  %6502 = vst.msk [vmem:[#allocation2 + $0xe8] sm:$0xff] %vm560, %v6301
  %6503 = vst.msk [vmem:[#allocation2 + $0xf0] sm:$0xff] %vm560, %v6303
  %6504 = vst.msk [vmem:[#allocation2 + $0xf8] sm:$0xff] %vm560, %v6305
  %6505 = vst.msk [vmem:[#allocation2 + $0x100] sm:$0xff] %vm560, %v6307
  %6506 = vst.msk [vmem:[#allocation2 + $0x108] sm:$0xff] %vm560, %v6309
  %6507 = vst.msk [vmem:[#allocation2 + $0x110] sm:$0xff] %vm560, %v6311
  %6508 = vst.msk [vmem:[#allocation2 + $0x118] sm:$0xff] %vm560, %v6313
  %6509 = vst.msk [vmem:[#allocation2 + $0x120] sm:$0xff] %vm560, %v6315
  %6510 = vst.msk [vmem:[#allocation2 + $0x128] sm:$0xff] %vm560, %v6317
  %6511 = vst.msk [vmem:[#allocation2 + $0x130] sm:$0xff] %vm560, %v6319
  %6512 = vst.msk [vmem:[#allocation2 + $0x138] sm:$0xff] %vm560, %v6321
  %6513 = vst.msk [vmem:[#allocation2 + $0x140] sm:$0xff] %vm560, %v6323
  %6514 = vst.msk [vmem:[#allocation2 + $0x148] sm:$0xff] %vm560, %v6325
  %6515 = vst.msk [vmem:[#allocation2 + $0x150] sm:$0xff] %vm560, %v6327
  %6516 = vst.msk [vmem:[#allocation2 + $0x158] sm:$0xff] %vm560, %v6329
  %6517 = vst.msk [vmem:[#allocation2 + $0x160] sm:$0xff] %vm560, %v6331
  %6518 = vst.msk [vmem:[#allocation2 + $0x168] sm:$0xff] %vm560, %v6333
  %6519 = vst.msk [vmem:[#allocation2 + $0x170] sm:$0xff] %vm560, %v6335
  %6520 = vst.msk [vmem:[#allocation2 + $0x178] sm:$0xff] %vm560, %v6337
  %6521 = vst.msk [vmem:[#allocation2 + $0x180] sm:$0xff] %vm560, %v6339
  %6522 = vst.msk [vmem:[#allocation2 + $0x188] sm:$0xff] %vm560, %v6341
  %6523 = vst.msk [vmem:[#allocation2 + $0x190] sm:$0xff] %vm560, %v6343
  %6524 = vst.msk [vmem:[#allocation2 + $0x198] sm:$0xff] %vm560, %v6345
  %6525 = vst.msk [vmem:[#allocation2 + $0x1a0] sm:$0xff] %vm560, %v6347
  %6526 = vst.msk [vmem:[#allocation2 + $0x1a8] sm:$0xff] %vm560, %v6349
  %6527 = vst.msk [vmem:[#allocation2 + $0x1b0] sm:$0xff] %vm560, %v6351
  %6528 = vst.msk [vmem:[#allocation2 + $0x1b8] sm:$0xff] %vm560, %v6353
  %6529 = vst.msk [vmem:[#allocation2 + $0x1c0] sm:$0xff] %vm560, %v6355
  %6530 = vst.msk [vmem:[#allocation2 + $0x1c8] sm:$0xff] %vm560, %v6357
  %6531 = vst.msk [vmem:[#allocation2 + $0x1d0] sm:$0xff] %vm560, %v6359
  %6532 = vst.msk [vmem:[#allocation2 + $0x1d8] sm:$0xff] %vm560, %v6361
  %6533 = vst.msk [vmem:[#allocation2 + $0x1e0] sm:$0xff] %vm560, %v6363
  %6534 = vst.msk [vmem:[#allocation2 + $0x1e8] sm:$0xff] %vm560, %v6365
  %6535 = vst.msk [vmem:[#allocation2 + $0x1f0] sm:$0xff] %vm560, %v6367
  %6536 = vst.msk [vmem:[#allocation2 + $0x1f8] sm:$0xff] %vm560, %v6369
  %6537 = vst.msk [vmem:[#allocation2 + $0x200] sm:$0xff] %vm560, %v6371
  %6538 = vst.msk [vmem:[#allocation2 + $0x208] sm:$0xff] %vm560, %v6373
  %6539 = vst.msk [vmem:[#allocation2 + $0x210] sm:$0xff] %vm560, %v6375
  %6540 = vst.msk [vmem:[#allocation2 + $0x218] sm:$0xff] %vm560, %v6377
  %6541 = vst.msk [vmem:[#allocation2 + $0x220] sm:$0xff] %vm560, %v6379
  %6542 = vst.msk [vmem:[#allocation2 + $0x228] sm:$0xff] %vm560, %v6381
  %6543 = vst.msk [vmem:[#allocation2 + $0x230] sm:$0xff] %vm560, %v6383
  %6544 = vst.msk [vmem:[#allocation2 + $0x238] sm:$0xff] %vm560, %v6385
  %6545 = vst.msk [vmem:[#allocation2 + $0x240] sm:$0xff] %vm560, %v6387
  %6546 = vst.msk [vmem:[#allocation2 + $0x248] sm:$0xff] %vm560, %v6389
  %6547 = vst.msk [vmem:[#allocation2 + $0x250] sm:$0xff] %vm560, %v6391
  %6548 = vst.msk [vmem:[#allocation2 + $0x258] sm:$0xff] %vm560, %v6393
  %6549 = vst.msk [vmem:[#allocation2 + $0x260] sm:$0xff] %vm560, %v6395
  %v6550 = vld [vmem:[#allocation3 + $0x2] sm:$0xff]
  %v6551 = vld [vmem:[#allocation3 + $0xa] sm:$0xff]
  %v6552 = vld [vmem:[#allocation3 + $0x12] sm:$0xff]
  %v6553 = vld [vmem:[#allocation3 + $0x1a] sm:$0xff]
  %v6554 = vld [vmem:[#allocation3 + $0x22] sm:$0xff]
  %v6555 = vld [vmem:[#allocation3 + $0x2a] sm:$0xff]
  %v6556 = vld [vmem:[#allocation3 + $0x32] sm:$0xff]
  %v6557 = vld [vmem:[#allocation3 + $0x3a] sm:$0xff]
  %v6558 = vld [vmem:[#allocation3 + $0x42] sm:$0xff]
  %v6559 = vld [vmem:[#allocation3 + $0x4a] sm:$0xff]
  %v6560 = vld [vmem:[#allocation3 + $0x52] sm:$0xff]
  %v6561 = vld [vmem:[#allocation3 + $0x5a] sm:$0xff]
  %v6562 = vld [vmem:[#allocation3 + $0x62] sm:$0xff]
  %v6563 = vld [vmem:[#allocation3 + $0x6a] sm:$0xff]
  %v6564 = vld [vmem:[#allocation3 + $0x72] sm:$0xff]
  %v6565 = vld [vmem:[#allocation3 + $0x7a] sm:$0xff]
  %v6566 = vld [vmem:[#allocation3 + $0x82] sm:$0xff]
  %v6567 = vld [vmem:[#allocation3 + $0x8a] sm:$0xff]
  %v6568 = vld [vmem:[#allocation3 + $0x92] sm:$0xff]
  %v6569 = vld [vmem:[#allocation3 + $0x9a] sm:$0xff]
  %v6570 = vld [vmem:[#allocation3 + $0xa2] sm:$0xff]
  %v6571 = vld [vmem:[#allocation3 + $0xaa] sm:$0xff]
  %v6572 = vld [vmem:[#allocation3 + $0xb2] sm:$0xff]
  %v6573 = vld [vmem:[#allocation3 + $0xba] sm:$0xff]
  %v6574 = vld [vmem:[#allocation3 + $0xc2] sm:$0xff]
  %v6575 = vld [vmem:[#allocation3 + $0xca] sm:$0xff]
  %v6576 = vld [vmem:[#allocation3 + $0xd2] sm:$0xff]
  %v6577 = vld [vmem:[#allocation3 + $0xda] sm:$0xff]
  %v6578 = vld [vmem:[#allocation3 + $0xe2] sm:$0xff]
  %v6579 = vld [vmem:[#allocation3 + $0xea] sm:$0xff]
  %v6580 = vld [vmem:[#allocation3 + $0xf2] sm:$0xff]
  %v6581 = vld [vmem:[#allocation3 + $0xfa] sm:$0xff]
  %v6582 = vld [vmem:[#allocation3 + $0x102] sm:$0xff]
  %v6583 = vld [vmem:[#allocation3 + $0x10a] sm:$0xff]
  %v6584 = vld [vmem:[#allocation3 + $0x112] sm:$0xff]
  %v6585 = vld [vmem:[#allocation3 + $0x11a] sm:$0xff]
  %v6586 = vld [vmem:[#allocation3 + $0x122] sm:$0xff]
  %v6587 = vld [vmem:[#allocation3 + $0x12a] sm:$0xff]
  %v6588 = vld [vmem:[#allocation3 + $0x132] sm:$0xff]
  %v6589 = vld [vmem:[#allocation3 + $0x13a] sm:$0xff]
  %v6590 = vld [vmem:[#allocation3 + $0x142] sm:$0xff]
  %v6591 = vld [vmem:[#allocation3 + $0x14a] sm:$0xff]
  %v6592 = vld [vmem:[#allocation3 + $0x152] sm:$0xff]
  %v6593 = vld [vmem:[#allocation3 + $0x15a] sm:$0xff]
  %v6594 = vld [vmem:[#allocation3 + $0x162] sm:$0xff]
  %v6595 = vld [vmem:[#allocation3 + $0x16a] sm:$0xff]
  %v6596 = vld [vmem:[#allocation3 + $0x172] sm:$0xff]
  %v6597 = vld [vmem:[#allocation3 + $0x17a] sm:$0xff]
  %v6598 = vld [vmem:[#allocation3 + $0x182] sm:$0xff]
  %v6599 = vld [vmem:[#allocation3 + $0x18a] sm:$0xff]
  %v6600 = vld [vmem:[#allocation3 + $0x192] sm:$0xff]
  %v6601 = vld [vmem:[#allocation3 + $0x19a] sm:$0xff]
  %v6602 = vld [vmem:[#allocation3 + $0x1a2] sm:$0xff]
  %v6603 = vld [vmem:[#allocation3 + $0x1aa] sm:$0xff]
  %v6604 = vld [vmem:[#allocation3 + $0x1b2] sm:$0xff]
  %v6605 = vld [vmem:[#allocation3 + $0x1ba] sm:$0xff]
  %v6606 = vld [vmem:[#allocation3 + $0x1c2] sm:$0xff]
  %v6607 = vld [vmem:[#allocation3 + $0x1ca] sm:$0xff]
  %v6608 = vld [vmem:[#allocation3 + $0x1d2] sm:$0xff]
  %v6609 = vld [vmem:[#allocation3 + $0x1da] sm:$0xff]
  %v6610 = vld [vmem:[#allocation3 + $0x1e2] sm:$0xff]
  %v6611 = vld [vmem:[#allocation3 + $0x1ea] sm:$0xff]
  %v6612 = vld [vmem:[#allocation3 + $0x1f2] sm:$0xff]
  %v6613 = vld [vmem:[#allocation3 + $0x1fa] sm:$0xff]
  %v6614 = vld [vmem:[#allocation3 + $0x202] sm:$0xff]
  %v6615 = vld [vmem:[#allocation3 + $0x20a] sm:$0xff]
  %v6616 = vld [vmem:[#allocation3 + $0x212] sm:$0xff]
  %v6617 = vld [vmem:[#allocation3 + $0x21a] sm:$0xff]
  %v6618 = vld [vmem:[#allocation3 + $0x222] sm:$0xff]
  %v6619 = vld [vmem:[#allocation3 + $0x22a] sm:$0xff]
  %v6620 = vld [vmem:[#allocation3 + $0x232] sm:$0xff]
  %v6621 = vld [vmem:[#allocation3 + $0x23a] sm:$0xff]
  %v6622 = vld [vmem:[#allocation3 + $0x242] sm:$0xff]
  %v6623 = vld [vmem:[#allocation3 + $0x24a] sm:$0xff]
  %v6624 = vld [vmem:[#allocation3 + $0x252] sm:$0xff]
  %v6625 = vld [vmem:[#allocation3 + $0x25a] sm:$0xff]
  %v6626 = vld [vmem:[#allocation3 + $0x262] sm:$0xff]
  %6704 = vrot.lane.b32.xlu0 %v6550, 16
  %v6705 = vpop.permute.xlu0 %6704
  %6706 = vrot.lane.b32.xlu0 %v6551, 16
  %v6707 = vpop.permute.xlu0 %6706
  %6708 = vrot.lane.b32.xlu0 %v6552, 16
  %v6709 = vpop.permute.xlu0 %6708
  %6710 = vrot.lane.b32.xlu0 %v6553, 16
  %v6711 = vpop.permute.xlu0 %6710
  %6712 = vrot.lane.b32.xlu0 %v6554, 16
  %v6713 = vpop.permute.xlu0 %6712
  %6714 = vrot.lane.b32.xlu0 %v6555, 16
  %v6715 = vpop.permute.xlu0 %6714
  %6716 = vrot.lane.b32.xlu0 %v6556, 16
  %v6717 = vpop.permute.xlu0 %6716
  %6718 = vrot.lane.b32.xlu0 %v6557, 16
  %v6719 = vpop.permute.xlu0 %6718
  %6720 = vrot.lane.b32.xlu0 %v6558, 16
  %v6721 = vpop.permute.xlu0 %6720
  %6722 = vrot.lane.b32.xlu0 %v6559, 16
  %v6723 = vpop.permute.xlu0 %6722
  %6724 = vrot.lane.b32.xlu0 %v6560, 16
  %v6725 = vpop.permute.xlu0 %6724
  %6726 = vrot.lane.b32.xlu0 %v6561, 16
  %v6727 = vpop.permute.xlu0 %6726
  %6728 = vrot.lane.b32.xlu0 %v6562, 16
  %v6729 = vpop.permute.xlu0 %6728
  %6730 = vrot.lane.b32.xlu0 %v6563, 16
  %v6731 = vpop.permute.xlu0 %6730
  %6732 = vrot.lane.b32.xlu0 %v6564, 16
  %v6733 = vpop.permute.xlu0 %6732
  %6734 = vrot.lane.b32.xlu0 %v6565, 16
  %v6735 = vpop.permute.xlu0 %6734
  %6736 = vrot.lane.b32.xlu0 %v6566, 16
  %v6737 = vpop.permute.xlu0 %6736
  %6738 = vrot.lane.b32.xlu0 %v6567, 16
  %v6739 = vpop.permute.xlu0 %6738
  %6740 = vrot.lane.b32.xlu0 %v6568, 16
  %v6741 = vpop.permute.xlu0 %6740
  %6742 = vrot.lane.b32.xlu0 %v6569, 16
  %v6743 = vpop.permute.xlu0 %6742
  %6744 = vrot.lane.b32.xlu0 %v6570, 16
  %v6745 = vpop.permute.xlu0 %6744
  %6746 = vrot.lane.b32.xlu0 %v6571, 16
  %v6747 = vpop.permute.xlu0 %6746
  %6748 = vrot.lane.b32.xlu0 %v6572, 16
  %v6749 = vpop.permute.xlu0 %6748
  %6750 = vrot.lane.b32.xlu0 %v6573, 16
  %v6751 = vpop.permute.xlu0 %6750
  %6752 = vrot.lane.b32.xlu0 %v6574, 16
  %v6753 = vpop.permute.xlu0 %6752
  %6754 = vrot.lane.b32.xlu0 %v6575, 16
  %v6755 = vpop.permute.xlu0 %6754
  %6756 = vrot.lane.b32.xlu0 %v6576, 16
  %v6757 = vpop.permute.xlu0 %6756
  %6758 = vrot.lane.b32.xlu0 %v6577, 16
  %v6759 = vpop.permute.xlu0 %6758
  %6760 = vrot.lane.b32.xlu0 %v6578, 16
  %v6761 = vpop.permute.xlu0 %6760
  %6762 = vrot.lane.b32.xlu0 %v6579, 16
  %v6763 = vpop.permute.xlu0 %6762
  %6764 = vrot.lane.b32.xlu0 %v6580, 16
  %v6765 = vpop.permute.xlu0 %6764
  %6766 = vrot.lane.b32.xlu0 %v6581, 16
  %v6767 = vpop.permute.xlu0 %6766
  %6768 = vrot.lane.b32.xlu0 %v6582, 16
  %v6769 = vpop.permute.xlu0 %6768
  %6770 = vrot.lane.b32.xlu0 %v6583, 16
  %v6771 = vpop.permute.xlu0 %6770
  %6772 = vrot.lane.b32.xlu0 %v6584, 16
  %v6773 = vpop.permute.xlu0 %6772
  %6774 = vrot.lane.b32.xlu0 %v6585, 16
  %v6775 = vpop.permute.xlu0 %6774
  %6776 = vrot.lane.b32.xlu0 %v6586, 16
  %v6777 = vpop.permute.xlu0 %6776
  %6778 = vrot.lane.b32.xlu0 %v6587, 16
  %v6779 = vpop.permute.xlu0 %6778
  %6780 = vrot.lane.b32.xlu0 %v6588, 16
  %v6781 = vpop.permute.xlu0 %6780
  %6782 = vrot.lane.b32.xlu0 %v6589, 16
  %v6783 = vpop.permute.xlu0 %6782
  %6784 = vrot.lane.b32.xlu0 %v6590, 16
  %v6785 = vpop.permute.xlu0 %6784
  %6786 = vrot.lane.b32.xlu0 %v6591, 16
  %v6787 = vpop.permute.xlu0 %6786
  %6788 = vrot.lane.b32.xlu0 %v6592, 16
  %v6789 = vpop.permute.xlu0 %6788
  %6790 = vrot.lane.b32.xlu0 %v6593, 16
  %v6791 = vpop.permute.xlu0 %6790
  %6792 = vrot.lane.b32.xlu0 %v6594, 16
  %v6793 = vpop.permute.xlu0 %6792
  %6794 = vrot.lane.b32.xlu0 %v6595, 16
  %v6795 = vpop.permute.xlu0 %6794
  %6796 = vrot.lane.b32.xlu0 %v6596, 16
  %v6797 = vpop.permute.xlu0 %6796
  %6798 = vrot.lane.b32.xlu0 %v6597, 16
  %v6799 = vpop.permute.xlu0 %6798
  %6800 = vrot.lane.b32.xlu0 %v6598, 16
  %v6801 = vpop.permute.xlu0 %6800
  %6802 = vrot.lane.b32.xlu0 %v6599, 16
  %v6803 = vpop.permute.xlu0 %6802
  %6804 = vrot.lane.b32.xlu0 %v6600, 16
  %v6805 = vpop.permute.xlu0 %6804
  %6806 = vrot.lane.b32.xlu0 %v6601, 16
  %v6807 = vpop.permute.xlu0 %6806
  %6808 = vrot.lane.b32.xlu0 %v6602, 16
  %v6809 = vpop.permute.xlu0 %6808
  %6810 = vrot.lane.b32.xlu0 %v6603, 16
  %v6811 = vpop.permute.xlu0 %6810
  %6812 = vrot.lane.b32.xlu0 %v6604, 16
  %v6813 = vpop.permute.xlu0 %6812
  %6814 = vrot.lane.b32.xlu0 %v6605, 16
  %v6815 = vpop.permute.xlu0 %6814
  %6816 = vrot.lane.b32.xlu0 %v6606, 16
  %v6817 = vpop.permute.xlu0 %6816
  %6818 = vrot.lane.b32.xlu0 %v6607, 16
  %v6819 = vpop.permute.xlu0 %6818
  %6820 = vrot.lane.b32.xlu0 %v6608, 16
  %v6821 = vpop.permute.xlu0 %6820
  %6822 = vrot.lane.b32.xlu0 %v6609, 16
  %v6823 = vpop.permute.xlu0 %6822
  %6824 = vrot.lane.b32.xlu0 %v6610, 16
  %v6825 = vpop.permute.xlu0 %6824
  %6826 = vrot.lane.b32.xlu0 %v6611, 16
  %v6827 = vpop.permute.xlu0 %6826
  %6828 = vrot.lane.b32.xlu0 %v6612, 16
  %v6829 = vpop.permute.xlu0 %6828
  %6830 = vrot.lane.b32.xlu0 %v6613, 16
  %v6831 = vpop.permute.xlu0 %6830
  %6832 = vrot.lane.b32.xlu0 %v6614, 16
  %v6833 = vpop.permute.xlu0 %6832
  %6834 = vrot.lane.b32.xlu0 %v6615, 16
  %v6835 = vpop.permute.xlu0 %6834
  %6836 = vrot.lane.b32.xlu0 %v6616, 16
  %v6837 = vpop.permute.xlu0 %6836
  %6838 = vrot.lane.b32.xlu0 %v6617, 16
  %v6839 = vpop.permute.xlu0 %6838
  %6840 = vrot.lane.b32.xlu0 %v6618, 16
  %v6841 = vpop.permute.xlu0 %6840
  %6842 = vrot.lane.b32.xlu0 %v6619, 16
  %v6843 = vpop.permute.xlu0 %6842
  %6844 = vrot.lane.b32.xlu0 %v6620, 16
  %v6845 = vpop.permute.xlu0 %6844
  %6846 = vrot.lane.b32.xlu0 %v6621, 16
  %v6847 = vpop.permute.xlu0 %6846
  %6848 = vrot.lane.b32.xlu0 %v6622, 16
  %v6849 = vpop.permute.xlu0 %6848
  %6850 = vrot.lane.b32.xlu0 %v6623, 16
  %v6851 = vpop.permute.xlu0 %6850
  %6852 = vrot.lane.b32.xlu0 %v6624, 16
  %v6853 = vpop.permute.xlu0 %6852
  %6854 = vrot.lane.b32.xlu0 %v6625, 16
  %v6855 = vpop.permute.xlu0 %6854
  %6856 = vrot.lane.b32.xlu0 %v6626, 16
  %v6857 = vpop.permute.xlu0 %6856
  %6935 = vst.msk [vmem:[#allocation2] sm:$0xff] %vm1023, %v6705
  %6936 = vst.msk [vmem:[#allocation2 + $0x8] sm:$0xff] %vm1023, %v6707
  %6937 = vst.msk [vmem:[#allocation2 + $0x10] sm:$0xff] %vm1023, %v6709
  %6938 = vst.msk [vmem:[#allocation2 + $0x18] sm:$0xff] %vm1023, %v6711
  %6939 = vst.msk [vmem:[#allocation2 + $0x20] sm:$0xff] %vm1023, %v6713
  %6940 = vst.msk [vmem:[#allocation2 + $0x28] sm:$0xff] %vm1023, %v6715
  %6941 = vst.msk [vmem:[#allocation2 + $0x30] sm:$0xff] %vm1023, %v6717
  %6942 = vst.msk [vmem:[#allocation2 + $0x38] sm:$0xff] %vm1023, %v6719
  %6943 = vst.msk [vmem:[#allocation2 + $0x40] sm:$0xff] %vm1023, %v6721
  %6944 = vst.msk [vmem:[#allocation2 + $0x48] sm:$0xff] %vm1023, %v6723
  %6945 = vst.msk [vmem:[#allocation2 + $0x50] sm:$0xff] %vm1023, %v6725
  %6946 = vst.msk [vmem:[#allocation2 + $0x58] sm:$0xff] %vm1023, %v6727
  %6947 = vst.msk [vmem:[#allocation2 + $0x60] sm:$0xff] %vm1023, %v6729
  %6948 = vst.msk [vmem:[#allocation2 + $0x68] sm:$0xff] %vm1023, %v6731
  %6949 = vst.msk [vmem:[#allocation2 + $0x70] sm:$0xff] %vm1023, %v6733
  %6950 = vst.msk [vmem:[#allocation2 + $0x78] sm:$0xff] %vm1023, %v6735
  %6951 = vst.msk [vmem:[#allocation2 + $0x80] sm:$0xff] %vm1023, %v6737
  %6952 = vst.msk [vmem:[#allocation2 + $0x88] sm:$0xff] %vm1023, %v6739
  %6953 = vst.msk [vmem:[#allocation2 + $0x90] sm:$0xff] %vm1023, %v6741
  %6954 = vst.msk [vmem:[#allocation2 + $0x98] sm:$0xff] %vm1023, %v6743
  %6955 = vst.msk [vmem:[#allocation2 + $0xa0] sm:$0xff] %vm1023, %v6745
  %6956 = vst.msk [vmem:[#allocation2 + $0xa8] sm:$0xff] %vm1023, %v6747
  %6957 = vst.msk [vmem:[#allocation2 + $0xb0] sm:$0xff] %vm1023, %v6749
  %6958 = vst.msk [vmem:[#allocation2 + $0xb8] sm:$0xff] %vm1023, %v6751
  %6959 = vst.msk [vmem:[#allocation2 + $0xc0] sm:$0xff] %vm1023, %v6753
  %6960 = vst.msk [vmem:[#allocation2 + $0xc8] sm:$0xff] %vm1023, %v6755
  %6961 = vst.msk [vmem:[#allocation2 + $0xd0] sm:$0xff] %vm1023, %v6757
  %6962 = vst.msk [vmem:[#allocation2 + $0xd8] sm:$0xff] %vm1023, %v6759
  %6963 = vst.msk [vmem:[#allocation2 + $0xe0] sm:$0xff] %vm1023, %v6761
  %6964 = vst.msk [vmem:[#allocation2 + $0xe8] sm:$0xff] %vm1023, %v6763
  %6965 = vst.msk [vmem:[#allocation2 + $0xf0] sm:$0xff] %vm1023, %v6765
  %6966 = vst.msk [vmem:[#allocation2 + $0xf8] sm:$0xff] %vm1023, %v6767
  %6967 = vst.msk [vmem:[#allocation2 + $0x100] sm:$0xff] %vm1023, %v6769
  %6968 = vst.msk [vmem:[#allocation2 + $0x108] sm:$0xff] %vm1023, %v6771
  %6969 = vst.msk [vmem:[#allocation2 + $0x110] sm:$0xff] %vm1023, %v6773
  %6970 = vst.msk [vmem:[#allocation2 + $0x118] sm:$0xff] %vm1023, %v6775
  %6971 = vst.msk [vmem:[#allocation2 + $0x120] sm:$0xff] %vm1023, %v6777
  %6972 = vst.msk [vmem:[#allocation2 + $0x128] sm:$0xff] %vm1023, %v6779
  %6973 = vst.msk [vmem:[#allocation2 + $0x130] sm:$0xff] %vm1023, %v6781
  %6974 = vst.msk [vmem:[#allocation2 + $0x138] sm:$0xff] %vm1023, %v6783
  %6975 = vst.msk [vmem:[#allocation2 + $0x140] sm:$0xff] %vm1023, %v6785
  %6976 = vst.msk [vmem:[#allocation2 + $0x148] sm:$0xff] %vm1023, %v6787
  %6977 = vst.msk [vmem:[#allocation2 + $0x150] sm:$0xff] %vm1023, %v6789
  %6978 = vst.msk [vmem:[#allocation2 + $0x158] sm:$0xff] %vm1023, %v6791
  %6979 = vst.msk [vmem:[#allocation2 + $0x160] sm:$0xff] %vm1023, %v6793
  %6980 = vst.msk [vmem:[#allocation2 + $0x168] sm:$0xff] %vm1023, %v6795
  %6981 = vst.msk [vmem:[#allocation2 + $0x170] sm:$0xff] %vm1023, %v6797
  %6982 = vst.msk [vmem:[#allocation2 + $0x178] sm:$0xff] %vm1023, %v6799
  %6983 = vst.msk [vmem:[#allocation2 + $0x180] sm:$0xff] %vm1023, %v6801
  %6984 = vst.msk [vmem:[#allocation2 + $0x188] sm:$0xff] %vm1023, %v6803
  %6985 = vst.msk [vmem:[#allocation2 + $0x190] sm:$0xff] %vm1023, %v6805
  %6986 = vst.msk [vmem:[#allocation2 + $0x198] sm:$0xff] %vm1023, %v6807
  %6987 = vst.msk [vmem:[#allocation2 + $0x1a0] sm:$0xff] %vm1023, %v6809
  %6988 = vst.msk [vmem:[#allocation2 + $0x1a8] sm:$0xff] %vm1023, %v6811
  %6989 = vst.msk [vmem:[#allocation2 + $0x1b0] sm:$0xff] %vm1023, %v6813
  %6990 = vst.msk [vmem:[#allocation2 + $0x1b8] sm:$0xff] %vm1023, %v6815
  %6991 = vst.msk [vmem:[#allocation2 + $0x1c0] sm:$0xff] %vm1023, %v6817
  %6992 = vst.msk [vmem:[#allocation2 + $0x1c8] sm:$0xff] %vm1023, %v6819
  %6993 = vst.msk [vmem:[#allocation2 + $0x1d0] sm:$0xff] %vm1023, %v6821
  %6994 = vst.msk [vmem:[#allocation2 + $0x1d8] sm:$0xff] %vm1023, %v6823
  %6995 = vst.msk [vmem:[#allocation2 + $0x1e0] sm:$0xff] %vm1023, %v6825
  %6996 = vst.msk [vmem:[#allocation2 + $0x1e8] sm:$0xff] %vm1023, %v6827
  %6997 = vst.msk [vmem:[#allocation2 + $0x1f0] sm:$0xff] %vm1023, %v6829
  %6998 = vst.msk [vmem:[#allocation2 + $0x1f8] sm:$0xff] %vm1023, %v6831
  %6999 = vst.msk [vmem:[#allocation2 + $0x200] sm:$0xff] %vm1023, %v6833
  %7000 = vst.msk [vmem:[#allocation2 + $0x208] sm:$0xff] %vm1023, %v6835
  %7001 = vst.msk [vmem:[#allocation2 + $0x210] sm:$0xff] %vm1023, %v6837
  %7002 = vst.msk [vmem:[#allocation2 + $0x218] sm:$0xff] %vm1023, %v6839
  %7003 = vst.msk [vmem:[#allocation2 + $0x220] sm:$0xff] %vm1023, %v6841
  %7004 = vst.msk [vmem:[#allocation2 + $0x228] sm:$0xff] %vm1023, %v6843
  %7005 = vst.msk [vmem:[#allocation2 + $0x230] sm:$0xff] %vm1023, %v6845
  %7006 = vst.msk [vmem:[#allocation2 + $0x238] sm:$0xff] %vm1023, %v6847
  %7007 = vst.msk [vmem:[#allocation2 + $0x240] sm:$0xff] %vm1023, %v6849
  %7008 = vst.msk [vmem:[#allocation2 + $0x248] sm:$0xff] %vm1023, %v6851
  %7009 = vst.msk [vmem:[#allocation2 + $0x250] sm:$0xff] %vm1023, %v6853
  %7010 = vst.msk [vmem:[#allocation2 + $0x258] sm:$0xff] %vm1023, %v6855
  %7011 = vst.msk [vmem:[#allocation2 + $0x260] sm:$0xff] %vm1023, %v6857
  %v7012 = vld [vmem:[#allocation3 + $0x12] sm:$0xff]
  %v7013 = vld [vmem:[#allocation3 + $0x1a] sm:$0xff]
  %v7014 = vld [vmem:[#allocation3 + $0x22] sm:$0xff]
  %v7015 = vld [vmem:[#allocation3 + $0x2a] sm:$0xff]
  %v7016 = vld [vmem:[#allocation3 + $0x32] sm:$0xff]
  %v7017 = vld [vmem:[#allocation3 + $0x3a] sm:$0xff]
  %v7018 = vld [vmem:[#allocation3 + $0x42] sm:$0xff]
  %v7019 = vld [vmem:[#allocation3 + $0x4a] sm:$0xff]
  %v7020 = vld [vmem:[#allocation3 + $0x52] sm:$0xff]
  %v7021 = vld [vmem:[#allocation3 + $0x5a] sm:$0xff]
  %v7022 = vld [vmem:[#allocation3 + $0x62] sm:$0xff]
  %v7023 = vld [vmem:[#allocation3 + $0x6a] sm:$0xff]
  %v7024 = vld [vmem:[#allocation3 + $0x72] sm:$0xff]
  %v7025 = vld [vmem:[#allocation3 + $0x7a] sm:$0xff]
  %v7026 = vld [vmem:[#allocation3 + $0x82] sm:$0xff]
  %v7027 = vld [vmem:[#allocation3 + $0x8a] sm:$0xff]
  %v7028 = vld [vmem:[#allocation3 + $0x92] sm:$0xff]
  %v7029 = vld [vmem:[#allocation3 + $0x9a] sm:$0xff]
  %v7030 = vld [vmem:[#allocation3 + $0xa2] sm:$0xff]
  %v7031 = vld [vmem:[#allocation3 + $0xaa] sm:$0xff]
  %v7032 = vld [vmem:[#allocation3 + $0xb2] sm:$0xff]
  %v7033 = vld [vmem:[#allocation3 + $0xba] sm:$0xff]
  %v7034 = vld [vmem:[#allocation3 + $0xc2] sm:$0xff]
  %v7035 = vld [vmem:[#allocation3 + $0xca] sm:$0xff]
  %v7036 = vld [vmem:[#allocation3 + $0xd2] sm:$0xff]
  %v7037 = vld [vmem:[#allocation3 + $0xda] sm:$0xff]
  %v7038 = vld [vmem:[#allocation3 + $0xe2] sm:$0xff]
  %v7039 = vld [vmem:[#allocation3 + $0xea] sm:$0xff]
  %v7040 = vld [vmem:[#allocation3 + $0xf2] sm:$0xff]
  %v7041 = vld [vmem:[#allocation3 + $0xfa] sm:$0xff]
  %v7042 = vld [vmem:[#allocation3 + $0x102] sm:$0xff]
  %v7043 = vld [vmem:[#allocation3 + $0x10a] sm:$0xff]
  %v7044 = vld [vmem:[#allocation3 + $0x112] sm:$0xff]
  %v7045 = vld [vmem:[#allocation3 + $0x11a] sm:$0xff]
  %v7046 = vld [vmem:[#allocation3 + $0x122] sm:$0xff]
  %v7047 = vld [vmem:[#allocation3 + $0x12a] sm:$0xff]
  %v7048 = vld [vmem:[#allocation3 + $0x132] sm:$0xff]
  %v7049 = vld [vmem:[#allocation3 + $0x13a] sm:$0xff]
  %v7050 = vld [vmem:[#allocation3 + $0x142] sm:$0xff]
  %v7051 = vld [vmem:[#allocation3 + $0x14a] sm:$0xff]
  %v7052 = vld [vmem:[#allocation3 + $0x152] sm:$0xff]
  %v7053 = vld [vmem:[#allocation3 + $0x15a] sm:$0xff]
  %v7054 = vld [vmem:[#allocation3 + $0x162] sm:$0xff]
  %v7055 = vld [vmem:[#allocation3 + $0x16a] sm:$0xff]
  %v7056 = vld [vmem:[#allocation3 + $0x172] sm:$0xff]
  %v7057 = vld [vmem:[#allocation3 + $0x17a] sm:$0xff]
  %v7058 = vld [vmem:[#allocation3 + $0x182] sm:$0xff]
  %v7059 = vld [vmem:[#allocation3 + $0x18a] sm:$0xff]
  %v7060 = vld [vmem:[#allocation3 + $0x192] sm:$0xff]
  %v7061 = vld [vmem:[#allocation3 + $0x19a] sm:$0xff]
  %v7062 = vld [vmem:[#allocation3 + $0x1a2] sm:$0xff]
  %v7063 = vld [vmem:[#allocation3 + $0x1aa] sm:$0xff]
  %v7064 = vld [vmem:[#allocation3 + $0x1b2] sm:$0xff]
  %v7065 = vld [vmem:[#allocation3 + $0x1ba] sm:$0xff]
  %v7066 = vld [vmem:[#allocation3 + $0x1c2] sm:$0xff]
  %v7067 = vld [vmem:[#allocation3 + $0x1ca] sm:$0xff]
  %v7068 = vld [vmem:[#allocation3 + $0x1d2] sm:$0xff]
  %v7069 = vld [vmem:[#allocation3 + $0x1da] sm:$0xff]
  %v7070 = vld [vmem:[#allocation3 + $0x1e2] sm:$0xff]
  %v7071 = vld [vmem:[#allocation3 + $0x1ea] sm:$0xff]
  %v7072 = vld [vmem:[#allocation3 + $0x1f2] sm:$0xff]
  %v7073 = vld [vmem:[#allocation3 + $0x1fa] sm:$0xff]
  %v7074 = vld [vmem:[#allocation3 + $0x202] sm:$0xff]
  %v7075 = vld [vmem:[#allocation3 + $0x20a] sm:$0xff]
  %v7076 = vld [vmem:[#allocation3 + $0x212] sm:$0xff]
  %v7077 = vld [vmem:[#allocation3 + $0x21a] sm:$0xff]
  %v7078 = vld [vmem:[#allocation3 + $0x222] sm:$0xff]
  %v7079 = vld [vmem:[#allocation3 + $0x22a] sm:$0xff]
  %v7080 = vld [vmem:[#allocation3 + $0x232] sm:$0xff]
  %v7081 = vld [vmem:[#allocation3 + $0x23a] sm:$0xff]
  %v7082 = vld [vmem:[#allocation3 + $0x242] sm:$0xff]
  %v7083 = vld [vmem:[#allocation3 + $0x24a] sm:$0xff]
  %v7084 = vld [vmem:[#allocation3 + $0x252] sm:$0xff]
  %v7085 = vld [vmem:[#allocation3 + $0x25a] sm:$0xff]
  %v7086 = vld [vmem:[#allocation3 + $0x262] sm:$0xff]
  %v7087 = vld [vmem:[#allocation3 + $0x26a] sm:$0xff]
  %v7088 = vld [vmem:[#allocation3 + $0x272] sm:$0xff]
  %7166 = vrot.lane.b32.xlu0 %v7012, 24
  %v7167 = vpop.permute.xlu0 %7166
  %7168 = vrot.lane.b32.xlu0 %v7013, 24
  %v7169 = vpop.permute.xlu0 %7168
  %7170 = vrot.lane.b32.xlu0 %v7014, 24
  %v7171 = vpop.permute.xlu0 %7170
  %7172 = vrot.lane.b32.xlu0 %v7015, 24
  %v7173 = vpop.permute.xlu0 %7172
  %7174 = vrot.lane.b32.xlu0 %v7016, 24
  %v7175 = vpop.permute.xlu0 %7174
  %7176 = vrot.lane.b32.xlu0 %v7017, 24
  %v7177 = vpop.permute.xlu0 %7176
  %7178 = vrot.lane.b32.xlu0 %v7018, 24
  %v7179 = vpop.permute.xlu0 %7178
  %7180 = vrot.lane.b32.xlu0 %v7019, 24
  %v7181 = vpop.permute.xlu0 %7180
  %7182 = vrot.lane.b32.xlu0 %v7020, 24
  %v7183 = vpop.permute.xlu0 %7182
  %7184 = vrot.lane.b32.xlu0 %v7021, 24
  %v7185 = vpop.permute.xlu0 %7184
  %7186 = vrot.lane.b32.xlu0 %v7022, 24
  %v7187 = vpop.permute.xlu0 %7186
  %7188 = vrot.lane.b32.xlu0 %v7023, 24
  %v7189 = vpop.permute.xlu0 %7188
  %7190 = vrot.lane.b32.xlu0 %v7024, 24
  %v7191 = vpop.permute.xlu0 %7190
  %7192 = vrot.lane.b32.xlu0 %v7025, 24
  %v7193 = vpop.permute.xlu0 %7192
  %7194 = vrot.lane.b32.xlu0 %v7026, 24
  %v7195 = vpop.permute.xlu0 %7194
  %7196 = vrot.lane.b32.xlu0 %v7027, 24
  %v7197 = vpop.permute.xlu0 %7196
  %7198 = vrot.lane.b32.xlu0 %v7028, 24
  %v7199 = vpop.permute.xlu0 %7198
  %7200 = vrot.lane.b32.xlu0 %v7029, 24
  %v7201 = vpop.permute.xlu0 %7200
  %7202 = vrot.lane.b32.xlu0 %v7030, 24
  %v7203 = vpop.permute.xlu0 %7202
  %7204 = vrot.lane.b32.xlu0 %v7031, 24
  %v7205 = vpop.permute.xlu0 %7204
  %7206 = vrot.lane.b32.xlu0 %v7032, 24
  %v7207 = vpop.permute.xlu0 %7206
  %7208 = vrot.lane.b32.xlu0 %v7033, 24
  %v7209 = vpop.permute.xlu0 %7208
  %7210 = vrot.lane.b32.xlu0 %v7034, 24
  %v7211 = vpop.permute.xlu0 %7210
  %7212 = vrot.lane.b32.xlu0 %v7035, 24
  %v7213 = vpop.permute.xlu0 %7212
  %7214 = vrot.lane.b32.xlu0 %v7036, 24
  %v7215 = vpop.permute.xlu0 %7214
  %7216 = vrot.lane.b32.xlu0 %v7037, 24
  %v7217 = vpop.permute.xlu0 %7216
  %7218 = vrot.lane.b32.xlu0 %v7038, 24
  %v7219 = vpop.permute.xlu0 %7218
  %7220 = vrot.lane.b32.xlu0 %v7039, 24
  %v7221 = vpop.permute.xlu0 %7220
  %7222 = vrot.lane.b32.xlu0 %v7040, 24
  %v7223 = vpop.permute.xlu0 %7222
  %7224 = vrot.lane.b32.xlu0 %v7041, 24
  %v7225 = vpop.permute.xlu0 %7224
  %7226 = vrot.lane.b32.xlu0 %v7042, 24
  %v7227 = vpop.permute.xlu0 %7226
  %7228 = vrot.lane.b32.xlu0 %v7043, 24
  %v7229 = vpop.permute.xlu0 %7228
  %7230 = vrot.lane.b32.xlu0 %v7044, 24
  %v7231 = vpop.permute.xlu0 %7230
  %7232 = vrot.lane.b32.xlu0 %v7045, 24
  %v7233 = vpop.permute.xlu0 %7232
  %7234 = vrot.lane.b32.xlu0 %v7046, 24
  %v7235 = vpop.permute.xlu0 %7234
  %7236 = vrot.lane.b32.xlu0 %v7047, 24
  %v7237 = vpop.permute.xlu0 %7236
  %7238 = vrot.lane.b32.xlu0 %v7048, 24
  %v7239 = vpop.permute.xlu0 %7238
  %7240 = vrot.lane.b32.xlu0 %v7049, 24
  %v7241 = vpop.permute.xlu0 %7240
  %7242 = vrot.lane.b32.xlu0 %v7050, 24
  %v7243 = vpop.permute.xlu0 %7242
  %7244 = vrot.lane.b32.xlu0 %v7051, 24
  %v7245 = vpop.permute.xlu0 %7244
  %7246 = vrot.lane.b32.xlu0 %v7052, 24
  %v7247 = vpop.permute.xlu0 %7246
  %7248 = vrot.lane.b32.xlu0 %v7053, 24
  %v7249 = vpop.permute.xlu0 %7248
  %7250 = vrot.lane.b32.xlu0 %v7054, 24
  %v7251 = vpop.permute.xlu0 %7250
  %7252 = vrot.lane.b32.xlu0 %v7055, 24
  %v7253 = vpop.permute.xlu0 %7252
  %7254 = vrot.lane.b32.xlu0 %v7056, 24
  %v7255 = vpop.permute.xlu0 %7254
  %7256 = vrot.lane.b32.xlu0 %v7057, 24
  %v7257 = vpop.permute.xlu0 %7256
  %7258 = vrot.lane.b32.xlu0 %v7058, 24
  %v7259 = vpop.permute.xlu0 %7258
  %7260 = vrot.lane.b32.xlu0 %v7059, 24
  %v7261 = vpop.permute.xlu0 %7260
  %7262 = vrot.lane.b32.xlu0 %v7060, 24
  %v7263 = vpop.permute.xlu0 %7262
  %7264 = vrot.lane.b32.xlu0 %v7061, 24
  %v7265 = vpop.permute.xlu0 %7264
  %7266 = vrot.lane.b32.xlu0 %v7062, 24
  %v7267 = vpop.permute.xlu0 %7266
  %7268 = vrot.lane.b32.xlu0 %v7063, 24
  %v7269 = vpop.permute.xlu0 %7268
  %7270 = vrot.lane.b32.xlu0 %v7064, 24
  %v7271 = vpop.permute.xlu0 %7270
  %7272 = vrot.lane.b32.xlu0 %v7065, 24
  %v7273 = vpop.permute.xlu0 %7272
  %7274 = vrot.lane.b32.xlu0 %v7066, 24
  %v7275 = vpop.permute.xlu0 %7274
  %7276 = vrot.lane.b32.xlu0 %v7067, 24
  %v7277 = vpop.permute.xlu0 %7276
  %7278 = vrot.lane.b32.xlu0 %v7068, 24
  %v7279 = vpop.permute.xlu0 %7278
  %7280 = vrot.lane.b32.xlu0 %v7069, 24
  %v7281 = vpop.permute.xlu0 %7280
  %7282 = vrot.lane.b32.xlu0 %v7070, 24
  %v7283 = vpop.permute.xlu0 %7282
  %7284 = vrot.lane.b32.xlu0 %v7071, 24
  %v7285 = vpop.permute.xlu0 %7284
  %7286 = vrot.lane.b32.xlu0 %v7072, 24
  %v7287 = vpop.permute.xlu0 %7286
  %7288 = vrot.lane.b32.xlu0 %v7073, 24
  %v7289 = vpop.permute.xlu0 %7288
  %7290 = vrot.lane.b32.xlu0 %v7074, 24
  %v7291 = vpop.permute.xlu0 %7290
  %7292 = vrot.lane.b32.xlu0 %v7075, 24
  %v7293 = vpop.permute.xlu0 %7292
  %7294 = vrot.lane.b32.xlu0 %v7076, 24
  %v7295 = vpop.permute.xlu0 %7294
  %7296 = vrot.lane.b32.xlu0 %v7077, 24
  %v7297 = vpop.permute.xlu0 %7296
  %7298 = vrot.lane.b32.xlu0 %v7078, 24
  %v7299 = vpop.permute.xlu0 %7298
  %7300 = vrot.lane.b32.xlu0 %v7079, 24
  %v7301 = vpop.permute.xlu0 %7300
  %7302 = vrot.lane.b32.xlu0 %v7080, 24
  %v7303 = vpop.permute.xlu0 %7302
  %7304 = vrot.lane.b32.xlu0 %v7081, 24
  %v7305 = vpop.permute.xlu0 %7304
  %7306 = vrot.lane.b32.xlu0 %v7082, 24
  %v7307 = vpop.permute.xlu0 %7306
  %7308 = vrot.lane.b32.xlu0 %v7083, 24
  %v7309 = vpop.permute.xlu0 %7308
  %7310 = vrot.lane.b32.xlu0 %v7084, 24
  %v7311 = vpop.permute.xlu0 %7310
  %7312 = vrot.lane.b32.xlu0 %v7085, 24
  %v7313 = vpop.permute.xlu0 %7312
  %7314 = vrot.lane.b32.xlu0 %v7086, 24
  %v7315 = vpop.permute.xlu0 %7314
  %7316 = vrot.lane.b32.xlu0 %v7087, 24
  %v7317 = vpop.permute.xlu0 %7316
  %7318 = vrot.lane.b32.xlu0 %v7088, 24
  %v7319 = vpop.permute.xlu0 %7318
  %7397 = vst.msk [vmem:[#allocation2] sm:$0xff] %vm1486, %v7167
  %7398 = vst.msk [vmem:[#allocation2 + $0x8] sm:$0xff] %vm1486, %v7169
  %7399 = vst.msk [vmem:[#allocation2 + $0x10] sm:$0xff] %vm1486, %v7171
  %7400 = vst.msk [vmem:[#allocation2 + $0x18] sm:$0xff] %vm1486, %v7173
  %7401 = vst.msk [vmem:[#allocation2 + $0x20] sm:$0xff] %vm1486, %v7175
  %7402 = vst.msk [vmem:[#allocation2 + $0x28] sm:$0xff] %vm1486, %v7177
  %7403 = vst.msk [vmem:[#allocation2 + $0x30] sm:$0xff] %vm1486, %v7179
  %7404 = vst.msk [vmem:[#allocation2 + $0x38] sm:$0xff] %vm1486, %v7181
  %7405 = vst.msk [vmem:[#allocation2 + $0x40] sm:$0xff] %vm1486, %v7183
  %7406 = vst.msk [vmem:[#allocation2 + $0x48] sm:$0xff] %vm1486, %v7185
  %7407 = vst.msk [vmem:[#allocation2 + $0x50] sm:$0xff] %vm1486, %v7187
  %7408 = vst.msk [vmem:[#allocation2 + $0x58] sm:$0xff] %vm1486, %v7189
  %7409 = vst.msk [vmem:[#allocation2 + $0x60] sm:$0xff] %vm1486, %v7191
  %7410 = vst.msk [vmem:[#allocation2 + $0x68] sm:$0xff] %vm1486, %v7193
  %7411 = vst.msk [vmem:[#allocation2 + $0x70] sm:$0xff] %vm1486, %v7195
  %7412 = vst.msk [vmem:[#allocation2 + $0x78] sm:$0xff] %vm1486, %v7197
  %7413 = vst.msk [vmem:[#allocation2 + $0x80] sm:$0xff] %vm1486, %v7199
  %7414 = vst.msk [vmem:[#allocation2 + $0x88] sm:$0xff] %vm1486, %v7201
  %7415 = vst.msk [vmem:[#allocation2 + $0x90] sm:$0xff] %vm1486, %v7203
  %7416 = vst.msk [vmem:[#allocation2 + $0x98] sm:$0xff] %vm1486, %v7205
  %7417 = vst.msk [vmem:[#allocation2 + $0xa0] sm:$0xff] %vm1486, %v7207
  %7418 = vst.msk [vmem:[#allocation2 + $0xa8] sm:$0xff] %vm1486, %v7209
  %7419 = vst.msk [vmem:[#allocation2 + $0xb0] sm:$0xff] %vm1486, %v7211
  %7420 = vst.msk [vmem:[#allocation2 + $0xb8] sm:$0xff] %vm1486, %v7213
  %7421 = vst.msk [vmem:[#allocation2 + $0xc0] sm:$0xff] %vm1486, %v7215
  %7422 = vst.msk [vmem:[#allocation2 + $0xc8] sm:$0xff] %vm1486, %v7217
  %7423 = vst.msk [vmem:[#allocation2 + $0xd0] sm:$0xff] %vm1486, %v7219
  %7424 = vst.msk [vmem:[#allocation2 + $0xd8] sm:$0xff] %vm1486, %v7221
  %7425 = vst.msk [vmem:[#allocation2 + $0xe0] sm:$0xff] %vm1486, %v7223
  %7426 = vst.msk [vmem:[#allocation2 + $0xe8] sm:$0xff] %vm1486, %v7225
  %7427 = vst.msk [vmem:[#allocation2 + $0xf0] sm:$0xff] %vm1486, %v7227
  %7428 = vst.msk [vmem:[#allocation2 + $0xf8] sm:$0xff] %vm1486, %v7229
  %7429 = vst.msk [vmem:[#allocation2 + $0x100] sm:$0xff] %vm1486, %v7231
  %7430 = vst.msk [vmem:[#allocation2 + $0x108] sm:$0xff] %vm1486, %v7233
  %7431 = vst.msk [vmem:[#allocation2 + $0x110] sm:$0xff] %vm1486, %v7235
  %7432 = vst.msk [vmem:[#allocation2 + $0x118] sm:$0xff] %vm1486, %v7237
  %7433 = vst.msk [vmem:[#allocation2 + $0x120] sm:$0xff] %vm1486, %v7239
  %7434 = vst.msk [vmem:[#allocation2 + $0x128] sm:$0xff] %vm1486, %v7241
  %7435 = vst.msk [vmem:[#allocation2 + $0x130] sm:$0xff] %vm1486, %v7243
  %7436 = vst.msk [vmem:[#allocation2 + $0x138] sm:$0xff] %vm1486, %v7245
  %7437 = vst.msk [vmem:[#allocation2 + $0x140] sm:$0xff] %vm1486, %v7247
  %7438 = vst.msk [vmem:[#allocation2 + $0x148] sm:$0xff] %vm1486, %v7249
  %7439 = vst.msk [vmem:[#allocation2 + $0x150] sm:$0xff] %vm1486, %v7251
  %7440 = vst.msk [vmem:[#allocation2 + $0x158] sm:$0xff] %vm1486, %v7253
  %7441 = vst.msk [vmem:[#allocation2 + $0x160] sm:$0xff] %vm1486, %v7255
  %7442 = vst.msk [vmem:[#allocation2 + $0x168] sm:$0xff] %vm1486, %v7257
  %7443 = vst.msk [vmem:[#allocation2 + $0x170] sm:$0xff] %vm1486, %v7259
  %7444 = vst.msk [vmem:[#allocation2 + $0x178] sm:$0xff] %vm1486, %v7261
  %7445 = vst.msk [vmem:[#allocation2 + $0x180] sm:$0xff] %vm1486, %v7263
  %7446 = vst.msk [vmem:[#allocation2 + $0x188] sm:$0xff] %vm1486, %v7265
  %7447 = vst.msk [vmem:[#allocation2 + $0x190] sm:$0xff] %vm1486, %v7267
  %7448 = vst.msk [vmem:[#allocation2 + $0x198] sm:$0xff] %vm1486, %v7269
  %7449 = vst.msk [vmem:[#allocation2 + $0x1a0] sm:$0xff] %vm1486, %v7271
  %7450 = vst.msk [vmem:[#allocation2 + $0x1a8] sm:$0xff] %vm1486, %v7273
  %7451 = vst.msk [vmem:[#allocation2 + $0x1b0] sm:$0xff] %vm1486, %v7275
  %7452 = vst.msk [vmem:[#allocation2 + $0x1b8] sm:$0xff] %vm1486, %v7277
  %7453 = vst.msk [vmem:[#allocation2 + $0x1c0] sm:$0xff] %vm1486, %v7279
  %7454 = vst.msk [vmem:[#allocation2 + $0x1c8] sm:$0xff] %vm1486, %v7281
  %7455 = vst.msk [vmem:[#allocation2 + $0x1d0] sm:$0xff] %vm1486, %v7283
  %7456 = vst.msk [vmem:[#allocation2 + $0x1d8] sm:$0xff] %vm1486, %v7285
  %7457 = vst.msk [vmem:[#allocation2 + $0x1e0] sm:$0xff] %vm1486, %v7287
  %7458 = vst.msk [vmem:[#allocation2 + $0x1e8] sm:$0xff] %vm1486, %v7289
  %7459 = vst.msk [vmem:[#allocation2 + $0x1f0] sm:$0xff] %vm1486, %v7291
  %7460 = vst.msk [vmem:[#allocation2 + $0x1f8] sm:$0xff] %vm1486, %v7293
  %7461 = vst.msk [vmem:[#allocation2 + $0x200] sm:$0xff] %vm1486, %v7295
  %7462 = vst.msk [vmem:[#allocation2 + $0x208] sm:$0xff] %vm1486, %v7297
  %7463 = vst.msk [vmem:[#allocation2 + $0x210] sm:$0xff] %vm1486, %v7299
  %7464 = vst.msk [vmem:[#allocation2 + $0x218] sm:$0xff] %vm1486, %v7301
  %7465 = vst.msk [vmem:[#allocation2 + $0x220] sm:$0xff] %vm1486, %v7303
  %7466 = vst.msk [vmem:[#allocation2 + $0x228] sm:$0xff] %vm1486, %v7305
  %7467 = vst.msk [vmem:[#allocation2 + $0x230] sm:$0xff] %vm1486, %v7307
  %7468 = vst.msk [vmem:[#allocation2 + $0x238] sm:$0xff] %vm1486, %v7309
  %7469 = vst.msk [vmem:[#allocation2 + $0x240] sm:$0xff] %vm1486, %v7311
  %7470 = vst.msk [vmem:[#allocation2 + $0x248] sm:$0xff] %vm1486, %v7313
  %7471 = vst.msk [vmem:[#allocation2 + $0x250] sm:$0xff] %vm1486, %v7315
  %7472 = vst.msk [vmem:[#allocation2 + $0x258] sm:$0xff] %vm1486, %v7317
  %7473 = vst.msk [vmem:[#allocation2 + $0x260] sm:$0xff] %vm1486, %v7319
  %v7474 = vld [vmem:[#allocation3 + $0x13] sm:$0xff]
  %v7475 = vld [vmem:[#allocation3 + $0x1b] sm:$0xff]
  %v7476 = vld [vmem:[#allocation3 + $0x23] sm:$0xff]
  %v7477 = vld [vmem:[#allocation3 + $0x2b] sm:$0xff]
  %v7478 = vld [vmem:[#allocation3 + $0x33] sm:$0xff]
  %v7479 = vld [vmem:[#allocation3 + $0x3b] sm:$0xff]
  %v7480 = vld [vmem:[#allocation3 + $0x43] sm:$0xff]
  %v7481 = vld [vmem:[#allocation3 + $0x4b] sm:$0xff]
  %v7482 = vld [vmem:[#allocation3 + $0x53] sm:$0xff]
  %v7483 = vld [vmem:[#allocation3 + $0x5b] sm:$0xff]
  %v7484 = vld [vmem:[#allocation3 + $0x63] sm:$0xff]
  %v7485 = vld [vmem:[#allocation3 + $0x6b] sm:$0xff]
  %v7486 = vld [vmem:[#allocation3 + $0x73] sm:$0xff]
  %v7487 = vld [vmem:[#allocation3 + $0x7b] sm:$0xff]
  %v7488 = vld [vmem:[#allocation3 + $0x83] sm:$0xff]
  %v7489 = vld [vmem:[#allocation3 + $0x8b] sm:$0xff]
  %v7490 = vld [vmem:[#allocation3 + $0x93] sm:$0xff]
  %v7491 = vld [vmem:[#allocation3 + $0x9b] sm:$0xff]
  %v7492 = vld [vmem:[#allocation3 + $0xa3] sm:$0xff]
  %v7493 = vld [vmem:[#allocation3 + $0xab] sm:$0xff]
  %v7494 = vld [vmem:[#allocation3 + $0xb3] sm:$0xff]
  %v7495 = vld [vmem:[#allocation3 + $0xbb] sm:$0xff]
  %v7496 = vld [vmem:[#allocation3 + $0xc3] sm:$0xff]
  %v7497 = vld [vmem:[#allocation3 + $0xcb] sm:$0xff]
  %v7498 = vld [vmem:[#allocation3 + $0xd3] sm:$0xff]
  %v7499 = vld [vmem:[#allocation3 + $0xdb] sm:$0xff]
  %v7500 = vld [vmem:[#allocation3 + $0xe3] sm:$0xff]
  %v7501 = vld [vmem:[#allocation3 + $0xeb] sm:$0xff]
  %v7502 = vld [vmem:[#allocation3 + $0xf3] sm:$0xff]
  %v7503 = vld [vmem:[#allocation3 + $0xfb] sm:$0xff]
  %v7504 = vld [vmem:[#allocation3 + $0x103] sm:$0xff]
  %v7505 = vld [vmem:[#allocation3 + $0x10b] sm:$0xff]
  %v7506 = vld [vmem:[#allocation3 + $0x113] sm:$0xff]
  %v7507 = vld [vmem:[#allocation3 + $0x11b] sm:$0xff]
  %v7508 = vld [vmem:[#allocation3 + $0x123] sm:$0xff]
  %v7509 = vld [vmem:[#allocation3 + $0x12b] sm:$0xff]
  %v7510 = vld [vmem:[#allocation3 + $0x133] sm:$0xff]
  %v7511 = vld [vmem:[#allocation3 + $0x13b] sm:$0xff]
  %v7512 = vld [vmem:[#allocation3 + $0x143] sm:$0xff]
  %v7513 = vld [vmem:[#allocation3 + $0x14b] sm:$0xff]
  %v7514 = vld [vmem:[#allocation3 + $0x153] sm:$0xff]
  %v7515 = vld [vmem:[#allocation3 + $0x15b] sm:$0xff]
  %v7516 = vld [vmem:[#allocation3 + $0x163] sm:$0xff]
  %v7517 = vld [vmem:[#allocation3 + $0x16b] sm:$0xff]
  %v7518 = vld [vmem:[#allocation3 + $0x173] sm:$0xff]
  %v7519 = vld [vmem:[#allocation3 + $0x17b] sm:$0xff]
  %v7520 = vld [vmem:[#allocation3 + $0x183] sm:$0xff]
  %v7521 = vld [vmem:[#allocation3 + $0x18b] sm:$0xff]
  %v7522 = vld [vmem:[#allocation3 + $0x193] sm:$0xff]
  %v7523 = vld [vmem:[#allocation3 + $0x19b] sm:$0xff]
  %v7524 = vld [vmem:[#allocation3 + $0x1a3] sm:$0xff]
  %v7525 = vld [vmem:[#allocation3 + $0x1ab] sm:$0xff]
  %v7526 = vld [vmem:[#allocation3 + $0x1b3] sm:$0xff]
  %v7527 = vld [vmem:[#allocation3 + $0x1bb] sm:$0xff]
  %v7528 = vld [vmem:[#allocation3 + $0x1c3] sm:$0xff]
  %v7529 = vld [vmem:[#allocation3 + $0x1cb] sm:$0xff]
  %v7530 = vld [vmem:[#allocation3 + $0x1d3] sm:$0xff]
  %v7531 = vld [vmem:[#allocation3 + $0x1db] sm:$0xff]
  %v7532 = vld [vmem:[#allocation3 + $0x1e3] sm:$0xff]
  %v7533 = vld [vmem:[#allocation3 + $0x1eb] sm:$0xff]
  %v7534 = vld [vmem:[#allocation3 + $0x1f3] sm:$0xff]
  %v7535 = vld [vmem:[#allocation3 + $0x1fb] sm:$0xff]
  %v7536 = vld [vmem:[#allocation3 + $0x203] sm:$0xff]
  %v7537 = vld [vmem:[#allocation3 + $0x20b] sm:$0xff]
  %v7538 = vld [vmem:[#allocation3 + $0x213] sm:$0xff]
  %v7539 = vld [vmem:[#allocation3 + $0x21b] sm:$0xff]
  %v7540 = vld [vmem:[#allocation3 + $0x223] sm:$0xff]
  %v7541 = vld [vmem:[#allocation3 + $0x22b] sm:$0xff]
  %v7542 = vld [vmem:[#allocation3 + $0x233] sm:$0xff]
  %v7543 = vld [vmem:[#allocation3 + $0x23b] sm:$0xff]
  %v7544 = vld [vmem:[#allocation3 + $0x243] sm:$0xff]
  %v7545 = vld [vmem:[#allocation3 + $0x24b] sm:$0xff]
  %v7546 = vld [vmem:[#allocation3 + $0x253] sm:$0xff]
  %v7547 = vld [vmem:[#allocation3 + $0x25b] sm:$0xff]
  %v7548 = vld [vmem:[#allocation3 + $0x263] sm:$0xff]
  %v7549 = vld [vmem:[#allocation3 + $0x26b] sm:$0xff]
  %v7550 = vld [vmem:[#allocation3 + $0x273] sm:$0xff]
  %7628 = vrot.lane.b32.xlu0 %v7474, 32
  %v7629 = vpop.permute.xlu0 %7628
  %7630 = vrot.lane.b32.xlu0 %v7475, 32
  %v7631 = vpop.permute.xlu0 %7630
  %7632 = vrot.lane.b32.xlu0 %v7476, 32
  %v7633 = vpop.permute.xlu0 %7632
  %7634 = vrot.lane.b32.xlu0 %v7477, 32
  %v7635 = vpop.permute.xlu0 %7634
  %7636 = vrot.lane.b32.xlu0 %v7478, 32
  %v7637 = vpop.permute.xlu0 %7636
  %7638 = vrot.lane.b32.xlu0 %v7479, 32
  %v7639 = vpop.permute.xlu0 %7638
  %7640 = vrot.lane.b32.xlu0 %v7480, 32
  %v7641 = vpop.permute.xlu0 %7640
  %7642 = vrot.lane.b32.xlu0 %v7481, 32
  %v7643 = vpop.permute.xlu0 %7642
  %7644 = vrot.lane.b32.xlu0 %v7482, 32
  %v7645 = vpop.permute.xlu0 %7644
  %7646 = vrot.lane.b32.xlu0 %v7483, 32
  %v7647 = vpop.permute.xlu0 %7646
  %7648 = vrot.lane.b32.xlu0 %v7484, 32
  %v7649 = vpop.permute.xlu0 %7648
  %7650 = vrot.lane.b32.xlu0 %v7485, 32
  %v7651 = vpop.permute.xlu0 %7650
  %7652 = vrot.lane.b32.xlu0 %v7486, 32
  %v7653 = vpop.permute.xlu0 %7652
  %7654 = vrot.lane.b32.xlu0 %v7487, 32
  %v7655 = vpop.permute.xlu0 %7654
  %7656 = vrot.lane.b32.xlu0 %v7488, 32
  %v7657 = vpop.permute.xlu0 %7656
  %7658 = vrot.lane.b32.xlu0 %v7489, 32
  %v7659 = vpop.permute.xlu0 %7658
  %7660 = vrot.lane.b32.xlu0 %v7490, 32
  %v7661 = vpop.permute.xlu0 %7660
  %7662 = vrot.lane.b32.xlu0 %v7491, 32
  %v7663 = vpop.permute.xlu0 %7662
  %7664 = vrot.lane.b32.xlu0 %v7492, 32
  %v7665 = vpop.permute.xlu0 %7664
  %7666 = vrot.lane.b32.xlu0 %v7493, 32
  %v7667 = vpop.permute.xlu0 %7666
  %7668 = vrot.lane.b32.xlu0 %v7494, 32
  %v7669 = vpop.permute.xlu0 %7668
  %7670 = vrot.lane.b32.xlu0 %v7495, 32
  %v7671 = vpop.permute.xlu0 %7670
  %7672 = vrot.lane.b32.xlu0 %v7496, 32
  %v7673 = vpop.permute.xlu0 %7672
  %7674 = vrot.lane.b32.xlu0 %v7497, 32
  %v7675 = vpop.permute.xlu0 %7674
  %7676 = vrot.lane.b32.xlu0 %v7498, 32
  %v7677 = vpop.permute.xlu0 %7676
  %7678 = vrot.lane.b32.xlu0 %v7499, 32
  %v7679 = vpop.permute.xlu0 %7678
  %7680 = vrot.lane.b32.xlu0 %v7500, 32
  %v7681 = vpop.permute.xlu0 %7680
  %7682 = vrot.lane.b32.xlu0 %v7501, 32
  %v7683 = vpop.permute.xlu0 %7682
  %7684 = vrot.lane.b32.xlu0 %v7502, 32
  %v7685 = vpop.permute.xlu0 %7684
  %7686 = vrot.lane.b32.xlu0 %v7503, 32
  %v7687 = vpop.permute.xlu0 %7686
  %7688 = vrot.lane.b32.xlu0 %v7504, 32
  %v7689 = vpop.permute.xlu0 %7688
  %7690 = vrot.lane.b32.xlu0 %v7505, 32
  %v7691 = vpop.permute.xlu0 %7690
  %7692 = vrot.lane.b32.xlu0 %v7506, 32
  %v7693 = vpop.permute.xlu0 %7692
  %7694 = vrot.lane.b32.xlu0 %v7507, 32
  %v7695 = vpop.permute.xlu0 %7694
  %7696 = vrot.lane.b32.xlu0 %v7508, 32
  %v7697 = vpop.permute.xlu0 %7696
  %7698 = vrot.lane.b32.xlu0 %v7509, 32
  %v7699 = vpop.permute.xlu0 %7698
  %7700 = vrot.lane.b32.xlu0 %v7510, 32
  %v7701 = vpop.permute.xlu0 %7700
  %7702 = vrot.lane.b32.xlu0 %v7511, 32
  %v7703 = vpop.permute.xlu0 %7702
  %7704 = vrot.lane.b32.xlu0 %v7512, 32
  %v7705 = vpop.permute.xlu0 %7704
  %7706 = vrot.lane.b32.xlu0 %v7513, 32
  %v7707 = vpop.permute.xlu0 %7706
  %7708 = vrot.lane.b32.xlu0 %v7514, 32
  %v7709 = vpop.permute.xlu0 %7708
  %7710 = vrot.lane.b32.xlu0 %v7515, 32
  %v7711 = vpop.permute.xlu0 %7710
  %7712 = vrot.lane.b32.xlu0 %v7516, 32
  %v7713 = vpop.permute.xlu0 %7712
  %7714 = vrot.lane.b32.xlu0 %v7517, 32
  %v7715 = vpop.permute.xlu0 %7714
  %7716 = vrot.lane.b32.xlu0 %v7518, 32
  %v7717 = vpop.permute.xlu0 %7716
  %7718 = vrot.lane.b32.xlu0 %v7519, 32
  %v7719 = vpop.permute.xlu0 %7718
  %7720 = vrot.lane.b32.xlu0 %v7520, 32
  %v7721 = vpop.permute.xlu0 %7720
  %7722 = vrot.lane.b32.xlu0 %v7521, 32
  %v7723 = vpop.permute.xlu0 %7722
  %7724 = vrot.lane.b32.xlu0 %v7522, 32
  %v7725 = vpop.permute.xlu0 %7724
  %7726 = vrot.lane.b32.xlu0 %v7523, 32
  %v7727 = vpop.permute.xlu0 %7726
  %7728 = vrot.lane.b32.xlu0 %v7524, 32
  %v7729 = vpop.permute.xlu0 %7728
  %7730 = vrot.lane.b32.xlu0 %v7525, 32
  %v7731 = vpop.permute.xlu0 %7730
  %7732 = vrot.lane.b32.xlu0 %v7526, 32
  %v7733 = vpop.permute.xlu0 %7732
  %7734 = vrot.lane.b32.xlu0 %v7527, 32
  %v7735 = vpop.permute.xlu0 %7734
  %7736 = vrot.lane.b32.xlu0 %v7528, 32
  %v7737 = vpop.permute.xlu0 %7736
  %7738 = vrot.lane.b32.xlu0 %v7529, 32
  %v7739 = vpop.permute.xlu0 %7738
  %7740 = vrot.lane.b32.xlu0 %v7530, 32
  %v7741 = vpop.permute.xlu0 %7740
  %7742 = vrot.lane.b32.xlu0 %v7531, 32
  %v7743 = vpop.permute.xlu0 %7742
  %7744 = vrot.lane.b32.xlu0 %v7532, 32
  %v7745 = vpop.permute.xlu0 %7744
  %7746 = vrot.lane.b32.xlu0 %v7533, 32
  %v7747 = vpop.permute.xlu0 %7746
  %7748 = vrot.lane.b32.xlu0 %v7534, 32
  %v7749 = vpop.permute.xlu0 %7748
  %7750 = vrot.lane.b32.xlu0 %v7535, 32
  %v7751 = vpop.permute.xlu0 %7750
  %7752 = vrot.lane.b32.xlu0 %v7536, 32
  %v7753 = vpop.permute.xlu0 %7752
  %7754 = vrot.lane.b32.xlu0 %v7537, 32
  %v7755 = vpop.permute.xlu0 %7754
  %7756 = vrot.lane.b32.xlu0 %v7538, 32
  %v7757 = vpop.permute.xlu0 %7756
  %7758 = vrot.lane.b32.xlu0 %v7539, 32
  %v7759 = vpop.permute.xlu0 %7758
  %7760 = vrot.lane.b32.xlu0 %v7540, 32
  %v7761 = vpop.permute.xlu0 %7760
  %7762 = vrot.lane.b32.xlu0 %v7541, 32
  %v7763 = vpop.permute.xlu0 %7762
  %7764 = vrot.lane.b32.xlu0 %v7542, 32
  %v7765 = vpop.permute.xlu0 %7764
  %7766 = vrot.lane.b32.xlu0 %v7543, 32
  %v7767 = vpop.permute.xlu0 %7766
  %7768 = vrot.lane.b32.xlu0 %v7544, 32
  %v7769 = vpop.permute.xlu0 %7768
  %7770 = vrot.lane.b32.xlu0 %v7545, 32
  %v7771 = vpop.permute.xlu0 %7770
  %7772 = vrot.lane.b32.xlu0 %v7546, 32
  %v7773 = vpop.permute.xlu0 %7772
  %7774 = vrot.lane.b32.xlu0 %v7547, 32
  %v7775 = vpop.permute.xlu0 %7774
  %7776 = vrot.lane.b32.xlu0 %v7548, 32
  %v7777 = vpop.permute.xlu0 %7776
  %7778 = vrot.lane.b32.xlu0 %v7549, 32
  %v7779 = vpop.permute.xlu0 %7778
  %7780 = vrot.lane.b32.xlu0 %v7550, 32
  %v7781 = vpop.permute.xlu0 %7780
  %7859 = vst.msk [vmem:[#allocation2] sm:$0xff] %vm1949, %v7629
  %7860 = vst.msk [vmem:[#allocation2 + $0x8] sm:$0xff] %vm1949, %v7631
  %7861 = vst.msk [vmem:[#allocation2 + $0x10] sm:$0xff] %vm1949, %v7633
  %7862 = vst.msk [vmem:[#allocation2 + $0x18] sm:$0xff] %vm1949, %v7635
  %7863 = vst.msk [vmem:[#allocation2 + $0x20] sm:$0xff] %vm1949, %v7637
  %7864 = vst.msk [vmem:[#allocation2 + $0x28] sm:$0xff] %vm1949, %v7639
  %7865 = vst.msk [vmem:[#allocation2 + $0x30] sm:$0xff] %vm1949, %v7641
  %7866 = vst.msk [vmem:[#allocation2 + $0x38] sm:$0xff] %vm1949, %v7643
  %7867 = vst.msk [vmem:[#allocation2 + $0x40] sm:$0xff] %vm1949, %v7645
  %7868 = vst.msk [vmem:[#allocation2 + $0x48] sm:$0xff] %vm1949, %v7647
  %7869 = vst.msk [vmem:[#allocation2 + $0x50] sm:$0xff] %vm1949, %v7649
  %7870 = vst.msk [vmem:[#allocation2 + $0x58] sm:$0xff] %vm1949, %v7651
  %7871 = vst.msk [vmem:[#allocation2 + $0x60] sm:$0xff] %vm1949, %v7653
  %7872 = vst.msk [vmem:[#allocation2 + $0x68] sm:$0xff] %vm1949, %v7655
  %7873 = vst.msk [vmem:[#allocation2 + $0x70] sm:$0xff] %vm1949, %v7657
  %7874 = vst.msk [vmem:[#allocation2 + $0x78] sm:$0xff] %vm1949, %v7659
  %7875 = vst.msk [vmem:[#allocation2 + $0x80] sm:$0xff] %vm1949, %v7661
  %7876 = vst.msk [vmem:[#allocation2 + $0x88] sm:$0xff] %vm1949, %v7663
  %7877 = vst.msk [vmem:[#allocation2 + $0x90] sm:$0xff] %vm1949, %v7665
  %7878 = vst.msk [vmem:[#allocation2 + $0x98] sm:$0xff] %vm1949, %v7667
  %7879 = vst.msk [vmem:[#allocation2 + $0xa0] sm:$0xff] %vm1949, %v7669
  %7880 = vst.msk [vmem:[#allocation2 + $0xa8] sm:$0xff] %vm1949, %v7671
  %7881 = vst.msk [vmem:[#allocation2 + $0xb0] sm:$0xff] %vm1949, %v7673
  %7882 = vst.msk [vmem:[#allocation2 + $0xb8] sm:$0xff] %vm1949, %v7675
  %7883 = vst.msk [vmem:[#allocation2 + $0xc0] sm:$0xff] %vm1949, %v7677
  %7884 = vst.msk [vmem:[#allocation2 + $0xc8] sm:$0xff] %vm1949, %v7679
  %7885 = vst.msk [vmem:[#allocation2 + $0xd0] sm:$0xff] %vm1949, %v7681
  %7886 = vst.msk [vmem:[#allocation2 + $0xd8] sm:$0xff] %vm1949, %v7683
  %7887 = vst.msk [vmem:[#allocation2 + $0xe0] sm:$0xff] %vm1949, %v7685
  %7888 = vst.msk [vmem:[#allocation2 + $0xe8] sm:$0xff] %vm1949, %v7687
  %7889 = vst.msk [vmem:[#allocation2 + $0xf0] sm:$0xff] %vm1949, %v7689
  %7890 = vst.msk [vmem:[#allocation2 + $0xf8] sm:$0xff] %vm1949, %v7691
  %7891 = vst.msk [vmem:[#allocation2 + $0x100] sm:$0xff] %vm1949, %v7693
  %7892 = vst.msk [vmem:[#allocation2 + $0x108] sm:$0xff] %vm1949, %v7695
  %7893 = vst.msk [vmem:[#allocation2 + $0x110] sm:$0xff] %vm1949, %v7697
  %7894 = vst.msk [vmem:[#allocation2 + $0x118] sm:$0xff] %vm1949, %v7699
  %7895 = vst.msk [vmem:[#allocation2 + $0x120] sm:$0xff] %vm1949, %v7701
  %7896 = vst.msk [vmem:[#allocation2 + $0x128] sm:$0xff] %vm1949, %v7703
  %7897 = vst.msk [vmem:[#allocation2 + $0x130] sm:$0xff] %vm1949, %v7705
  %7898 = vst.msk [vmem:[#allocation2 + $0x138] sm:$0xff] %vm1949, %v7707
  %7899 = vst.msk [vmem:[#allocation2 + $0x140] sm:$0xff] %vm1949, %v7709
  %7900 = vst.msk [vmem:[#allocation2 + $0x148] sm:$0xff] %vm1949, %v7711
  %7901 = vst.msk [vmem:[#allocation2 + $0x150] sm:$0xff] %vm1949, %v7713
  %7902 = vst.msk [vmem:[#allocation2 + $0x158] sm:$0xff] %vm1949, %v7715
  %7903 = vst.msk [vmem:[#allocation2 + $0x160] sm:$0xff] %vm1949, %v7717
  %7904 = vst.msk [vmem:[#allocation2 + $0x168] sm:$0xff] %vm1949, %v7719
  %7905 = vst.msk [vmem:[#allocation2 + $0x170] sm:$0xff] %vm1949, %v7721
  %7906 = vst.msk [vmem:[#allocation2 + $0x178] sm:$0xff] %vm1949, %v7723
  %7907 = vst.msk [vmem:[#allocation2 + $0x180] sm:$0xff] %vm1949, %v7725
  %7908 = vst.msk [vmem:[#allocation2 + $0x188] sm:$0xff] %vm1949, %v7727
  %7909 = vst.msk [vmem:[#allocation2 + $0x190] sm:$0xff] %vm1949, %v7729
  %7910 = vst.msk [vmem:[#allocation2 + $0x198] sm:$0xff] %vm1949, %v7731
  %7911 = vst.msk [vmem:[#allocation2 + $0x1a0] sm:$0xff] %vm1949, %v7733
  %7912 = vst.msk [vmem:[#allocation2 + $0x1a8] sm:$0xff] %vm1949, %v7735
  %7913 = vst.msk [vmem:[#allocation2 + $0x1b0] sm:$0xff] %vm1949, %v7737
  %7914 = vst.msk [vmem:[#allocation2 + $0x1b8] sm:$0xff] %vm1949, %v7739
  %7915 = vst.msk [vmem:[#allocation2 + $0x1c0] sm:$0xff] %vm1949, %v7741
  %7916 = vst.msk [vmem:[#allocation2 + $0x1c8] sm:$0xff] %vm1949, %v7743
  %7917 = vst.msk [vmem:[#allocation2 + $0x1d0] sm:$0xff] %vm1949, %v7745
  %7918 = vst.msk [vmem:[#allocation2 + $0x1d8] sm:$0xff] %vm1949, %v7747
  %7919 = vst.msk [vmem:[#allocation2 + $0x1e0] sm:$0xff] %vm1949, %v7749
  %7920 = vst.msk [vmem:[#allocation2 + $0x1e8] sm:$0xff] %vm1949, %v7751
  %7921 = vst.msk [vmem:[#allocation2 + $0x1f0] sm:$0xff] %vm1949, %v7753
  %7922 = vst.msk [vmem:[#allocation2 + $0x1f8] sm:$0xff] %vm1949, %v7755
  %7923 = vst.msk [vmem:[#allocation2 + $0x200] sm:$0xff] %vm1949, %v7757
  %7924 = vst.msk [vmem:[#allocation2 + $0x208] sm:$0xff] %vm1949, %v7759
  %7925 = vst.msk [vmem:[#allocation2 + $0x210] sm:$0xff] %vm1949, %v7761
  %7926 = vst.msk [vmem:[#allocation2 + $0x218] sm:$0xff] %vm1949, %v7763
  %7927 = vst.msk [vmem:[#allocation2 + $0x220] sm:$0xff] %vm1949, %v7765
  %7928 = vst.msk [vmem:[#allocation2 + $0x228] sm:$0xff] %vm1949, %v7767
  %7929 = vst.msk [vmem:[#allocation2 + $0x230] sm:$0xff] %vm1949, %v7769
  %7930 = vst.msk [vmem:[#allocation2 + $0x238] sm:$0xff] %vm1949, %v7771
  %7931 = vst.msk [vmem:[#allocation2 + $0x240] sm:$0xff] %vm1949, %v7773
  %7932 = vst.msk [vmem:[#allocation2 + $0x248] sm:$0xff] %vm1949, %v7775
  %7933 = vst.msk [vmem:[#allocation2 + $0x250] sm:$0xff] %vm1949, %v7777
  %7934 = vst.msk [vmem:[#allocation2 + $0x258] sm:$0xff] %vm1949, %v7779
  %7935 = vst.msk [vmem:[#allocation2 + $0x260] sm:$0xff] %vm1949, %v7781
  %v7936 = vld [vmem:[#allocation3 + $0x14] sm:$0xff]
  %v7937 = vld [vmem:[#allocation3 + $0x1c] sm:$0xff]
  %v7938 = vld [vmem:[#allocation3 + $0x24] sm:$0xff]
  %v7939 = vld [vmem:[#allocation3 + $0x2c] sm:$0xff]
  %v7940 = vld [vmem:[#allocation3 + $0x34] sm:$0xff]
  %v7941 = vld [vmem:[#allocation3 + $0x3c] sm:$0xff]
  %v7942 = vld [vmem:[#allocation3 + $0x44] sm:$0xff]
  %v7943 = vld [vmem:[#allocation3 + $0x4c] sm:$0xff]
  %v7944 = vld [vmem:[#allocation3 + $0x54] sm:$0xff]
  %v7945 = vld [vmem:[#allocation3 + $0x5c] sm:$0xff]
  %v7946 = vld [vmem:[#allocation3 + $0x64] sm:$0xff]
  %v7947 = vld [vmem:[#allocation3 + $0x6c] sm:$0xff]
  %v7948 = vld [vmem:[#allocation3 + $0x74] sm:$0xff]
  %v7949 = vld [vmem:[#allocation3 + $0x7c] sm:$0xff]
  %v7950 = vld [vmem:[#allocation3 + $0x84] sm:$0xff]
  %v7951 = vld [vmem:[#allocation3 + $0x8c] sm:$0xff]
  %v7952 = vld [vmem:[#allocation3 + $0x94] sm:$0xff]
  %v7953 = vld [vmem:[#allocation3 + $0x9c] sm:$0xff]
  %v7954 = vld [vmem:[#allocation3 + $0xa4] sm:$0xff]
  %v7955 = vld [vmem:[#allocation3 + $0xac] sm:$0xff]
  %v7956 = vld [vmem:[#allocation3 + $0xb4] sm:$0xff]
  %v7957 = vld [vmem:[#allocation3 + $0xbc] sm:$0xff]
  %v7958 = vld [vmem:[#allocation3 + $0xc4] sm:$0xff]
  %v7959 = vld [vmem:[#allocation3 + $0xcc] sm:$0xff]
  %v7960 = vld [vmem:[#allocation3 + $0xd4] sm:$0xff]
  %v7961 = vld [vmem:[#allocation3 + $0xdc] sm:$0xff]
  %v7962 = vld [vmem:[#allocation3 + $0xe4] sm:$0xff]
  %v7963 = vld [vmem:[#allocation3 + $0xec] sm:$0xff]
  %v7964 = vld [vmem:[#allocation3 + $0xf4] sm:$0xff]
  %v7965 = vld [vmem:[#allocation3 + $0xfc] sm:$0xff]
  %v7966 = vld [vmem:[#allocation3 + $0x104] sm:$0xff]
  %v7967 = vld [vmem:[#allocation3 + $0x10c] sm:$0xff]
  %v7968 = vld [vmem:[#allocation3 + $0x114] sm:$0xff]
  %v7969 = vld [vmem:[#allocation3 + $0x11c] sm:$0xff]
  %v7970 = vld [vmem:[#allocation3 + $0x124] sm:$0xff]
  %v7971 = vld [vmem:[#allocation3 + $0x12c] sm:$0xff]
  %v7972 = vld [vmem:[#allocation3 + $0x134] sm:$0xff]
  %v7973 = vld [vmem:[#allocation3 + $0x13c] sm:$0xff]
  %v7974 = vld [vmem:[#allocation3 + $0x144] sm:$0xff]
  %v7975 = vld [vmem:[#allocation3 + $0x14c] sm:$0xff]
  %v7976 = vld [vmem:[#allocation3 + $0x154] sm:$0xff]
  %v7977 = vld [vmem:[#allocation3 + $0x15c] sm:$0xff]
  %v7978 = vld [vmem:[#allocation3 + $0x164] sm:$0xff]
  %v7979 = vld [vmem:[#allocation3 + $0x16c] sm:$0xff]
  %v7980 = vld [vmem:[#allocation3 + $0x174] sm:$0xff]
  %v7981 = vld [vmem:[#allocation3 + $0x17c] sm:$0xff]
  %v7982 = vld [vmem:[#allocation3 + $0x184] sm:$0xff]
  %v7983 = vld [vmem:[#allocation3 + $0x18c] sm:$0xff]
  %v7984 = vld [vmem:[#allocation3 + $0x194] sm:$0xff]
  %v7985 = vld [vmem:[#allocation3 + $0x19c] sm:$0xff]
  %v7986 = vld [vmem:[#allocation3 + $0x1a4] sm:$0xff]
  %v7987 = vld [vmem:[#allocation3 + $0x1ac] sm:$0xff]
  %v7988 = vld [vmem:[#allocation3 + $0x1b4] sm:$0xff]
  %v7989 = vld [vmem:[#allocation3 + $0x1bc] sm:$0xff]
  %v7990 = vld [vmem:[#allocation3 + $0x1c4] sm:$0xff]
  %v7991 = vld [vmem:[#allocation3 + $0x1cc] sm:$0xff]
  %v7992 = vld [vmem:[#allocation3 + $0x1d4] sm:$0xff]
  %v7993 = vld [vmem:[#allocation3 + $0x1dc] sm:$0xff]
  %v7994 = vld [vmem:[#allocation3 + $0x1e4] sm:$0xff]
  %v7995 = vld [vmem:[#allocation3 + $0x1ec] sm:$0xff]
  %v7996 = vld [vmem:[#allocation3 + $0x1f4] sm:$0xff]
  %v7997 = vld [vmem:[#allocation3 + $0x1fc] sm:$0xff]
  %v7998 = vld [vmem:[#allocation3 + $0x204] sm:$0xff]
  %v7999 = vld [vmem:[#allocation3 + $0x20c] sm:$0xff]
  %v8000 = vld [vmem:[#allocation3 + $0x214] sm:$0xff]
  %v8001 = vld [vmem:[#allocation3 + $0x21c] sm:$0xff]
  %v8002 = vld [vmem:[#allocation3 + $0x224] sm:$0xff]
  %v8003 = vld [vmem:[#allocation3 + $0x22c] sm:$0xff]
  %v8004 = vld [vmem:[#allocation3 + $0x234] sm:$0xff]
  %v8005 = vld [vmem:[#allocation3 + $0x23c] sm:$0xff]
  %v8006 = vld [vmem:[#allocation3 + $0x244] sm:$0xff]
  %v8007 = vld [vmem:[#allocation3 + $0x24c] sm:$0xff]
  %v8008 = vld [vmem:[#allocation3 + $0x254] sm:$0xff]
  %v8009 = vld [vmem:[#allocation3 + $0x25c] sm:$0xff]
  %v8010 = vld [vmem:[#allocation3 + $0x264] sm:$0xff]
  %v8011 = vld [vmem:[#allocation3 + $0x26c] sm:$0xff]
  %v8012 = vld [vmem:[#allocation3 + $0x274] sm:$0xff]
  %8090 = vrot.lane.b32.xlu0 %v7936, 40
  %v8091 = vpop.permute.xlu0 %8090
  %8092 = vrot.lane.b32.xlu0 %v7937, 40
  %v8093 = vpop.permute.xlu0 %8092
  %8094 = vrot.lane.b32.xlu0 %v7938, 40
  %v8095 = vpop.permute.xlu0 %8094
  %8096 = vrot.lane.b32.xlu0 %v7939, 40
  %v8097 = vpop.permute.xlu0 %8096
  %8098 = vrot.lane.b32.xlu0 %v7940, 40
  %v8099 = vpop.permute.xlu0 %8098
  %8100 = vrot.lane.b32.xlu0 %v7941, 40
  %v8101 = vpop.permute.xlu0 %8100
  %8102 = vrot.lane.b32.xlu0 %v7942, 40
  %v8103 = vpop.permute.xlu0 %8102
  %8104 = vrot.lane.b32.xlu0 %v7943, 40
  %v8105 = vpop.permute.xlu0 %8104
  %8106 = vrot.lane.b32.xlu0 %v7944, 40
  %v8107 = vpop.permute.xlu0 %8106
  %8108 = vrot.lane.b32.xlu0 %v7945, 40
  %v8109 = vpop.permute.xlu0 %8108
  %8110 = vrot.lane.b32.xlu0 %v7946, 40
  %v8111 = vpop.permute.xlu0 %8110
  %8112 = vrot.lane.b32.xlu0 %v7947, 40
  %v8113 = vpop.permute.xlu0 %8112
  %8114 = vrot.lane.b32.xlu0 %v7948, 40
  %v8115 = vpop.permute.xlu0 %8114
  %8116 = vrot.lane.b32.xlu0 %v7949, 40
  %v8117 = vpop.permute.xlu0 %8116
  %8118 = vrot.lane.b32.xlu0 %v7950, 40
  %v8119 = vpop.permute.xlu0 %8118
  %8120 = vrot.lane.b32.xlu0 %v7951, 40
  %v8121 = vpop.permute.xlu0 %8120
  %8122 = vrot.lane.b32.xlu0 %v7952, 40
  %v8123 = vpop.permute.xlu0 %8122
  %8124 = vrot.lane.b32.xlu0 %v7953, 40
  %v8125 = vpop.permute.xlu0 %8124
  %8126 = vrot.lane.b32.xlu0 %v7954, 40
  %v8127 = vpop.permute.xlu0 %8126
  %8128 = vrot.lane.b32.xlu0 %v7955, 40
  %v8129 = vpop.permute.xlu0 %8128
  %8130 = vrot.lane.b32.xlu0 %v7956, 40
  %v8131 = vpop.permute.xlu0 %8130
  %8132 = vrot.lane.b32.xlu0 %v7957, 40
  %v8133 = vpop.permute.xlu0 %8132
  %8134 = vrot.lane.b32.xlu0 %v7958, 40
  %v8135 = vpop.permute.xlu0 %8134
  %8136 = vrot.lane.b32.xlu0 %v7959, 40
  %v8137 = vpop.permute.xlu0 %8136
  %8138 = vrot.lane.b32.xlu0 %v7960, 40
  %v8139 = vpop.permute.xlu0 %8138
  %8140 = vrot.lane.b32.xlu0 %v7961, 40
  %v8141 = vpop.permute.xlu0 %8140
  %8142 = vrot.lane.b32.xlu0 %v7962, 40
  %v8143 = vpop.permute.xlu0 %8142
  %8144 = vrot.lane.b32.xlu0 %v7963, 40
  %v8145 = vpop.permute.xlu0 %8144
  %8146 = vrot.lane.b32.xlu0 %v7964, 40
  %v8147 = vpop.permute.xlu0 %8146
  %8148 = vrot.lane.b32.xlu0 %v7965, 40
  %v8149 = vpop.permute.xlu0 %8148
  %8150 = vrot.lane.b32.xlu0 %v7966, 40
  %v8151 = vpop.permute.xlu0 %8150
  %8152 = vrot.lane.b32.xlu0 %v7967, 40
  %v8153 = vpop.permute.xlu0 %8152
  %8154 = vrot.lane.b32.xlu0 %v7968, 40
  %v8155 = vpop.permute.xlu0 %8154
  %8156 = vrot.lane.b32.xlu0 %v7969, 40
  %v8157 = vpop.permute.xlu0 %8156
  %8158 = vrot.lane.b32.xlu0 %v7970, 40
  %v8159 = vpop.permute.xlu0 %8158
  %8160 = vrot.lane.b32.xlu0 %v7971, 40
  %v8161 = vpop.permute.xlu0 %8160
  %8162 = vrot.lane.b32.xlu0 %v7972, 40
  %v8163 = vpop.permute.xlu0 %8162
  %8164 = vrot.lane.b32.xlu0 %v7973, 40
  %v8165 = vpop.permute.xlu0 %8164
  %8166 = vrot.lane.b32.xlu0 %v7974, 40
  %v8167 = vpop.permute.xlu0 %8166
  %8168 = vrot.lane.b32.xlu0 %v7975, 40
  %v8169 = vpop.permute.xlu0 %8168
  %8170 = vrot.lane.b32.xlu0 %v7976, 40
  %v8171 = vpop.permute.xlu0 %8170
  %8172 = vrot.lane.b32.xlu0 %v7977, 40
  %v8173 = vpop.permute.xlu0 %8172
  %8174 = vrot.lane.b32.xlu0 %v7978, 40
  %v8175 = vpop.permute.xlu0 %8174
  %8176 = vrot.lane.b32.xlu0 %v7979, 40
  %v8177 = vpop.permute.xlu0 %8176
  %8178 = vrot.lane.b32.xlu0 %v7980, 40
  %v8179 = vpop.permute.xlu0 %8178
  %8180 = vrot.lane.b32.xlu0 %v7981, 40
  %v8181 = vpop.permute.xlu0 %8180
  %8182 = vrot.lane.b32.xlu0 %v7982, 40
  %v8183 = vpop.permute.xlu0 %8182
  %8184 = vrot.lane.b32.xlu0 %v7983, 40
  %v8185 = vpop.permute.xlu0 %8184
  %8186 = vrot.lane.b32.xlu0 %v7984, 40
  %v8187 = vpop.permute.xlu0 %8186
  %8188 = vrot.lane.b32.xlu0 %v7985, 40
  %v8189 = vpop.permute.xlu0 %8188
  %8190 = vrot.lane.b32.xlu0 %v7986, 40
  %v8191 = vpop.permute.xlu0 %8190
  %8192 = vrot.lane.b32.xlu0 %v7987, 40
  %v8193 = vpop.permute.xlu0 %8192
  %8194 = vrot.lane.b32.xlu0 %v7988, 40
  %v8195 = vpop.permute.xlu0 %8194
  %8196 = vrot.lane.b32.xlu0 %v7989, 40
  %v8197 = vpop.permute.xlu0 %8196
  %8198 = vrot.lane.b32.xlu0 %v7990, 40
  %v8199 = vpop.permute.xlu0 %8198
  %8200 = vrot.lane.b32.xlu0 %v7991, 40
  %v8201 = vpop.permute.xlu0 %8200
  %8202 = vrot.lane.b32.xlu0 %v7992, 40
  %v8203 = vpop.permute.xlu0 %8202
  %8204 = vrot.lane.b32.xlu0 %v7993, 40
  %v8205 = vpop.permute.xlu0 %8204
  %8206 = vrot.lane.b32.xlu0 %v7994, 40
  %v8207 = vpop.permute.xlu0 %8206
  %8208 = vrot.lane.b32.xlu0 %v7995, 40
  %v8209 = vpop.permute.xlu0 %8208
  %8210 = vrot.lane.b32.xlu0 %v7996, 40
  %v8211 = vpop.permute.xlu0 %8210
  %8212 = vrot.lane.b32.xlu0 %v7997, 40
  %v8213 = vpop.permute.xlu0 %8212
  %8214 = vrot.lane.b32.xlu0 %v7998, 40
  %v8215 = vpop.permute.xlu0 %8214
  %8216 = vrot.lane.b32.xlu0 %v7999, 40
  %v8217 = vpop.permute.xlu0 %8216
  %8218 = vrot.lane.b32.xlu0 %v8000, 40
  %v8219 = vpop.permute.xlu0 %8218
  %8220 = vrot.lane.b32.xlu0 %v8001, 40
  %v8221 = vpop.permute.xlu0 %8220
  %8222 = vrot.lane.b32.xlu0 %v8002, 40
  %v8223 = vpop.permute.xlu0 %8222
  %8224 = vrot.lane.b32.xlu0 %v8003, 40
  %v8225 = vpop.permute.xlu0 %8224
  %8226 = vrot.lane.b32.xlu0 %v8004, 40
  %v8227 = vpop.permute.xlu0 %8226
  %8228 = vrot.lane.b32.xlu0 %v8005, 40
  %v8229 = vpop.permute.xlu0 %8228
  %8230 = vrot.lane.b32.xlu0 %v8006, 40
  %v8231 = vpop.permute.xlu0 %8230
  %8232 = vrot.lane.b32.xlu0 %v8007, 40
  %v8233 = vpop.permute.xlu0 %8232
  %8234 = vrot.lane.b32.xlu0 %v8008, 40
  %v8235 = vpop.permute.xlu0 %8234
  %8236 = vrot.lane.b32.xlu0 %v8009, 40
  %v8237 = vpop.permute.xlu0 %8236
  %8238 = vrot.lane.b32.xlu0 %v8010, 40
  %v8239 = vpop.permute.xlu0 %8238
  %8240 = vrot.lane.b32.xlu0 %v8011, 40
  %v8241 = vpop.permute.xlu0 %8240
  %8242 = vrot.lane.b32.xlu0 %v8012, 40
  %v8243 = vpop.permute.xlu0 %8242
  %8321 = vst.msk [vmem:[#allocation2] sm:$0xff] %vm2412, %v8091
  %8322 = vst.msk [vmem:[#allocation2 + $0x8] sm:$0xff] %vm2412, %v8093
  %8323 = vst.msk [vmem:[#allocation2 + $0x10] sm:$0xff] %vm2412, %v8095
  %8324 = vst.msk [vmem:[#allocation2 + $0x18] sm:$0xff] %vm2412, %v8097
  %8325 = vst.msk [vmem:[#allocation2 + $0x20] sm:$0xff] %vm2412, %v8099
  %8326 = vst.msk [vmem:[#allocation2 + $0x28] sm:$0xff] %vm2412, %v8101
  %8327 = vst.msk [vmem:[#allocation2 + $0x30] sm:$0xff] %vm2412, %v8103
  %8328 = vst.msk [vmem:[#allocation2 + $0x38] sm:$0xff] %vm2412, %v8105
  %8329 = vst.msk [vmem:[#allocation2 + $0x40] sm:$0xff] %vm2412, %v8107
  %8330 = vst.msk [vmem:[#allocation2 + $0x48] sm:$0xff] %vm2412, %v8109
  %8331 = vst.msk [vmem:[#allocation2 + $0x50] sm:$0xff] %vm2412, %v8111
  %8332 = vst.msk [vmem:[#allocation2 + $0x58] sm:$0xff] %vm2412, %v8113
  %8333 = vst.msk [vmem:[#allocation2 + $0x60] sm:$0xff] %vm2412, %v8115
  %8334 = vst.msk [vmem:[#allocation2 + $0x68] sm:$0xff] %vm2412, %v8117
  %8335 = vst.msk [vmem:[#allocation2 + $0x70] sm:$0xff] %vm2412, %v8119
  %8336 = vst.msk [vmem:[#allocation2 + $0x78] sm:$0xff] %vm2412, %v8121
  %8337 = vst.msk [vmem:[#allocation2 + $0x80] sm:$0xff] %vm2412, %v8123
  %8338 = vst.msk [vmem:[#allocation2 + $0x88] sm:$0xff] %vm2412, %v8125
  %8339 = vst.msk [vmem:[#allocation2 + $0x90] sm:$0xff] %vm2412, %v8127
  %8340 = vst.msk [vmem:[#allocation2 + $0x98] sm:$0xff] %vm2412, %v8129
  %8341 = vst.msk [vmem:[#allocation2 + $0xa0] sm:$0xff] %vm2412, %v8131
  %8342 = vst.msk [vmem:[#allocation2 + $0xa8] sm:$0xff] %vm2412, %v8133
  %8343 = vst.msk [vmem:[#allocation2 + $0xb0] sm:$0xff] %vm2412, %v8135
  %8344 = vst.msk [vmem:[#allocation2 + $0xb8] sm:$0xff] %vm2412, %v8137
  %8345 = vst.msk [vmem:[#allocation2 + $0xc0] sm:$0xff] %vm2412, %v8139
  %8346 = vst.msk [vmem:[#allocation2 + $0xc8] sm:$0xff] %vm2412, %v8141
  %8347 = vst.msk [vmem:[#allocation2 + $0xd0] sm:$0xff] %vm2412, %v8143
  %8348 = vst.msk [vmem:[#allocation2 + $0xd8] sm:$0xff] %vm2412, %v8145
  %8349 = vst.msk [vmem:[#allocation2 + $0xe0] sm:$0xff] %vm2412, %v8147
  %8350 = vst.msk [vmem:[#allocation2 + $0xe8] sm:$0xff] %vm2412, %v8149
  %8351 = vst.msk [vmem:[#allocation2 + $0xf0] sm:$0xff] %vm2412, %v8151
  %8352 = vst.msk [vmem:[#allocation2 + $0xf8] sm:$0xff] %vm2412, %v8153
  %8353 = vst.msk [vmem:[#allocation2 + $0x100] sm:$0xff] %vm2412, %v8155
  %8354 = vst.msk [vmem:[#allocation2 + $0x108] sm:$0xff] %vm2412, %v8157
  %8355 = vst.msk [vmem:[#allocation2 + $0x110] sm:$0xff] %vm2412, %v8159
  %8356 = vst.msk [vmem:[#allocation2 + $0x118] sm:$0xff] %vm2412, %v8161
  %8357 = vst.msk [vmem:[#allocation2 + $0x120] sm:$0xff] %vm2412, %v8163
  %8358 = vst.msk [vmem:[#allocation2 + $0x128] sm:$0xff] %vm2412, %v8165
  %8359 = vst.msk [vmem:[#allocation2 + $0x130] sm:$0xff] %vm2412, %v8167
  %8360 = vst.msk [vmem:[#allocation2 + $0x138] sm:$0xff] %vm2412, %v8169
  %8361 = vst.msk [vmem:[#allocation2 + $0x140] sm:$0xff] %vm2412, %v8171
  %8362 = vst.msk [vmem:[#allocation2 + $0x148] sm:$0xff] %vm2412, %v8173
  %8363 = vst.msk [vmem:[#allocation2 + $0x150] sm:$0xff] %vm2412, %v8175
  %8364 = vst.msk [vmem:[#allocation2 + $0x158] sm:$0xff] %vm2412, %v8177
  %8365 = vst.msk [vmem:[#allocation2 + $0x160] sm:$0xff] %vm2412, %v8179
  %8366 = vst.msk [vmem:[#allocation2 + $0x168] sm:$0xff] %vm2412, %v8181
  %8367 = vst.msk [vmem:[#allocation2 + $0x170] sm:$0xff] %vm2412, %v8183
  %8368 = vst.msk [vmem:[#allocation2 + $0x178] sm:$0xff] %vm2412, %v8185
  %8369 = vst.msk [vmem:[#allocation2 + $0x180] sm:$0xff] %vm2412, %v8187
  %8370 = vst.msk [vmem:[#allocation2 + $0x188] sm:$0xff] %vm2412, %v8189
  %8371 = vst.msk [vmem:[#allocation2 + $0x190] sm:$0xff] %vm2412, %v8191
  %8372 = vst.msk [vmem:[#allocation2 + $0x198] sm:$0xff] %vm2412, %v8193
  %8373 = vst.msk [vmem:[#allocation2 + $0x1a0] sm:$0xff] %vm2412, %v8195
  %8374 = vst.msk [vmem:[#allocation2 + $0x1a8] sm:$0xff] %vm2412, %v8197
  %8375 = vst.msk [vmem:[#allocation2 + $0x1b0] sm:$0xff] %vm2412, %v8199
  %8376 = vst.msk [vmem:[#allocation2 + $0x1b8] sm:$0xff] %vm2412, %v8201
  %8377 = vst.msk [vmem:[#allocation2 + $0x1c0] sm:$0xff] %vm2412, %v8203
  %8378 = vst.msk [vmem:[#allocation2 + $0x1c8] sm:$0xff] %vm2412, %v8205
  %8379 = vst.msk [vmem:[#allocation2 + $0x1d0] sm:$0xff] %vm2412, %v8207
  %8380 = vst.msk [vmem:[#allocation2 + $0x1d8] sm:$0xff] %vm2412, %v8209
  %8381 = vst.msk [vmem:[#allocation2 + $0x1e0] sm:$0xff] %vm2412, %v8211
  %8382 = vst.msk [vmem:[#allocation2 + $0x1e8] sm:$0xff] %vm2412, %v8213
  %8383 = vst.msk [vmem:[#allocation2 + $0x1f0] sm:$0xff] %vm2412, %v8215
  %8384 = vst.msk [vmem:[#allocation2 + $0x1f8] sm:$0xff] %vm2412, %v8217
  %8385 = vst.msk [vmem:[#allocation2 + $0x200] sm:$0xff] %vm2412, %v8219
  %8386 = vst.msk [vmem:[#allocation2 + $0x208] sm:$0xff] %vm2412, %v8221
  %8387 = vst.msk [vmem:[#allocation2 + $0x210] sm:$0xff] %vm2412, %v8223
  %8388 = vst.msk [vmem:[#allocation2 + $0x218] sm:$0xff] %vm2412, %v8225
  %8389 = vst.msk [vmem:[#allocation2 + $0x220] sm:$0xff] %vm2412, %v8227
  %8390 = vst.msk [vmem:[#allocation2 + $0x228] sm:$0xff] %vm2412, %v8229
  %8391 = vst.msk [vmem:[#allocation2 + $0x230] sm:$0xff] %vm2412, %v8231
  %8392 = vst.msk [vmem:[#allocation2 + $0x238] sm:$0xff] %vm2412, %v8233
  %8393 = vst.msk [vmem:[#allocation2 + $0x240] sm:$0xff] %vm2412, %v8235
  %8394 = vst.msk [vmem:[#allocation2 + $0x248] sm:$0xff] %vm2412, %v8237
  %8395 = vst.msk [vmem:[#allocation2 + $0x250] sm:$0xff] %vm2412, %v8239
  %8396 = vst.msk [vmem:[#allocation2 + $0x258] sm:$0xff] %vm2412, %v8241
  %8397 = vst.msk [vmem:[#allocation2 + $0x260] sm:$0xff] %vm2412, %v8243
  %v8398 = vld [vmem:[#allocation3 + $0x24] sm:$0xff]
  %v8399 = vld [vmem:[#allocation3 + $0x2c] sm:$0xff]
  %v8400 = vld [vmem:[#allocation3 + $0x34] sm:$0xff]
  %v8401 = vld [vmem:[#allocation3 + $0x3c] sm:$0xff]
  %v8402 = vld [vmem:[#allocation3 + $0x44] sm:$0xff]
  %v8403 = vld [vmem:[#allocation3 + $0x4c] sm:$0xff]
  %v8404 = vld [vmem:[#allocation3 + $0x54] sm:$0xff]
  %v8405 = vld [vmem:[#allocation3 + $0x5c] sm:$0xff]
  %v8406 = vld [vmem:[#allocation3 + $0x64] sm:$0xff]
  %v8407 = vld [vmem:[#allocation3 + $0x6c] sm:$0xff]
  %v8408 = vld [vmem:[#allocation3 + $0x74] sm:$0xff]
  %v8409 = vld [vmem:[#allocation3 + $0x7c] sm:$0xff]
  %v8410 = vld [vmem:[#allocation3 + $0x84] sm:$0xff]
  %v8411 = vld [vmem:[#allocation3 + $0x8c] sm:$0xff]
  %v8412 = vld [vmem:[#allocation3 + $0x94] sm:$0xff]
  %v8413 = vld [vmem:[#allocation3 + $0x9c] sm:$0xff]
  %v8414 = vld [vmem:[#allocation3 + $0xa4] sm:$0xff]
  %v8415 = vld [vmem:[#allocation3 + $0xac] sm:$0xff]
  %v8416 = vld [vmem:[#allocation3 + $0xb4] sm:$0xff]
  %v8417 = vld [vmem:[#allocation3 + $0xbc] sm:$0xff]
  %v8418 = vld [vmem:[#allocation3 + $0xc4] sm:$0xff]
  %v8419 = vld [vmem:[#allocation3 + $0xcc] sm:$0xff]
  %v8420 = vld [vmem:[#allocation3 + $0xd4] sm:$0xff]
  %v8421 = vld [vmem:[#allocation3 + $0xdc] sm:$0xff]
  %v8422 = vld [vmem:[#allocation3 + $0xe4] sm:$0xff]
  %v8423 = vld [vmem:[#allocation3 + $0xec] sm:$0xff]
  %v8424 = vld [vmem:[#allocation3 + $0xf4] sm:$0xff]
  %v8425 = vld [vmem:[#allocation3 + $0xfc] sm:$0xff]
  %v8426 = vld [vmem:[#allocation3 + $0x104] sm:$0xff]
  %v8427 = vld [vmem:[#allocation3 + $0x10c] sm:$0xff]
  %v8428 = vld [vmem:[#allocation3 + $0x114] sm:$0xff]
  %v8429 = vld [vmem:[#allocation3 + $0x11c] sm:$0xff]
  %v8430 = vld [vmem:[#allocation3 + $0x124] sm:$0xff]
  %v8431 = vld [vmem:[#allocation3 + $0x12c] sm:$0xff]
  %v8432 = vld [vmem:[#allocation3 + $0x134] sm:$0xff]
  %v8433 = vld [vmem:[#allocation3 + $0x13c] sm:$0xff]
  %v8434 = vld [vmem:[#allocation3 + $0x144] sm:$0xff]
  %v8435 = vld [vmem:[#allocation3 + $0x14c] sm:$0xff]
  %v8436 = vld [vmem:[#allocation3 + $0x154] sm:$0xff]
  %v8437 = vld [vmem:[#allocation3 + $0x15c] sm:$0xff]
  %v8438 = vld [vmem:[#allocation3 + $0x164] sm:$0xff]
  %v8439 = vld [vmem:[#allocation3 + $0x16c] sm:$0xff]
  %v8440 = vld [vmem:[#allocation3 + $0x174] sm:$0xff]
  %v8441 = vld [vmem:[#allocation3 + $0x17c] sm:$0xff]
  %v8442 = vld [vmem:[#allocation3 + $0x184] sm:$0xff]
  %v8443 = vld [vmem:[#allocation3 + $0x18c] sm:$0xff]
  %v8444 = vld [vmem:[#allocation3 + $0x194] sm:$0xff]
  %v8445 = vld [vmem:[#allocation3 + $0x19c] sm:$0xff]
  %v8446 = vld [vmem:[#allocation3 + $0x1a4] sm:$0xff]
  %v8447 = vld [vmem:[#allocation3 + $0x1ac] sm:$0xff]
  %v8448 = vld [vmem:[#allocation3 + $0x1b4] sm:$0xff]
  %v8449 = vld [vmem:[#allocation3 + $0x1bc] sm:$0xff]
  %v8450 = vld [vmem:[#allocation3 + $0x1c4] sm:$0xff]
  %v8451 = vld [vmem:[#allocation3 + $0x1cc] sm:$0xff]
  %v8452 = vld [vmem:[#allocation3 + $0x1d4] sm:$0xff]
  %v8453 = vld [vmem:[#allocation3 + $0x1dc] sm:$0xff]
  %v8454 = vld [vmem:[#allocation3 + $0x1e4] sm:$0xff]
  %v8455 = vld [vmem:[#allocation3 + $0x1ec] sm:$0xff]
  %v8456 = vld [vmem:[#allocation3 + $0x1f4] sm:$0xff]
  %v8457 = vld [vmem:[#allocation3 + $0x1fc] sm:$0xff]
  %v8458 = vld [vmem:[#allocation3 + $0x204] sm:$0xff]
  %v8459 = vld [vmem:[#allocation3 + $0x20c] sm:$0xff]
  %v8460 = vld [vmem:[#allocation3 + $0x214] sm:$0xff]
  %v8461 = vld [vmem:[#allocation3 + $0x21c] sm:$0xff]
  %v8462 = vld [vmem:[#allocation3 + $0x224] sm:$0xff]
  %v8463 = vld [vmem:[#allocation3 + $0x22c] sm:$0xff]
  %v8464 = vld [vmem:[#allocation3 + $0x234] sm:$0xff]
  %v8465 = vld [vmem:[#allocation3 + $0x23c] sm:$0xff]
  %v8466 = vld [vmem:[#allocation3 + $0x244] sm:$0xff]
  %v8467 = vld [vmem:[#allocation3 + $0x24c] sm:$0xff]
  %v8468 = vld [vmem:[#allocation3 + $0x254] sm:$0xff]
  %v8469 = vld [vmem:[#allocation3 + $0x25c] sm:$0xff]
  %v8470 = vld [vmem:[#allocation3 + $0x264] sm:$0xff]
  %v8471 = vld [vmem:[#allocation3 + $0x26c] sm:$0xff]
  %v8472 = vld [vmem:[#allocation3 + $0x274] sm:$0xff]
  %v8473 = vld [vmem:[#allocation3 + $0x27c] sm:$0xff]
  %v8474 = vld [vmem:[#allocation3 + $0x284] sm:$0xff]
  %8552 = vrot.lane.b32.xlu0 %v8398, 48
  %v8553 = vpop.permute.xlu0 %8552
  %8554 = vrot.lane.b32.xlu0 %v8399, 48
  %v8555 = vpop.permute.xlu0 %8554
  %8556 = vrot.lane.b32.xlu0 %v8400, 48
  %v8557 = vpop.permute.xlu0 %8556
  %8558 = vrot.lane.b32.xlu0 %v8401, 48
  %v8559 = vpop.permute.xlu0 %8558
  %8560 = vrot.lane.b32.xlu0 %v8402, 48
  %v8561 = vpop.permute.xlu0 %8560
  %8562 = vrot.lane.b32.xlu0 %v8403, 48
  %v8563 = vpop.permute.xlu0 %8562
  %8564 = vrot.lane.b32.xlu0 %v8404, 48
  %v8565 = vpop.permute.xlu0 %8564
  %8566 = vrot.lane.b32.xlu0 %v8405, 48
  %v8567 = vpop.permute.xlu0 %8566
  %8568 = vrot.lane.b32.xlu0 %v8406, 48
  %v8569 = vpop.permute.xlu0 %8568
  %8570 = vrot.lane.b32.xlu0 %v8407, 48
  %v8571 = vpop.permute.xlu0 %8570
  %8572 = vrot.lane.b32.xlu0 %v8408, 48
  %v8573 = vpop.permute.xlu0 %8572
  %8574 = vrot.lane.b32.xlu0 %v8409, 48
  %v8575 = vpop.permute.xlu0 %8574
  %8576 = vrot.lane.b32.xlu0 %v8410, 48
  %v8577 = vpop.permute.xlu0 %8576
  %8578 = vrot.lane.b32.xlu0 %v8411, 48
  %v8579 = vpop.permute.xlu0 %8578
  %8580 = vrot.lane.b32.xlu0 %v8412, 48
  %v8581 = vpop.permute.xlu0 %8580
  %8582 = vrot.lane.b32.xlu0 %v8413, 48
  %v8583 = vpop.permute.xlu0 %8582
  %8584 = vrot.lane.b32.xlu0 %v8414, 48
  %v8585 = vpop.permute.xlu0 %8584
  %8586 = vrot.lane.b32.xlu0 %v8415, 48
  %v8587 = vpop.permute.xlu0 %8586
  %8588 = vrot.lane.b32.xlu0 %v8416, 48
  %v8589 = vpop.permute.xlu0 %8588
  %8590 = vrot.lane.b32.xlu0 %v8417, 48
  %v8591 = vpop.permute.xlu0 %8590
  %8592 = vrot.lane.b32.xlu0 %v8418, 48
  %v8593 = vpop.permute.xlu0 %8592
  %8594 = vrot.lane.b32.xlu0 %v8419, 48
  %v8595 = vpop.permute.xlu0 %8594
  %8596 = vrot.lane.b32.xlu0 %v8420, 48
  %v8597 = vpop.permute.xlu0 %8596
  %8598 = vrot.lane.b32.xlu0 %v8421, 48
  %v8599 = vpop.permute.xlu0 %8598
  %8600 = vrot.lane.b32.xlu0 %v8422, 48
  %v8601 = vpop.permute.xlu0 %8600
  %8602 = vrot.lane.b32.xlu0 %v8423, 48
  %v8603 = vpop.permute.xlu0 %8602
  %8604 = vrot.lane.b32.xlu0 %v8424, 48
  %v8605 = vpop.permute.xlu0 %8604
  %8606 = vrot.lane.b32.xlu0 %v8425, 48
  %v8607 = vpop.permute.xlu0 %8606
  %8608 = vrot.lane.b32.xlu0 %v8426, 48
  %v8609 = vpop.permute.xlu0 %8608
  %8610 = vrot.lane.b32.xlu0 %v8427, 48
  %v8611 = vpop.permute.xlu0 %8610
  %8612 = vrot.lane.b32.xlu0 %v8428, 48
  %v8613 = vpop.permute.xlu0 %8612
  %8614 = vrot.lane.b32.xlu0 %v8429, 48
  %v8615 = vpop.permute.xlu0 %8614
  %8616 = vrot.lane.b32.xlu0 %v8430, 48
  %v8617 = vpop.permute.xlu0 %8616
  %8618 = vrot.lane.b32.xlu0 %v8431, 48
  %v8619 = vpop.permute.xlu0 %8618
  %8620 = vrot.lane.b32.xlu0 %v8432, 48
  %v8621 = vpop.permute.xlu0 %8620
  %8622 = vrot.lane.b32.xlu0 %v8433, 48
  %v8623 = vpop.permute.xlu0 %8622
  %8624 = vrot.lane.b32.xlu0 %v8434, 48
  %v8625 = vpop.permute.xlu0 %8624
  %8626 = vrot.lane.b32.xlu0 %v8435, 48
  %v8627 = vpop.permute.xlu0 %8626
  %8628 = vrot.lane.b32.xlu0 %v8436, 48
  %v8629 = vpop.permute.xlu0 %8628
  %8630 = vrot.lane.b32.xlu0 %v8437, 48
  %v8631 = vpop.permute.xlu0 %8630
  %8632 = vrot.lane.b32.xlu0 %v8438, 48
  %v8633 = vpop.permute.xlu0 %8632
  %8634 = vrot.lane.b32.xlu0 %v8439, 48
  %v8635 = vpop.permute.xlu0 %8634
  %8636 = vrot.lane.b32.xlu0 %v8440, 48
  %v8637 = vpop.permute.xlu0 %8636
  %8638 = vrot.lane.b32.xlu0 %v8441, 48
  %v8639 = vpop.permute.xlu0 %8638
  %8640 = vrot.lane.b32.xlu0 %v8442, 48
  %v8641 = vpop.permute.xlu0 %8640
  %8642 = vrot.lane.b32.xlu0 %v8443, 48
  %v8643 = vpop.permute.xlu0 %8642
  %8644 = vrot.lane.b32.xlu0 %v8444, 48
  %v8645 = vpop.permute.xlu0 %8644
  %8646 = vrot.lane.b32.xlu0 %v8445, 48
  %v8647 = vpop.permute.xlu0 %8646
  %8648 = vrot.lane.b32.xlu0 %v8446, 48
  %v8649 = vpop.permute.xlu0 %8648
  %8650 = vrot.lane.b32.xlu0 %v8447, 48
  %v8651 = vpop.permute.xlu0 %8650
  %8652 = vrot.lane.b32.xlu0 %v8448, 48
  %v8653 = vpop.permute.xlu0 %8652
  %8654 = vrot.lane.b32.xlu0 %v8449, 48
  %v8655 = vpop.permute.xlu0 %8654
  %8656 = vrot.lane.b32.xlu0 %v8450, 48
  %v8657 = vpop.permute.xlu0 %8656
  %8658 = vrot.lane.b32.xlu0 %v8451, 48
  %v8659 = vpop.permute.xlu0 %8658
  %8660 = vrot.lane.b32.xlu0 %v8452, 48
  %v8661 = vpop.permute.xlu0 %8660
  %8662 = vrot.lane.b32.xlu0 %v8453, 48
  %v8663 = vpop.permute.xlu0 %8662
  %8664 = vrot.lane.b32.xlu0 %v8454, 48
  %v8665 = vpop.permute.xlu0 %8664
  %8666 = vrot.lane.b32.xlu0 %v8455, 48
  %v8667 = vpop.permute.xlu0 %8666
  %8668 = vrot.lane.b32.xlu0 %v8456, 48
  %v8669 = vpop.permute.xlu0 %8668
  %8670 = vrot.lane.b32.xlu0 %v8457, 48
  %v8671 = vpop.permute.xlu0 %8670
  %8672 = vrot.lane.b32.xlu0 %v8458, 48
  %v8673 = vpop.permute.xlu0 %8672
  %8674 = vrot.lane.b32.xlu0 %v8459, 48
  %v8675 = vpop.permute.xlu0 %8674
  %8676 = vrot.lane.b32.xlu0 %v8460, 48
  %v8677 = vpop.permute.xlu0 %8676
  %8678 = vrot.lane.b32.xlu0 %v8461, 48
  %v8679 = vpop.permute.xlu0 %8678
  %8680 = vrot.lane.b32.xlu0 %v8462, 48
  %v8681 = vpop.permute.xlu0 %8680
  %8682 = vrot.lane.b32.xlu0 %v8463, 48
  %v8683 = vpop.permute.xlu0 %8682
  %8684 = vrot.lane.b32.xlu0 %v8464, 48
  %v8685 = vpop.permute.xlu0 %8684
  %8686 = vrot.lane.b32.xlu0 %v8465, 48
  %v8687 = vpop.permute.xlu0 %8686
  %8688 = vrot.lane.b32.xlu0 %v8466, 48
  %v8689 = vpop.permute.xlu0 %8688
  %8690 = vrot.lane.b32.xlu0 %v8467, 48
  %v8691 = vpop.permute.xlu0 %8690
  %8692 = vrot.lane.b32.xlu0 %v8468, 48
  %v8693 = vpop.permute.xlu0 %8692
  %8694 = vrot.lane.b32.xlu0 %v8469, 48
  %v8695 = vpop.permute.xlu0 %8694
  %8696 = vrot.lane.b32.xlu0 %v8470, 48
  %v8697 = vpop.permute.xlu0 %8696
  %8698 = vrot.lane.b32.xlu0 %v8471, 48
  %v8699 = vpop.permute.xlu0 %8698
  %8700 = vrot.lane.b32.xlu0 %v8472, 48
  %v8701 = vpop.permute.xlu0 %8700
  %8702 = vrot.lane.b32.xlu0 %v8473, 48
  %v8703 = vpop.permute.xlu0 %8702
  %8704 = vrot.lane.b32.xlu0 %v8474, 48
  %v8705 = vpop.permute.xlu0 %8704
  %8783 = vst.msk [vmem:[#allocation2] sm:$0xff] %vm2875, %v8553
  %8784 = vst.msk [vmem:[#allocation2 + $0x8] sm:$0xff] %vm2875, %v8555
  %8785 = vst.msk [vmem:[#allocation2 + $0x10] sm:$0xff] %vm2875, %v8557
  %8786 = vst.msk [vmem:[#allocation2 + $0x18] sm:$0xff] %vm2875, %v8559
  %8787 = vst.msk [vmem:[#allocation2 + $0x20] sm:$0xff] %vm2875, %v8561
  %8788 = vst.msk [vmem:[#allocation2 + $0x28] sm:$0xff] %vm2875, %v8563
  %8789 = vst.msk [vmem:[#allocation2 + $0x30] sm:$0xff] %vm2875, %v8565
  %8790 = vst.msk [vmem:[#allocation2 + $0x38] sm:$0xff] %vm2875, %v8567
  %8791 = vst.msk [vmem:[#allocation2 + $0x40] sm:$0xff] %vm2875, %v8569
  %8792 = vst.msk [vmem:[#allocation2 + $0x48] sm:$0xff] %vm2875, %v8571
  %8793 = vst.msk [vmem:[#allocation2 + $0x50] sm:$0xff] %vm2875, %v8573
  %8794 = vst.msk [vmem:[#allocation2 + $0x58] sm:$0xff] %vm2875, %v8575
  %8795 = vst.msk [vmem:[#allocation2 + $0x60] sm:$0xff] %vm2875, %v8577
  %8796 = vst.msk [vmem:[#allocation2 + $0x68] sm:$0xff] %vm2875, %v8579
  %8797 = vst.msk [vmem:[#allocation2 + $0x70] sm:$0xff] %vm2875, %v8581
  %8798 = vst.msk [vmem:[#allocation2 + $0x78] sm:$0xff] %vm2875, %v8583
  %8799 = vst.msk [vmem:[#allocation2 + $0x80] sm:$0xff] %vm2875, %v8585
  %8800 = vst.msk [vmem:[#allocation2 + $0x88] sm:$0xff] %vm2875, %v8587
  %8801 = vst.msk [vmem:[#allocation2 + $0x90] sm:$0xff] %vm2875, %v8589
  %8802 = vst.msk [vmem:[#allocation2 + $0x98] sm:$0xff] %vm2875, %v8591
  %8803 = vst.msk [vmem:[#allocation2 + $0xa0] sm:$0xff] %vm2875, %v8593
  %8804 = vst.msk [vmem:[#allocation2 + $0xa8] sm:$0xff] %vm2875, %v8595
  %8805 = vst.msk [vmem:[#allocation2 + $0xb0] sm:$0xff] %vm2875, %v8597
  %8806 = vst.msk [vmem:[#allocation2 + $0xb8] sm:$0xff] %vm2875, %v8599
  %8807 = vst.msk [vmem:[#allocation2 + $0xc0] sm:$0xff] %vm2875, %v8601
  %8808 = vst.msk [vmem:[#allocation2 + $0xc8] sm:$0xff] %vm2875, %v8603
  %8809 = vst.msk [vmem:[#allocation2 + $0xd0] sm:$0xff] %vm2875, %v8605
  %8810 = vst.msk [vmem:[#allocation2 + $0xd8] sm:$0xff] %vm2875, %v8607
  %8811 = vst.msk [vmem:[#allocation2 + $0xe0] sm:$0xff] %vm2875, %v8609
  %8812 = vst.msk [vmem:[#allocation2 + $0xe8] sm:$0xff] %vm2875, %v8611
  %8813 = vst.msk [vmem:[#allocation2 + $0xf0] sm:$0xff] %vm2875, %v8613
  %8814 = vst.msk [vmem:[#allocation2 + $0xf8] sm:$0xff] %vm2875, %v8615
  %8815 = vst.msk [vmem:[#allocation2 + $0x100] sm:$0xff] %vm2875, %v8617
  %8816 = vst.msk [vmem:[#allocation2 + $0x108] sm:$0xff] %vm2875, %v8619
  %8817 = vst.msk [vmem:[#allocation2 + $0x110] sm:$0xff] %vm2875, %v8621
  %8818 = vst.msk [vmem:[#allocation2 + $0x118] sm:$0xff] %vm2875, %v8623
  %8819 = vst.msk [vmem:[#allocation2 + $0x120] sm:$0xff] %vm2875, %v8625
  %8820 = vst.msk [vmem:[#allocation2 + $0x128] sm:$0xff] %vm2875, %v8627
  %8821 = vst.msk [vmem:[#allocation2 + $0x130] sm:$0xff] %vm2875, %v8629
  %8822 = vst.msk [vmem:[#allocation2 + $0x138] sm:$0xff] %vm2875, %v8631
  %8823 = vst.msk [vmem:[#allocation2 + $0x140] sm:$0xff] %vm2875, %v8633
  %8824 = vst.msk [vmem:[#allocation2 + $0x148] sm:$0xff] %vm2875, %v8635
  %8825 = vst.msk [vmem:[#allocation2 + $0x150] sm:$0xff] %vm2875, %v8637
  %8826 = vst.msk [vmem:[#allocation2 + $0x158] sm:$0xff] %vm2875, %v8639
  %8827 = vst.msk [vmem:[#allocation2 + $0x160] sm:$0xff] %vm2875, %v8641
  %8828 = vst.msk [vmem:[#allocation2 + $0x168] sm:$0xff] %vm2875, %v8643
  %8829 = vst.msk [vmem:[#allocation2 + $0x170] sm:$0xff] %vm2875, %v8645
  %8830 = vst.msk [vmem:[#allocation2 + $0x178] sm:$0xff] %vm2875, %v8647
  %8831 = vst.msk [vmem:[#allocation2 + $0x180] sm:$0xff] %vm2875, %v8649
  %8832 = vst.msk [vmem:[#allocation2 + $0x188] sm:$0xff] %vm2875, %v8651
  %8833 = vst.msk [vmem:[#allocation2 + $0x190] sm:$0xff] %vm2875, %v8653
  %8834 = vst.msk [vmem:[#allocation2 + $0x198] sm:$0xff] %vm2875, %v8655
  %8835 = vst.msk [vmem:[#allocation2 + $0x1a0] sm:$0xff] %vm2875, %v8657
  %8836 = vst.msk [vmem:[#allocation2 + $0x1a8] sm:$0xff] %vm2875, %v8659
  %8837 = vst.msk [vmem:[#allocation2 + $0x1b0] sm:$0xff] %vm2875, %v8661
  %8838 = vst.msk [vmem:[#allocation2 + $0x1b8] sm:$0xff] %vm2875, %v8663
  %8839 = vst.msk [vmem:[#allocation2 + $0x1c0] sm:$0xff] %vm2875, %v8665
  %8840 = vst.msk [vmem:[#allocation2 + $0x1c8] sm:$0xff] %vm2875, %v8667
  %8841 = vst.msk [vmem:[#allocation2 + $0x1d0] sm:$0xff] %vm2875, %v8669
  %8842 = vst.msk [vmem:[#allocation2 + $0x1d8] sm:$0xff] %vm2875, %v8671
  %8843 = vst.msk [vmem:[#allocation2 + $0x1e0] sm:$0xff] %vm2875, %v8673
  %8844 = vst.msk [vmem:[#allocation2 + $0x1e8] sm:$0xff] %vm2875, %v8675
  %8845 = vst.msk [vmem:[#allocation2 + $0x1f0] sm:$0xff] %vm2875, %v8677
  %8846 = vst.msk [vmem:[#allocation2 + $0x1f8] sm:$0xff] %vm2875, %v8679
  %8847 = vst.msk [vmem:[#allocation2 + $0x200] sm:$0xff] %vm2875, %v8681
  %8848 = vst.msk [vmem:[#allocation2 + $0x208] sm:$0xff] %vm2875, %v8683
  %8849 = vst.msk [vmem:[#allocation2 + $0x210] sm:$0xff] %vm2875, %v8685
  %8850 = vst.msk [vmem:[#allocation2 + $0x218] sm:$0xff] %vm2875, %v8687
  %8851 = vst.msk [vmem:[#allocation2 + $0x220] sm:$0xff] %vm2875, %v8689
  %8852 = vst.msk [vmem:[#allocation2 + $0x228] sm:$0xff] %vm2875, %v8691
  %8853 = vst.msk [vmem:[#allocation2 + $0x230] sm:$0xff] %vm2875, %v8693
  %8854 = vst.msk [vmem:[#allocation2 + $0x238] sm:$0xff] %vm2875, %v8695
  %8855 = vst.msk [vmem:[#allocation2 + $0x240] sm:$0xff] %vm2875, %v8697
  %8856 = vst.msk [vmem:[#allocation2 + $0x248] sm:$0xff] %vm2875, %v8699
  %8857 = vst.msk [vmem:[#allocation2 + $0x250] sm:$0xff] %vm2875, %v8701
  %8858 = vst.msk [vmem:[#allocation2 + $0x258] sm:$0xff] %vm2875, %v8703
  %8859 = vst.msk [vmem:[#allocation2 + $0x260] sm:$0xff] %vm2875, %v8705
  %v8860 = vld [vmem:[#allocation3 + $0x25] sm:$0xff]
  %v8861 = vld [vmem:[#allocation3 + $0x2d] sm:$0xff]
  %v8862 = vld [vmem:[#allocation3 + $0x35] sm:$0xff]
  %v8863 = vld [vmem:[#allocation3 + $0x3d] sm:$0xff]
  %v8864 = vld [vmem:[#allocation3 + $0x45] sm:$0xff]
  %v8865 = vld [vmem:[#allocation3 + $0x4d] sm:$0xff]
  %v8866 = vld [vmem:[#allocation3 + $0x55] sm:$0xff]
  %v8867 = vld [vmem:[#allocation3 + $0x5d] sm:$0xff]
  %v8868 = vld [vmem:[#allocation3 + $0x65] sm:$0xff]
  %v8869 = vld [vmem:[#allocation3 + $0x6d] sm:$0xff]
  %v8870 = vld [vmem:[#allocation3 + $0x75] sm:$0xff]
  %v8871 = vld [vmem:[#allocation3 + $0x7d] sm:$0xff]
  %v8872 = vld [vmem:[#allocation3 + $0x85] sm:$0xff]
  %v8873 = vld [vmem:[#allocation3 + $0x8d] sm:$0xff]
  %v8874 = vld [vmem:[#allocation3 + $0x95] sm:$0xff]
  %v8875 = vld [vmem:[#allocation3 + $0x9d] sm:$0xff]
  %v8876 = vld [vmem:[#allocation3 + $0xa5] sm:$0xff]
  %v8877 = vld [vmem:[#allocation3 + $0xad] sm:$0xff]
  %v8878 = vld [vmem:[#allocation3 + $0xb5] sm:$0xff]
  %v8879 = vld [vmem:[#allocation3 + $0xbd] sm:$0xff]
  %v8880 = vld [vmem:[#allocation3 + $0xc5] sm:$0xff]
  %v8881 = vld [vmem:[#allocation3 + $0xcd] sm:$0xff]
  %v8882 = vld [vmem:[#allocation3 + $0xd5] sm:$0xff]
  %v8883 = vld [vmem:[#allocation3 + $0xdd] sm:$0xff]
  %v8884 = vld [vmem:[#allocation3 + $0xe5] sm:$0xff]
  %v8885 = vld [vmem:[#allocation3 + $0xed] sm:$0xff]
  %v8886 = vld [vmem:[#allocation3 + $0xf5] sm:$0xff]
  %v8887 = vld [vmem:[#allocation3 + $0xfd] sm:$0xff]
  %v8888 = vld [vmem:[#allocation3 + $0x105] sm:$0xff]
  %v8889 = vld [vmem:[#allocation3 + $0x10d] sm:$0xff]
  %v8890 = vld [vmem:[#allocation3 + $0x115] sm:$0xff]
  %v8891 = vld [vmem:[#allocation3 + $0x11d] sm:$0xff]
  %v8892 = vld [vmem:[#allocation3 + $0x125] sm:$0xff]
  %v8893 = vld [vmem:[#allocation3 + $0x12d] sm:$0xff]
  %v8894 = vld [vmem:[#allocation3 + $0x135] sm:$0xff]
  %v8895 = vld [vmem:[#allocation3 + $0x13d] sm:$0xff]
  %v8896 = vld [vmem:[#allocation3 + $0x145] sm:$0xff]
  %v8897 = vld [vmem:[#allocation3 + $0x14d] sm:$0xff]
  %v8898 = vld [vmem:[#allocation3 + $0x155] sm:$0xff]
  %v8899 = vld [vmem:[#allocation3 + $0x15d] sm:$0xff]
  %v8900 = vld [vmem:[#allocation3 + $0x165] sm:$0xff]
  %v8901 = vld [vmem:[#allocation3 + $0x16d] sm:$0xff]
  %v8902 = vld [vmem:[#allocation3 + $0x175] sm:$0xff]
  %v8903 = vld [vmem:[#allocation3 + $0x17d] sm:$0xff]
  %v8904 = vld [vmem:[#allocation3 + $0x185] sm:$0xff]
  %v8905 = vld [vmem:[#allocation3 + $0x18d] sm:$0xff]
  %v8906 = vld [vmem:[#allocation3 + $0x195] sm:$0xff]
  %v8907 = vld [vmem:[#allocation3 + $0x19d] sm:$0xff]
  %v8908 = vld [vmem:[#allocation3 + $0x1a5] sm:$0xff]
  %v8909 = vld [vmem:[#allocation3 + $0x1ad] sm:$0xff]
  %v8910 = vld [vmem:[#allocation3 + $0x1b5] sm:$0xff]
  %v8911 = vld [vmem:[#allocation3 + $0x1bd] sm:$0xff]
  %v8912 = vld [vmem:[#allocation3 + $0x1c5] sm:$0xff]
  %v8913 = vld [vmem:[#allocation3 + $0x1cd] sm:$0xff]
  %v8914 = vld [vmem:[#allocation3 + $0x1d5] sm:$0xff]
  %v8915 = vld [vmem:[#allocation3 + $0x1dd] sm:$0xff]
  %v8916 = vld [vmem:[#allocation3 + $0x1e5] sm:$0xff]
  %v8917 = vld [vmem:[#allocation3 + $0x1ed] sm:$0xff]
  %v8918 = vld [vmem:[#allocation3 + $0x1f5] sm:$0xff]
  %v8919 = vld [vmem:[#allocation3 + $0x1fd] sm:$0xff]
  %v8920 = vld [vmem:[#allocation3 + $0x205] sm:$0xff]
  %v8921 = vld [vmem:[#allocation3 + $0x20d] sm:$0xff]
  %v8922 = vld [vmem:[#allocation3 + $0x215] sm:$0xff]
  %v8923 = vld [vmem:[#allocation3 + $0x21d] sm:$0xff]
  %v8924 = vld [vmem:[#allocation3 + $0x225] sm:$0xff]
  %v8925 = vld [vmem:[#allocation3 + $0x22d] sm:$0xff]
  %v8926 = vld [vmem:[#allocation3 + $0x235] sm:$0xff]
  %v8927 = vld [vmem:[#allocation3 + $0x23d] sm:$0xff]
  %v8928 = vld [vmem:[#allocation3 + $0x245] sm:$0xff]
  %v8929 = vld [vmem:[#allocation3 + $0x24d] sm:$0xff]
  %v8930 = vld [vmem:[#allocation3 + $0x255] sm:$0xff]
  %v8931 = vld [vmem:[#allocation3 + $0x25d] sm:$0xff]
  %v8932 = vld [vmem:[#allocation3 + $0x265] sm:$0xff]
  %v8933 = vld [vmem:[#allocation3 + $0x26d] sm:$0xff]
  %v8934 = vld [vmem:[#allocation3 + $0x275] sm:$0xff]
  %v8935 = vld [vmem:[#allocation3 + $0x27d] sm:$0xff]
  %v8936 = vld [vmem:[#allocation3 + $0x285] sm:$0xff]
  %9014 = vrot.lane.b32.xlu0 %v8860, 56
  %v9015 = vpop.permute.xlu0 %9014
  %9016 = vrot.lane.b32.xlu0 %v8861, 56
  %v9017 = vpop.permute.xlu0 %9016
  %9018 = vrot.lane.b32.xlu0 %v8862, 56
  %v9019 = vpop.permute.xlu0 %9018
  %9020 = vrot.lane.b32.xlu0 %v8863, 56
  %v9021 = vpop.permute.xlu0 %9020
  %9022 = vrot.lane.b32.xlu0 %v8864, 56
  %v9023 = vpop.permute.xlu0 %9022
  %9024 = vrot.lane.b32.xlu0 %v8865, 56
  %v9025 = vpop.permute.xlu0 %9024
  %9026 = vrot.lane.b32.xlu0 %v8866, 56
  %v9027 = vpop.permute.xlu0 %9026
  %9028 = vrot.lane.b32.xlu0 %v8867, 56
  %v9029 = vpop.permute.xlu0 %9028
  %9030 = vrot.lane.b32.xlu0 %v8868, 56
  %v9031 = vpop.permute.xlu0 %9030
  %9032 = vrot.lane.b32.xlu0 %v8869, 56
  %v9033 = vpop.permute.xlu0 %9032
  %9034 = vrot.lane.b32.xlu0 %v8870, 56
  %v9035 = vpop.permute.xlu0 %9034
  %9036 = vrot.lane.b32.xlu0 %v8871, 56
  %v9037 = vpop.permute.xlu0 %9036
  %9038 = vrot.lane.b32.xlu0 %v8872, 56
  %v9039 = vpop.permute.xlu0 %9038
  %9040 = vrot.lane.b32.xlu0 %v8873, 56
  %v9041 = vpop.permute.xlu0 %9040
  %9042 = vrot.lane.b32.xlu0 %v8874, 56
  %v9043 = vpop.permute.xlu0 %9042
  %9044 = vrot.lane.b32.xlu0 %v8875, 56
  %v9045 = vpop.permute.xlu0 %9044
  %9046 = vrot.lane.b32.xlu0 %v8876, 56
  %v9047 = vpop.permute.xlu0 %9046
  %9048 = vrot.lane.b32.xlu0 %v8877, 56
  %v9049 = vpop.permute.xlu0 %9048
  %9050 = vrot.lane.b32.xlu0 %v8878, 56
  %v9051 = vpop.permute.xlu0 %9050
  %9052 = vrot.lane.b32.xlu0 %v8879, 56
  %v9053 = vpop.permute.xlu0 %9052
  %9054 = vrot.lane.b32.xlu0 %v8880, 56
  %v9055 = vpop.permute.xlu0 %9054
  %9056 = vrot.lane.b32.xlu0 %v8881, 56
  %v9057 = vpop.permute.xlu0 %9056
  %9058 = vrot.lane.b32.xlu0 %v8882, 56
  %v9059 = vpop.permute.xlu0 %9058
  %9060 = vrot.lane.b32.xlu0 %v8883, 56
  %v9061 = vpop.permute.xlu0 %9060
  %9062 = vrot.lane.b32.xlu0 %v8884, 56
  %v9063 = vpop.permute.xlu0 %9062
  %9064 = vrot.lane.b32.xlu0 %v8885, 56
  %v9065 = vpop.permute.xlu0 %9064
  %9066 = vrot.lane.b32.xlu0 %v8886, 56
  %v9067 = vpop.permute.xlu0 %9066
  %9068 = vrot.lane.b32.xlu0 %v8887, 56
  %v9069 = vpop.permute.xlu0 %9068
  %9070 = vrot.lane.b32.xlu0 %v8888, 56
  %v9071 = vpop.permute.xlu0 %9070
  %9072 = vrot.lane.b32.xlu0 %v8889, 56
  %v9073 = vpop.permute.xlu0 %9072
  %9074 = vrot.lane.b32.xlu0 %v8890, 56
  %v9075 = vpop.permute.xlu0 %9074
  %9076 = vrot.lane.b32.xlu0 %v8891, 56
  %v9077 = vpop.permute.xlu0 %9076
  %9078 = vrot.lane.b32.xlu0 %v8892, 56
  %v9079 = vpop.permute.xlu0 %9078
  %9080 = vrot.lane.b32.xlu0 %v8893, 56
  %v9081 = vpop.permute.xlu0 %9080
  %9082 = vrot.lane.b32.xlu0 %v8894, 56
  %v9083 = vpop.permute.xlu0 %9082
  %9084 = vrot.lane.b32.xlu0 %v8895, 56
  %v9085 = vpop.permute.xlu0 %9084
  %9086 = vrot.lane.b32.xlu0 %v8896, 56
  %v9087 = vpop.permute.xlu0 %9086
  %9088 = vrot.lane.b32.xlu0 %v8897, 56
  %v9089 = vpop.permute.xlu0 %9088
  %9090 = vrot.lane.b32.xlu0 %v8898, 56
  %v9091 = vpop.permute.xlu0 %9090
  %9092 = vrot.lane.b32.xlu0 %v8899, 56
  %v9093 = vpop.permute.xlu0 %9092
  %9094 = vrot.lane.b32.xlu0 %v8900, 56
  %v9095 = vpop.permute.xlu0 %9094
  %9096 = vrot.lane.b32.xlu0 %v8901, 56
  %v9097 = vpop.permute.xlu0 %9096
  %9098 = vrot.lane.b32.xlu0 %v8902, 56
  %v9099 = vpop.permute.xlu0 %9098
  %9100 = vrot.lane.b32.xlu0 %v8903, 56
  %v9101 = vpop.permute.xlu0 %9100
  %9102 = vrot.lane.b32.xlu0 %v8904, 56
  %v9103 = vpop.permute.xlu0 %9102
  %9104 = vrot.lane.b32.xlu0 %v8905, 56
  %v9105 = vpop.permute.xlu0 %9104
  %9106 = vrot.lane.b32.xlu0 %v8906, 56
  %v9107 = vpop.permute.xlu0 %9106
  %9108 = vrot.lane.b32.xlu0 %v8907, 56
  %v9109 = vpop.permute.xlu0 %9108
  %9110 = vrot.lane.b32.xlu0 %v8908, 56
  %v9111 = vpop.permute.xlu0 %9110
  %9112 = vrot.lane.b32.xlu0 %v8909, 56
  %v9113 = vpop.permute.xlu0 %9112
  %9114 = vrot.lane.b32.xlu0 %v8910, 56
  %v9115 = vpop.permute.xlu0 %9114
  %9116 = vrot.lane.b32.xlu0 %v8911, 56
  %v9117 = vpop.permute.xlu0 %9116
  %9118 = vrot.lane.b32.xlu0 %v8912, 56
  %v9119 = vpop.permute.xlu0 %9118
  %9120 = vrot.lane.b32.xlu0 %v8913, 56
  %v9121 = vpop.permute.xlu0 %9120
  %9122 = vrot.lane.b32.xlu0 %v8914, 56
  %v9123 = vpop.permute.xlu0 %9122
  %9124 = vrot.lane.b32.xlu0 %v8915, 56
  %v9125 = vpop.permute.xlu0 %9124
  %9126 = vrot.lane.b32.xlu0 %v8916, 56
  %v9127 = vpop.permute.xlu0 %9126
  %9128 = vrot.lane.b32.xlu0 %v8917, 56
  %v9129 = vpop.permute.xlu0 %9128
  %9130 = vrot.lane.b32.xlu0 %v8918, 56
  %v9131 = vpop.permute.xlu0 %9130
  %9132 = vrot.lane.b32.xlu0 %v8919, 56
  %v9133 = vpop.permute.xlu0 %9132
  %9134 = vrot.lane.b32.xlu0 %v8920, 56
  %v9135 = vpop.permute.xlu0 %9134
  %9136 = vrot.lane.b32.xlu0 %v8921, 56
  %v9137 = vpop.permute.xlu0 %9136
  %9138 = vrot.lane.b32.xlu0 %v8922, 56
  %v9139 = vpop.permute.xlu0 %9138
  %9140 = vrot.lane.b32.xlu0 %v8923, 56
  %v9141 = vpop.permute.xlu0 %9140
  %9142 = vrot.lane.b32.xlu0 %v8924, 56
  %v9143 = vpop.permute.xlu0 %9142
  %9144 = vrot.lane.b32.xlu0 %v8925, 56
  %v9145 = vpop.permute.xlu0 %9144
  %9146 = vrot.lane.b32.xlu0 %v8926, 56
  %v9147 = vpop.permute.xlu0 %9146
  %9148 = vrot.lane.b32.xlu0 %v8927, 56
  %v9149 = vpop.permute.xlu0 %9148
  %9150 = vrot.lane.b32.xlu0 %v8928, 56
  %v9151 = vpop.permute.xlu0 %9150
  %9152 = vrot.lane.b32.xlu0 %v8929, 56
  %v9153 = vpop.permute.xlu0 %9152
  %9154 = vrot.lane.b32.xlu0 %v8930, 56
  %v9155 = vpop.permute.xlu0 %9154
  %9156 = vrot.lane.b32.xlu0 %v8931, 56
  %v9157 = vpop.permute.xlu0 %9156
  %9158 = vrot.lane.b32.xlu0 %v8932, 56
  %v9159 = vpop.permute.xlu0 %9158
  %9160 = vrot.lane.b32.xlu0 %v8933, 56
  %v9161 = vpop.permute.xlu0 %9160
  %9162 = vrot.lane.b32.xlu0 %v8934, 56
  %v9163 = vpop.permute.xlu0 %9162
  %9164 = vrot.lane.b32.xlu0 %v8935, 56
  %v9165 = vpop.permute.xlu0 %9164
  %9166 = vrot.lane.b32.xlu0 %v8936, 56
  %v9167 = vpop.permute.xlu0 %9166
  %9245 = vst.msk [vmem:[#allocation2] sm:$0xff] %vm3338, %v9015
  %9246 = vst.msk [vmem:[#allocation2 + $0x8] sm:$0xff] %vm3338, %v9017
  %9247 = vst.msk [vmem:[#allocation2 + $0x10] sm:$0xff] %vm3338, %v9019
  %9248 = vst.msk [vmem:[#allocation2 + $0x18] sm:$0xff] %vm3338, %v9021
  %9249 = vst.msk [vmem:[#allocation2 + $0x20] sm:$0xff] %vm3338, %v9023
  %9250 = vst.msk [vmem:[#allocation2 + $0x28] sm:$0xff] %vm3338, %v9025
  %9251 = vst.msk [vmem:[#allocation2 + $0x30] sm:$0xff] %vm3338, %v9027
  %9252 = vst.msk [vmem:[#allocation2 + $0x38] sm:$0xff] %vm3338, %v9029
  %9253 = vst.msk [vmem:[#allocation2 + $0x40] sm:$0xff] %vm3338, %v9031
  %9254 = vst.msk [vmem:[#allocation2 + $0x48] sm:$0xff] %vm3338, %v9033
  %9255 = vst.msk [vmem:[#allocation2 + $0x50] sm:$0xff] %vm3338, %v9035
  %9256 = vst.msk [vmem:[#allocation2 + $0x58] sm:$0xff] %vm3338, %v9037
  %9257 = vst.msk [vmem:[#allocation2 + $0x60] sm:$0xff] %vm3338, %v9039
  %9258 = vst.msk [vmem:[#allocation2 + $0x68] sm:$0xff] %vm3338, %v9041
  %9259 = vst.msk [vmem:[#allocation2 + $0x70] sm:$0xff] %vm3338, %v9043
  %9260 = vst.msk [vmem:[#allocation2 + $0x78] sm:$0xff] %vm3338, %v9045
  %9261 = vst.msk [vmem:[#allocation2 + $0x80] sm:$0xff] %vm3338, %v9047
  %9262 = vst.msk [vmem:[#allocation2 + $0x88] sm:$0xff] %vm3338, %v9049
  %9263 = vst.msk [vmem:[#allocation2 + $0x90] sm:$0xff] %vm3338, %v9051
  %9264 = vst.msk [vmem:[#allocation2 + $0x98] sm:$0xff] %vm3338, %v9053
  %9265 = vst.msk [vmem:[#allocation2 + $0xa0] sm:$0xff] %vm3338, %v9055
  %9266 = vst.msk [vmem:[#allocation2 + $0xa8] sm:$0xff] %vm3338, %v9057
  %9267 = vst.msk [vmem:[#allocation2 + $0xb0] sm:$0xff] %vm3338, %v9059
  %9268 = vst.msk [vmem:[#allocation2 + $0xb8] sm:$0xff] %vm3338, %v9061
  %9269 = vst.msk [vmem:[#allocation2 + $0xc0] sm:$0xff] %vm3338, %v9063
  %9270 = vst.msk [vmem:[#allocation2 + $0xc8] sm:$0xff] %vm3338, %v9065
  %9271 = vst.msk [vmem:[#allocation2 + $0xd0] sm:$0xff] %vm3338, %v9067
  %9272 = vst.msk [vmem:[#allocation2 + $0xd8] sm:$0xff] %vm3338, %v9069
  %9273 = vst.msk [vmem:[#allocation2 + $0xe0] sm:$0xff] %vm3338, %v9071
  %9274 = vst.msk [vmem:[#allocation2 + $0xe8] sm:$0xff] %vm3338, %v9073
  %9275 = vst.msk [vmem:[#allocation2 + $0xf0] sm:$0xff] %vm3338, %v9075
  %9276 = vst.msk [vmem:[#allocation2 + $0xf8] sm:$0xff] %vm3338, %v9077
  %9277 = vst.msk [vmem:[#allocation2 + $0x100] sm:$0xff] %vm3338, %v9079
  %9278 = vst.msk [vmem:[#allocation2 + $0x108] sm:$0xff] %vm3338, %v9081
  %9279 = vst.msk [vmem:[#allocation2 + $0x110] sm:$0xff] %vm3338, %v9083
  %9280 = vst.msk [vmem:[#allocation2 + $0x118] sm:$0xff] %vm3338, %v9085
  %9281 = vst.msk [vmem:[#allocation2 + $0x120] sm:$0xff] %vm3338, %v9087
  %9282 = vst.msk [vmem:[#allocation2 + $0x128] sm:$0xff] %vm3338, %v9089
  %9283 = vst.msk [vmem:[#allocation2 + $0x130] sm:$0xff] %vm3338, %v9091
  %9284 = vst.msk [vmem:[#allocation2 + $0x138] sm:$0xff] %vm3338, %v9093
  %9285 = vst.msk [vmem:[#allocation2 + $0x140] sm:$0xff] %vm3338, %v9095
  %9286 = vst.msk [vmem:[#allocation2 + $0x148] sm:$0xff] %vm3338, %v9097
  %9287 = vst.msk [vmem:[#allocation2 + $0x150] sm:$0xff] %vm3338, %v9099
  %9288 = vst.msk [vmem:[#allocation2 + $0x158] sm:$0xff] %vm3338, %v9101
  %9289 = vst.msk [vmem:[#allocation2 + $0x160] sm:$0xff] %vm3338, %v9103
  %9290 = vst.msk [vmem:[#allocation2 + $0x168] sm:$0xff] %vm3338, %v9105
  %9291 = vst.msk [vmem:[#allocation2 + $0x170] sm:$0xff] %vm3338, %v9107
  %9292 = vst.msk [vmem:[#allocation2 + $0x178] sm:$0xff] %vm3338, %v9109
  %9293 = vst.msk [vmem:[#allocation2 + $0x180] sm:$0xff] %vm3338, %v9111
  %9294 = vst.msk [vmem:[#allocation2 + $0x188] sm:$0xff] %vm3338, %v9113
  %9295 = vst.msk [vmem:[#allocation2 + $0x190] sm:$0xff] %vm3338, %v9115
  %9296 = vst.msk [vmem:[#allocation2 + $0x198] sm:$0xff] %vm3338, %v9117
  %9297 = vst.msk [vmem:[#allocation2 + $0x1a0] sm:$0xff] %vm3338, %v9119
  %9298 = vst.msk [vmem:[#allocation2 + $0x1a8] sm:$0xff] %vm3338, %v9121
  %9299 = vst.msk [vmem:[#allocation2 + $0x1b0] sm:$0xff] %vm3338, %v9123
  %9300 = vst.msk [vmem:[#allocation2 + $0x1b8] sm:$0xff] %vm3338, %v9125
  %9301 = vst.msk [vmem:[#allocation2 + $0x1c0] sm:$0xff] %vm3338, %v9127
  %9302 = vst.msk [vmem:[#allocation2 + $0x1c8] sm:$0xff] %vm3338, %v9129
  %9303 = vst.msk [vmem:[#allocation2 + $0x1d0] sm:$0xff] %vm3338, %v9131
  %9304 = vst.msk [vmem:[#allocation2 + $0x1d8] sm:$0xff] %vm3338, %v9133
  %9305 = vst.msk [vmem:[#allocation2 + $0x1e0] sm:$0xff] %vm3338, %v9135
  %9306 = vst.msk [vmem:[#allocation2 + $0x1e8] sm:$0xff] %vm3338, %v9137
  %9307 = vst.msk [vmem:[#allocation2 + $0x1f0] sm:$0xff] %vm3338, %v9139
  %9308 = vst.msk [vmem:[#allocation2 + $0x1f8] sm:$0xff] %vm3338, %v9141
  %9309 = vst.msk [vmem:[#allocation2 + $0x200] sm:$0xff] %vm3338, %v9143
  %9310 = vst.msk [vmem:[#allocation2 + $0x208] sm:$0xff] %vm3338, %v9145
  %9311 = vst.msk [vmem:[#allocation2 + $0x210] sm:$0xff] %vm3338, %v9147
  %9312 = vst.msk [vmem:[#allocation2 + $0x218] sm:$0xff] %vm3338, %v9149
  %9313 = vst.msk [vmem:[#allocation2 + $0x220] sm:$0xff] %vm3338, %v9151
  %9314 = vst.msk [vmem:[#allocation2 + $0x228] sm:$0xff] %vm3338, %v9153
  %9315 = vst.msk [vmem:[#allocation2 + $0x230] sm:$0xff] %vm3338, %v9155
  %9316 = vst.msk [vmem:[#allocation2 + $0x238] sm:$0xff] %vm3338, %v9157
  %9317 = vst.msk [vmem:[#allocation2 + $0x240] sm:$0xff] %vm3338, %v9159
  %9318 = vst.msk [vmem:[#allocation2 + $0x248] sm:$0xff] %vm3338, %v9161
  %9319 = vst.msk [vmem:[#allocation2 + $0x250] sm:$0xff] %vm3338, %v9163
  %9320 = vst.msk [vmem:[#allocation2 + $0x258] sm:$0xff] %vm3338, %v9165
  %9321 = vst.msk [vmem:[#allocation2 + $0x260] sm:$0xff] %vm3338, %v9167
  %v9322 = vld [vmem:[#allocation3 + $0x26] sm:$0xff]
  %v9323 = vld [vmem:[#allocation3 + $0x2e] sm:$0xff]
  %v9324 = vld [vmem:[#allocation3 + $0x36] sm:$0xff]
  %v9325 = vld [vmem:[#allocation3 + $0x3e] sm:$0xff]
  %v9326 = vld [vmem:[#allocation3 + $0x46] sm:$0xff]
  %v9327 = vld [vmem:[#allocation3 + $0x4e] sm:$0xff]
  %v9328 = vld [vmem:[#allocation3 + $0x56] sm:$0xff]
  %v9329 = vld [vmem:[#allocation3 + $0x5e] sm:$0xff]
  %v9330 = vld [vmem:[#allocation3 + $0x66] sm:$0xff]
  %v9331 = vld [vmem:[#allocation3 + $0x6e] sm:$0xff]
  %v9332 = vld [vmem:[#allocation3 + $0x76] sm:$0xff]
  %v9333 = vld [vmem:[#allocation3 + $0x7e] sm:$0xff]
  %v9334 = vld [vmem:[#allocation3 + $0x86] sm:$0xff]
  %v9335 = vld [vmem:[#allocation3 + $0x8e] sm:$0xff]
  %v9336 = vld [vmem:[#allocation3 + $0x96] sm:$0xff]
  %v9337 = vld [vmem:[#allocation3 + $0x9e] sm:$0xff]
  %v9338 = vld [vmem:[#allocation3 + $0xa6] sm:$0xff]
  %v9339 = vld [vmem:[#allocation3 + $0xae] sm:$0xff]
  %v9340 = vld [vmem:[#allocation3 + $0xb6] sm:$0xff]
  %v9341 = vld [vmem:[#allocation3 + $0xbe] sm:$0xff]
  %v9342 = vld [vmem:[#allocation3 + $0xc6] sm:$0xff]
  %v9343 = vld [vmem:[#allocation3 + $0xce] sm:$0xff]
  %v9344 = vld [vmem:[#allocation3 + $0xd6] sm:$0xff]
  %v9345 = vld [vmem:[#allocation3 + $0xde] sm:$0xff]
  %v9346 = vld [vmem:[#allocation3 + $0xe6] sm:$0xff]
  %v9347 = vld [vmem:[#allocation3 + $0xee] sm:$0xff]
  %v9348 = vld [vmem:[#allocation3 + $0xf6] sm:$0xff]
  %v9349 = vld [vmem:[#allocation3 + $0xfe] sm:$0xff]
  %v9350 = vld [vmem:[#allocation3 + $0x106] sm:$0xff]
  %v9351 = vld [vmem:[#allocation3 + $0x10e] sm:$0xff]
  %v9352 = vld [vmem:[#allocation3 + $0x116] sm:$0xff]
  %v9353 = vld [vmem:[#allocation3 + $0x11e] sm:$0xff]
  %v9354 = vld [vmem:[#allocation3 + $0x126] sm:$0xff]
  %v9355 = vld [vmem:[#allocation3 + $0x12e] sm:$0xff]
  %v9356 = vld [vmem:[#allocation3 + $0x136] sm:$0xff]
  %v9357 = vld [vmem:[#allocation3 + $0x13e] sm:$0xff]
  %v9358 = vld [vmem:[#allocation3 + $0x146] sm:$0xff]
  %v9359 = vld [vmem:[#allocation3 + $0x14e] sm:$0xff]
  %v9360 = vld [vmem:[#allocation3 + $0x156] sm:$0xff]
  %v9361 = vld [vmem:[#allocation3 + $0x15e] sm:$0xff]
  %v9362 = vld [vmem:[#allocation3 + $0x166] sm:$0xff]
  %v9363 = vld [vmem:[#allocation3 + $0x16e] sm:$0xff]
  %v9364 = vld [vmem:[#allocation3 + $0x176] sm:$0xff]
  %v9365 = vld [vmem:[#allocation3 + $0x17e] sm:$0xff]
  %v9366 = vld [vmem:[#allocation3 + $0x186] sm:$0xff]
  %v9367 = vld [vmem:[#allocation3 + $0x18e] sm:$0xff]
  %v9368 = vld [vmem:[#allocation3 + $0x196] sm:$0xff]
  %v9369 = vld [vmem:[#allocation3 + $0x19e] sm:$0xff]
  %v9370 = vld [vmem:[#allocation3 + $0x1a6] sm:$0xff]
  %v9371 = vld [vmem:[#allocation3 + $0x1ae] sm:$0xff]
  %v9372 = vld [vmem:[#allocation3 + $0x1b6] sm:$0xff]
  %v9373 = vld [vmem:[#allocation3 + $0x1be] sm:$0xff]
  %v9374 = vld [vmem:[#allocation3 + $0x1c6] sm:$0xff]
  %v9375 = vld [vmem:[#allocation3 + $0x1ce] sm:$0xff]
  %v9376 = vld [vmem:[#allocation3 + $0x1d6] sm:$0xff]
  %v9377 = vld [vmem:[#allocation3 + $0x1de] sm:$0xff]
  %v9378 = vld [vmem:[#allocation3 + $0x1e6] sm:$0xff]
  %v9379 = vld [vmem:[#allocation3 + $0x1ee] sm:$0xff]
  %v9380 = vld [vmem:[#allocation3 + $0x1f6] sm:$0xff]
  %v9381 = vld [vmem:[#allocation3 + $0x1fe] sm:$0xff]
  %v9382 = vld [vmem:[#allocation3 + $0x206] sm:$0xff]
  %v9383 = vld [vmem:[#allocation3 + $0x20e] sm:$0xff]
  %v9384 = vld [vmem:[#allocation3 + $0x216] sm:$0xff]
  %v9385 = vld [vmem:[#allocation3 + $0x21e] sm:$0xff]
  %v9386 = vld [vmem:[#allocation3 + $0x226] sm:$0xff]
  %v9387 = vld [vmem:[#allocation3 + $0x22e] sm:$0xff]
  %v9388 = vld [vmem:[#allocation3 + $0x236] sm:$0xff]
  %v9389 = vld [vmem:[#allocation3 + $0x23e] sm:$0xff]
  %v9390 = vld [vmem:[#allocation3 + $0x246] sm:$0xff]
  %v9391 = vld [vmem:[#allocation3 + $0x24e] sm:$0xff]
  %v9392 = vld [vmem:[#allocation3 + $0x256] sm:$0xff]
  %v9393 = vld [vmem:[#allocation3 + $0x25e] sm:$0xff]
  %v9394 = vld [vmem:[#allocation3 + $0x266] sm:$0xff]
  %v9395 = vld [vmem:[#allocation3 + $0x26e] sm:$0xff]
  %v9396 = vld [vmem:[#allocation3 + $0x276] sm:$0xff]
  %v9397 = vld [vmem:[#allocation3 + $0x27e] sm:$0xff]
  %v9398 = vld [vmem:[#allocation3 + $0x286] sm:$0xff]
  %9476 = vrot.lane.b32.xlu0 %v9322, 64
  %v9477 = vpop.permute.xlu0 %9476
  %9478 = vrot.lane.b32.xlu0 %v9323, 64
  %v9479 = vpop.permute.xlu0 %9478
  %9480 = vrot.lane.b32.xlu0 %v9324, 64
  %v9481 = vpop.permute.xlu0 %9480
  %9482 = vrot.lane.b32.xlu0 %v9325, 64
  %v9483 = vpop.permute.xlu0 %9482
  %9484 = vrot.lane.b32.xlu0 %v9326, 64
  %v9485 = vpop.permute.xlu0 %9484
  %9486 = vrot.lane.b32.xlu0 %v9327, 64
  %v9487 = vpop.permute.xlu0 %9486
  %9488 = vrot.lane.b32.xlu0 %v9328, 64
  %v9489 = vpop.permute.xlu0 %9488
  %9490 = vrot.lane.b32.xlu0 %v9329, 64
  %v9491 = vpop.permute.xlu0 %9490
  %9492 = vrot.lane.b32.xlu0 %v9330, 64
  %v9493 = vpop.permute.xlu0 %9492
  %9494 = vrot.lane.b32.xlu0 %v9331, 64
  %v9495 = vpop.permute.xlu0 %9494
  %9496 = vrot.lane.b32.xlu0 %v9332, 64
  %v9497 = vpop.permute.xlu0 %9496
  %9498 = vrot.lane.b32.xlu0 %v9333, 64
  %v9499 = vpop.permute.xlu0 %9498
  %9500 = vrot.lane.b32.xlu0 %v9334, 64
  %v9501 = vpop.permute.xlu0 %9500
  %9502 = vrot.lane.b32.xlu0 %v9335, 64
  %v9503 = vpop.permute.xlu0 %9502
  %9504 = vrot.lane.b32.xlu0 %v9336, 64
  %v9505 = vpop.permute.xlu0 %9504
  %9506 = vrot.lane.b32.xlu0 %v9337, 64
  %v9507 = vpop.permute.xlu0 %9506
  %9508 = vrot.lane.b32.xlu0 %v9338, 64
  %v9509 = vpop.permute.xlu0 %9508
  %9510 = vrot.lane.b32.xlu0 %v9339, 64
  %v9511 = vpop.permute.xlu0 %9510
  %9512 = vrot.lane.b32.xlu0 %v9340, 64
  %v9513 = vpop.permute.xlu0 %9512
  %9514 = vrot.lane.b32.xlu0 %v9341, 64
  %v9515 = vpop.permute.xlu0 %9514
  %9516 = vrot.lane.b32.xlu0 %v9342, 64
  %v9517 = vpop.permute.xlu0 %9516
  %9518 = vrot.lane.b32.xlu0 %v9343, 64
  %v9519 = vpop.permute.xlu0 %9518
  %9520 = vrot.lane.b32.xlu0 %v9344, 64
  %v9521 = vpop.permute.xlu0 %9520
  %9522 = vrot.lane.b32.xlu0 %v9345, 64
  %v9523 = vpop.permute.xlu0 %9522
  %9524 = vrot.lane.b32.xlu0 %v9346, 64
  %v9525 = vpop.permute.xlu0 %9524
  %9526 = vrot.lane.b32.xlu0 %v9347, 64
  %v9527 = vpop.permute.xlu0 %9526
  %9528 = vrot.lane.b32.xlu0 %v9348, 64
  %v9529 = vpop.permute.xlu0 %9528
  %9530 = vrot.lane.b32.xlu0 %v9349, 64
  %v9531 = vpop.permute.xlu0 %9530
  %9532 = vrot.lane.b32.xlu0 %v9350, 64
  %v9533 = vpop.permute.xlu0 %9532
  %9534 = vrot.lane.b32.xlu0 %v9351, 64
  %v9535 = vpop.permute.xlu0 %9534
  %9536 = vrot.lane.b32.xlu0 %v9352, 64
  %v9537 = vpop.permute.xlu0 %9536
  %9538 = vrot.lane.b32.xlu0 %v9353, 64
  %v9539 = vpop.permute.xlu0 %9538
  %9540 = vrot.lane.b32.xlu0 %v9354, 64
  %v9541 = vpop.permute.xlu0 %9540
  %9542 = vrot.lane.b32.xlu0 %v9355, 64
  %v9543 = vpop.permute.xlu0 %9542
  %9544 = vrot.lane.b32.xlu0 %v9356, 64
  %v9545 = vpop.permute.xlu0 %9544
  %9546 = vrot.lane.b32.xlu0 %v9357, 64
  %v9547 = vpop.permute.xlu0 %9546
  %9548 = vrot.lane.b32.xlu0 %v9358, 64
  %v9549 = vpop.permute.xlu0 %9548
  %9550 = vrot.lane.b32.xlu0 %v9359, 64
  %v9551 = vpop.permute.xlu0 %9550
  %9552 = vrot.lane.b32.xlu0 %v9360, 64
  %v9553 = vpop.permute.xlu0 %9552
  %9554 = vrot.lane.b32.xlu0 %v9361, 64
  %v9555 = vpop.permute.xlu0 %9554
  %9556 = vrot.lane.b32.xlu0 %v9362, 64
  %v9557 = vpop.permute.xlu0 %9556
  %9558 = vrot.lane.b32.xlu0 %v9363, 64
  %v9559 = vpop.permute.xlu0 %9558
  %9560 = vrot.lane.b32.xlu0 %v9364, 64
  %v9561 = vpop.permute.xlu0 %9560
  %9562 = vrot.lane.b32.xlu0 %v9365, 64
  %v9563 = vpop.permute.xlu0 %9562
  %9564 = vrot.lane.b32.xlu0 %v9366, 64
  %v9565 = vpop.permute.xlu0 %9564
  %9566 = vrot.lane.b32.xlu0 %v9367, 64
  %v9567 = vpop.permute.xlu0 %9566
  %9568 = vrot.lane.b32.xlu0 %v9368, 64
  %v9569 = vpop.permute.xlu0 %9568
  %9570 = vrot.lane.b32.xlu0 %v9369, 64
  %v9571 = vpop.permute.xlu0 %9570
  %9572 = vrot.lane.b32.xlu0 %v9370, 64
  %v9573 = vpop.permute.xlu0 %9572
  %9574 = vrot.lane.b32.xlu0 %v9371, 64
  %v9575 = vpop.permute.xlu0 %9574
  %9576 = vrot.lane.b32.xlu0 %v9372, 64
  %v9577 = vpop.permute.xlu0 %9576
  %9578 = vrot.lane.b32.xlu0 %v9373, 64
  %v9579 = vpop.permute.xlu0 %9578
  %9580 = vrot.lane.b32.xlu0 %v9374, 64
  %v9581 = vpop.permute.xlu0 %9580
  %9582 = vrot.lane.b32.xlu0 %v9375, 64
  %v9583 = vpop.permute.xlu0 %9582
  %9584 = vrot.lane.b32.xlu0 %v9376, 64
  %v9585 = vpop.permute.xlu0 %9584
  %9586 = vrot.lane.b32.xlu0 %v9377, 64
  %v9587 = vpop.permute.xlu0 %9586
  %9588 = vrot.lane.b32.xlu0 %v9378, 64
  %v9589 = vpop.permute.xlu0 %9588
  %9590 = vrot.lane.b32.xlu0 %v9379, 64
  %v9591 = vpop.permute.xlu0 %9590
  %9592 = vrot.lane.b32.xlu0 %v9380, 64
  %v9593 = vpop.permute.xlu0 %9592
  %9594 = vrot.lane.b32.xlu0 %v9381, 64
  %v9595 = vpop.permute.xlu0 %9594
  %9596 = vrot.lane.b32.xlu0 %v9382, 64
  %v9597 = vpop.permute.xlu0 %9596
  %9598 = vrot.lane.b32.xlu0 %v9383, 64
  %v9599 = vpop.permute.xlu0 %9598
  %9600 = vrot.lane.b32.xlu0 %v9384, 64
  %v9601 = vpop.permute.xlu0 %9600
  %9602 = vrot.lane.b32.xlu0 %v9385, 64
  %v9603 = vpop.permute.xlu0 %9602
  %9604 = vrot.lane.b32.xlu0 %v9386, 64
  %v9605 = vpop.permute.xlu0 %9604
  %9606 = vrot.lane.b32.xlu0 %v9387, 64
  %v9607 = vpop.permute.xlu0 %9606
  %9608 = vrot.lane.b32.xlu0 %v9388, 64
  %v9609 = vpop.permute.xlu0 %9608
  %9610 = vrot.lane.b32.xlu0 %v9389, 64
  %v9611 = vpop.permute.xlu0 %9610
  %9612 = vrot.lane.b32.xlu0 %v9390, 64
  %v9613 = vpop.permute.xlu0 %9612
  %9614 = vrot.lane.b32.xlu0 %v9391, 64
  %v9615 = vpop.permute.xlu0 %9614
  %9616 = vrot.lane.b32.xlu0 %v9392, 64
  %v9617 = vpop.permute.xlu0 %9616
  %9618 = vrot.lane.b32.xlu0 %v9393, 64
  %v9619 = vpop.permute.xlu0 %9618
  %9620 = vrot.lane.b32.xlu0 %v9394, 64
  %v9621 = vpop.permute.xlu0 %9620
  %9622 = vrot.lane.b32.xlu0 %v9395, 64
  %v9623 = vpop.permute.xlu0 %9622
  %9624 = vrot.lane.b32.xlu0 %v9396, 64
  %v9625 = vpop.permute.xlu0 %9624
  %9626 = vrot.lane.b32.xlu0 %v9397, 64
  %v9627 = vpop.permute.xlu0 %9626
  %9628 = vrot.lane.b32.xlu0 %v9398, 64
  %v9629 = vpop.permute.xlu0 %9628
  %9707 = vst.msk [vmem:[#allocation2] sm:$0xff] %vm3801, %v9477
  %9708 = vst.msk [vmem:[#allocation2 + $0x8] sm:$0xff] %vm3801, %v9479
  %9709 = vst.msk [vmem:[#allocation2 + $0x10] sm:$0xff] %vm3801, %v9481
  %9710 = vst.msk [vmem:[#allocation2 + $0x18] sm:$0xff] %vm3801, %v9483
  %9711 = vst.msk [vmem:[#allocation2 + $0x20] sm:$0xff] %vm3801, %v9485
  %9712 = vst.msk [vmem:[#allocation2 + $0x28] sm:$0xff] %vm3801, %v9487
  %9713 = vst.msk [vmem:[#allocation2 + $0x30] sm:$0xff] %vm3801, %v9489
  %9714 = vst.msk [vmem:[#allocation2 + $0x38] sm:$0xff] %vm3801, %v9491
  %9715 = vst.msk [vmem:[#allocation2 + $0x40] sm:$0xff] %vm3801, %v9493
  %9716 = vst.msk [vmem:[#allocation2 + $0x48] sm:$0xff] %vm3801, %v9495
  %9717 = vst.msk [vmem:[#allocation2 + $0x50] sm:$0xff] %vm3801, %v9497
  %9718 = vst.msk [vmem:[#allocation2 + $0x58] sm:$0xff] %vm3801, %v9499
  %9719 = vst.msk [vmem:[#allocation2 + $0x60] sm:$0xff] %vm3801, %v9501
  %9720 = vst.msk [vmem:[#allocation2 + $0x68] sm:$0xff] %vm3801, %v9503
  %9721 = vst.msk [vmem:[#allocation2 + $0x70] sm:$0xff] %vm3801, %v9505
  %9722 = vst.msk [vmem:[#allocation2 + $0x78] sm:$0xff] %vm3801, %v9507
  %9723 = vst.msk [vmem:[#allocation2 + $0x80] sm:$0xff] %vm3801, %v9509
  %9724 = vst.msk [vmem:[#allocation2 + $0x88] sm:$0xff] %vm3801, %v9511
  %9725 = vst.msk [vmem:[#allocation2 + $0x90] sm:$0xff] %vm3801, %v9513
  %9726 = vst.msk [vmem:[#allocation2 + $0x98] sm:$0xff] %vm3801, %v9515
  %9727 = vst.msk [vmem:[#allocation2 + $0xa0] sm:$0xff] %vm3801, %v9517
  %9728 = vst.msk [vmem:[#allocation2 + $0xa8] sm:$0xff] %vm3801, %v9519
  %9729 = vst.msk [vmem:[#allocation2 + $0xb0] sm:$0xff] %vm3801, %v9521
  %9730 = vst.msk [vmem:[#allocation2 + $0xb8] sm:$0xff] %vm3801, %v9523
  %9731 = vst.msk [vmem:[#allocation2 + $0xc0] sm:$0xff] %vm3801, %v9525
  %9732 = vst.msk [vmem:[#allocation2 + $0xc8] sm:$0xff] %vm3801, %v9527
  %9733 = vst.msk [vmem:[#allocation2 + $0xd0] sm:$0xff] %vm3801, %v9529
  %9734 = vst.msk [vmem:[#allocation2 + $0xd8] sm:$0xff] %vm3801, %v9531
  %9735 = vst.msk [vmem:[#allocation2 + $0xe0] sm:$0xff] %vm3801, %v9533
  %9736 = vst.msk [vmem:[#allocation2 + $0xe8] sm:$0xff] %vm3801, %v9535
  %9737 = vst.msk [vmem:[#allocation2 + $0xf0] sm:$0xff] %vm3801, %v9537
  %9738 = vst.msk [vmem:[#allocation2 + $0xf8] sm:$0xff] %vm3801, %v9539
  %9739 = vst.msk [vmem:[#allocation2 + $0x100] sm:$0xff] %vm3801, %v9541
  %9740 = vst.msk [vmem:[#allocation2 + $0x108] sm:$0xff] %vm3801, %v9543
  %9741 = vst.msk [vmem:[#allocation2 + $0x110] sm:$0xff] %vm3801, %v9545
  %9742 = vst.msk [vmem:[#allocation2 + $0x118] sm:$0xff] %vm3801, %v9547
  %9743 = vst.msk [vmem:[#allocation2 + $0x120] sm:$0xff] %vm3801, %v9549
  %9744 = vst.msk [vmem:[#allocation2 + $0x128] sm:$0xff] %vm3801, %v9551
  %9745 = vst.msk [vmem:[#allocation2 + $0x130] sm:$0xff] %vm3801, %v9553
  %9746 = vst.msk [vmem:[#allocation2 + $0x138] sm:$0xff] %vm3801, %v9555
  %9747 = vst.msk [vmem:[#allocation2 + $0x140] sm:$0xff] %vm3801, %v9557
  %9748 = vst.msk [vmem:[#allocation2 + $0x148] sm:$0xff] %vm3801, %v9559
  %9749 = vst.msk [vmem:[#allocation2 + $0x150] sm:$0xff] %vm3801, %v9561
  %9750 = vst.msk [vmem:[#allocation2 + $0x158] sm:$0xff] %vm3801, %v9563
  %9751 = vst.msk [vmem:[#allocation2 + $0x160] sm:$0xff] %vm3801, %v9565
  %9752 = vst.msk [vmem:[#allocation2 + $0x168] sm:$0xff] %vm3801, %v9567
  %9753 = vst.msk [vmem:[#allocation2 + $0x170] sm:$0xff] %vm3801, %v9569
  %9754 = vst.msk [vmem:[#allocation2 + $0x178] sm:$0xff] %vm3801, %v9571
  %9755 = vst.msk [vmem:[#allocation2 + $0x180] sm:$0xff] %vm3801, %v9573
  %9756 = vst.msk [vmem:[#allocation2 + $0x188] sm:$0xff] %vm3801, %v9575
  %9757 = vst.msk [vmem:[#allocation2 + $0x190] sm:$0xff] %vm3801, %v9577
  %9758 = vst.msk [vmem:[#allocation2 + $0x198] sm:$0xff] %vm3801, %v9579
  %9759 = vst.msk [vmem:[#allocation2 + $0x1a0] sm:$0xff] %vm3801, %v9581
  %9760 = vst.msk [vmem:[#allocation2 + $0x1a8] sm:$0xff] %vm3801, %v9583
  %9761 = vst.msk [vmem:[#allocation2 + $0x1b0] sm:$0xff] %vm3801, %v9585
  %9762 = vst.msk [vmem:[#allocation2 + $0x1b8] sm:$0xff] %vm3801, %v9587
  %9763 = vst.msk [vmem:[#allocation2 + $0x1c0] sm:$0xff] %vm3801, %v9589
  %9764 = vst.msk [vmem:[#allocation2 + $0x1c8] sm:$0xff] %vm3801, %v9591
  %9765 = vst.msk [vmem:[#allocation2 + $0x1d0] sm:$0xff] %vm3801, %v9593
  %9766 = vst.msk [vmem:[#allocation2 + $0x1d8] sm:$0xff] %vm3801, %v9595
  %9767 = vst.msk [vmem:[#allocation2 + $0x1e0] sm:$0xff] %vm3801, %v9597
  %9768 = vst.msk [vmem:[#allocation2 + $0x1e8] sm:$0xff] %vm3801, %v9599
  %9769 = vst.msk [vmem:[#allocation2 + $0x1f0] sm:$0xff] %vm3801, %v9601
  %9770 = vst.msk [vmem:[#allocation2 + $0x1f8] sm:$0xff] %vm3801, %v9603
  %9771 = vst.msk [vmem:[#allocation2 + $0x200] sm:$0xff] %vm3801, %v9605
  %9772 = vst.msk [vmem:[#allocation2 + $0x208] sm:$0xff] %vm3801, %v9607
  %9773 = vst.msk [vmem:[#allocation2 + $0x210] sm:$0xff] %vm3801, %v9609
  %9774 = vst.msk [vmem:[#allocation2 + $0x218] sm:$0xff] %vm3801, %v9611
  %9775 = vst.msk [vmem:[#allocation2 + $0x220] sm:$0xff] %vm3801, %v9613
  %9776 = vst.msk [vmem:[#allocation2 + $0x228] sm:$0xff] %vm3801, %v9615
  %9777 = vst.msk [vmem:[#allocation2 + $0x230] sm:$0xff] %vm3801, %v9617
  %9778 = vst.msk [vmem:[#allocation2 + $0x238] sm:$0xff] %vm3801, %v9619
  %9779 = vst.msk [vmem:[#allocation2 + $0x240] sm:$0xff] %vm3801, %v9621
  %9780 = vst.msk [vmem:[#allocation2 + $0x248] sm:$0xff] %vm3801, %v9623
  %9781 = vst.msk [vmem:[#allocation2 + $0x250] sm:$0xff] %vm3801, %v9625
  %9782 = vst.msk [vmem:[#allocation2 + $0x258] sm:$0xff] %vm3801, %v9627
  %9783 = vst.msk [vmem:[#allocation2 + $0x260] sm:$0xff] %vm3801, %v9629
  %v9784 = vld [vmem:[#allocation2] sm:$0xff]
  %v9785 = vld [vmem:[#allocation2 + $0x8] sm:$0xff]
  %v9786 = vld [vmem:[#allocation2 + $0x10] sm:$0xff]
  %v9787 = vld [vmem:[#allocation2 + $0x18] sm:$0xff]
  %v9788 = vld [vmem:[#allocation2 + $0x20] sm:$0xff]
  %v9789 = vld [vmem:[#allocation2 + $0x28] sm:$0xff]
  %v9790 = vld [vmem:[#allocation2 + $0x30] sm:$0xff]
  %v9791 = vld [vmem:[#allocation2 + $0x38] sm:$0xff]
  %v9792 = vld [vmem:[#allocation2 + $0x40] sm:$0xff]
  %v9793 = vld [vmem:[#allocation2 + $0x48] sm:$0xff]
  %v9794 = vld [vmem:[#allocation2 + $0x50] sm:$0xff]
  %v9795 = vld [vmem:[#allocation2 + $0x58] sm:$0xff]
  %v9796 = vld [vmem:[#allocation2 + $0x60] sm:$0xff]
  %v9797 = vld [vmem:[#allocation2 + $0x68] sm:$0xff]
  %v9798 = vld [vmem:[#allocation2 + $0x70] sm:$0xff]
  %v9799 = vld [vmem:[#allocation2 + $0x78] sm:$0xff]
  %v9800 = vld [vmem:[#allocation2 + $0x80] sm:$0xff]
  %v9801 = vld [vmem:[#allocation2 + $0x88] sm:$0xff]
  %v9802 = vld [vmem:[#allocation2 + $0x90] sm:$0xff]
  %v9803 = vld [vmem:[#allocation2 + $0x98] sm:$0xff]
  %v9804 = vld [vmem:[#allocation2 + $0xa0] sm:$0xff]
  %v9805 = vld [vmem:[#allocation2 + $0xa8] sm:$0xff]
  %v9806 = vld [vmem:[#allocation2 + $0xb0] sm:$0xff]
  %v9807 = vld [vmem:[#allocation2 + $0xb8] sm:$0xff]
  %v9808 = vld [vmem:[#allocation2 + $0xc0] sm:$0xff]
  %v9809 = vld [vmem:[#allocation2 + $0xc8] sm:$0xff]
  %v9810 = vld [vmem:[#allocation2 + $0xd0] sm:$0xff]
  %v9811 = vld [vmem:[#allocation2 + $0xd8] sm:$0xff]
  %v9812 = vld [vmem:[#allocation2 + $0xe0] sm:$0xff]
  %v9813 = vld [vmem:[#allocation2 + $0xe8] sm:$0xff]
  %v9814 = vld [vmem:[#allocation2 + $0xf0] sm:$0xff]
  %v9815 = vld [vmem:[#allocation2 + $0xf8] sm:$0xff]
  %v9816 = vld [vmem:[#allocation2 + $0x100] sm:$0xff]
  %v9817 = vld [vmem:[#allocation2 + $0x108] sm:$0xff]
  %v9818 = vld [vmem:[#allocation2 + $0x110] sm:$0xff]
  %v9819 = vld [vmem:[#allocation2 + $0x118] sm:$0xff]
  %v9820 = vld [vmem:[#allocation2 + $0x120] sm:$0xff]
  %v9821 = vld [vmem:[#allocation2 + $0x128] sm:$0xff]
  %v9822 = vld [vmem:[#allocation2 + $0x130] sm:$0xff]
  %v9823 = vld [vmem:[#allocation2 + $0x138] sm:$0xff]
  %v9824 = vld [vmem:[#allocation2 + $0x140] sm:$0xff]
  %v9825 = vld [vmem:[#allocation2 + $0x148] sm:$0xff]
  %v9826 = vld [vmem:[#allocation2 + $0x150] sm:$0xff]
  %v9827 = vld [vmem:[#allocation2 + $0x158] sm:$0xff]
  %v9828 = vld [vmem:[#allocation2 + $0x160] sm:$0xff]
  %v9829 = vld [vmem:[#allocation2 + $0x168] sm:$0xff]
  %v9830 = vld [vmem:[#allocation2 + $0x170] sm:$0xff]
  %v9831 = vld [vmem:[#allocation2 + $0x178] sm:$0xff]
  %v9832 = vld [vmem:[#allocation2 + $0x180] sm:$0xff]
  %v9833 = vld [vmem:[#allocation2 + $0x188] sm:$0xff]
  %v9834 = vld [vmem:[#allocation2 + $0x190] sm:$0xff]
  %v9835 = vld [vmem:[#allocation2 + $0x198] sm:$0xff]
  %v9836 = vld [vmem:[#allocation2 + $0x1a0] sm:$0xff]
  %v9837 = vld [vmem:[#allocation2 + $0x1a8] sm:$0xff]
  %v9838 = vld [vmem:[#allocation2 + $0x1b0] sm:$0xff]
  %v9839 = vld [vmem:[#allocation2 + $0x1b8] sm:$0xff]
  %v9840 = vld [vmem:[#allocation2 + $0x1c0] sm:$0xff]
  %v9841 = vld [vmem:[#allocation2 + $0x1c8] sm:$0xff]
  %v9842 = vld [vmem:[#allocation2 + $0x1d0] sm:$0xff]
  %v9843 = vld [vmem:[#allocation2 + $0x1d8] sm:$0xff]
  %v9844 = vld [vmem:[#allocation2 + $0x1e0] sm:$0xff]
  %v9845 = vld [vmem:[#allocation2 + $0x1e8] sm:$0xff]
  %v9846 = vld [vmem:[#allocation2 + $0x1f0] sm:$0xff]
  %v9847 = vld [vmem:[#allocation2 + $0x1f8] sm:$0xff]
  %v9848 = vld [vmem:[#allocation2 + $0x200] sm:$0xff]
  %v9849 = vld [vmem:[#allocation2 + $0x208] sm:$0xff]
  %v9850 = vld [vmem:[#allocation2 + $0x210] sm:$0xff]
  %v9851 = vld [vmem:[#allocation2 + $0x218] sm:$0xff]
  %v9852 = vld [vmem:[#allocation2 + $0x220] sm:$0xff]
  %v9853 = vld [vmem:[#allocation2 + $0x228] sm:$0xff]
  %v9854 = vld [vmem:[#allocation2 + $0x230] sm:$0xff]
  %v9855 = vld [vmem:[#allocation2 + $0x238] sm:$0xff]
  %v9856 = vld [vmem:[#allocation2 + $0x240] sm:$0xff]
  %v9857 = vld [vmem:[#allocation2 + $0x248] sm:$0xff]
  %v9858 = vld [vmem:[#allocation2 + $0x250] sm:$0xff]
  %v9859 = vld [vmem:[#allocation2 + $0x258] sm:$0xff]
  %v9860 = vld [vmem:[#allocation2 + $0x260] sm:$0xff]
  %v9861 = vld [vmem:[%s3] sm:$0xff]
  %v9862 = vld [vmem:[%s3 + $0x8] sm:$0xff]
  %v9863 = vld [vmem:[%s3 + $0x10] sm:$0xff]
  %v9864 = vld [vmem:[%s3 + $0x18] sm:$0xff]
  %v9865 = vld [vmem:[%s3 + $0x20] sm:$0xff]
  %v9866 = vld [vmem:[%s3 + $0x28] sm:$0xff]
  %v9867 = vld [vmem:[%s3 + $0x30] sm:$0xff]
  %v9868 = vld [vmem:[%s3 + $0x38] sm:$0xff]
  %v9869 = vld [vmem:[%s3 + $0x40] sm:$0xff]
  %v9870 = vld [vmem:[%s0 + $0x13] sm:$0xff]
  %v9871 = vld [vmem:[%s0 + $0x1b] sm:$0xff]
  %v9872 = vld [vmem:[%s0 + $0x23] sm:$0xff]
  %v9873 = vld [vmem:[%s0 + $0x2b] sm:$0xff]
  %v9874 = vld [vmem:[%s0 + $0x33] sm:$0xff]
  %v9875 = vld [vmem:[%s0 + $0x3b] sm:$0xff]
  %v9876 = vld [vmem:[%s0 + $0x43] sm:$0xff]
  %v9877 = vld [vmem:[%s0 + $0x4b] sm:$0xff]
  %v9878 = vld [vmem:[%s0 + $0x53] sm:$0xff]
  %v9879 = vld [vmem:[%s0 + $0x5b] sm:$0xff]
  %v9880 = vld [vmem:[%s0 + $0x63] sm:$0xff]
  %v9881 = vld [vmem:[%s0 + $0x6b] sm:$0xff]
  %v9882 = vld [vmem:[%s0 + $0x73] sm:$0xff]
  %v9883 = vld [vmem:[%s0 + $0x7b] sm:$0xff]
  %v9884 = vld [vmem:[%s0 + $0x83] sm:$0xff]
  %v9885 = vld [vmem:[%s0 + $0x8b] sm:$0xff]
  %v9886 = vld [vmem:[%s0 + $0x93] sm:$0xff]
  %v9887 = vld [vmem:[%s0 + $0x9b] sm:$0xff]
  %v9888 = vld [vmem:[%s0 + $0xa3] sm:$0xff]
  %v9889 = vld [vmem:[%s0 + $0xab] sm:$0xff]
  %v9890 = vld [vmem:[%s0 + $0xb3] sm:$0xff]
  %v9891 = vld [vmem:[%s0 + $0xbb] sm:$0xff]
  %v9892 = vld [vmem:[%s0 + $0xc3] sm:$0xff]
  %v9893 = vld [vmem:[%s0 + $0xcb] sm:$0xff]
  %v9894 = vld [vmem:[%s0 + $0xd3] sm:$0xff]
  %v9895 = vld [vmem:[%s0 + $0xdb] sm:$0xff]
  %v9896 = vld [vmem:[%s0 + $0xe3] sm:$0xff]
  %v9897 = vld [vmem:[%s0 + $0xeb] sm:$0xff]
  %v9898 = vld [vmem:[%s0 + $0xf3] sm:$0xff]
  %v9899 = vld [vmem:[%s0 + $0xfb] sm:$0xff]
  %v9900 = vld [vmem:[%s0 + $0x103] sm:$0xff]
  %v9901 = vld [vmem:[%s0 + $0x10b] sm:$0xff]
  %v9902 = vld [vmem:[%s0 + $0x113] sm:$0xff]
  %v9903 = vld [vmem:[%s0 + $0x11b] sm:$0xff]
  %v9904 = vld [vmem:[%s0 + $0x123] sm:$0xff]
  %v9905 = vld [vmem:[%s0 + $0x12b] sm:$0xff]
  %v9906 = vld [vmem:[%s0 + $0x133] sm:$0xff]
  %v9907 = vld [vmem:[%s0 + $0x13b] sm:$0xff]
  %v9908 = vld [vmem:[%s0 + $0x143] sm:$0xff]
  %v9909 = vld [vmem:[%s0 + $0x14b] sm:$0xff]
  %v9910 = vld [vmem:[%s0 + $0x153] sm:$0xff]
  %v9911 = vld [vmem:[%s0 + $0x15b] sm:$0xff]
  %v9912 = vld [vmem:[%s0 + $0x163] sm:$0xff]
  %v9913 = vld [vmem:[%s0 + $0x16b] sm:$0xff]
  %v9914 = vld [vmem:[%s0 + $0x173] sm:$0xff]
  %v9915 = vld [vmem:[%s0 + $0x17b] sm:$0xff]
  %v9916 = vld [vmem:[%s0 + $0x183] sm:$0xff]
  %v9917 = vld [vmem:[%s0 + $0x18b] sm:$0xff]
  %v9918 = vld [vmem:[%s0 + $0x193] sm:$0xff]
  %v9919 = vld [vmem:[%s0 + $0x19b] sm:$0xff]
  %v9920 = vld [vmem:[%s0 + $0x1a3] sm:$0xff]
  %v9921 = vld [vmem:[%s0 + $0x1ab] sm:$0xff]
  %v9922 = vld [vmem:[%s0 + $0x1b3] sm:$0xff]
  %v9923 = vld [vmem:[%s0 + $0x1bb] sm:$0xff]
  %v9924 = vld [vmem:[%s0 + $0x1c3] sm:$0xff]
  %v9925 = vld [vmem:[%s0 + $0x1cb] sm:$0xff]
  %v9926 = vld [vmem:[%s0 + $0x1d3] sm:$0xff]
  %v9927 = vld [vmem:[%s0 + $0x1db] sm:$0xff]
  %v9928 = vld [vmem:[%s0 + $0x1e3] sm:$0xff]
  %v9929 = vld [vmem:[%s0 + $0x1eb] sm:$0xff]
  %v9930 = vld [vmem:[%s0 + $0x1f3] sm:$0xff]
  %v9931 = vld [vmem:[%s0 + $0x1fb] sm:$0xff]
  %v9932 = vld [vmem:[%s0 + $0x203] sm:$0xff]
  %v9933 = vld [vmem:[%s0 + $0x20b] sm:$0xff]
  %v9934 = vld [vmem:[%s0 + $0x213] sm:$0xff]
  %v9935 = vld [vmem:[%s0 + $0x21b] sm:$0xff]
  %v9936 = vld [vmem:[%s0 + $0x223] sm:$0xff]
  %v9937 = vld [vmem:[%s0 + $0x22b] sm:$0xff]
  %v9938 = vld [vmem:[%s0 + $0x233] sm:$0xff]
  %v9939 = vld [vmem:[%s0 + $0x23b] sm:$0xff]
  %v9940 = vld [vmem:[%s0 + $0x243] sm:$0xff]
  %v9941 = vld [vmem:[%s0 + $0x24b] sm:$0xff]
  %v9942 = vld [vmem:[%s0 + $0x253] sm:$0xff]
  %v9943 = vld [vmem:[%s0 + $0x25b] sm:$0xff]
  %v9944 = vld [vmem:[%s0 + $0x263] sm:$0xff]
  %v9945 = vld [vmem:[%s0 + $0x26b] sm:$0xff]
  %v9946 = vld [vmem:[%s0 + $0x273] sm:$0xff]
  %v9947 = vld [vmem:[%s4] sm:$0x1]
  %v9949 = vperm.slane %v9947, 0
  %v9952 = vsel %vm5216, %v9784, 0
  %v9955 = vsel %vm5216, %v9785, 0
  %v9958 = vsel %vm5216, %v9786, 0
  %v9961 = vsel %vm5216, %v9787, 0
  %v9964 = vsel %vm5216, %v9788, 0
  %v9967 = vsel %vm5216, %v9789, 0
  %v9970 = vsel %vm5216, %v9790, 0
  %v9973 = vsel %vm5216, %v9791, 0
  %v9976 = vsel %vm5216, %v9792, 0
  %v9979 = vsel %vm5216, %v9793, 0
  %v9982 = vsel %vm5216, %v9794, 0
  %v9985 = vsel %vm5216, %v9795, 0
  %v9988 = vsel %vm5216, %v9796, 0
  %v9991 = vsel %vm5216, %v9797, 0
  %v9994 = vsel %vm5216, %v9798, 0
  %v9997 = vsel %vm5216, %v9799, 0
  %v10000 = vsel %vm5216, %v9800, 0
  %v10003 = vsel %vm5216, %v9801, 0
  %v10006 = vsel %vm5216, %v9802, 0
  %v10009 = vsel %vm5216, %v9803, 0
  %v10012 = vsel %vm5216, %v9804, 0
  %v10015 = vsel %vm5216, %v9805, 0
  %v10018 = vsel %vm5216, %v9806, 0
  %v10021 = vsel %vm5216, %v9807, 0
  %v10024 = vsel %vm5216, %v9808, 0
  %v10027 = vsel %vm5216, %v9809, 0
  %v10030 = vsel %vm5216, %v9810, 0
  %v10033 = vsel %vm5216, %v9811, 0
  %v10036 = vsel %vm5216, %v9812, 0
  %v10039 = vsel %vm5216, %v9813, 0
  %v10042 = vsel %vm5216, %v9814, 0
  %v10045 = vsel %vm5216, %v9815, 0
  %v10048 = vsel %vm5216, %v9816, 0
  %v10051 = vsel %vm5216, %v9817, 0
  %v10054 = vsel %vm5216, %v9818, 0
  %v10057 = vsel %vm5216, %v9819, 0
  %v10060 = vsel %vm5216, %v9820, 0
  %v10063 = vsel %vm5216, %v9821, 0
  %v10066 = vsel %vm5216, %v9822, 0
  %v10069 = vsel %vm5216, %v9823, 0
  %v10072 = vsel %vm5216, %v9824, 0
  %v10075 = vsel %vm5216, %v9825, 0
  %v10078 = vsel %vm5216, %v9826, 0
  %v10081 = vsel %vm5216, %v9827, 0
  %v10084 = vsel %vm5216, %v9828, 0
  %v10087 = vsel %vm5216, %v9829, 0
  %v10090 = vsel %vm5216, %v9830, 0
  %v10093 = vsel %vm5216, %v9831, 0
  %v10096 = vsel %vm5216, %v9832, 0
  %v10099 = vsel %vm5216, %v9833, 0
  %v10102 = vsel %vm5216, %v9834, 0
  %v10105 = vsel %vm5216, %v9835, 0
  %v10108 = vsel %vm5216, %v9836, 0
  %v10111 = vsel %vm5216, %v9837, 0
  %v10114 = vsel %vm5216, %v9838, 0
  %v10117 = vsel %vm5216, %v9839, 0
  %v10120 = vsel %vm5216, %v9840, 0
  %v10123 = vsel %vm5216, %v9841, 0
  %v10126 = vsel %vm5216, %v9842, 0
  %v10129 = vsel %vm5216, %v9843, 0
  %v10132 = vsel %vm5216, %v9844, 0
  %v10135 = vsel %vm5216, %v9845, 0
  %v10138 = vsel %vm5216, %v9846, 0
  %v10141 = vsel %vm5216, %v9847, 0
  %v10144 = vsel %vm5216, %v9848, 0
  %v10147 = vsel %vm5216, %v9849, 0
  %v10150 = vsel %vm5216, %v9850, 0
  %v10153 = vsel %vm5216, %v9851, 0
  %v10156 = vsel %vm5216, %v9852, 0
  %v10159 = vsel %vm5216, %v9853, 0
  %v10162 = vsel %vm5216, %v9854, 0
  %v10165 = vsel %vm5216, %v9855, 0
  %v10168 = vsel %vm5216, %v9856, 0
  %v10171 = vsel %vm5216, %v9857, 0
  %v10174 = vsel %vm5216, %v9858, 0
  %v10177 = vsel %vm5216, %v9859, 0
  %v10180 = vsel %vm5216, %v9860, 0
  %10182 = vmatpush.msra.mxu0 0.0
  %10183 = vmatpush.msra.mxu0 0.0
  %10184 = vmatpush.msra.mxu0 0.0
  %10185 = vmatpush.msra.mxu0 0.0
  %10186 = vmatpush.msra.mxu0 0.0
  %10187 = vmatpush.msra.mxu0 0.0
  %10188 = vmatpush.msra.mxu0 0.0
  %10189 = vmatpush.msra.mxu0 %v9869
  %10190 = vmatpush.msra.mxu0 %v9868
  %10191 = vmatpush.msra.mxu0 %v9867
  %10192 = vmatpush.msra.mxu0 %v9866
  %10193 = vmatpush.msra.mxu0 %v9865
  %10194 = vmatpush.msra.mxu0 %v9864
  %10195 = vmatpush.msra.mxu0 %v9863
  %10196 = vmatpush.msra.mxu0 %v9862
  %10197 = vmatpush.msra.mxu0 %v9861
  %10198 = vmatmul.f32.gmra.mxu0 %v9952
  %v10199 = vpop.f32.mrf.mxu0
  %v10200 = vadd.f32 %v9949, %v10199
  %10201 = vmatmul.f32.gmra.mxu0 %v9955
  %v10202 = vpop.f32.mrf.mxu0
  %v10203 = vadd.f32 %v9949, %v10202
  %10204 = vmatmul.f32.gmra.mxu0 %v9958
  %v10205 = vpop.f32.mrf.mxu0
  %v10206 = vadd.f32 %v9949, %v10205
  %10207 = vmatmul.f32.gmra.mxu0 %v9961
  %v10208 = vpop.f32.mrf.mxu0
  %v10209 = vadd.f32 %v9949, %v10208
  %10210 = vmatmul.f32.gmra.mxu0 %v9964
  %v10211 = vpop.f32.mrf.mxu0
  %v10212 = vadd.f32 %v9949, %v10211
  %10213 = vmatmul.f32.gmra.mxu0 %v9967
  %v10214 = vpop.f32.mrf.mxu0
  %v10215 = vadd.f32 %v9949, %v10214
  %10216 = vmatmul.f32.gmra.mxu0 %v9970
  %v10217 = vpop.f32.mrf.mxu0
  %v10218 = vadd.f32 %v9949, %v10217
  %10219 = vmatmul.f32.gmra.mxu0 %v9973
  %v10220 = vpop.f32.mrf.mxu0
  %v10221 = vadd.f32 %v9949, %v10220
  %10222 = vmatmul.f32.gmra.mxu0 %v9976
  %v10223 = vpop.f32.mrf.mxu0
  %v10224 = vadd.f32 %v9949, %v10223
  %10225 = vmatmul.f32.gmra.mxu0 %v9979
  %v10226 = vpop.f32.mrf.mxu0
  %v10227 = vadd.f32 %v9949, %v10226
  %10228 = vmatmul.f32.gmra.mxu0 %v9982
  %v10229 = vpop.f32.mrf.mxu0
  %v10230 = vadd.f32 %v9949, %v10229
  %10231 = vmatmul.f32.gmra.mxu0 %v9985
  %v10232 = vpop.f32.mrf.mxu0
  %v10233 = vadd.f32 %v9949, %v10232
  %10234 = vmatmul.f32.gmra.mxu0 %v9988
  %v10235 = vpop.f32.mrf.mxu0
  %v10236 = vadd.f32 %v9949, %v10235
  %10237 = vmatmul.f32.gmra.mxu0 %v9991
  %v10238 = vpop.f32.mrf.mxu0
  %v10239 = vadd.f32 %v9949, %v10238
  %10240 = vmatmul.f32.gmra.mxu0 %v9994
  %v10241 = vpop.f32.mrf.mxu0
  %v10242 = vadd.f32 %v9949, %v10241
  %10243 = vmatmul.f32.gmra.mxu0 %v9997
  %v10244 = vpop.f32.mrf.mxu0
  %v10245 = vadd.f32 %v9949, %v10244
  %10246 = vmatmul.f32.gmra.mxu0 %v10000
  %v10247 = vpop.f32.mrf.mxu0
  %v10248 = vadd.f32 %v9949, %v10247
  %10249 = vmatmul.f32.gmra.mxu0 %v10003
  %v10250 = vpop.f32.mrf.mxu0
  %v10251 = vadd.f32 %v9949, %v10250
  %10252 = vmatmul.f32.gmra.mxu0 %v10006
  %v10253 = vpop.f32.mrf.mxu0
  %v10254 = vadd.f32 %v9949, %v10253
  %10255 = vmatmul.f32.gmra.mxu0 %v10009
  %v10256 = vpop.f32.mrf.mxu0
  %v10257 = vadd.f32 %v9949, %v10256
  %10258 = vmatmul.f32.gmra.mxu0 %v10012
  %v10259 = vpop.f32.mrf.mxu0
  %v10260 = vadd.f32 %v9949, %v10259
  %10261 = vmatmul.f32.gmra.mxu0 %v10015
  %v10262 = vpop.f32.mrf.mxu0
  %v10263 = vadd.f32 %v9949, %v10262
  %10264 = vmatmul.f32.gmra.mxu0 %v10018
  %v10265 = vpop.f32.mrf.mxu0
  %v10266 = vadd.f32 %v9949, %v10265
  %10267 = vmatmul.f32.gmra.mxu0 %v10021
  %v10268 = vpop.f32.mrf.mxu0
  %v10269 = vadd.f32 %v9949, %v10268
  %10270 = vmatmul.f32.gmra.mxu0 %v10024
  %v10271 = vpop.f32.mrf.mxu0
  %v10272 = vadd.f32 %v9949, %v10271
  %10273 = vmatmul.f32.gmra.mxu0 %v10027
  %v10274 = vpop.f32.mrf.mxu0
  %v10275 = vadd.f32 %v9949, %v10274
  %10276 = vmatmul.f32.gmra.mxu0 %v10030
  %v10277 = vpop.f32.mrf.mxu0
  %v10278 = vadd.f32 %v9949, %v10277
  %10279 = vmatmul.f32.gmra.mxu0 %v10033
  %v10280 = vpop.f32.mrf.mxu0
  %v10281 = vadd.f32 %v9949, %v10280
  %10282 = vmatmul.f32.gmra.mxu0 %v10036
  %v10283 = vpop.f32.mrf.mxu0
  %v10284 = vadd.f32 %v9949, %v10283
  %10285 = vmatmul.f32.gmra.mxu0 %v10039
  %v10286 = vpop.f32.mrf.mxu0
  %v10287 = vadd.f32 %v9949, %v10286
  %10288 = vmatmul.f32.gmra.mxu0 %v10042
  %v10289 = vpop.f32.mrf.mxu0
  %v10290 = vadd.f32 %v9949, %v10289
  %10291 = vmatmul.f32.gmra.mxu0 %v10045
  %v10292 = vpop.f32.mrf.mxu0
  %v10293 = vadd.f32 %v9949, %v10292
  %10294 = vmatmul.f32.gmra.mxu0 %v10048
  %v10295 = vpop.f32.mrf.mxu0
  %v10296 = vadd.f32 %v9949, %v10295
  %10297 = vmatmul.f32.gmra.mxu0 %v10051
  %v10298 = vpop.f32.mrf.mxu0
  %v10299 = vadd.f32 %v9949, %v10298
  %10300 = vmatmul.f32.gmra.mxu0 %v10054
  %v10301 = vpop.f32.mrf.mxu0
  %v10302 = vadd.f32 %v9949, %v10301
  %10303 = vmatmul.f32.gmra.mxu0 %v10057
  %v10304 = vpop.f32.mrf.mxu0
  %v10305 = vadd.f32 %v9949, %v10304
  %10306 = vmatmul.f32.gmra.mxu0 %v10060
  %v10307 = vpop.f32.mrf.mxu0
  %v10308 = vadd.f32 %v9949, %v10307
  %10309 = vmatmul.f32.gmra.mxu0 %v10063
  %v10310 = vpop.f32.mrf.mxu0
  %v10311 = vadd.f32 %v9949, %v10310
  %10312 = vmatmul.f32.gmra.mxu0 %v10066
  %v10313 = vpop.f32.mrf.mxu0
  %v10314 = vadd.f32 %v9949, %v10313
  %10315 = vmatmul.f32.gmra.mxu0 %v10069
  %v10316 = vpop.f32.mrf.mxu0
  %v10317 = vadd.f32 %v9949, %v10316
  %10318 = vmatmul.f32.gmra.mxu0 %v10072
  %v10319 = vpop.f32.mrf.mxu0
  %v10320 = vadd.f32 %v9949, %v10319
  %10321 = vmatmul.f32.gmra.mxu0 %v10075
  %v10322 = vpop.f32.mrf.mxu0
  %v10323 = vadd.f32 %v9949, %v10322
  %10324 = vmatmul.f32.gmra.mxu0 %v10078
  %v10325 = vpop.f32.mrf.mxu0
  %v10326 = vadd.f32 %v9949, %v10325
  %10327 = vmatmul.f32.gmra.mxu0 %v10081
  %v10328 = vpop.f32.mrf.mxu0
  %v10329 = vadd.f32 %v9949, %v10328
  %10330 = vmatmul.f32.gmra.mxu0 %v10084
  %v10331 = vpop.f32.mrf.mxu0
  %v10332 = vadd.f32 %v9949, %v10331
  %10333 = vmatmul.f32.gmra.mxu0 %v10087
  %v10334 = vpop.f32.mrf.mxu0
  %v10335 = vadd.f32 %v9949, %v10334
  %10336 = vmatmul.f32.gmra.mxu0 %v10090
  %v10337 = vpop.f32.mrf.mxu0
  %v10338 = vadd.f32 %v9949, %v10337
  %10339 = vmatmul.f32.gmra.mxu0 %v10093
  %v10340 = vpop.f32.mrf.mxu0
  %v10341 = vadd.f32 %v9949, %v10340
  %10342 = vmatmul.f32.gmra.mxu0 %v10096
  %v10343 = vpop.f32.mrf.mxu0
  %v10344 = vadd.f32 %v9949, %v10343
  %10345 = vmatmul.f32.gmra.mxu0 %v10099
  %v10346 = vpop.f32.mrf.mxu0
  %v10347 = vadd.f32 %v9949, %v10346
  %10348 = vmatmul.f32.gmra.mxu0 %v10102
  %v10349 = vpop.f32.mrf.mxu0
  %v10350 = vadd.f32 %v9949, %v10349
  %10351 = vmatmul.f32.gmra.mxu0 %v10105
  %v10352 = vpop.f32.mrf.mxu0
  %v10353 = vadd.f32 %v9949, %v10352
  %10354 = vmatmul.f32.gmra.mxu0 %v10108
  %v10355 = vpop.f32.mrf.mxu0
  %v10356 = vadd.f32 %v9949, %v10355
  %10357 = vmatmul.f32.gmra.mxu0 %v10111
  %v10358 = vpop.f32.mrf.mxu0
  %v10359 = vadd.f32 %v9949, %v10358
  %10360 = vmatmul.f32.gmra.mxu0 %v10114
  %v10361 = vpop.f32.mrf.mxu0
  %v10362 = vadd.f32 %v9949, %v10361
  %10363 = vmatmul.f32.gmra.mxu0 %v10117
  %v10364 = vpop.f32.mrf.mxu0
  %v10365 = vadd.f32 %v9949, %v10364
  %10366 = vmatmul.f32.gmra.mxu0 %v10120
  %v10367 = vpop.f32.mrf.mxu0
  %v10368 = vadd.f32 %v9949, %v10367
  %10369 = vmatmul.f32.gmra.mxu0 %v10123
  %v10370 = vpop.f32.mrf.mxu0
  %v10371 = vadd.f32 %v9949, %v10370
  %10372 = vmatmul.f32.gmra.mxu0 %v10126
  %v10373 = vpop.f32.mrf.mxu0
  %v10374 = vadd.f32 %v9949, %v10373
  %10375 = vmatmul.f32.gmra.mxu0 %v10129
  %v10376 = vpop.f32.mrf.mxu0
  %v10377 = vadd.f32 %v9949, %v10376
  %10378 = vmatmul.f32.gmra.mxu0 %v10132
  %v10379 = vpop.f32.mrf.mxu0
  %v10380 = vadd.f32 %v9949, %v10379
  %10381 = vmatmul.f32.gmra.mxu0 %v10135
  %v10382 = vpop.f32.mrf.mxu0
  %v10383 = vadd.f32 %v9949, %v10382
  %10384 = vmatmul.f32.gmra.mxu0 %v10138
  %v10385 = vpop.f32.mrf.mxu0
  %v10386 = vadd.f32 %v9949, %v10385
  %10387 = vmatmul.f32.gmra.mxu0 %v10141
  %v10388 = vpop.f32.mrf.mxu0
  %v10389 = vadd.f32 %v9949, %v10388
  %10390 = vmatmul.f32.gmra.mxu0 %v10144
  %v10391 = vpop.f32.mrf.mxu0
  %v10392 = vadd.f32 %v9949, %v10391
  %10393 = vmatmul.f32.gmra.mxu0 %v10147
  %v10394 = vpop.f32.mrf.mxu0
  %v10395 = vadd.f32 %v9949, %v10394
  %10396 = vmatmul.f32.gmra.mxu0 %v10150
  %v10397 = vpop.f32.mrf.mxu0
  %v10398 = vadd.f32 %v9949, %v10397
  %10399 = vmatmul.f32.gmra.mxu0 %v10153
  %v10400 = vpop.f32.mrf.mxu0
  %v10401 = vadd.f32 %v9949, %v10400
  %10402 = vmatmul.f32.gmra.mxu0 %v10156
  %v10403 = vpop.f32.mrf.mxu0
  %v10404 = vadd.f32 %v9949, %v10403
  %10405 = vmatmul.f32.gmra.mxu0 %v10159
  %v10406 = vpop.f32.mrf.mxu0
  %v10407 = vadd.f32 %v9949, %v10406
  %10408 = vmatmul.f32.gmra.mxu0 %v10162
  %v10409 = vpop.f32.mrf.mxu0
  %v10410 = vadd.f32 %v9949, %v10409
  %10411 = vmatmul.f32.gmra.mxu0 %v10165
  %v10412 = vpop.f32.mrf.mxu0
  %v10413 = vadd.f32 %v9949, %v10412
  %10414 = vmatmul.f32.gmra.mxu0 %v10168
  %v10415 = vpop.f32.mrf.mxu0
  %v10416 = vadd.f32 %v9949, %v10415
  %10417 = vmatmul.f32.gmra.mxu0 %v10171
  %v10418 = vpop.f32.mrf.mxu0
  %v10419 = vadd.f32 %v9949, %v10418
  %10420 = vmatmul.f32.gmra.mxu0 %v10174
  %v10421 = vpop.f32.mrf.mxu0
  %v10422 = vadd.f32 %v9949, %v10421
  %10423 = vmatmul.f32.gmra.mxu0 %v10177
  %v10424 = vpop.f32.mrf.mxu0
  %v10425 = vadd.f32 %v9949, %v10424
  %10426 = vmatmul.f32.gmra.mxu0 %v10180
  %v10427 = vpop.f32.mrf.mxu0
  %v10428 = vadd.f32 %v9949, %v10427
  %10429 = vdwg.mxu0
  %v10430 = vadd.f32 %v10200, %v9870
  %v10431 = vadd.f32 %v10203, %v9871
  %v10432 = vadd.f32 %v10206, %v9872
  %v10433 = vadd.f32 %v10209, %v9873
  %v10434 = vadd.f32 %v10212, %v9874
  %v10435 = vadd.f32 %v10215, %v9875
  %v10436 = vadd.f32 %v10218, %v9876
  %v10437 = vadd.f32 %v10221, %v9877
  %v10438 = vadd.f32 %v10224, %v9878
  %v10439 = vadd.f32 %v10227, %v9879
  %v10440 = vadd.f32 %v10230, %v9880
  %v10441 = vadd.f32 %v10233, %v9881
  %v10442 = vadd.f32 %v10236, %v9882
  %v10443 = vadd.f32 %v10239, %v9883
  %v10444 = vadd.f32 %v10242, %v9884
  %v10445 = vadd.f32 %v10245, %v9885
  %v10446 = vadd.f32 %v10248, %v9886
  %v10447 = vadd.f32 %v10251, %v9887
  %v10448 = vadd.f32 %v10254, %v9888
  %v10449 = vadd.f32 %v10257, %v9889
  %v10450 = vadd.f32 %v10260, %v9890
  %v10451 = vadd.f32 %v10263, %v9891
  %v10452 = vadd.f32 %v10266, %v9892
  %v10453 = vadd.f32 %v10269, %v9893
  %v10454 = vadd.f32 %v10272, %v9894
  %v10455 = vadd.f32 %v10275, %v9895
  %v10456 = vadd.f32 %v10278, %v9896
  %v10457 = vadd.f32 %v10281, %v9897
  %v10458 = vadd.f32 %v10284, %v9898
  %v10459 = vadd.f32 %v10287, %v9899
  %v10460 = vadd.f32 %v10290, %v9900
  %v10461 = vadd.f32 %v10293, %v9901
  %v10462 = vadd.f32 %v10296, %v9902
  %v10463 = vadd.f32 %v10299, %v9903
  %v10464 = vadd.f32 %v10302, %v9904
  %v10465 = vadd.f32 %v10305, %v9905
  %v10466 = vadd.f32 %v10308, %v9906
  %v10467 = vadd.f32 %v10311, %v9907
  %v10468 = vadd.f32 %v10314, %v9908
  %v10469 = vadd.f32 %v10317, %v9909
  %v10470 = vadd.f32 %v10320, %v9910
  %v10471 = vadd.f32 %v10323, %v9911
  %v10472 = vadd.f32 %v10326, %v9912
  %v10473 = vadd.f32 %v10329, %v9913
  %v10474 = vadd.f32 %v10332, %v9914
  %v10475 = vadd.f32 %v10335, %v9915
  %v10476 = vadd.f32 %v10338, %v9916
  %v10477 = vadd.f32 %v10341, %v9917
  %v10478 = vadd.f32 %v10344, %v9918
  %v10479 = vadd.f32 %v10347, %v9919
  %v10480 = vadd.f32 %v10350, %v9920
  %v10481 = vadd.f32 %v10353, %v9921
  %v10482 = vadd.f32 %v10356, %v9922
  %v10483 = vadd.f32 %v10359, %v9923
  %v10484 = vadd.f32 %v10362, %v9924
  %v10485 = vadd.f32 %v10365, %v9925
  %v10486 = vadd.f32 %v10368, %v9926
  %v10487 = vadd.f32 %v10371, %v9927
  %v10488 = vadd.f32 %v10374, %v9928
  %v10489 = vadd.f32 %v10377, %v9929
  %v10490 = vadd.f32 %v10380, %v9930
  %v10491 = vadd.f32 %v10383, %v9931
  %v10492 = vadd.f32 %v10386, %v9932
  %v10493 = vadd.f32 %v10389, %v9933
  %v10494 = vadd.f32 %v10392, %v9934
  %v10495 = vadd.f32 %v10395, %v9935
  %v10496 = vadd.f32 %v10398, %v9936
  %v10497 = vadd.f32 %v10401, %v9937
  %v10498 = vadd.f32 %v10404, %v9938
  %v10499 = vadd.f32 %v10407, %v9939
  %v10500 = vadd.f32 %v10410, %v9940
  %v10501 = vadd.f32 %v10413, %v9941
  %v10502 = vadd.f32 %v10416, %v9942
  %v10503 = vadd.f32 %v10419, %v9943
  %v10504 = vadd.f32 %v10422, %v9944
  %v10505 = vadd.f32 %v10425, %v9945
  %v10506 = vadd.f32 %v10428, %v9946
  %v10507 = vmax.f32 %v10430, 0.0
  %v10508 = vmax.f32 %v10431, 0.0
  %v10509 = vmax.f32 %v10432, 0.0
  %v10510 = vmax.f32 %v10433, 0.0
  %v10511 = vmax.f32 %v10434, 0.0
  %v10512 = vmax.f32 %v10435, 0.0
  %v10513 = vmax.f32 %v10436, 0.0
  %v10514 = vmax.f32 %v10437, 0.0
  %v10515 = vmax.f32 %v10438, 0.0
  %v10516 = vmax.f32 %v10439, 0.0
  %v10517 = vmax.f32 %v10440, 0.0
  %v10518 = vmax.f32 %v10441, 0.0
  %v10519 = vmax.f32 %v10442, 0.0
  %v10520 = vmax.f32 %v10443, 0.0
  %v10521 = vmax.f32 %v10444, 0.0
  %v10522 = vmax.f32 %v10445, 0.0
  %v10523 = vmax.f32 %v10446, 0.0
  %v10524 = vmax.f32 %v10447, 0.0
  %v10525 = vmax.f32 %v10448, 0.0
  %v10526 = vmax.f32 %v10449, 0.0
  %v10527 = vmax.f32 %v10450, 0.0
  %v10528 = vmax.f32 %v10451, 0.0
  %v10529 = vmax.f32 %v10452, 0.0
  %v10530 = vmax.f32 %v10453, 0.0
  %v10531 = vmax.f32 %v10454, 0.0
  %v10532 = vmax.f32 %v10455, 0.0
  %v10533 = vmax.f32 %v10456, 0.0
  %v10534 = vmax.f32 %v10457, 0.0
  %v10535 = vmax.f32 %v10458, 0.0
  %v10536 = vmax.f32 %v10459, 0.0
  %v10537 = vmax.f32 %v10460, 0.0
  %v10538 = vmax.f32 %v10461, 0.0
  %v10539 = vmax.f32 %v10462, 0.0
  %v10540 = vmax.f32 %v10463, 0.0
  %v10541 = vmax.f32 %v10464, 0.0
  %v10542 = vmax.f32 %v10465, 0.0
  %v10543 = vmax.f32 %v10466, 0.0
  %v10544 = vmax.f32 %v10467, 0.0
  %v10545 = vmax.f32 %v10468, 0.0
  %v10546 = vmax.f32 %v10469, 0.0
  %v10547 = vmax.f32 %v10470, 0.0
  %v10548 = vmax.f32 %v10471, 0.0
  %v10549 = vmax.f32 %v10472, 0.0
  %v10550 = vmax.f32 %v10473, 0.0
  %v10551 = vmax.f32 %v10474, 0.0
  %v10552 = vmax.f32 %v10475, 0.0
  %v10553 = vmax.f32 %v10476, 0.0
  %v10554 = vmax.f32 %v10477, 0.0
  %v10555 = vmax.f32 %v10478, 0.0
  %v10556 = vmax.f32 %v10479, 0.0
  %v10557 = vmax.f32 %v10480, 0.0
  %v10558 = vmax.f32 %v10481, 0.0
  %v10559 = vmax.f32 %v10482, 0.0
  %v10560 = vmax.f32 %v10483, 0.0
  %v10561 = vmax.f32 %v10484, 0.0
  %v10562 = vmax.f32 %v10485, 0.0
  %v10563 = vmax.f32 %v10486, 0.0
  %v10564 = vmax.f32 %v10487, 0.0
  %v10565 = vmax.f32 %v10488, 0.0
  %v10566 = vmax.f32 %v10489, 0.0
  %v10567 = vmax.f32 %v10490, 0.0
  %v10568 = vmax.f32 %v10491, 0.0
  %v10569 = vmax.f32 %v10492, 0.0
  %v10570 = vmax.f32 %v10493, 0.0
  %v10571 = vmax.f32 %v10494, 0.0
  %v10572 = vmax.f32 %v10495, 0.0
  %v10573 = vmax.f32 %v10496, 0.0
  %v10574 = vmax.f32 %v10497, 0.0
  %v10575 = vmax.f32 %v10498, 0.0
  %v10576 = vmax.f32 %v10499, 0.0
  %v10577 = vmax.f32 %v10500, 0.0
  %v10578 = vmax.f32 %v10501, 0.0
  %v10579 = vmax.f32 %v10502, 0.0
  %v10580 = vmax.f32 %v10503, 0.0
  %v10581 = vmax.f32 %v10504, 0.0
  %v10582 = vmax.f32 %v10505, 0.0
  %v10583 = vmax.f32 %v10506, 0.0
  %10584 = vst.msk [vmem:[%s5] sm:$0xff] %vm97, %v10507
  %10585 = vst.msk [vmem:[%s5 + $0x8] sm:$0xff] %vm97, %v10508
  %10586 = vst.msk [vmem:[%s5 + $0x10] sm:$0xff] %vm97, %v10509
  %10587 = vst.msk [vmem:[%s5 + $0x18] sm:$0xff] %vm97, %v10510
  %10588 = vst.msk [vmem:[%s5 + $0x20] sm:$0xff] %vm97, %v10511
  %10589 = vst.msk [vmem:[%s5 + $0x28] sm:$0xff] %vm97, %v10512
  %10590 = vst.msk [vmem:[%s5 + $0x30] sm:$0xff] %vm97, %v10513
  %10591 = vst.msk [vmem:[%s5 + $0x38] sm:$0xff] %vm97, %v10514
  %10592 = vst.msk [vmem:[%s5 + $0x40] sm:$0xff] %vm97, %v10515
  %10593 = vst.msk [vmem:[%s5 + $0x48] sm:$0xff] %vm97, %v10516
  %10594 = vst.msk [vmem:[%s5 + $0x50] sm:$0xff] %vm97, %v10517
  %10595 = vst.msk [vmem:[%s5 + $0x58] sm:$0xff] %vm97, %v10518
  %10596 = vst.msk [vmem:[%s5 + $0x60] sm:$0xff] %vm97, %v10519
  %10597 = vst.msk [vmem:[%s5 + $0x68] sm:$0xff] %vm97, %v10520
  %10598 = vst.msk [vmem:[%s5 + $0x70] sm:$0xff] %vm97, %v10521
  %10599 = vst.msk [vmem:[%s5 + $0x78] sm:$0xff] %vm97, %v10522
  %10600 = vst.msk [vmem:[%s5 + $0x80] sm:$0xff] %vm97, %v10523
  %10601 = vst.msk [vmem:[%s5 + $0x88] sm:$0xff] %vm97, %v10524
  %10602 = vst.msk [vmem:[%s5 + $0x90] sm:$0xff] %vm97, %v10525
  %10603 = vst.msk [vmem:[%s5 + $0x98] sm:$0xff] %vm97, %v10526
  %10604 = vst.msk [vmem:[%s5 + $0xa0] sm:$0xff] %vm97, %v10527
  %10605 = vst.msk [vmem:[%s5 + $0xa8] sm:$0xff] %vm97, %v10528
  %10606 = vst.msk [vmem:[%s5 + $0xb0] sm:$0xff] %vm97, %v10529
  %10607 = vst.msk [vmem:[%s5 + $0xb8] sm:$0xff] %vm97, %v10530
  %10608 = vst.msk [vmem:[%s5 + $0xc0] sm:$0xff] %vm97, %v10531
  %10609 = vst.msk [vmem:[%s5 + $0xc8] sm:$0xff] %vm97, %v10532
  %10610 = vst.msk [vmem:[%s5 + $0xd0] sm:$0xff] %vm97, %v10533
  %10611 = vst.msk [vmem:[%s5 + $0xd8] sm:$0xff] %vm97, %v10534
  %10612 = vst.msk [vmem:[%s5 + $0xe0] sm:$0xff] %vm97, %v10535
  %10613 = vst.msk [vmem:[%s5 + $0xe8] sm:$0xff] %vm97, %v10536
  %10614 = vst.msk [vmem:[%s5 + $0xf0] sm:$0xff] %vm97, %v10537
  %10615 = vst.msk [vmem:[%s5 + $0xf8] sm:$0xff] %vm97, %v10538
  %10616 = vst.msk [vmem:[%s5 + $0x100] sm:$0xff] %vm97, %v10539
  %10617 = vst.msk [vmem:[%s5 + $0x108] sm:$0xff] %vm97, %v10540
  %10618 = vst.msk [vmem:[%s5 + $0x110] sm:$0xff] %vm97, %v10541
  %10619 = vst.msk [vmem:[%s5 + $0x118] sm:$0xff] %vm97, %v10542
  %10620 = vst.msk [vmem:[%s5 + $0x120] sm:$0xff] %vm97, %v10543
  %10621 = vst.msk [vmem:[%s5 + $0x128] sm:$0xff] %vm97, %v10544
  %10622 = vst.msk [vmem:[%s5 + $0x130] sm:$0xff] %vm97, %v10545
  %10623 = vst.msk [vmem:[%s5 + $0x138] sm:$0xff] %vm97, %v10546
  %10624 = vst.msk [vmem:[%s5 + $0x140] sm:$0xff] %vm97, %v10547
  %10625 = vst.msk [vmem:[%s5 + $0x148] sm:$0xff] %vm97, %v10548
  %10626 = vst.msk [vmem:[%s5 + $0x150] sm:$0xff] %vm97, %v10549
  %10627 = vst.msk [vmem:[%s5 + $0x158] sm:$0xff] %vm97, %v10550
  %10628 = vst.msk [vmem:[%s5 + $0x160] sm:$0xff] %vm97, %v10551
  %10629 = vst.msk [vmem:[%s5 + $0x168] sm:$0xff] %vm97, %v10552
  %10630 = vst.msk [vmem:[%s5 + $0x170] sm:$0xff] %vm97, %v10553
  %10631 = vst.msk [vmem:[%s5 + $0x178] sm:$0xff] %vm97, %v10554
  %10632 = vst.msk [vmem:[%s5 + $0x180] sm:$0xff] %vm97, %v10555
  %10633 = vst.msk [vmem:[%s5 + $0x188] sm:$0xff] %vm97, %v10556
  %10634 = vst.msk [vmem:[%s5 + $0x190] sm:$0xff] %vm97, %v10557
  %10635 = vst.msk [vmem:[%s5 + $0x198] sm:$0xff] %vm97, %v10558
  %10636 = vst.msk [vmem:[%s5 + $0x1a0] sm:$0xff] %vm97, %v10559
  %10637 = vst.msk [vmem:[%s5 + $0x1a8] sm:$0xff] %vm97, %v10560
  %10638 = vst.msk [vmem:[%s5 + $0x1b0] sm:$0xff] %vm97, %v10561
  %10639 = vst.msk [vmem:[%s5 + $0x1b8] sm:$0xff] %vm97, %v10562
  %10640 = vst.msk [vmem:[%s5 + $0x1c0] sm:$0xff] %vm97, %v10563
  %10641 = vst.msk [vmem:[%s5 + $0x1c8] sm:$0xff] %vm97, %v10564
  %10642 = vst.msk [vmem:[%s5 + $0x1d0] sm:$0xff] %vm97, %v10565
  %10643 = vst.msk [vmem:[%s5 + $0x1d8] sm:$0xff] %vm97, %v10566
  %10644 = vst.msk [vmem:[%s5 + $0x1e0] sm:$0xff] %vm97, %v10567
  %10645 = vst.msk [vmem:[%s5 + $0x1e8] sm:$0xff] %vm97, %v10568
  %10646 = vst.msk [vmem:[%s5 + $0x1f0] sm:$0xff] %vm97, %v10569
  %10647 = vst.msk [vmem:[%s5 + $0x1f8] sm:$0xff] %vm97, %v10570
  %10648 = vst.msk [vmem:[%s5 + $0x200] sm:$0xff] %vm97, %v10571
  %10649 = vst.msk [vmem:[%s5 + $0x208] sm:$0xff] %vm97, %v10572
  %10650 = vst.msk [vmem:[%s5 + $0x210] sm:$0xff] %vm97, %v10573
  %10651 = vst.msk [vmem:[%s5 + $0x218] sm:$0xff] %vm97, %v10574
  %10652 = vst.msk [vmem:[%s5 + $0x220] sm:$0xff] %vm97, %v10575
  %10653 = vst.msk [vmem:[%s5 + $0x228] sm:$0xff] %vm97, %v10576
  %10654 = vst.msk [vmem:[%s5 + $0x230] sm:$0xff] %vm97, %v10577
  %10655 = vst.msk [vmem:[%s5 + $0x238] sm:$0xff] %vm97, %v10578
  %10656 = vst.msk [vmem:[%s5 + $0x240] sm:$0xff] %vm97, %v10579
  %10657 = vst.msk [vmem:[%s5 + $0x248] sm:$0xff] %vm97, %v10580
  %10658 = vst.msk [vmem:[%s5 + $0x250] sm:$0xff] %vm97, %v10581
  %10659 = vst.msk [vmem:[%s5 + $0x258] sm:$0xff] %vm97, %v10582
  %10660 = vst.msk [vmem:[%s5 + $0x260] sm:$0xff] %vm97, %v10583
  %10661 = vst.msk [vmem:[%s5 + $0x268] sm:$0xff] %vm97, 0.0
  %10662 = vst.msk [vmem:[%s5 + $0x270] sm:$0xff] %vm97, 0.0
  %10663 = vst.msk [vmem:[%s5 + $0x278] sm:$0xff] %vm97, 0.0
  %10664 = vst.msk [vmem:[%s5 + $0x280] sm:$0xff] %vm97, 0.0
  %10665 = vst.msk [vmem:[%s5 + $0x288] sm:$0xff] %vm97, 0.0
  // Predicated region
  $region22: #{tpu_custom_call.1} parent=0 // pred_check
    _
  $region23: #{tpu_custom_call.1} parent=0 // pred_check_branch
    %10667 = sbr.rel (0) target = $region25
  $region24: #{tpu_custom_call.1} parent=0 // pred_region
    _
  $region25: #{tpu_custom_call.1} parent=0 // pred_fallthru
    _
  // Predicated region
  $region26: #{tpu_custom_call.1} parent=0 // pred_check
    _
  $region27: #{tpu_custom_call.1} parent=0 // pred_check_branch
    %10669 = sbr.rel (0) target = $region29
  $region28: #{tpu_custom_call.1} parent=0 // pred_region
    _
  $region29: #{tpu_custom_call.1} parent=0 // pred_fallthru
    _

</llo_original>
